<compile_context>
chip_gen: v7x
topology: tpu7x:2x2x1
jax: 0.10.0
libtpu: 0.0.40
codegen_flags: <defaults>
</compile_context>

<pallas_src>
import numpy as np

import jax
import jax.numpy as jnp
from jax import lax
from jax.experimental import pallas as pl
from jax.experimental.pallas import tpu as pltpu


# ----------------------------------------------------------------------------
# Fused kernel: conv1 -> pool -> ReLU -> conv2 -> pool -> ReLU -> fc1
# Row/lane bookkeeping (per batch tile of TB images):
#   conv1 lhs rows  = (P=pool-row-offset, g=(gr,gs)=conv2-window-row, q=pooled
#                      output row of conv2, n)            -> 48*TB rows, K=140
#   conv1 rhs cols  = (PJ=pool-col-offset, pj=pooled col, c)        -> 768
#   conv2 lhs rows  = (q, n) -> 4*TB ; lanes = (g, pj, c) -> 2304
#   conv2 rhs cols  = (QI=pool-row-off, QJ=pool-col-off, pj2, c2)   -> 1024
#   fc1             = sum over q of (TB,256)@(256,512)
# ----------------------------------------------------------------------------
def _lenet_kernel(lhs1_ref, rhs1_ref, b1_ref, rhs2_ref, b2_ref, wf_ref, bf_ref,
                  o_ref, l2_ref):
    TB = o_ref.shape[1]
    R = 24 * TB                                   # rows per pool-row-offset half

    l1 = lhs1_ref[0]                              # (48*TB, 140) bf16
    rhs1 = rhs1_ref[...]                          # (140, 768)   bf16

    # conv1 (Toeplitz along width): two dots = the two pool row offsets.
    a = jnp.dot(l1[:R], rhs1, preferred_element_type=jnp.float32)   # (24TB, 768)
    b = jnp.dot(l1[R:], rhs1, preferred_element_type=jnp.float32)
    m = jnp.maximum(a, b)                         # max over pool row offset
    hp = jnp.maximum(m[:, :384], m[:, 384:])      # max over pool col offset
    act = jnp.maximum(hp + b1_ref[...], 0.0).astype(jnp.bfloat16)   # (24TB, 384)

    # h1, already replicated per conv2-window-row g, goes straight into the
    # conv2 lhs as six aligned 384-lane slabs -> zero relayout / no scatter.
    for g in range(6):
        l2_ref[:, g * 384:(g + 1) * 384] = act[g * 4 * TB:(g + 1) * 4 * TB, :]

    # conv2: ONE matmul, K = 2304; output lanes grouped by pool offsets.
    o2 = jnp.dot(l2_ref[...], rhs2_ref[...],
                 preferred_element_type=jnp.float32)                # (4TB, 1024)
    pa = jnp.maximum(o2[:, :512], o2[:, 512:])    # max over pool row offset
    pb = jnp.maximum(pa[:, :256], pa[:, 256:])    # max over pool col offset
    act2 = jnp.maximum(pb + b2_ref[...], 0.0).astype(jnp.bfloat16)  # (4TB, 256)

    # fc1: 4 accumulating matmuls over the 4 pooled rows, all aligned slices.
    feat = jnp.dot(act2[:TB], wf_ref[0:256, :],
                   preferred_element_type=jnp.float32)              # (TB, 512)
    for q in range(1, 4):
        feat = feat + jnp.dot(act2[q * TB:(q + 1) * TB],
                              wf_ref[q * 256:(q + 1) * 256, :],
                              preferred_element_type=jnp.float32)
    o_ref[0] = feat + bf_ref[...]


# ----------------------------------------------------------------------------
# Wrapper-side data prep
# ----------------------------------------------------------------------------
def _make_conv1_lhs(xs, NT, TB):
    """xs: (NT*TB, 28, 28) f32 -> (NT, 48*TB, 140) bf16 conv1 Toeplitz lhs.

    Row (within a tile) = P*24TB + (gr*3+gs)*4TB + q*TB + n, holding image rows
    i1+kh (kh=0..4) where i1 = 4*(gs+q) + 2*gr + P; lane = kh*28 + jin.
    """
    A = jnp.stack([xs[:, k:k + 24, :] for k in range(5)], axis=2)   # (Np,24,5,28)
    B = A.reshape(-1, 6, 2, 2, 5, 28)                               # [n,u,gr,P,kh,jin]
    u_idx = np.arange(3)[:, None] + np.arange(4)[None, :]           # u = gs + q
    C = B[:, u_idx]                                                 # (Np,3,4,2,2,5,28)
    D = C.reshape(NT, TB, 3, 4, 2, 2, 5, 28)
    E = jnp.transpose(D, (0, 5, 4, 2, 3, 1, 6, 7))                  # (NT,2,2,3,4,TB,5,28)
    return E.reshape(NT, 48 * TB, 140).astype(jnp.bfloat16)


def _prep_weights(w1, b1, w2, b2, wf, bf):
    # conv1 rhs: rows (kh, jin), cols (PJ, pj, c32): Toeplitz along width.
    w1t = jnp.pad(jnp.transpose(w1[:, 0], (1, 2, 0)), ((0, 0), (0, 1), (0, 12)))  # (5,6,32)
    kwi = (np.arange(28)[:, None, None]
           - (2 * np.arange(12)[None, None, :] + np.arange(2)[None, :, None]))
    kwi = np.where((kwi >= 0) & (kwi <= 4), kwi, 5)                 # 5 -> zero tap
    rhs1 = w1t[:, kwi, :].reshape(140, 768).astype(jnp.bfloat16)
    b1v = jnp.tile(jnp.pad(b1, (0, 12)), 12).reshape(1, 384).astype(jnp.float32)

    # conv2 rhs: rows (gr, gs, pj, c32), cols (QI, QJ, pj2, c2_64).
    w2t = jnp.pad(jnp.transpose(w2, (2, 3, 1, 0)),
                  ((0, 1), (0, 1), (0, 12), (0, 14)))               # (6,6,32,64)
    khi = (2 * np.arange(3)[None, :, None] + np.arange(2)[:, None, None]
           - np.arange(2)[None, None, :])                           # kh = 2gs+gr-QI
    khi = np.where((khi >= 0) & (khi <= 4), khi, 5)
    kwi2 = (np.arange(12)[:, None, None]
            - (2 * np.arange(4)[None, None, :] + np.arange(2)[None, :, None]))
    kwi2 = np.where((kwi2 >= 0) & (kwi2 <= 4), kwi2, 5)
    G = w2t[khi[:, :, :, None, None, None], kwi2[None, None, None, :, :, :]]
    rhs2 = jnp.transpose(G, (0, 1, 3, 6, 2, 4, 5, 7)).reshape(2304, 1024)
    rhs2 = rhs2.astype(jnp.bfloat16)
    b2v = jnp.tile(jnp.pad(b2, (0, 14)), 4).reshape(1, 256).astype(jnp.float32)

    # fc1 weight: rows (q=pooled row, pj2, c2_64) matching the kernel's flatten
    # order; outputs padded 500 -> 512 for a lane-dense store.
    wf_r = jnp.pad(jnp.transpose(wf.reshape(500, 50, 4, 4), (2, 3, 1, 0)),
                   ((0, 0), (0, 0), (0, 14), (0, 12))).reshape(1024, 512)
    wf_r = wf_r.astype(jnp.bfloat16)
    bf_v = jnp.pad(bf, (0, 12)).reshape(1, 512).astype(jnp.float32)
    return rhs1, b1v, rhs2, b2v, wf_r, bf_v


def lenet_encoder_forward(x, params):
    """x: (N, 1, 28, 28) float32 -> feat: (N, 500) float32."""
    w1, b1, w2, b2, wf, bf = params
    N = x.shape[0]

    # Batch tile: biggest VMEM-friendly tile (~0.45 MiB/image incl. transients,
    # TB=64 -> ~30 MiB total, fits the v7x 64 MiB / 48 MiB budget), always a
    # multiple of 8 when possible, and NT >= 2 whenever N >= 2 (megacore).
    if N >= 128:
        TB = 64
    elif N >= 16:
        TB = 8 * ((N + 15) // 16)
    else:
        TB = max(1, (N + 1) // 2)
    NT = -(-N // TB)
    N_pad = NT * TB

    xs = x[:, 0]
    if N_pad != N:
        xs = jnp.pad(xs, ((0, N_pad - N), (0, 0), (0, 0)))
    lhs1 = _make_conv1_lhs(xs, NT, TB)
    rhs1, b1v, rhs2, b2v, wf_r, bf_v = _prep_weights(w1, b1, w2, b2, wf, bf)

    out = pl.pallas_call(
        _lenet_kernel,
        out_shape=jax.ShapeDtypeStruct((NT, TB, 512), jnp.float32),
        grid_spec=pltpu.PrefetchScalarGridSpec(
            num_scalar_prefetch=0,
            grid=(NT,),
            in_specs=[
                pl.BlockSpec((1, 48 * TB, 140), lambda t: (t, 0, 0)),
                pl.BlockSpec((140, 768), lambda t: (0, 0)),
                pl.BlockSpec((1, 384), lambda t: (0, 0)),
                pl.BlockSpec((2304, 1024), lambda t: (0, 0)),
                pl.BlockSpec((1, 256), lambda t: (0, 0)),
                pl.BlockSpec((1024, 512), lambda t: (0, 0)),
                pl.BlockSpec((1, 512), lambda t: (0, 0)),
            ],
            out_specs=pl.BlockSpec((1, TB, 512), lambda t: (t, 0, 0)),
            scratch_shapes=[pltpu.VMEM((4 * TB, 2304), jnp.bfloat16)],
        ),
        compiler_params=pltpu.CompilerParams(
            dimension_semantics=("parallel",),
            vmem_limit_bytes=48 * 1024 * 1024),
    )(lhs1, rhs1, b1v, rhs2, b2v, wf_r, bf_v)

    return out.reshape(N_pad, 512)[:N, :500]


# ----------------------------------------------------------------------------
# Pure-JAX reference (sanity check)
# ----------------------------------------------------------------------------
def ref_forward(x, params):
    w1, b1, w2, b2, wf, bf = params
    dn = ("NCHW", "OIHW", "NCHW")
    y = lax.conv_general_dilated(x, w1, (1, 1), "VALID", dimension_numbers=dn)
    y = y + b1[None, :, None, None]
    y = lax.reduce_window(y, -jnp.inf, lax.max, (1, 1, 2, 2), (1, 1, 2, 2), "VALID")
    y = jnp.maximum(y, 0.0)
    y = lax.conv_general_dilated(y, w2, (1, 1), "VALID", dimension_numbers=dn)
    y = y + b2[None, :, None, None]
    y = lax.reduce_window(y, -jnp.inf, lax.max, (1, 1, 2, 2), (1, 1, 2, 2), "VALID")
    y = jnp.maximum(y, 0.0)
    flat = y.reshape(x.shape[0], 800)
    return flat @ wf.T + bf


# ----------------------------------------------------------------------------
if __name__ == "__main__":
    key = jax.random.PRNGKey(0)
    k1, k2, k3, k4, k5, k6, k7 = jax.random.split(key, 7)

    # Parameter shapes follow the PyTorch module __init__.
    w1 = 0.10 * jax.random.normal(k1, (20, 1, 5, 5), jnp.float32)
    b1 = 0.10 * jax.random.normal(k2, (20,), jnp.float32)
    w2 = 0.05 * jax.random.normal(k3, (50, 20, 5, 5), jnp.float32)
    b2 = 0.05 * jax.random.normal(k4, (50,), jnp.float32)
    wf = 0.02 * jax.random.normal(k5, (500, 800), jnp.float32)
    bf = 0.02 * jax.random.normal(k6, (500,), jnp.float32)
    params = (w1, b1, w2, b2, wf, bf)

    fwd = jax.jit(lenet_encoder_forward)

    # N=2 exercises the tiny-batch path (TB=1, NT=2); N=37 exercises a
    # multi-image tile (TB=24, NT=2) plus the batch-padding path.
    for N in (2, 37):
        x = jax.random.normal(jax.random.fold_in(k7, N), (N, 1, 28, 28),
                              jnp.float32)
        feat = jax.block_until_ready(fwd(x, params))
        assert feat.shape == (N, 500), feat.shape
        ref = ref_forward(x, params)
        if not bool(jnp.allclose(feat, ref, rtol=5e-2, atol=5e-2)):
            err = float(jnp.max(jnp.abs(feat - ref)))
            raise AssertionError(
                f"N={N}: Pallas output does not match reference (max |err| = {err})")

    print("KERNEL_OK")
</pallas_src>

<mosaic_0001>
module attributes {stable_mosaic.version = 11 : i64} {
  func.func @_lenet_kernel(%arg0: i32, %arg1: memref<1x48x140xbf16, #tpu.memory_space<vmem>>, %arg2: memref<140x768xbf16, #tpu.memory_space<vmem>>, %arg3: memref<1x384xf32, #tpu.memory_space<vmem>>, %arg4: memref<2304x1024xbf16, #tpu.memory_space<vmem>>, %arg5: memref<1x256xf32, #tpu.memory_space<vmem>>, %arg6: memref<1024x512xbf16, #tpu.memory_space<vmem>>, %arg7: memref<1x512xf32, #tpu.memory_space<vmem>>, %arg8: memref<1x1x512xf32, #tpu.memory_space<vmem>>, %arg9: memref<4x2304xbf16, #tpu.memory_space<vmem>>) attributes {dimension_semantics = [#tpu.dimension_semantics<parallel>], iteration_bounds = array<i64: 2>, scalar_prefetch = 0 : i64, scratch_operands = 1 : i64, tpu.core_type = #tpu.core_type<tc>, window_params = [{transform_indices = @transform_0, window_bounds = array<i64: 1, 48, 140>}, {pipeline_mode = #tpu.pipeline_mode<synchronous>, transform_indices = @transform_1, window_bounds = array<i64: 140, 768>}, {pipeline_mode = #tpu.pipeline_mode<synchronous>, transform_indices = @transform_2, window_bounds = array<i64: 1, 384>}, {pipeline_mode = #tpu.pipeline_mode<synchronous>, transform_indices = @transform_3, window_bounds = array<i64: 2304, 1024>}, {pipeline_mode = #tpu.pipeline_mode<synchronous>, transform_indices = @transform_4, window_bounds = array<i64: 1, 256>}, {pipeline_mode = #tpu.pipeline_mode<synchronous>, transform_indices = @transform_5, window_bounds = array<i64: 1024, 512>}, {pipeline_mode = #tpu.pipeline_mode<synchronous>, transform_indices = @transform_6, window_bounds = array<i64: 1, 512>}, {transform_indices = @transform_7, window_bounds = array<i64: 1, 1, 512>}]} {
    %c0 = arith.constant 0 : index
    %c0_0 = arith.constant 0 : index
    %c0_1 = arith.constant 0 : index
    %0 = vector.load %arg1[%c0, %c0_0, %c0_1] : memref<1x48x140xbf16, #tpu.memory_space<vmem>>, vector<1x48x140xbf16>
    %1 = vector.shape_cast %0 : vector<1x48x140xbf16> to vector<48x140xbf16>
    %c0_2 = arith.constant 0 : index
    %c0_3 = arith.constant 0 : index
    %2 = vector.load %arg2[%c0_2, %c0_3] : memref<140x768xbf16, #tpu.memory_space<vmem>>, vector<140x768xbf16>
    %3 = vector.extract_strided_slice %1 {offsets = [0, 0], sizes = [24, 140], strides = [1, 1]} : vector<48x140xbf16> to vector<24x140xbf16>
    %cst = arith.constant dense<0.000000e+00> : vector<24x768xf32>
    %4 = tpu.matmul %3, %2, %cst {dimension_numbers = #tpu.dot_dimension_numbers<[1], [0], [0], [1], [0, 0, 1, 1], [], []>} : vector<24x140xbf16>, vector<140x768xbf16>, vector<24x768xf32> -> vector<24x768xf32>
    %5 = vector.extract_strided_slice %1 {offsets = [24, 0], sizes = [24, 140], strides = [1, 1]} : vector<48x140xbf16> to vector<24x140xbf16>
    %cst_4 = arith.constant dense<0.000000e+00> : vector<24x768xf32>
    %6 = tpu.matmul %5, %2, %cst_4 {dimension_numbers = #tpu.dot_dimension_numbers<[1], [0], [0], [1], [0, 0, 1, 1], [], []>} : vector<24x140xbf16>, vector<140x768xbf16>, vector<24x768xf32> -> vector<24x768xf32>
    %7 = arith.maximumf %4, %6 : vector<24x768xf32>
    %8 = vector.extract_strided_slice %7 {offsets = [0, 0], sizes = [24, 384], strides = [1, 1]} : vector<24x768xf32> to vector<24x384xf32>
    %9 = vector.extract_strided_slice %7 {offsets = [0, 384], sizes = [24, 384], strides = [1, 1]} : vector<24x768xf32> to vector<24x384xf32>
    %10 = arith.maximumf %8, %9 : vector<24x384xf32>
    %c0_5 = arith.constant 0 : index
    %c0_6 = arith.constant 0 : index
    %11 = vector.load %arg3[%c0_5, %c0_6] : memref<1x384xf32, #tpu.memory_space<vmem>>, vector<1x384xf32>
    %12 = vector.broadcast %11 : vector<1x384xf32> to vector<24x384xf32>
    %13 = arith.addf %10, %12 : vector<24x384xf32>
    %cst_7 = arith.constant 0.000000e+00 : f32
    %14 = vector.broadcast %cst_7 : f32 to vector<24x384xf32>
    %15 = arith.maximumf %13, %14 : vector<24x384xf32>
    %16 = arith.truncf %15 : vector<24x384xf32> to vector<24x384xbf16>
    %17 = vector.extract_strided_slice %16 {offsets = [0, 0], sizes = [4, 384], strides = [1, 1]} : vector<24x384xbf16> to vector<4x384xbf16>
    %c0_8 = arith.constant 0 : index
    %c0_9 = arith.constant 0 : index
    %18 = vector.load %arg9[%c0_8, %c0_9] : memref<4x2304xbf16, #tpu.memory_space<vmem>>, vector<4x384xbf16>
    tpu.vector_store %arg9[%c0_8, %c0_9], %17 {strides = array<i32>} : memref<4x2304xbf16, #tpu.memory_space<vmem>>, vector<4x384xbf16>,
    %19 = vector.extract_strided_slice %16 {offsets = [4, 0], sizes = [4, 384], strides = [1, 1]} : vector<24x384xbf16> to vector<4x384xbf16>
    %c0_10 = arith.constant 0 : index
    %c384 = arith.constant 384 : index
    %20 = vector.load %arg9[%c0_10, %c384] : memref<4x2304xbf16, #tpu.memory_space<vmem>>, vector<4x384xbf16>
    tpu.vector_store %arg9[%c0_10, %c384], %19 {strides = array<i32>} : memref<4x2304xbf16, #tpu.memory_space<vmem>>, vector<4x384xbf16>,
    %21 = vector.extract_strided_slice %16 {offsets = [8, 0], sizes = [4, 384], strides = [1, 1]} : vector<24x384xbf16> to vector<4x384xbf16>
    %c0_11 = arith.constant 0 : index
    %c768 = arith.constant 768 : index
    %22 = vector.load %arg9[%c0_11, %c768] : memref<4x2304xbf16, #tpu.memory_space<vmem>>, vector<4x384xbf16>
    tpu.vector_store %arg9[%c0_11, %c768], %21 {strides = array<i32>} : memref<4x2304xbf16, #tpu.memory_space<vmem>>, vector<4x384xbf16>,
    %23 = vector.extract_strided_slice %16 {offsets = [12, 0], sizes = [4, 384], strides = [1, 1]} : vector<24x384xbf16> to vector<4x384xbf16>
    %c0_12 = arith.constant 0 : index
    %c1152 = arith.constant 1152 : index
    %24 = vector.load %arg9[%c0_12, %c1152] : memref<4x2304xbf16, #tpu.memory_space<vmem>>, vector<4x384xbf16>
    tpu.vector_store %arg9[%c0_12, %c1152], %23 {strides = array<i32>} : memref<4x2304xbf16, #tpu.memory_space<vmem>>, vector<4x384xbf16>,
    %25 = vector.extract_strided_slice %16 {offsets = [16, 0], sizes = [4, 384], strides = [1, 1]} : vector<24x384xbf16> to vector<4x384xbf16>
    %c0_13 = arith.constant 0 : index
    %c1536 = arith.constant 1536 : index
    %26 = vector.load %arg9[%c0_13, %c1536] : memref<4x2304xbf16, #tpu.memory_space<vmem>>, vector<4x384xbf16>
    tpu.vector_store %arg9[%c0_13, %c1536], %25 {strides = array<i32>} : memref<4x2304xbf16, #tpu.memory_space<vmem>>, vector<4x384xbf16>,
    %27 = vector.extract_strided_slice %16 {offsets = [20, 0], sizes = [4, 384], strides = [1, 1]} : vector<24x384xbf16> to vector<4x384xbf16>
    %c0_14 = arith.constant 0 : index
    %c1920 = arith.constant 1920 : index
    %28 = vector.load %arg9[%c0_14, %c1920] : memref<4x2304xbf16, #tpu.memory_space<vmem>>, vector<4x384xbf16>
    tpu.vector_store %arg9[%c0_14, %c1920], %27 {strides = array<i32>} : memref<4x2304xbf16, #tpu.memory_space<vmem>>, vector<4x384xbf16>,
    %c0_15 = arith.constant 0 : index
    %c0_16 = arith.constant 0 : index
    %29 = vector.load %arg9[%c0_15, %c0_16] : memref<4x2304xbf16, #tpu.memory_space<vmem>>, vector<4x2304xbf16>
    %c0_17 = arith.constant 0 : index
    %c0_18 = arith.constant 0 : index
    %30 = vector.load %arg4[%c0_17, %c0_18] : memref<2304x1024xbf16, #tpu.memory_space<vmem>>, vector<2304x1024xbf16>
    %cst_19 = arith.constant dense<0.000000e+00> : vector<4x1024xf32>
    %31 = tpu.matmul %29, %30, %cst_19 {dimension_numbers = #tpu.dot_dimension_numbers<[1], [0], [0], [1], [0, 0, 1, 1], [], []>} : vector<4x2304xbf16>, vector<2304x1024xbf16>, vector<4x1024xf32> -> vector<4x1024xf32>
    %32 = vector.extract_strided_slice %31 {offsets = [0, 0], sizes = [4, 512], strides = [1, 1]} : vector<4x1024xf32> to vector<4x512xf32>
    %33 = vector.extract_strided_slice %31 {offsets = [0, 512], sizes = [4, 512], strides = [1, 1]} : vector<4x1024xf32> to vector<4x512xf32>
    %34 = arith.maximumf %32, %33 : vector<4x512xf32>
    %35 = vector.extract_strided_slice %34 {offsets = [0, 0], sizes = [4, 256], strides = [1, 1]} : vector<4x512xf32> to vector<4x256xf32>
    %36 = vector.extract_strided_slice %34 {offsets = [0, 256], sizes = [4, 256], strides = [1, 1]} : vector<4x512xf32> to vector<4x256xf32>
    %37 = arith.maximumf %35, %36 : vector<4x256xf32>
    %c0_20 = arith.constant 0 : index
    %c0_21 = arith.constant 0 : index
    %38 = vector.load %arg5[%c0_20, %c0_21] : memref<1x256xf32, #tpu.memory_space<vmem>>, vector<1x256xf32>
    %39 = vector.broadcast %38 : vector<1x256xf32> to vector<4x256xf32>
    %40 = arith.addf %37, %39 : vector<4x256xf32>
    %cst_22 = arith.constant 0.000000e+00 : f32
    %41 = vector.broadcast %cst_22 : f32 to vector<4x256xf32>
    %42 = arith.maximumf %40, %41 : vector<4x256xf32>
    %43 = arith.truncf %42 : vector<4x256xf32> to vector<4x256xbf16>
    %44 = vector.extract_strided_slice %43 {offsets = [0, 0], sizes = [1, 256], strides = [1, 1]} : vector<4x256xbf16> to vector<1x256xbf16>
    %c0_23 = arith.constant 0 : index
    %c0_24 = arith.constant 0 : index
    %45 = vector.load %arg6[%c0_23, %c0_24] : memref<1024x512xbf16, #tpu.memory_space<vmem>>, vector<256x512xbf16>
    %cst_25 = arith.constant dense<0.000000e+00> : vector<1x512xf32>
    %46 = tpu.matmul %44, %45, %cst_25 {dimension_numbers = #tpu.dot_dimension_numbers<[1], [0], [0], [1], [0, 0, 1, 1], [], []>} : vector<1x256xbf16>, vector<256x512xbf16>, vector<1x512xf32> -> vector<1x512xf32>
    %47 = vector.extract_strided_slice %43 {offsets = [1, 0], sizes = [1, 256], strides = [1, 1]} : vector<4x256xbf16> to vector<1x256xbf16>
    %c256 = arith.constant 256 : index
    %c0_26 = arith.constant 0 : index
    %48 = vector.load %arg6[%c256, %c0_26] : memref<1024x512xbf16, #tpu.memory_space<vmem>>, vector<256x512xbf16>
    %cst_27 = arith.constant dense<0.000000e+00> : vector<1x512xf32>
    %49 = tpu.matmul %47, %48, %cst_27 {dimension_numbers = #tpu.dot_dimension_numbers<[1], [0], [0], [1], [0, 0, 1, 1], [], []>} : vector<1x256xbf16>, vector<256x512xbf16>, vector<1x512xf32> -> vector<1x512xf32>
    %50 = arith.addf %46, %49 : vector<1x512xf32>
    %51 = vector.extract_strided_slice %43 {offsets = [2, 0], sizes = [1, 256], strides = [1, 1]} : vector<4x256xbf16> to vector<1x256xbf16>
    %c512 = arith.constant 512 : index
    %c0_28 = arith.constant 0 : index
    %52 = vector.load %arg6[%c512, %c0_28] : memref<1024x512xbf16, #tpu.memory_space<vmem>>, vector<256x512xbf16>
    %cst_29 = arith.constant dense<0.000000e+00> : vector<1x512xf32>
    %53 = tpu.matmul %51, %52, %cst_29 {dimension_numbers = #tpu.dot_dimension_numbers<[1], [0], [0], [1], [0, 0, 1, 1], [], []>} : vector<1x256xbf16>, vector<256x512xbf16>, vector<1x512xf32> -> vector<1x512xf32>
    %54 = arith.addf %50, %53 : vector<1x512xf32>
    %55 = vector.extract_strided_slice %43 {offsets = [3, 0], sizes = [1, 256], strides = [1, 1]} : vector<4x256xbf16> to vector<1x256xbf16>
    %c768_30 = arith.constant 768 : index
    %c0_31 = arith.constant 0 : index
    %56 = vector.load %arg6[%c768_30, %c0_31] : memref<1024x512xbf16, #tpu.memory_space<vmem>>, vector<256x512xbf16>
    %cst_32 = arith.constant dense<0.000000e+00> : vector<1x512xf32>
    %57 = tpu.matmul %55, %56, %cst_32 {dimension_numbers = #tpu.dot_dimension_numbers<[1], [0], [0], [1], [0, 0, 1, 1], [], []>} : vector<1x256xbf16>, vector<256x512xbf16>, vector<1x512xf32> -> vector<1x512xf32>
    %58 = arith.addf %54, %57 : vector<1x512xf32>
    %c0_33 = arith.constant 0 : index
    %c0_34 = arith.constant 0 : index
    %59 = vector.load %arg7[%c0_33, %c0_34] : memref<1x512xf32, #tpu.memory_space<vmem>>, vector<1x512xf32>
    %60 = arith.addf %58, %59 : vector<1x512xf32>
    %c0_35 = arith.constant 0 : index
    %c0_36 = arith.constant 0 : index
    %c0_37 = arith.constant 0 : index
    %61 = vector.load %arg8[%c0_35, %c0_36, %c0_37] : memref<1x1x512xf32, #tpu.memory_space<vmem>>, vector<1x1x512xf32>
    %62 = vector.shape_cast %61 : vector<1x1x512xf32> to vector<1x512xf32>
    %63 = vector.shape_cast %60 : vector<1x512xf32> to vector<1x1x512xf32>
    tpu.vector_store %arg8[%c0_35, %c0_36, %c0_37], %63 {strides = array<i32>} : memref<1x1x512xf32, #tpu.memory_space<vmem>>, vector<1x1x512xf32>,
    return
  }
  func.func @transform_0(%arg0: i32) -> (i32, i32, i32) {
    %c0_i32 = arith.constant 0 : i32
    %c0_i32_0 = arith.constant 0 : i32
    %c0_i32_1 = arith.constant 0 : i32
    return %arg0, %c0_i32, %c0_i32_0 : i32, i32, i32
  }
  func.func @transform_1(%arg0: i32) -> (i32, i32) {
    %c0_i32 = arith.constant 0 : i32
    %c0_i32_0 = arith.constant 0 : i32
    %c0_i32_1 = arith.constant 0 : i32
    return %c0_i32, %c0_i32_0 : i32, i32
  }
  func.func @transform_2(%arg0: i32) -> (i32, i32) {
    %c0_i32 = arith.constant 0 : i32
    %c0_i32_0 = arith.constant 0 : i32
    %c0_i32_1 = arith.constant 0 : i32
    return %c0_i32, %c0_i32_0 : i32, i32
  }
  func.func @transform_3(%arg0: i32) -> (i32, i32) {
    %c0_i32 = arith.constant 0 : i32
    %c0_i32_0 = arith.constant 0 : i32
    %c0_i32_1 = arith.constant 0 : i32
    return %c0_i32, %c0_i32_0 : i32, i32
  }
  func.func @transform_4(%arg0: i32) -> (i32, i32) {
    %c0_i32 = arith.constant 0 : i32
    %c0_i32_0 = arith.constant 0 : i32
    %c0_i32_1 = arith.constant 0 : i32
    return %c0_i32, %c0_i32_0 : i32, i32
  }
  func.func @transform_5(%arg0: i32) -> (i32, i32) {
    %c0_i32 = arith.constant 0 : i32
    %c0_i32_0 = arith.constant 0 : i32
    %c0_i32_1 = arith.constant 0 : i32
    return %c0_i32, %c0_i32_0 : i32, i32
  }
  func.func @transform_6(%arg0: i32) -> (i32, i32) {
    %c0_i32 = arith.constant 0 : i32
    %c0_i32_0 = arith.constant 0 : i32
    %c0_i32_1 = arith.constant 0 : i32
    return %c0_i32, %c0_i32_0 : i32, i32
  }
  func.func @transform_7(%arg0: i32) -> (i32, i32, i32) {
    %c0_i32 = arith.constant 0 : i32
    %c0_i32_0 = arith.constant 0 : i32
    %c0_i32_1 = arith.constant 0 : i32
    return %arg0, %c0_i32, %c0_i32_0 : i32, i32, i32
  }
}

</mosaic_0001>

<llo_original>
// kernel: tile.13
$region0: #{tile.13}
  #allocation0 [shape = 's32[1]{0}', space=sflag, size = 0x4, scoped, tag = 'scoped memory for tile.13']
  %s0 = inlined_call_operand.vmem [shape: f32[32], index: 0, kind: input, shape index: {}]
  %s1 = inlined_call_operand.vmem [shape: f32[12,32], index: 1, kind: output, shape index: {}]
  // Predicated region
  $region2: #{tile.13} parent=0 // pred_check
    _
  $region3: #{tile.13} parent=0 // pred_check_branch
    %3 = sbr.rel (0) target = $region5
  $region4: #{tile.13} parent=0 // pred_region
    _
  $region5: #{tile.13} parent=0 // pred_fallthru
    _
  %v4 = vld [vmem:[%s0] ss:$0 sm:$0xff]
  %5 = vst [vmem:[%s1] sm:$0xff] %v4
  %s6 = scalar_lea.vmem %s1, 8
  %7 = vst [vmem:[%s6] sm:$0xff] %v4

// kernel: tile.14
$region0: #{tile.14}
  %s0 = inlined_call_operand.vmem [shape: f32[12,32], index: 0, kind: input, shape index: {}]
  %s1 = inlined_call_operand.vmem [shape: f32[1,384], index: 1, kind: output, shape index: {}]
  $region1: #{tile.14} parent=0
    #allocation0 [shape = 'u8[12288]{0}', space=vmem, size = 0x3000, scoped, tag = 'scoped mem for output reshape']
    %v2 = vld [vmem:[%s0] ss:$4 sm:$0x7]
    %vm3 = vcmask 261120
    %4 = vst.msk [vmem:[#allocation0] ss:$8 sm:$0x7] %vm3, %v2
    %s5 = scalar_lea.vmem %s0, 3
    %v6 = vld [vmem:[%s5] ss:$4 sm:$0x7]
    %7 = vrot.lane.b32.xlu0 %v6, 96
    %v8 = vpop.permute.xlu0 %7
    %vm9 = vcmask 1048320
    %10 = vst.msk [vmem:[#allocation0] ss:$8 sm:$0x7] %vm9, %v8
    %s11 = scalar_lea.vmem %s0, 2
    %v12 = vld [vmem:[%s11] ss:$4 sm:$0x7]
    %13 = vrot.lane.b32.xlu0 %v12, 64
    %v14 = vpop.permute.xlu0 %13
    %vm15 = vcmask 785920
    %16 = vst.msk [vmem:[#allocation0] ss:$8 sm:$0x7] %vm15, %v14
    %s17 = scalar_lea.vmem %s0, 1
    %v18 = vld [vmem:[%s17] ss:$4 sm:$0x7]
    %19 = vrot.lane.b32.xlu0 %v18, 32
    %v20 = vpop.permute.xlu0 %19
    %vm21 = vcmask 523520
    %22 = vst.msk [vmem:[#allocation0] ss:$8 sm:$0x7] %vm21, %v20
    %s24 = sshllo.u32 0, 1
    %v26 = vld [vmem:[#allocation0] sm:%s24]
    %s27 = sshllo.u32 0, 1
    %28 = vst [vmem:[%s1] sm:%s27] %v26
    %s29 = scalar_lea.vmem [#allocation0], 8
    %v30 = vld [vmem:[%s29] sm:%s24]
    %s31 = sshllo.u32 0, 1
    %s32 = scalar_lea.vmem %s1, 1
    %33 = vst [vmem:[%s32] sm:%s31] %v30
    %s34 = scalar_lea.vmem [#allocation0], 16
    %v35 = vld [vmem:[%s34] sm:%s24]
    %s36 = sshllo.u32 0, 1
    %s37 = smul.addr 1, 2
    %s38 = scalar_lea.vmem %s1, %s37
    %39 = vst [vmem:[%s38] sm:%s36] %v35

// kernel: tile.18
$region0: #{tile.18}
  #allocation0 [shape = 's32[1]{0}', space=sflag, size = 0x4, scoped, tag = 'scoped memory for tile.18']
  %s0 = inlined_call_operand.vmem [shape: f32[64], index: 0, kind: input, shape index: {}]
  %s1 = inlined_call_operand.vmem [shape: f32[4,64], index: 1, kind: output, shape index: {}]
  // Predicated region
  $region2: #{tile.18} parent=0 // pred_check
    _
  $region3: #{tile.18} parent=0 // pred_check_branch
    %3 = sbr.rel (0) target = $region5
  $region4: #{tile.18} parent=0 // pred_region
    _
  $region5: #{tile.18} parent=0 // pred_fallthru
    _
  %v4 = vld [vmem:[%s0] ss:$0 sm:$0xff]
  %5 = vst [vmem:[%s1] sm:$0xf] %v4

// kernel: tile.19
$region0: #{tile.19}
  %s0 = inlined_call_operand.vmem [shape: f32[4,64], index: 0, kind: input, shape index: {}]
  %s1 = inlined_call_operand.vmem [shape: f32[1,256], index: 1, kind: output, shape index: {}]
  $region1: #{tile.19} parent=0
    #allocation0 [shape = 'u8[8192]{0}', space=vmem, size = 0x2000, scoped, tag = 'scoped mem for output reshape']
    #allocation1 [shape = 'u8[4096]{0}', space=vmem, size = 0x1000, scoped, tag = 'scoped mem for input reshape']
    %s3 = sshllo.u32 0, 4
    %v4 = vld [vmem:[%s0] sm:%s3]
    %5 = vst [vmem:[#allocation1] sm:%s3] %v4
    %s6 = smov 3
    %v7 = vld [vmem:[#allocation1] ss:$2 sm:%s6]
    %vm8 = vcmask 523264
    %9 = vst.msk [vmem:[#allocation0] ss:$8 sm:$0x3] %vm8, %v7
    %s10 = scalar_lea.vmem [#allocation1], 1
    %s11 = smov 3
    %v12 = vld [vmem:[%s10] ss:$2 sm:%s11]
    %13 = vrot.lane.b32.xlu0 %v12, 64
    %v14 = vpop.permute.xlu0 %13
    %vm15 = vcmask 1048064
    %16 = vst.msk [vmem:[#allocation0] ss:$8 sm:$0x3] %vm15, %v14
    %s18 = sshllo.u32 0, 1
    %v20 = vld [vmem:[#allocation0] sm:%s18]
    %s21 = sshllo.u32 0, 1
    %22 = vst [vmem:[%s1] sm:%s21] %v20
    %s23 = scalar_lea.vmem [#allocation0], 8
    %v24 = vld [vmem:[%s23] sm:%s18]
    %s25 = sshllo.u32 0, 1
    %s26 = scalar_lea.vmem %s1, 1
    %27 = vst [vmem:[%s26] sm:%s25] %v24

// kernel: lenet_encoder_forward.1
$region0: #{lenet_encoder_forward.1}
  #allocation0 [shape = 'u32[]', space=smem, size = 0x4, offset = 0x4, fixed_abs, tag = 'smem constant byte address 0x4 - core index']
  #allocation1 [shape = 'u32[144,128]{1,0:T(1,128)}', space=vmem, size = 0x12000, scoped, tag = 'internal scratch']
  #allocation2 [shape = 'bf16[4,2304]{1,0:T(4,128)(2,1)}', space=vmem, size = 0x4800, scoped, tag = 'scratch operand']
  %s0 = inlined_call_operand.vmem [shape: bf16[2,48,140], index: 0, kind: input, shape index: {}]
  %s1 = inlined_call_operand.vmem [shape: bf16[140,768], index: 1, kind: input, shape index: {}]
  %s2 = inlined_call_operand.vmem [shape: f32[1,384], index: 2, kind: input, shape index: {}]
  %s3 = inlined_call_operand.vmem [shape: bf16[2304,1024], index: 3, kind: input, shape index: {}]
  %s4 = inlined_call_operand.vmem [shape: f32[1,256], index: 4, kind: input, shape index: {}]
  %s5 = inlined_call_operand.vmem [shape: bf16[1024,512], index: 5, kind: input, shape index: {}]
  %s6 = inlined_call_operand.vmem [shape: f32[1,512], index: 6, kind: input, shape index: {}]
  %s7 = inlined_call_operand.vmem [shape: f32[2,1,512], index: 7, kind: output, shape index: {}]
  %s8 = sld [smem:[#allocation0]]
  $region61: #{lenet_encoder_forward.1} parent=0
    _
  %s10 = ssub.s32 1, %s8
  %s11 = scalar_select 0, %s10, %s8
  loop: start=0, step=1, limit=4
  $region2: #{lenet_encoder_forward.1} parent=0 // loop_pre_header
    _
  $region3: #{lenet_encoder_forward.1} parent=0 // loop_header
    %s13 = sphi 0, %s17
    %p14 = scmp.ge.s32.totalorder %s13, 4
    %s23 = sphi 0, %s25
    %s26 = sphi 0, %s23
    %s27 = sphi 0, %s26
    %s43 = sphi 0, %s27
    %s47 = sphi 0, %s47
    %s49 = sphi 0, %s47
    %s50 = sphi 0, %s49
    %s64 = sphi 0, %s50
    %s68 = sphi 0, %s68
    %s70 = sphi 0, %s68
    %s71 = sphi 0, %s70
    %s85 = sphi 0, %s71
    %s89 = sphi 0, %s89
    %s91 = sphi 0, %s89
    %s92 = sphi 0, %s91
    %s106 = sphi 0, %s92
    %s110 = sphi 0, %s110
    %s112 = sphi 0, %s110
    %s113 = sphi 0, %s112
    %s127 = sphi 0, %s113
    %s131 = sphi 0, %s131
    %s133 = sphi 0, %s131
    %s134 = sphi 0, %s133
    %s148 = sphi 0, %s134
    %s152 = sphi 0, %s152
    %s154 = sphi 0, %s152
    %s155 = sphi 0, %s154
    %s169 = sphi 0, %s155
    %s175 = sphi 0, %s177
    %s178 = sphi 0, %s175
    %s179 = sphi 0, %s178
    %s195 = sphi 0, %s179
  $region4: #{lenet_encoder_forward.1} parent=0 // loop_header_branch
    %16 = sbr.rel (%p14) target = $region8
  $region5: #{lenet_encoder_forward.1} parent=0 // loop_body
    %s18 = ssub.s32 %s13, 1
    %s19 = ssub.s32 %s13, 2
    %s20 = sadd.s32 %s13, 1
    %s21 = ssub.s32 %s13, %s20
    %p22 = scmp.eq.s32.totalorder %s21, 0
    %s24 = sadd.s32 %s23, 1
    %s25 = scalar_select %p22, %s23, %s24
    %p28 = pneg %p22
    %p29 = scmp.eq.s32.totalorder %s13, 1
    %p30 = por %p28, %p29
    %p31 = scmp.ne.s32.totalorder %s23, %s26
    %p32 = scmp.eq.s32.totalorder %s13, 0
    %p33 = por %p31, %p32
    %p34 = scmp.ne.s32.totalorder %s23, %s26
    %p35 = scmp.eq.s32.totalorder %s18, 1
    %p36 = por %p34, %p35
    %p37 = scmp.ne.s32.totalorder %s26, %s27
    %p38 = scmp.eq.s32.totalorder %s18, 0
    %p39 = por %p37, %p38
    %p40 = scmp.ne.s32.totalorder %s26, %s27
    %p41 = scmp.eq.s32.totalorder %s19, 1
    %p42 = por %p40, %p41
    %p44 = scmp.ne.s32.totalorder %s27, %s43
    %p45 = scmp.eq.s32.totalorder %s19, 0
    %p46 = por %p44, %p45
    %s48 = sadd.s32 %s47, 1
    %p51 = scmp.eq.s32.totalorder %s13, 1
    %p52 = scmp.ne.s32.totalorder %s47, %s49
    %p53 = scmp.eq.s32.totalorder %s13, 0
    %p54 = por %p52, %p53
    %p55 = scmp.ne.s32.totalorder %s47, %s49
    %p56 = scmp.eq.s32.totalorder %s18, 1
    %p57 = por %p55, %p56
    %p58 = scmp.ne.s32.totalorder %s49, %s50
    %p59 = scmp.eq.s32.totalorder %s18, 0
    %p60 = por %p58, %p59
    %p61 = scmp.ne.s32.totalorder %s49, %s50
    %p62 = scmp.eq.s32.totalorder %s19, 1
    %p63 = por %p61, %p62
    %p65 = scmp.ne.s32.totalorder %s50, %s64
    %p66 = scmp.eq.s32.totalorder %s19, 0
    %p67 = por %p65, %p66
    %s69 = sadd.s32 %s68, 1
    %p72 = scmp.eq.s32.totalorder %s13, 1
    %p73 = scmp.ne.s32.totalorder %s68, %s70
    %p74 = scmp.eq.s32.totalorder %s13, 0
    %p75 = por %p73, %p74
    %p76 = scmp.ne.s32.totalorder %s68, %s70
    %p77 = scmp.eq.s32.totalorder %s18, 1
    %p78 = por %p76, %p77
    %p79 = scmp.ne.s32.totalorder %s70, %s71
    %p80 = scmp.eq.s32.totalorder %s18, 0
    %p81 = por %p79, %p80
    %p82 = scmp.ne.s32.totalorder %s70, %s71
    %p83 = scmp.eq.s32.totalorder %s19, 1
    %p84 = por %p82, %p83
    %p86 = scmp.ne.s32.totalorder %s71, %s85
    %p87 = scmp.eq.s32.totalorder %s19, 0
    %p88 = por %p86, %p87
    %s90 = sadd.s32 %s89, 1
    %p93 = scmp.eq.s32.totalorder %s13, 1
    %p94 = scmp.ne.s32.totalorder %s89, %s91
    %p95 = scmp.eq.s32.totalorder %s13, 0
    %p96 = por %p94, %p95
    %p97 = scmp.ne.s32.totalorder %s89, %s91
    %p98 = scmp.eq.s32.totalorder %s18, 1
    %p99 = por %p97, %p98
    %p100 = scmp.ne.s32.totalorder %s91, %s92
    %p101 = scmp.eq.s32.totalorder %s18, 0
    %p102 = por %p100, %p101
    %p103 = scmp.ne.s32.totalorder %s91, %s92
    %p104 = scmp.eq.s32.totalorder %s19, 1
    %p105 = por %p103, %p104
    %p107 = scmp.ne.s32.totalorder %s92, %s106
    %p108 = scmp.eq.s32.totalorder %s19, 0
    %p109 = por %p107, %p108
    %s111 = sadd.s32 %s110, 1
    %p114 = scmp.eq.s32.totalorder %s13, 1
    %p115 = scmp.ne.s32.totalorder %s110, %s112
    %p116 = scmp.eq.s32.totalorder %s13, 0
    %p117 = por %p115, %p116
    %p118 = scmp.ne.s32.totalorder %s110, %s112
    %p119 = scmp.eq.s32.totalorder %s18, 1
    %p120 = por %p118, %p119
    %p121 = scmp.ne.s32.totalorder %s112, %s113
    %p122 = scmp.eq.s32.totalorder %s18, 0
    %p123 = por %p121, %p122
    %p124 = scmp.ne.s32.totalorder %s112, %s113
    %p125 = scmp.eq.s32.totalorder %s19, 1
    %p126 = por %p124, %p125
    %p128 = scmp.ne.s32.totalorder %s113, %s127
    %p129 = scmp.eq.s32.totalorder %s19, 0
    %p130 = por %p128, %p129
    %s132 = sadd.s32 %s131, 1
    %p135 = scmp.eq.s32.totalorder %s13, 1
    %p136 = scmp.ne.s32.totalorder %s131, %s133
    %p137 = scmp.eq.s32.totalorder %s13, 0
    %p138 = por %p136, %p137
    %p139 = scmp.ne.s32.totalorder %s131, %s133
    %p140 = scmp.eq.s32.totalorder %s18, 1
    %p141 = por %p139, %p140
    %p142 = scmp.ne.s32.totalorder %s133, %s134
    %p143 = scmp.eq.s32.totalorder %s18, 0
    %p144 = por %p142, %p143
    %p145 = scmp.ne.s32.totalorder %s133, %s134
    %p146 = scmp.eq.s32.totalorder %s19, 1
    %p147 = por %p145, %p146
    %p149 = scmp.ne.s32.totalorder %s134, %s148
    %p150 = scmp.eq.s32.totalorder %s19, 0
    %p151 = por %p149, %p150
    %s153 = sadd.s32 %s152, 1
    %p156 = scmp.eq.s32.totalorder %s13, 1
    %p157 = scmp.ne.s32.totalorder %s152, %s154
    %p158 = scmp.eq.s32.totalorder %s13, 0
    %p159 = por %p157, %p158
    %p160 = scmp.ne.s32.totalorder %s152, %s154
    %p161 = scmp.eq.s32.totalorder %s18, 1
    %p162 = por %p160, %p161
    %p163 = scmp.ne.s32.totalorder %s154, %s155
    %p164 = scmp.eq.s32.totalorder %s18, 0
    %p165 = por %p163, %p164
    %p166 = scmp.ne.s32.totalorder %s154, %s155
    %p167 = scmp.eq.s32.totalorder %s19, 1
    %p168 = por %p166, %p167
    %p170 = scmp.ne.s32.totalorder %s155, %s169
    %p171 = scmp.eq.s32.totalorder %s19, 0
    %p172 = por %p170, %p171
    %s173 = ssub.s32 %s13, %s20
    %p174 = scmp.eq.s32.totalorder %s173, 0
    %s176 = sadd.s32 %s175, 1
    %s177 = scalar_select %p174, %s175, %s176
    %p180 = pneg %p174
    %p181 = scmp.eq.s32.totalorder %s13, 1
    %p182 = por %p180, %p181
    %p183 = scmp.ne.s32.totalorder %s175, %s178
    %p184 = scmp.eq.s32.totalorder %s13, 0
    %p185 = por %p183, %p184
    %p186 = scmp.ne.s32.totalorder %s175, %s178
    %p187 = scmp.eq.s32.totalorder %s18, 1
    %p188 = por %p186, %p187
    %p189 = scmp.ne.s32.totalorder %s178, %s179
    %p190 = scmp.eq.s32.totalorder %s18, 0
    %p191 = por %p189, %p190
    %p192 = scmp.ne.s32.totalorder %s178, %s179
    %p193 = scmp.eq.s32.totalorder %s19, 1
    %p194 = por %p192, %p193
    %p196 = scmp.ne.s32.totalorder %s179, %s195
    %p197 = scmp.eq.s32.totalorder %s19, 0
    %p198 = por %p196, %p197
    %p199 = scmp.le.s32.totalorder 1, %s13
    %p200 = scmp.lt.s32.totalorder %s13, 3
    %p201 = pnand %p199, %p200
    %p202 = pneg %p201
    // Predicated region
    $region9: #{lenet_encoder_forward.1} parent=5 // pred_check
      _
    $region10: #{lenet_encoder_forward.1} parent=5 // pred_check_branch
      %204 = sbr.rel (%p201) target = $region12
    $region11: #{lenet_encoder_forward.1} parent=5 // pred_region
      %s205 = ssub.s32 %s13, 1
      // Predicated region
      $region13: #{lenet_encoder_forward.1} parent=11 // pred_check
        %p206 = pneg %p60
      $region14: #{lenet_encoder_forward.1} parent=11 // pred_check_branch
        %208 = sbr.rel (%p206) target = $region16
      $region15: #{lenet_encoder_forward.1} parent=11 // pred_region
        _
      $region16: #{lenet_encoder_forward.1} parent=11 // pred_fallthru
        _
      // Predicated region
      $region17: #{lenet_encoder_forward.1} parent=11 // pred_check
        %p209 = pneg %p81
      $region18: #{lenet_encoder_forward.1} parent=11 // pred_check_branch
        %211 = sbr.rel (%p209) target = $region20
      $region19: #{lenet_encoder_forward.1} parent=11 // pred_region
        _
      $region20: #{lenet_encoder_forward.1} parent=11 // pred_fallthru
        _
      // Predicated region
      $region21: #{lenet_encoder_forward.1} parent=11 // pred_check
        %p212 = pneg %p102
      $region22: #{lenet_encoder_forward.1} parent=11 // pred_check_branch
        %214 = sbr.rel (%p212) target = $region24
      $region23: #{lenet_encoder_forward.1} parent=11 // pred_region
        _
      $region24: #{lenet_encoder_forward.1} parent=11 // pred_fallthru
        _
      // Predicated region
      $region25: #{lenet_encoder_forward.1} parent=11 // pred_check
        %p215 = pneg %p123
      $region26: #{lenet_encoder_forward.1} parent=11 // pred_check_branch
        %217 = sbr.rel (%p215) target = $region28
      $region27: #{lenet_encoder_forward.1} parent=11 // pred_region
        _
      $region28: #{lenet_encoder_forward.1} parent=11 // pred_fallthru
        _
      // Predicated region
      $region29: #{lenet_encoder_forward.1} parent=11 // pred_check
        %p218 = pneg %p144
      $region30: #{lenet_encoder_forward.1} parent=11 // pred_check_branch
        %220 = sbr.rel (%p218) target = $region32
      $region31: #{lenet_encoder_forward.1} parent=11 // pred_region
        _
      $region32: #{lenet_encoder_forward.1} parent=11 // pred_fallthru
        _
      // Predicated region
      $region33: #{lenet_encoder_forward.1} parent=11 // pred_check
        %p221 = pneg %p165
      $region34: #{lenet_encoder_forward.1} parent=11 // pred_check_branch
        %223 = sbr.rel (%p221) target = $region36
      $region35: #{lenet_encoder_forward.1} parent=11 // pred_region
        _
      $region36: #{lenet_encoder_forward.1} parent=11 // pred_fallthru
        _
    $region12: #{lenet_encoder_forward.1} parent=5 // pred_fallthru
      _
    %p224 = scmp.lt.s32.totalorder %s13, 2
    // Predicated region
    $region37: #{lenet_encoder_forward.1} parent=5 // pred_check
      %p225 = pneg %p224
    $region38: #{lenet_encoder_forward.1} parent=5 // pred_check_branch
      %227 = sbr.rel (%p225) target = $region40
    $region39: #{lenet_encoder_forward.1} parent=5 // pred_region
      // Predicated region
      $region41: #{lenet_encoder_forward.1} parent=39 // pred_check
        %p228 = pneg %p33
      $region42: #{lenet_encoder_forward.1} parent=39 // pred_check_branch
        %230 = sbr.rel (%p228) target = $region44
      $region43: #{lenet_encoder_forward.1} parent=39 // pred_region
        %p231 = scmp.lt.s32.totalorder %s13, 1
        %s232 = scalar_select %p231, %s13, 1
        %s233 = smul.addr %s232, 12
        %s234 = smul.addr %s233, 4
        %s235 = scalar_lea.vmem %s0, %s234
      $region44: #{lenet_encoder_forward.1} parent=39 // pred_fallthru
        _
    $region40: #{lenet_encoder_forward.1} parent=5 // pred_fallthru
      _
    %p236 = scmp.le.s32.totalorder 1, %s13
    %p237 = scmp.lt.s32.totalorder %s13, 3
    %p238 = pnand %p236, %p237
    %p239 = pneg %p238
    // Predicated region
    $region45: #{lenet_encoder_forward.1} parent=5 // pred_check
      _
    $region46: #{lenet_encoder_forward.1} parent=5 // pred_check_branch
      %241 = sbr.rel (%p238) target = $region48
    $region47: #{lenet_encoder_forward.1} parent=5 // pred_region
      %s242 = ssub.s32 %s13, 1
      %p243 = scmp.lt.s32.totalorder %s18, 1
      %s244 = scalar_select %p243, %s18, 1
      %s245 = smul.addr %s244, 12
      %s246 = smul.addr %s245, 4
      %s247 = scalar_lea.vmem %s0, %s246
      %p248 = pneg %p39
      %p249 = pneg %p36
      %p250 = pneg %p60
      %p251 = pneg %p57
      %p252 = pneg %p81
      %p253 = pneg %p78
      %p254 = pneg %p102
      %p255 = pneg %p99
      %p256 = pneg %p123
      %p257 = pneg %p120
      %p258 = pneg %p144
      %p259 = pneg %p141
      %p260 = pneg %p165
      %p261 = pneg %p162
      %p262 = pneg %p191
      %p263 = pneg %p188
      %p264 = scmp.lt.s32.totalorder %s18, 1
      %s265 = scalar_select %p264, %s18, 1
      %s266 = smul.addr %s265, 4
      %s267 = scalar_lea.vmem %s7, %s266
      %p268 = scmp.lt.s32.totalorder %s18, 1
      %s269 = scalar_select %p268, %s18, 1
      %s270 = smul.addr %s269, 12
      %s271 = smul.addr %s270, 4
      %s272 = scalar_lea.vmem %s0, %s271
      %p273 = scmp.lt.s32.totalorder %s18, 1
      %s274 = scalar_select %p273, %s18, 1
      %s275 = smul.addr %s274, 4
      %s276 = scalar_lea.vmem %s7, %s275
      %v278 = vld [vmem:[%s272] sm:$0xff]
      %v279 = vld [vmem:[%s272 + $0x8] sm:$0xff]
      %v280 = vld [vmem:[%s272 + $0x10] sm:$0xff]
      %v281 = vld [vmem:[%s272 + $0x18] sm:$0xff]
      %v282 = vld [vmem:[%s272 + $0x20] sm:$0xff]
      %v283 = vld [vmem:[%s272 + $0x28] sm:$0xff]
      %v284 = vld [vmem:[%s1] sm:$0xff]
      %v285 = vld [vmem:[%s1 + $0x8] sm:$0xff]
      %v286 = vld [vmem:[%s1 + $0x10] sm:$0xff]
      %v287 = vld [vmem:[%s1 + $0x18] sm:$0xff]
      %v288 = vld [vmem:[%s1 + $0x20] sm:$0xff]
      %v289 = vld [vmem:[%s1 + $0x28] sm:$0xff]
      %v290 = vld [vmem:[%s1 + $0x30] sm:$0xff]
      %v291 = vld [vmem:[%s1 + $0x38] sm:$0xff]
      %v292 = vld [vmem:[%s1 + $0x40] sm:$0xff]
      %v293 = vld [vmem:[%s1 + $0x48] sm:$0xff]
      %v294 = vld [vmem:[%s1 + $0x50] sm:$0xff]
      %v295 = vld [vmem:[%s1 + $0x58] sm:$0xff]
      %v296 = vld [vmem:[%s1 + $0x60] sm:$0xff]
      %v297 = vld [vmem:[%s1 + $0x68] sm:$0xff]
      %v298 = vld [vmem:[%s1 + $0x70] sm:$0xff]
      %v299 = vld [vmem:[%s1 + $0x78] sm:$0xff]
      %v300 = vld [vmem:[%s1 + $0x80] sm:$0xff]
      %v301 = vld [vmem:[%s1 + $0x88] sm:$0xff]
      %v302 = vld [vmem:[%s1 + $0x90] sm:$0xff]
      %v303 = vld [vmem:[%s1 + $0x98] sm:$0xff]
      %v304 = vld [vmem:[%s1 + $0xa0] sm:$0xff]
      %v305 = vld [vmem:[%s1 + $0xa8] sm:$0xff]
      %v306 = vld [vmem:[%s1 + $0xb0] sm:$0xff]
      %v307 = vld [vmem:[%s1 + $0xb8] sm:$0xff]
      %v308 = vld [vmem:[%s1 + $0xc0] sm:$0xff]
      %v309 = vld [vmem:[%s1 + $0xc8] sm:$0xff]
      %v310 = vld [vmem:[%s1 + $0xd0] sm:$0xff]
      %v311 = vld [vmem:[%s1 + $0xd8] sm:$0xff]
      %v312 = vld [vmem:[%s1 + $0xe0] sm:$0xff]
      %v313 = vld [vmem:[%s1 + $0xe8] sm:$0xff]
      %v314 = vld [vmem:[%s1 + $0xf0] sm:$0xff]
      %v315 = vld [vmem:[%s1 + $0xf8] sm:$0xff]
      %v316 = vld [vmem:[%s1 + $0x100] sm:$0xff]
      %v317 = vld [vmem:[%s1 + $0x108] sm:$0xff]
      %v318 = vld [vmem:[%s1 + $0x110] sm:$0xff]
      %v319 = vld [vmem:[%s1 + $0x118] sm:$0xff]
      %v320 = vld [vmem:[%s1 + $0x120] sm:$0xff]
      %v321 = vld [vmem:[%s1 + $0x128] sm:$0xff]
      %v322 = vld [vmem:[%s1 + $0x130] sm:$0xff]
      %v323 = vld [vmem:[%s1 + $0x138] sm:$0xff]
      %v324 = vld [vmem:[%s1 + $0x140] sm:$0xff]
      %v325 = vld [vmem:[%s1 + $0x148] sm:$0xff]
      %v326 = vld [vmem:[%s1 + $0x150] sm:$0xff]
      %v327 = vld [vmem:[%s1 + $0x158] sm:$0xff]
      %v328 = vld [vmem:[%s1 + $0x160] sm:$0xff]
      %v329 = vld [vmem:[%s1 + $0x168] sm:$0xff]
      %v330 = vld [vmem:[%s1 + $0x170] sm:$0xff]
      %v331 = vld [vmem:[%s1 + $0x178] sm:$0xff]
      %v332 = vld [vmem:[%s1 + $0x180] sm:$0xff]
      %v333 = vld [vmem:[%s1 + $0x188] sm:$0xff]
      %v334 = vld [vmem:[%s1 + $0x190] sm:$0xff]
      %v335 = vld [vmem:[%s1 + $0x198] sm:$0x33]
      %v336 = vld [vmem:[%s1 + $0x1a0] sm:$0x33]
      %v337 = vld [vmem:[%s1 + $0x1a8] sm:$0x33]
      %v341 = vunpack.c.l.b16 %v278
      %v342 = vunpack.c.h.b16 %v278
      %v343 = vunpack.c.l.b16 %v279
      %v344 = vunpack.c.h.b16 %v279
      %v345 = vunpack.c.l.b16 %v280
      %v346 = vunpack.c.h.b16 %v280
      %v347 = vpack.c.b16 %v343, %v341
      %v348 = vpack.c.b16 %v344, %v342
      %v349 = vpack.c.b16 %v345, %v345
      %v350 = vpack.c.b16 %v346, %v346
      %v407 = vunpack.c.l.b16 %v284
      %v408 = vunpack.c.h.b16 %v284
      %v409 = vunpack.c.l.b16 %v285
      %v410 = vunpack.c.h.b16 %v285
      %v411 = vunpack.c.l.b16 %v286
      %v412 = vunpack.c.h.b16 %v286
      %v413 = vunpack.c.l.b16 %v287
      %v414 = vunpack.c.h.b16 %v287
      %v415 = vunpack.c.l.b16 %v288
      %v416 = vunpack.c.h.b16 %v288
      %v417 = vunpack.c.l.b16 %v289
      %v418 = vunpack.c.h.b16 %v289
      %v419 = vunpack.c.l.b16 %v290
      %v420 = vunpack.c.h.b16 %v290
      %v421 = vunpack.c.l.b16 %v291
      %v422 = vunpack.c.h.b16 %v291
      %v423 = vunpack.c.l.b16 %v292
      %v424 = vunpack.c.h.b16 %v292
      %v425 = vunpack.c.l.b16 %v293
      %v426 = vunpack.c.h.b16 %v293
      %v427 = vunpack.c.l.b16 %v294
      %v428 = vunpack.c.h.b16 %v294
      %v429 = vunpack.c.l.b16 %v295
      %v430 = vunpack.c.h.b16 %v295
      %v431 = vunpack.c.l.b16 %v296
      %v432 = vunpack.c.h.b16 %v296
      %v433 = vunpack.c.l.b16 %v297
      %v434 = vunpack.c.h.b16 %v297
      %v435 = vunpack.c.l.b16 %v298
      %v436 = vunpack.c.h.b16 %v298
      %v437 = vunpack.c.l.b16 %v299
      %v438 = vunpack.c.h.b16 %v299
      %v439 = vunpack.c.l.b16 %v300
      %v440 = vunpack.c.h.b16 %v300
      %v441 = vunpack.c.l.b16 %v301
      %v442 = vunpack.c.h.b16 %v301
      %v443 = vunpack.c.l.b16 %v302
      %v444 = vunpack.c.h.b16 %v302
      %v445 = vunpack.c.l.b16 %v303
      %v446 = vunpack.c.h.b16 %v303
      %v447 = vunpack.c.l.b16 %v304
      %v448 = vunpack.c.h.b16 %v304
      %v449 = vunpack.c.l.b16 %v305
      %v450 = vunpack.c.h.b16 %v305
      %v451 = vunpack.c.l.b16 %v306
      %v452 = vunpack.c.h.b16 %v306
      %v453 = vunpack.c.l.b16 %v307
      %v454 = vunpack.c.h.b16 %v307
      %v455 = vunpack.c.l.b16 %v308
      %v456 = vunpack.c.h.b16 %v308
      %v457 = vunpack.c.l.b16 %v309
      %v458 = vunpack.c.h.b16 %v309
      %v459 = vunpack.c.l.b16 %v310
      %v460 = vunpack.c.h.b16 %v310
      %v461 = vunpack.c.l.b16 %v311
      %v462 = vunpack.c.h.b16 %v311
      %v463 = vunpack.c.l.b16 %v312
      %v464 = vunpack.c.h.b16 %v312
      %v465 = vunpack.c.l.b16 %v313
      %v466 = vunpack.c.h.b16 %v313
      %v467 = vunpack.c.l.b16 %v314
      %v468 = vunpack.c.h.b16 %v314
      %v469 = vunpack.c.l.b16 %v315
      %v470 = vunpack.c.h.b16 %v315
      %v471 = vunpack.c.l.b16 %v316
      %v472 = vunpack.c.h.b16 %v316
      %v473 = vunpack.c.l.b16 %v317
      %v474 = vunpack.c.h.b16 %v317
      %v475 = vunpack.c.l.b16 %v318
      %v476 = vunpack.c.h.b16 %v318
      %v477 = vunpack.c.l.b16 %v319
      %v478 = vunpack.c.h.b16 %v319
      %v479 = vunpack.c.l.b16 %v320
      %v480 = vunpack.c.h.b16 %v320
      %v481 = vunpack.c.l.b16 %v321
      %v482 = vunpack.c.h.b16 %v321
      %v483 = vunpack.c.l.b16 %v322
      %v484 = vunpack.c.h.b16 %v322
      %v485 = vunpack.c.l.b16 %v323
      %v486 = vunpack.c.h.b16 %v323
      %v487 = vunpack.c.l.b16 %v324
      %v488 = vunpack.c.h.b16 %v324
      %v489 = vunpack.c.l.b16 %v325
      %v490 = vunpack.c.h.b16 %v325
      %v491 = vunpack.c.l.b16 %v326
      %v492 = vunpack.c.h.b16 %v326
      %v493 = vunpack.c.l.b16 %v327
      %v494 = vunpack.c.h.b16 %v327
      %v495 = vunpack.c.l.b16 %v328
      %v496 = vunpack.c.h.b16 %v328
      %v497 = vunpack.c.l.b16 %v329
      %v498 = vunpack.c.h.b16 %v329
      %v499 = vunpack.c.l.b16 %v330
      %v500 = vunpack.c.h.b16 %v330
      %v501 = vunpack.c.l.b16 %v331
      %v502 = vunpack.c.h.b16 %v331
      %v503 = vunpack.c.l.b16 %v332
      %v504 = vunpack.c.h.b16 %v332
      %v505 = vunpack.c.l.b16 %v333
      %v506 = vunpack.c.h.b16 %v333
      %v507 = vunpack.c.l.b16 %v334
      %v508 = vunpack.c.h.b16 %v334
      %v509 = vunpack.c.l.b16 %v335
      %v510 = vunpack.c.h.b16 %v335
      %v511 = vunpack.c.l.b16 %v336
      %v512 = vunpack.c.h.b16 %v336
      %v513 = vunpack.c.l.b16 %v337
      %v514 = vunpack.c.h.b16 %v337
      %v515 = vpack.c.b16 %v413, %v407
      %v516 = vpack.c.b16 %v414, %v408
      %v517 = vpack.c.b16 %v415, %v409
      %v518 = vpack.c.b16 %v416, %v410
      %v519 = vpack.c.b16 %v417, %v411
      %v520 = vpack.c.b16 %v418, %v412
      %v521 = vpack.c.b16 %v425, %v419
      %v522 = vpack.c.b16 %v426, %v420
      %v523 = vpack.c.b16 %v427, %v421
      %v524 = vpack.c.b16 %v428, %v422
      %v525 = vpack.c.b16 %v429, %v423
      %v526 = vpack.c.b16 %v430, %v424
      %v527 = vpack.c.b16 %v437, %v431
      %v528 = vpack.c.b16 %v438, %v432
      %v529 = vpack.c.b16 %v439, %v433
      %v530 = vpack.c.b16 %v440, %v434
      %v531 = vpack.c.b16 %v441, %v435
      %v532 = vpack.c.b16 %v442, %v436
      %v533 = vpack.c.b16 %v449, %v443
      %v534 = vpack.c.b16 %v450, %v444
      %v535 = vpack.c.b16 %v451, %v445
      %v536 = vpack.c.b16 %v452, %v446
      %v537 = vpack.c.b16 %v453, %v447
      %v538 = vpack.c.b16 %v454, %v448
      %v539 = vpack.c.b16 %v461, %v455
      %v540 = vpack.c.b16 %v462, %v456
      %v541 = vpack.c.b16 %v463, %v457
      %v542 = vpack.c.b16 %v464, %v458
      %v543 = vpack.c.b16 %v465, %v459
      %v544 = vpack.c.b16 %v466, %v460
      %v545 = vpack.c.b16 %v473, %v467
      %v546 = vpack.c.b16 %v474, %v468
      %v547 = vpack.c.b16 %v475, %v469
      %v548 = vpack.c.b16 %v476, %v470
      %v549 = vpack.c.b16 %v477, %v471
      %v550 = vpack.c.b16 %v478, %v472
      %v551 = vpack.c.b16 %v485, %v479
      %v552 = vpack.c.b16 %v486, %v480
      %v553 = vpack.c.b16 %v487, %v481
      %v554 = vpack.c.b16 %v488, %v482
      %v555 = vpack.c.b16 %v489, %v483
      %v556 = vpack.c.b16 %v490, %v484
      %v557 = vpack.c.b16 %v497, %v491
      %v558 = vpack.c.b16 %v498, %v492
      %v559 = vpack.c.b16 %v499, %v493
      %v560 = vpack.c.b16 %v500, %v494
      %v561 = vpack.c.b16 %v501, %v495
      %v562 = vpack.c.b16 %v502, %v496
      %v563 = vpack.c.b16 %v509, %v503
      %v564 = vpack.c.b16 %v510, %v504
      %v565 = vpack.c.b16 %v511, %v505
      %v566 = vpack.c.b16 %v512, %v506
      %v567 = vpack.c.b16 %v513, %v507
      %v568 = vpack.c.b16 %v514, %v508
      %vm617 = vcmask 97280
      %v619 = vsel %vm617, %v348, 0
      %v622 = vsel %vm617, %v350, 0
      %vm624 = vcmask 1045504
      %v626 = vsel %vm624, %v563, 0
      %v629 = vsel %vm624, %v564, 0
      %v632 = vsel %vm624, %v565, 0
      %v635 = vsel %vm624, %v566, 0
      %v638 = vsel %vm624, %v567, 0
      %v641 = vsel %vm624, %v568, 0
      %643 = vmatprep.subr.bf16.mxu0 %v516
      %644 = vmatpush1.bf16.msra.mxu0 %v515
      %645 = vmatprep.subr.bf16.mxu0 %v522
      %646 = vmatpush1.bf16.msra.mxu0 %v521
      %647 = vmatprep.subr.bf16.mxu0 %v528
      %648 = vmatpush1.bf16.msra.mxu0 %v527
      %649 = vmatprep.subr.bf16.mxu0 %v534
      %650 = vmatpush1.bf16.msra.mxu0 %v533
      %651 = vmatprep.subr.bf16.mxu0 %v540
      %652 = vmatpush1.bf16.msra.mxu0 %v539
      %653 = vmatprep.subr.bf16.mxu0 %v546
      %654 = vmatpush1.bf16.msra.mxu0 %v545
      %655 = vmatprep.subr.bf16.mxu0 %v552
      %656 = vmatpush1.bf16.msra.mxu0 %v551
      %657 = vmatprep.subr.bf16.mxu0 %v558
      %658 = vmatpush1.bf16.msra.mxu0 %v557
      %659 = vmatprep.subr.bf16.mxu0 %v629
      %660 = vmatpush1.bf16.msra.mxu0 %v626
      %661 = vmatprep.subr.bf16.mxu0 0
      %662 = vmatpush1.bf16.msra.mxu0 0
      %663 = vmatprep.subr.bf16.mxu0 0
      %664 = vmatpush1.bf16.msra.mxu0 0
      %665 = vmatprep.subr.bf16.mxu0 0
      %666 = vmatpush1.bf16.msra.mxu0 0
      %667 = vmatprep.subr.bf16.mxu0 0
      %668 = vmatpush1.bf16.msra.mxu0 0
      %669 = vmatprep.subr.bf16.mxu0 0
      %670 = vmatpush1.bf16.msra.mxu0 0
      %671 = vmatprep.subr.bf16.mxu0 0
      %672 = vmatpush1.bf16.msra.mxu0 0
      %673 = vmatprep.subr.bf16.mxu0 0
      %674 = vmatpush1.bf16.msra.mxu0 0
      %675 = vmatprep.mubr.bf16.mxu0 %v619
      %676 = vmatmul.mubr.bf16.gmra.mrb[0].mxu0 %v347
      %v677 = vpop.f32.mrb[0].mxu0
      %v678 = vadd.f32 0.0, %v677
      %v679 = vpop.f32.mrb[0].mxu0
      %v680 = vadd.f32 0.0, %v679
      %v681 = vpop.f32.mrb[0].mxu0
      %v682 = vadd.f32 0.0, %v681
      %v683 = vpop.f32.mrb[0].mxu0
      %v684 = vadd.f32 0.0, %v683
      %685 = vmatprep.mubr.bf16.mxu0 %v622
      %686 = vmatmul.mubr.bf16.gmra.mrb[0].mxu0 %v349
      %v687 = vpop.f32.mrb[0].mxu0
      %v688 = vadd.f32 0.0, %v687
      %v689 = vpop.f32.mrb[0].mxu0
      %v690 = vadd.f32 0.0, %v689
      %v691 = vpop.f32.mrb[0].mxu0
      %v692 = vpop.f32.mrb[0].mxu0
      %693 = vdwg.mxu0
      %694 = vmatprep.subr.bf16.mxu0 %v518
      %695 = vmatpush1.bf16.msra.mxu0 %v517
      %696 = vmatprep.subr.bf16.mxu0 %v524
      %697 = vmatpush1.bf16.msra.mxu0 %v523
      %698 = vmatprep.subr.bf16.mxu0 %v530
      %699 = vmatpush1.bf16.msra.mxu0 %v529
      %700 = vmatprep.subr.bf16.mxu0 %v536
      %701 = vmatpush1.bf16.msra.mxu0 %v535
      %702 = vmatprep.subr.bf16.mxu0 %v542
      %703 = vmatpush1.bf16.msra.mxu0 %v541
      %704 = vmatprep.subr.bf16.mxu0 %v548
      %705 = vmatpush1.bf16.msra.mxu0 %v547
      %706 = vmatprep.subr.bf16.mxu0 %v554
      %707 = vmatpush1.bf16.msra.mxu0 %v553
      %708 = vmatprep.subr.bf16.mxu0 %v560
      %709 = vmatpush1.bf16.msra.mxu0 %v559
      %710 = vmatprep.subr.bf16.mxu0 %v635
      %711 = vmatpush1.bf16.msra.mxu0 %v632
      %712 = vmatprep.subr.bf16.mxu0 0
      %713 = vmatpush1.bf16.msra.mxu0 0
      %714 = vmatprep.subr.bf16.mxu0 0
      %715 = vmatpush1.bf16.msra.mxu0 0
      %716 = vmatprep.subr.bf16.mxu0 0
      %717 = vmatpush1.bf16.msra.mxu0 0
      %718 = vmatprep.subr.bf16.mxu0 0
      %719 = vmatpush1.bf16.msra.mxu0 0
      %720 = vmatprep.subr.bf16.mxu0 0
      %721 = vmatpush1.bf16.msra.mxu0 0
      %722 = vmatprep.subr.bf16.mxu0 0
      %723 = vmatpush1.bf16.msra.mxu0 0
      %724 = vmatprep.subr.bf16.mxu0 0
      %725 = vmatpush1.bf16.msra.mxu0 0
      %726 = vmatprep.mubr.bf16.mxu0 %v619
      %727 = vmatmul.mubr.bf16.gmra.mrb[0].mxu0 %v347
      %v728 = vpop.f32.mrb[0].mxu0
      %v729 = vadd.f32 0.0, %v728
      %v730 = vpop.f32.mrb[0].mxu0
      %v731 = vadd.f32 0.0, %v730
      %v732 = vpop.f32.mrb[0].mxu0
      %v733 = vadd.f32 0.0, %v732
      %v734 = vpop.f32.mrb[0].mxu0
      %v735 = vadd.f32 0.0, %v734
      %736 = vmatprep.mubr.bf16.mxu0 %v622
      %737 = vmatmul.mubr.bf16.gmra.mrb[0].mxu0 %v349
      %v738 = vpop.f32.mrb[0].mxu0
      %v739 = vadd.f32 0.0, %v738
      %v740 = vpop.f32.mrb[0].mxu0
      %v741 = vadd.f32 0.0, %v740
      %v742 = vpop.f32.mrb[0].mxu0
      %v743 = vpop.f32.mrb[0].mxu0
      %744 = vdwg.mxu0
      %745 = vmatprep.subr.bf16.mxu0 %v520
      %746 = vmatpush1.bf16.msra.mxu0 %v519
      %747 = vmatprep.subr.bf16.mxu0 %v526
      %748 = vmatpush1.bf16.msra.mxu0 %v525
      %749 = vmatprep.subr.bf16.mxu0 %v532
      %750 = vmatpush1.bf16.msra.mxu0 %v531
      %751 = vmatprep.subr.bf16.mxu0 %v538
      %752 = vmatpush1.bf16.msra.mxu0 %v537
      %753 = vmatprep.subr.bf16.mxu0 %v544
      %754 = vmatpush1.bf16.msra.mxu0 %v543
      %755 = vmatprep.subr.bf16.mxu0 %v550
      %756 = vmatpush1.bf16.msra.mxu0 %v549
      %757 = vmatprep.subr.bf16.mxu0 %v556
      %758 = vmatpush1.bf16.msra.mxu0 %v555
      %759 = vmatprep.subr.bf16.mxu0 %v562
      %760 = vmatpush1.bf16.msra.mxu0 %v561
      %761 = vmatprep.subr.bf16.mxu0 %v641
      %762 = vmatpush1.bf16.msra.mxu0 %v638
      %763 = vmatprep.subr.bf16.mxu0 0
      %764 = vmatpush1.bf16.msra.mxu0 0
      %765 = vmatprep.subr.bf16.mxu0 0
      %766 = vmatpush1.bf16.msra.mxu0 0
      %767 = vmatprep.subr.bf16.mxu0 0
      %768 = vmatpush1.bf16.msra.mxu0 0
      %769 = vmatprep.subr.bf16.mxu0 0
      %770 = vmatpush1.bf16.msra.mxu0 0
      %771 = vmatprep.subr.bf16.mxu0 0
      %772 = vmatpush1.bf16.msra.mxu0 0
      %773 = vmatprep.subr.bf16.mxu0 0
      %774 = vmatpush1.bf16.msra.mxu0 0
      %775 = vmatprep.subr.bf16.mxu0 0
      %776 = vmatpush1.bf16.msra.mxu0 0
      %777 = vmatprep.mubr.bf16.mxu0 %v619
      %778 = vmatmul.mubr.bf16.gmra.mrb[0].mxu0 %v347
      %v779 = vpop.f32.mrb[0].mxu0
      %v780 = vadd.f32 0.0, %v779
      %v781 = vpop.f32.mrb[0].mxu0
      %v782 = vadd.f32 0.0, %v781
      %v783 = vpop.f32.mrb[0].mxu0
      %v784 = vadd.f32 0.0, %v783
      %v785 = vpop.f32.mrb[0].mxu0
      %v786 = vadd.f32 0.0, %v785
      %787 = vmatprep.mubr.bf16.mxu0 %v622
      %788 = vmatmul.mubr.bf16.gmra.mrb[0].mxu0 %v349
      %v789 = vpop.f32.mrb[0].mxu0
      %v790 = vadd.f32 0.0, %v789
      %v791 = vpop.f32.mrb[0].mxu0
      %v792 = vadd.f32 0.0, %v791
      %v793 = vpop.f32.mrb[0].mxu0
      %v794 = vpop.f32.mrb[0].mxu0
      %795 = vdwg.mxu0
      %v799 = vunpack.c.l.b16 %v281
      %v800 = vunpack.c.h.b16 %v281
      %v801 = vunpack.c.l.b16 %v282
      %v802 = vunpack.c.h.b16 %v282
      %v803 = vunpack.c.l.b16 %v283
      %v804 = vunpack.c.h.b16 %v283
      %v805 = vpack.c.b16 %v801, %v799
      %v806 = vpack.c.b16 %v802, %v800
      %v807 = vpack.c.b16 %v803, %v803
      %v808 = vpack.c.b16 %v804, %v804
      %v812 = vsel %vm617, %v806, 0
      %v815 = vsel %vm617, %v808, 0
      %817 = vmatprep.subr.bf16.mxu0 %v516
      %818 = vmatpush1.bf16.msra.mxu0 %v515
      %819 = vmatprep.subr.bf16.mxu0 %v522
      %820 = vmatpush1.bf16.msra.mxu0 %v521
      %821 = vmatprep.subr.bf16.mxu0 %v528
      %822 = vmatpush1.bf16.msra.mxu0 %v527
      %823 = vmatprep.subr.bf16.mxu0 %v534
      %824 = vmatpush1.bf16.msra.mxu0 %v533
      %825 = vmatprep.subr.bf16.mxu0 %v540
      %826 = vmatpush1.bf16.msra.mxu0 %v539
      %827 = vmatprep.subr.bf16.mxu0 %v546
      %828 = vmatpush1.bf16.msra.mxu0 %v545
      %829 = vmatprep.subr.bf16.mxu0 %v552
      %830 = vmatpush1.bf16.msra.mxu0 %v551
      %831 = vmatprep.subr.bf16.mxu0 %v558
      %832 = vmatpush1.bf16.msra.mxu0 %v557
      %833 = vmatprep.subr.bf16.mxu0 %v629
      %834 = vmatpush1.bf16.msra.mxu0 %v626
      %835 = vmatprep.subr.bf16.mxu0 0
      %836 = vmatpush1.bf16.msra.mxu0 0
      %837 = vmatprep.subr.bf16.mxu0 0
      %838 = vmatpush1.bf16.msra.mxu0 0
      %839 = vmatprep.subr.bf16.mxu0 0
      %840 = vmatpush1.bf16.msra.mxu0 0
      %841 = vmatprep.subr.bf16.mxu0 0
      %842 = vmatpush1.bf16.msra.mxu0 0
      %843 = vmatprep.subr.bf16.mxu0 0
      %844 = vmatpush1.bf16.msra.mxu0 0
      %845 = vmatprep.subr.bf16.mxu0 0
      %846 = vmatpush1.bf16.msra.mxu0 0
      %847 = vmatprep.subr.bf16.mxu0 0
      %848 = vmatpush1.bf16.msra.mxu0 0
      %849 = vmatprep.mubr.bf16.mxu0 %v812
      %850 = vmatmul.mubr.bf16.gmra.mrb[0].mxu0 %v805
      %v851 = vpop.f32.mrb[0].mxu0
      %v852 = vadd.f32 0.0, %v851
      %v853 = vpop.f32.mrb[0].mxu0
      %v854 = vadd.f32 0.0, %v853
      %v855 = vpop.f32.mrb[0].mxu0
      %v856 = vadd.f32 0.0, %v855
      %v857 = vpop.f32.mrb[0].mxu0
      %v858 = vadd.f32 0.0, %v857
      %859 = vmatprep.mubr.bf16.mxu0 %v815
      %860 = vmatmul.mubr.bf16.gmra.mrb[0].mxu0 %v807
      %v861 = vpop.f32.mrb[0].mxu0
      %v862 = vadd.f32 0.0, %v861
      %v863 = vpop.f32.mrb[0].mxu0
      %v864 = vadd.f32 0.0, %v863
      %v865 = vpop.f32.mrb[0].mxu0
      %v866 = vpop.f32.mrb[0].mxu0
      %867 = vdwg.mxu0
      %868 = vmatprep.subr.bf16.mxu0 %v518
      %869 = vmatpush1.bf16.msra.mxu0 %v517
      %870 = vmatprep.subr.bf16.mxu0 %v524
      %871 = vmatpush1.bf16.msra.mxu0 %v523
      %872 = vmatprep.subr.bf16.mxu0 %v530
      %873 = vmatpush1.bf16.msra.mxu0 %v529
      %874 = vmatprep.subr.bf16.mxu0 %v536
      %875 = vmatpush1.bf16.msra.mxu0 %v535
      %876 = vmatprep.subr.bf16.mxu0 %v542
      %877 = vmatpush1.bf16.msra.mxu0 %v541
      %878 = vmatprep.subr.bf16.mxu0 %v548
      %879 = vmatpush1.bf16.msra.mxu0 %v547
      %880 = vmatprep.subr.bf16.mxu0 %v554
      %881 = vmatpush1.bf16.msra.mxu0 %v553
      %882 = vmatprep.subr.bf16.mxu0 %v560
      %883 = vmatpush1.bf16.msra.mxu0 %v559
      %884 = vmatprep.subr.bf16.mxu0 %v635
      %885 = vmatpush1.bf16.msra.mxu0 %v632
      %886 = vmatprep.subr.bf16.mxu0 0
      %887 = vmatpush1.bf16.msra.mxu0 0
      %888 = vmatprep.subr.bf16.mxu0 0
      %889 = vmatpush1.bf16.msra.mxu0 0
      %890 = vmatprep.subr.bf16.mxu0 0
      %891 = vmatpush1.bf16.msra.mxu0 0
      %892 = vmatprep.subr.bf16.mxu0 0
      %893 = vmatpush1.bf16.msra.mxu0 0
      %894 = vmatprep.subr.bf16.mxu0 0
      %895 = vmatpush1.bf16.msra.mxu0 0
      %896 = vmatprep.subr.bf16.mxu0 0
      %897 = vmatpush1.bf16.msra.mxu0 0
      %898 = vmatprep.subr.bf16.mxu0 0
      %899 = vmatpush1.bf16.msra.mxu0 0
      %900 = vmatprep.mubr.bf16.mxu0 %v812
      %901 = vmatmul.mubr.bf16.gmra.mrb[0].mxu0 %v805
      %v902 = vpop.f32.mrb[0].mxu0
      %v903 = vadd.f32 0.0, %v902
      %v904 = vpop.f32.mrb[0].mxu0
      %v905 = vadd.f32 0.0, %v904
      %v906 = vpop.f32.mrb[0].mxu0
      %v907 = vadd.f32 0.0, %v906
      %v908 = vpop.f32.mrb[0].mxu0
      %v909 = vadd.f32 0.0, %v908
      %910 = vmatprep.mubr.bf16.mxu0 %v815
      %911 = vmatmul.mubr.bf16.gmra.mrb[0].mxu0 %v807
      %v912 = vpop.f32.mrb[0].mxu0
      %v913 = vadd.f32 0.0, %v912
      %v914 = vpop.f32.mrb[0].mxu0
      %v915 = vadd.f32 0.0, %v914
      %v916 = vpop.f32.mrb[0].mxu0
      %v917 = vpop.f32.mrb[0].mxu0
      %918 = vdwg.mxu0
      %919 = vmatprep.subr.bf16.mxu0 %v520
      %920 = vmatpush1.bf16.msra.mxu0 %v519
      %921 = vmatprep.subr.bf16.mxu0 %v526
      %922 = vmatpush1.bf16.msra.mxu0 %v525
      %923 = vmatprep.subr.bf16.mxu0 %v532
      %924 = vmatpush1.bf16.msra.mxu0 %v531
      %925 = vmatprep.subr.bf16.mxu0 %v538
      %926 = vmatpush1.bf16.msra.mxu0 %v537
      %927 = vmatprep.subr.bf16.mxu0 %v544
      %928 = vmatpush1.bf16.msra.mxu0 %v543
      %929 = vmatprep.subr.bf16.mxu0 %v550
      %930 = vmatpush1.bf16.msra.mxu0 %v549
      %931 = vmatprep.subr.bf16.mxu0 %v556
      %932 = vmatpush1.bf16.msra.mxu0 %v555
      %933 = vmatprep.subr.bf16.mxu0 %v562
      %934 = vmatpush1.bf16.msra.mxu0 %v561
      %935 = vmatprep.subr.bf16.mxu0 %v641
      %936 = vmatpush1.bf16.msra.mxu0 %v638
      %937 = vmatprep.subr.bf16.mxu0 0
      %938 = vmatpush1.bf16.msra.mxu0 0
      %939 = vmatprep.subr.bf16.mxu0 0
      %940 = vmatpush1.bf16.msra.mxu0 0
      %941 = vmatprep.subr.bf16.mxu0 0
      %942 = vmatpush1.bf16.msra.mxu0 0
      %943 = vmatprep.subr.bf16.mxu0 0
      %944 = vmatpush1.bf16.msra.mxu0 0
      %945 = vmatprep.subr.bf16.mxu0 0
      %946 = vmatpush1.bf16.msra.mxu0 0
      %947 = vmatprep.subr.bf16.mxu0 0
      %948 = vmatpush1.bf16.msra.mxu0 0
      %949 = vmatprep.subr.bf16.mxu0 0
      %950 = vmatpush1.bf16.msra.mxu0 0
      %951 = vmatprep.mubr.bf16.mxu0 %v812
      %952 = vmatmul.mubr.bf16.gmra.mrb[0].mxu0 %v805
      %v953 = vpop.f32.mrb[0].mxu0
      %v954 = vadd.f32 0.0, %v953
      %v955 = vpop.f32.mrb[0].mxu0
      %v956 = vadd.f32 0.0, %v955
      %v957 = vpop.f32.mrb[0].mxu0
      %v958 = vadd.f32 0.0, %v957
      %v959 = vpop.f32.mrb[0].mxu0
      %v960 = vadd.f32 0.0, %v959
      %961 = vmatprep.mubr.bf16.mxu0 %v815
      %962 = vmatmul.mubr.bf16.gmra.mrb[0].mxu0 %v807
      %v963 = vpop.f32.mrb[0].mxu0
      %v964 = vadd.f32 0.0, %v963
      %v965 = vpop.f32.mrb[0].mxu0
      %v966 = vadd.f32 0.0, %v965
      %v967 = vpop.f32.mrb[0].mxu0
      %v968 = vpop.f32.mrb[0].mxu0
      %969 = vdwg.mxu0
      %v970 = vmax.f32 %v678, %v852
      %v971 = vmax.f32 %v680, %v854
      %v972 = vmax.f32 %v729, %v903
      %v973 = vmax.f32 %v731, %v905
      %v974 = vmax.f32 %v780, %v954
      %v975 = vmax.f32 %v782, %v956
      %v976 = vmax.f32 %v682, %v856
      %v977 = vmax.f32 %v684, %v858
      %v978 = vmax.f32 %v733, %v907
      %v979 = vmax.f32 %v735, %v909
      %v980 = vmax.f32 %v784, %v958
      %v981 = vmax.f32 %v786, %v960
      %v982 = vmax.f32 %v688, %v862
      %v983 = vmax.f32 %v690, %v864
      %v984 = vmax.f32 %v739, %v913
      %v985 = vmax.f32 %v741, %v915
      %v986 = vmax.f32 %v790, %v964
      %v987 = vmax.f32 %v792, %v966
      %v988 = vmax.f32 %v970, %v973
      %v989 = vmax.f32 %v971, %v974
      %v990 = vmax.f32 %v972, %v975
      %v991 = vmax.f32 %v976, %v979
      %v992 = vmax.f32 %v977, %v980
      %v993 = vmax.f32 %v978, %v981
      %v994 = vmax.f32 %v982, %v985
      %v995 = vmax.f32 %v983, %v986
      %v996 = vmax.f32 %v984, %v987
      %v997 = vld [vmem:[%s2] sm:$0x7]
      %v999 = vlaneseq
      %v1000 = vshrl.u32 %v999, 7
      %v1001 = vsub.s32 0, %v1000
      %v1002 = vrot.slane %v997, %v1001
      %v1003 = vlaneseq
      %v1004 = vshrl.u32 %v1003, 7
      %v1005 = vsub.s32 1, %v1004
      %v1006 = vrot.slane %v997, %v1005
      %v1007 = vlaneseq
      %v1008 = vshrl.u32 %v1007, 7
      %v1009 = vsub.s32 2, %v1008
      %v1010 = vrot.slane %v997, %v1009
      %v1014 = vadd.f32 %v988, %v1002
      %v1015 = vadd.f32 %v989, %v1006
      %v1016 = vadd.f32 %v990, %v1010
      %v1017 = vadd.f32 %v991, %v1002
      %v1018 = vadd.f32 %v992, %v1006
      %v1019 = vadd.f32 %v993, %v1010
      %v1020 = vadd.f32 %v994, %v1002
      %v1021 = vadd.f32 %v995, %v1006
      %v1022 = vadd.f32 %v996, %v1010
      %v1023 = vmax.f32 %v1014, 0.0
      %v1024 = vmax.f32 %v1015, 0.0
      %v1025 = vmax.f32 %v1016, 0.0
      %v1026 = vmax.f32 %v1017, 0.0
      %v1027 = vmax.f32 %v1018, 0.0
      %v1028 = vmax.f32 %v1019, 0.0
      %v1029 = vmax.f32 %v1020, 0.0
      %v1030 = vmax.f32 %v1021, 0.0
      %v1031 = vmax.f32 %v1022, 0.0
      %v1032 = vpack.c.bf16 %v1026, %v1023
      %v1033 = vpack.c.bf16 %v1027, %v1024
      %v1034 = vpack.c.bf16 %v1028, %v1025
      %v1035 = vpack.c.bf16 %v1029, %v1029
      %v1036 = vpack.c.bf16 %v1030, %v1030
      %v1037 = vpack.c.bf16 %v1031, %v1031
      %v1041 = vcombine.low %v1032, %v1033
      %v1043 = vunpack.c.l.s4 1983009808
      %v1044 = vunpack.c.0.s8 %v1043
      %v1045 = vlaneseq
      %v1046 = vshrl.u32 %v1045, 7
      %v1047 = vsub.s32 %v1044, %v1046
      %v1048 = vrot.slane %v1041, %v1047
      %v1050 = vunpack.c.l.s4 1983009808
      %v1051 = vunpack.c.0.s8 %v1050
      %v1052 = vlaneseq
      %v1053 = vshrl.u32 %v1052, 7
      %v1054 = vsub.s32 %v1051, %v1053
      %v1055 = vrot.slane %v1034, %v1054
      %v1056 = vcombine.low %v1048, %v1055
      %1058 = vst [vmem:[#allocation2] sm:$0x3f] %v1056
      %v1059 = vcombine.high %v1048, %v1055
      %1061 = vst [vmem:[#allocation2 + $0x6] sm:$0x3f] %v1059
      %v1062 = vcombine.high %v1032, %v1033
      %v1063 = vcombine.high %v1034, %v1034
      %v1065 = vunpack.c.l.s4 1983009808
      %v1066 = vunpack.c.0.s8 %v1065
      %v1067 = vlaneseq
      %v1068 = vshrl.u32 %v1067, 7
      %v1069 = vsub.s32 %v1066, %v1068
      %v1070 = vrot.slane %v1062, %v1069
      %v1072 = vunpack.c.l.s4 1983009808
      %v1073 = vunpack.c.0.s8 %v1072
      %v1074 = vlaneseq
      %v1075 = vshrl.u32 %v1074, 7
      %v1076 = vsub.s32 %v1073, %v1075
      %v1077 = vrot.slane %v1063, %v1076
      %v1078 = vcombine.low %v1070, %v1077
      %1080 = vst [vmem:[#allocation2 + $0xc] sm:$0x3f] %v1078
      %v1081 = vcombine.high %v1070, %v1077
      %1083 = vst [vmem:[#allocation2 + $0x12] sm:$0x3f] %v1081
      %v1087 = vcombine.low %v1035, %v1036
      %v1089 = vunpack.c.l.s4 1983009808
      %v1090 = vunpack.c.0.s8 %v1089
      %v1091 = vlaneseq
      %v1092 = vshrl.u32 %v1091, 7
      %v1093 = vsub.s32 %v1090, %v1092
      %v1094 = vrot.slane %v1087, %v1093
      %v1096 = vunpack.c.l.s4 1983009808
      %v1097 = vunpack.c.0.s8 %v1096
      %v1098 = vlaneseq
      %v1099 = vshrl.u32 %v1098, 7
      %v1100 = vsub.s32 %v1097, %v1099
      %v1101 = vrot.slane %v1037, %v1100
      %v1102 = vcombine.low %v1094, %v1101
      %1104 = vst [vmem:[#allocation2 + $0x18] sm:$0x3f] %v1102
      %v1105 = vcombine.high %v1094, %v1101
      %1107 = vst [vmem:[#allocation2 + $0x1e] sm:$0x3f] %v1105
      %v1108 = vld [vmem:[#allocation2] sm:$0xff]
      %v1109 = vld [vmem:[#allocation2 + $0x8] sm:$0xff]
      %v1110 = vld [vmem:[#allocation2 + $0x10] sm:$0xff]
      %v1111 = vld [vmem:[#allocation2 + $0x18] sm:$0xff]
      %v1112 = vld [vmem:[#allocation2 + $0x20] sm:$0xf]
      %v1113 = vld [vmem:[%s3] sm:$0xff]
      %v1114 = vld [vmem:[%s3 + $0x8] sm:$0xff]
      %v1115 = vld [vmem:[%s3 + $0x10] sm:$0xff]
      %v1116 = vld [vmem:[%s3 + $0x18] sm:$0xff]
      %v1117 = vld [vmem:[%s3 + $0x20] sm:$0xff]
      %v1118 = vld [vmem:[%s3 + $0x28] sm:$0xff]
      %v1119 = vld [vmem:[%s3 + $0x30] sm:$0xff]
      %v1120 = vld [vmem:[%s3 + $0x38] sm:$0xff]
      %v1121 = vld [vmem:[%s3 + $0x40] sm:$0xff]
      %v1122 = vld [vmem:[%s3 + $0x48] sm:$0xff]
      %v1123 = vld [vmem:[%s3 + $0x50] sm:$0xff]
      %v1124 = vld [vmem:[%s3 + $0x58] sm:$0xff]
      %v1125 = vld [vmem:[%s3 + $0x60] sm:$0xff]
      %v1126 = vld [vmem:[%s3 + $0x68] sm:$0xff]
      %v1127 = vld [vmem:[%s3 + $0x70] sm:$0xff]
      %v1128 = vld [vmem:[%s3 + $0x78] sm:$0xff]
      %v1129 = vld [vmem:[%s3 + $0x80] sm:$0xff]
      %v1130 = vld [vmem:[%s3 + $0x88] sm:$0xff]
      %v1131 = vld [vmem:[%s3 + $0x90] sm:$0xff]
      %v1132 = vld [vmem:[%s3 + $0x98] sm:$0xff]
      %v1133 = vld [vmem:[%s3 + $0xa0] sm:$0xff]
      %v1134 = vld [vmem:[%s3 + $0xa8] sm:$0xff]
      %v1135 = vld [vmem:[%s3 + $0xb0] sm:$0xff]
      %v1136 = vld [vmem:[%s3 + $0xb8] sm:$0xff]
      %v1137 = vld [vmem:[%s3 + $0xc0] sm:$0xff]
      %v1138 = vld [vmem:[%s3 + $0xc8] sm:$0xff]
      %v1139 = vld [vmem:[%s3 + $0xd0] sm:$0xff]
      %v1140 = vld [vmem:[%s3 + $0xd8] sm:$0xff]
      %v1141 = vld [vmem:[%s3 + $0xe0] sm:$0xff]
      %v1142 = vld [vmem:[%s3 + $0xe8] sm:$0xff]
      %v1143 = vld [vmem:[%s3 + $0xf0] sm:$0xff]
      %v1144 = vld [vmem:[%s3 + $0xf8] sm:$0xff]
      %v1145 = vld [vmem:[%s3 + $0x100] sm:$0xff]
      %v1146 = vld [vmem:[%s3 + $0x108] sm:$0xff]
      %v1147 = vld [vmem:[%s3 + $0x110] sm:$0xff]
      %v1148 = vld [vmem:[%s3 + $0x118] sm:$0xff]
      %v1149 = vld [vmem:[%s3 + $0x120] sm:$0xff]
      %v1150 = vld [vmem:[%s3 + $0x128] sm:$0xff]
      %v1151 = vld [vmem:[%s3 + $0x130] sm:$0xff]
      %v1152 = vld [vmem:[%s3 + $0x138] sm:$0xff]
      %v1153 = vld [vmem:[%s3 + $0x140] sm:$0xff]
      %v1154 = vld [vmem:[%s3 + $0x148] sm:$0xff]
      %v1155 = vld [vmem:[%s3 + $0x150] sm:$0xff]
      %v1156 = vld [vmem:[%s3 + $0x158] sm:$0xff]
      %v1157 = vld [vmem:[%s3 + $0x160] sm:$0xff]
      %v1158 = vld [vmem:[%s3 + $0x168] sm:$0xff]
      %v1159 = vld [vmem:[%s3 + $0x170] sm:$0xff]
      %v1160 = vld [vmem:[%s3 + $0x178] sm:$0xff]
      %v1161 = vld [vmem:[%s3 + $0x180] sm:$0xff]
      %v1162 = vld [vmem:[%s3 + $0x188] sm:$0xff]
      %v1163 = vld [vmem:[%s3 + $0x190] sm:$0xff]
      %v1164 = vld [vmem:[%s3 + $0x198] sm:$0xff]
      %v1165 = vld [vmem:[%s3 + $0x1a0] sm:$0xff]
      %v1166 = vld [vmem:[%s3 + $0x1a8] sm:$0xff]
      %v1167 = vld [vmem:[%s3 + $0x1b0] sm:$0xff]
      %v1168 = vld [vmem:[%s3 + $0x1b8] sm:$0xff]
      %v1169 = vld [vmem:[%s3 + $0x1c0] sm:$0xff]
      %v1170 = vld [vmem:[%s3 + $0x1c8] sm:$0xff]
      %v1171 = vld [vmem:[%s3 + $0x1d0] sm:$0xff]
      %v1172 = vld [vmem:[%s3 + $0x1d8] sm:$0xff]
      %v1173 = vld [vmem:[%s3 + $0x1e0] sm:$0xff]
      %v1174 = vld [vmem:[%s3 + $0x1e8] sm:$0xff]
      %v1175 = vld [vmem:[%s3 + $0x1f0] sm:$0xff]
      %v1176 = vld [vmem:[%s3 + $0x1f8] sm:$0xff]
      %v1177 = vld [vmem:[%s3 + $0x200] sm:$0xff]
      %v1178 = vld [vmem:[%s3 + $0x208] sm:$0xff]
      %v1179 = vld [vmem:[%s3 + $0x210] sm:$0xff]
      %v1180 = vld [vmem:[%s3 + $0x218] sm:$0xff]
      %v1181 = vld [vmem:[%s3 + $0x220] sm:$0xff]
      %v1182 = vld [vmem:[%s3 + $0x228] sm:$0xff]
      %v1183 = vld [vmem:[%s3 + $0x230] sm:$0xff]
      %v1184 = vld [vmem:[%s3 + $0x238] sm:$0xff]
      %v1185 = vld [vmem:[%s3 + $0x240] sm:$0xff]
      %v1186 = vld [vmem:[%s3 + $0x248] sm:$0xff]
      %v1187 = vld [vmem:[%s3 + $0x250] sm:$0xff]
      %v1188 = vld [vmem:[%s3 + $0x258] sm:$0xff]
      %v1189 = vld [vmem:[%s3 + $0x260] sm:$0xff]
      %v1190 = vld [vmem:[%s3 + $0x268] sm:$0xff]
      %v1191 = vld [vmem:[%s3 + $0x270] sm:$0xff]
      %v1192 = vld [vmem:[%s3 + $0x278] sm:$0xff]
      %v1193 = vld [vmem:[%s3 + $0x280] sm:$0xff]
      %v1194 = vld [vmem:[%s3 + $0x288] sm:$0xff]
      %v1195 = vld [vmem:[%s3 + $0x290] sm:$0xff]
      %v1196 = vld [vmem:[%s3 + $0x298] sm:$0xff]
      %v1197 = vld [vmem:[%s3 + $0x2a0] sm:$0xff]
      %v1198 = vld [vmem:[%s3 + $0x2a8] sm:$0xff]
      %v1199 = vld [vmem:[%s3 + $0x2b0] sm:$0xff]
      %v1200 = vld [vmem:[%s3 + $0x2b8] sm:$0xff]
      %v1201 = vld [vmem:[%s3 + $0x2c0] sm:$0xff]
      %v1202 = vld [vmem:[%s3 + $0x2c8] sm:$0xff]
      %v1203 = vld [vmem:[%s3 + $0x2d0] sm:$0xff]
      %v1204 = vld [vmem:[%s3 + $0x2d8] sm:$0xff]
      %v1205 = vld [vmem:[%s3 + $0x2e0] sm:$0xff]
      %v1206 = vld [vmem:[%s3 + $0x2e8] sm:$0xff]
      %v1207 = vld [vmem:[%s3 + $0x2f0] sm:$0xff]
      %v1208 = vld [vmem:[%s3 + $0x2f8] sm:$0xff]
      %v1209 = vld [vmem:[%s3 + $0x300] sm:$0xff]
      %v1210 = vld [vmem:[%s3 + $0x308] sm:$0xff]
      %v1211 = vld [vmem:[%s3 + $0x310] sm:$0xff]
      %v1212 = vld [vmem:[%s3 + $0x318] sm:$0xff]
      %v1213 = vld [vmem:[%s3 + $0x320] sm:$0xff]
      %v1214 = vld [vmem:[%s3 + $0x328] sm:$0xff]
      %v1215 = vld [vmem:[%s3 + $0x330] sm:$0xff]
      %v1216 = vld [vmem:[%s3 + $0x338] sm:$0xff]
      %v1217 = vld [vmem:[%s3 + $0x340] sm:$0xff]
      %v1218 = vld [vmem:[%s3 + $0x348] sm:$0xff]
      %v1219 = vld [vmem:[%s3 + $0x350] sm:$0xff]
      %v1220 = vld [vmem:[%s3 + $0x358] sm:$0xff]
      %v1221 = vld [vmem:[%s3 + $0x360] sm:$0xff]
      %v1222 = vld [vmem:[%s3 + $0x368] sm:$0xff]
      %v1223 = vld [vmem:[%s3 + $0x370] sm:$0xff]
      %v1224 = vld [vmem:[%s3 + $0x378] sm:$0xff]
      %v1225 = vld [vmem:[%s3 + $0x380] sm:$0xff]
      %v1226 = vld [vmem:[%s3 + $0x388] sm:$0xff]
      %v1227 = vld [vmem:[%s3 + $0x390] sm:$0xff]
      %v1228 = vld [vmem:[%s3 + $0x398] sm:$0xff]
      %v1229 = vld [vmem:[%s3 + $0x3a0] sm:$0xff]
      %v1230 = vld [vmem:[%s3 + $0x3a8] sm:$0xff]
      %v1231 = vld [vmem:[%s3 + $0x3b0] sm:$0xff]
      %v1232 = vld [vmem:[%s3 + $0x3b8] sm:$0xff]
      %v1233 = vld [vmem:[%s3 + $0x3c0] sm:$0xff]
      %v1234 = vld [vmem:[%s3 + $0x3c8] sm:$0xff]
      %v1235 = vld [vmem:[%s3 + $0x3d0] sm:$0xff]
      %v1236 = vld [vmem:[%s3 + $0x3d8] sm:$0xff]
      %v1237 = vld [vmem:[%s3 + $0x3e0] sm:$0xff]
      %v1238 = vld [vmem:[%s3 + $0x3e8] sm:$0xff]
      %v1239 = vld [vmem:[%s3 + $0x3f0] sm:$0xff]
      %v1240 = vld [vmem:[%s3 + $0x3f8] sm:$0xff]
      %v1241 = vld [vmem:[%s3 + $0x400] sm:$0xff]
      %v1242 = vld [vmem:[%s3 + $0x408] sm:$0xff]
      %v1243 = vld [vmem:[%s3 + $0x410] sm:$0xff]
      %v1244 = vld [vmem:[%s3 + $0x418] sm:$0xff]
      %v1245 = vld [vmem:[%s3 + $0x420] sm:$0xff]
      %v1246 = vld [vmem:[%s3 + $0x428] sm:$0xff]
      %v1247 = vld [vmem:[%s3 + $0x430] sm:$0xff]
      %v1248 = vld [vmem:[%s3 + $0x438] sm:$0xff]
      %v1249 = vld [vmem:[%s3 + $0x440] sm:$0xff]
      %v1250 = vld [vmem:[%s3 + $0x448] sm:$0xff]
      %v1251 = vld [vmem:[%s3 + $0x450] sm:$0xff]
      %v1252 = vld [vmem:[%s3 + $0x458] sm:$0xff]
      %v1253 = vld [vmem:[%s3 + $0x460] sm:$0xff]
      %v1254 = vld [vmem:[%s3 + $0x468] sm:$0xff]
      %v1255 = vld [vmem:[%s3 + $0x470] sm:$0xff]
      %v1256 = vld [vmem:[%s3 + $0x478] sm:$0xff]
      %v1257 = vld [vmem:[%s3 + $0x480] sm:$0xff]
      %v1258 = vld [vmem:[%s3 + $0x488] sm:$0xff]
      %v1259 = vld [vmem:[%s3 + $0x490] sm:$0xff]
      %v1260 = vld [vmem:[%s3 + $0x498] sm:$0xff]
      %v1261 = vld [vmem:[%s3 + $0x4a0] sm:$0xff]
      %v1262 = vld [vmem:[%s3 + $0x4a8] sm:$0xff]
      %v1263 = vld [vmem:[%s3 + $0x4b0] sm:$0xff]
      %v1264 = vld [vmem:[%s3 + $0x4b8] sm:$0xff]
      %v1265 = vld [vmem:[%s3 + $0x4c0] sm:$0xff]
      %v1266 = vld [vmem:[%s3 + $0x4c8] sm:$0xff]
      %v1267 = vld [vmem:[%s3 + $0x4d0] sm:$0xff]
      %v1268 = vld [vmem:[%s3 + $0x4d8] sm:$0xff]
      %v1269 = vld [vmem:[%s3 + $0x4e0] sm:$0xff]
      %v1270 = vld [vmem:[%s3 + $0x4e8] sm:$0xff]
      %v1271 = vld [vmem:[%s3 + $0x4f0] sm:$0xff]
      %v1272 = vld [vmem:[%s3 + $0x4f8] sm:$0xff]
      %v1273 = vld [vmem:[%s3 + $0x500] sm:$0xff]
      %v1274 = vld [vmem:[%s3 + $0x508] sm:$0xff]
      %v1275 = vld [vmem:[%s3 + $0x510] sm:$0xff]
      %v1276 = vld [vmem:[%s3 + $0x518] sm:$0xff]
      %v1277 = vld [vmem:[%s3 + $0x520] sm:$0xff]
      %v1278 = vld [vmem:[%s3 + $0x528] sm:$0xff]
      %v1279 = vld [vmem:[%s3 + $0x530] sm:$0xff]
      %v1280 = vld [vmem:[%s3 + $0x538] sm:$0xff]
      %v1281 = vld [vmem:[%s3 + $0x540] sm:$0xff]
      %v1282 = vld [vmem:[%s3 + $0x548] sm:$0xff]
      %v1283 = vld [vmem:[%s3 + $0x550] sm:$0xff]
      %v1284 = vld [vmem:[%s3 + $0x558] sm:$0xff]
      %v1285 = vld [vmem:[%s3 + $0x560] sm:$0xff]
      %v1286 = vld [vmem:[%s3 + $0x568] sm:$0xff]
      %v1287 = vld [vmem:[%s3 + $0x570] sm:$0xff]
      %v1288 = vld [vmem:[%s3 + $0x578] sm:$0xff]
      %v1289 = vld [vmem:[%s3 + $0x580] sm:$0xff]
      %v1290 = vld [vmem:[%s3 + $0x588] sm:$0xff]
      %v1291 = vld [vmem:[%s3 + $0x590] sm:$0xff]
      %v1292 = vld [vmem:[%s3 + $0x598] sm:$0xff]
      %v1293 = vld [vmem:[%s3 + $0x5a0] sm:$0xff]
      %v1294 = vld [vmem:[%s3 + $0x5a8] sm:$0xff]
      %v1295 = vld [vmem:[%s3 + $0x5b0] sm:$0xff]
      %v1296 = vld [vmem:[%s3 + $0x5b8] sm:$0xff]
      %v1297 = vld [vmem:[%s3 + $0x5c0] sm:$0xff]
      %v1298 = vld [vmem:[%s3 + $0x5c8] sm:$0xff]
      %v1299 = vld [vmem:[%s3 + $0x5d0] sm:$0xff]
      %v1300 = vld [vmem:[%s3 + $0x5d8] sm:$0xff]
      %v1301 = vld [vmem:[%s3 + $0x5e0] sm:$0xff]
      %v1302 = vld [vmem:[%s3 + $0x5e8] sm:$0xff]
      %v1303 = vld [vmem:[%s3 + $0x5f0] sm:$0xff]
      %v1304 = vld [vmem:[%s3 + $0x5f8] sm:$0xff]
      %v1305 = vld [vmem:[%s3 + $0x600] sm:$0xff]
      %v1306 = vld [vmem:[%s3 + $0x608] sm:$0xff]
      %v1307 = vld [vmem:[%s3 + $0x610] sm:$0xff]
      %v1308 = vld [vmem:[%s3 + $0x618] sm:$0xff]
      %v1309 = vld [vmem:[%s3 + $0x620] sm:$0xff]
      %v1310 = vld [vmem:[%s3 + $0x628] sm:$0xff]
      %v1311 = vld [vmem:[%s3 + $0x630] sm:$0xff]
      %v1312 = vld [vmem:[%s3 + $0x638] sm:$0xff]
      %v1313 = vld [vmem:[%s3 + $0x640] sm:$0xff]
      %v1314 = vld [vmem:[%s3 + $0x648] sm:$0xff]
      %v1315 = vld [vmem:[%s3 + $0x650] sm:$0xff]
      %v1316 = vld [vmem:[%s3 + $0x658] sm:$0xff]
      %v1317 = vld [vmem:[%s3 + $0x660] sm:$0xff]
      %v1318 = vld [vmem:[%s3 + $0x668] sm:$0xff]
      %v1319 = vld [vmem:[%s3 + $0x670] sm:$0xff]
      %v1320 = vld [vmem:[%s3 + $0x678] sm:$0xff]
      %v1321 = vld [vmem:[%s3 + $0x680] sm:$0xff]
      %v1322 = vld [vmem:[%s3 + $0x688] sm:$0xff]
      %v1323 = vld [vmem:[%s3 + $0x690] sm:$0xff]
      %v1324 = vld [vmem:[%s3 + $0x698] sm:$0xff]
      %v1325 = vld [vmem:[%s3 + $0x6a0] sm:$0xff]
      %v1326 = vld [vmem:[%s3 + $0x6a8] sm:$0xff]
      %v1327 = vld [vmem:[%s3 + $0x6b0] sm:$0xff]
      %v1328 = vld [vmem:[%s3 + $0x6b8] sm:$0xff]
      %v1329 = vld [vmem:[%s3 + $0x6c0] sm:$0xff]
      %v1330 = vld [vmem:[%s3 + $0x6c8] sm:$0xff]
      %v1331 = vld [vmem:[%s3 + $0x6d0] sm:$0xff]
      %v1332 = vld [vmem:[%s3 + $0x6d8] sm:$0xff]
      %v1333 = vld [vmem:[%s3 + $0x6e0] sm:$0xff]
      %v1334 = vld [vmem:[%s3 + $0x6e8] sm:$0xff]
      %v1335 = vld [vmem:[%s3 + $0x6f0] sm:$0xff]
      %v1336 = vld [vmem:[%s3 + $0x6f8] sm:$0xff]
      %v1337 = vld [vmem:[%s3 + $0x700] sm:$0xff]
      %v1338 = vld [vmem:[%s3 + $0x708] sm:$0xff]
      %v1339 = vld [vmem:[%s3 + $0x710] sm:$0xff]
      %v1340 = vld [vmem:[%s3 + $0x718] sm:$0xff]
      %v1341 = vld [vmem:[%s3 + $0x720] sm:$0xff]
      %v1342 = vld [vmem:[%s3 + $0x728] sm:$0xff]
      %v1343 = vld [vmem:[%s3 + $0x730] sm:$0xff]
      %v1344 = vld [vmem:[%s3 + $0x738] sm:$0xff]
      %v1345 = vld [vmem:[%s3 + $0x740] sm:$0xff]
      %v1346 = vld [vmem:[%s3 + $0x748] sm:$0xff]
      %v1347 = vld [vmem:[%s3 + $0x750] sm:$0xff]
      %v1348 = vld [vmem:[%s3 + $0x758] sm:$0xff]
      %v1349 = vld [vmem:[%s3 + $0x760] sm:$0xff]
      %v1350 = vld [vmem:[%s3 + $0x768] sm:$0xff]
      %v1351 = vld [vmem:[%s3 + $0x770] sm:$0xff]
      %v1352 = vld [vmem:[%s3 + $0x778] sm:$0xff]
      %v1353 = vld [vmem:[%s3 + $0x780] sm:$0xff]
      %v1354 = vld [vmem:[%s3 + $0x788] sm:$0xff]
      %v1355 = vld [vmem:[%s3 + $0x790] sm:$0xff]
      %v1356 = vld [vmem:[%s3 + $0x798] sm:$0xff]
      %v1357 = vld [vmem:[%s3 + $0x7a0] sm:$0xff]
      %v1358 = vld [vmem:[%s3 + $0x7a8] sm:$0xff]
      %v1359 = vld [vmem:[%s3 + $0x7b0] sm:$0xff]
      %v1360 = vld [vmem:[%s3 + $0x7b8] sm:$0xff]
      %v1361 = vld [vmem:[%s3 + $0x7c0] sm:$0xff]
      %v1362 = vld [vmem:[%s3 + $0x7c8] sm:$0xff]
      %v1363 = vld [vmem:[%s3 + $0x7d0] sm:$0xff]
      %v1364 = vld [vmem:[%s3 + $0x7d8] sm:$0xff]
      %v1365 = vld [vmem:[%s3 + $0x7e0] sm:$0xff]
      %v1366 = vld [vmem:[%s3 + $0x7e8] sm:$0xff]
      %v1367 = vld [vmem:[%s3 + $0x7f0] sm:$0xff]
      %v1368 = vld [vmem:[%s3 + $0x7f8] sm:$0xff]
      %v1369 = vld [vmem:[%s3 + $0x800] sm:$0xff]
      %v1370 = vld [vmem:[%s3 + $0x808] sm:$0xff]
      %v1371 = vld [vmem:[%s3 + $0x810] sm:$0xff]
      %v1372 = vld [vmem:[%s3 + $0x818] sm:$0xff]
      %v1373 = vld [vmem:[%s3 + $0x820] sm:$0xff]
      %v1374 = vld [vmem:[%s3 + $0x828] sm:$0xff]
      %v1375 = vld [vmem:[%s3 + $0x830] sm:$0xff]
      %v1376 = vld [vmem:[%s3 + $0x838] sm:$0xff]
      %v1377 = vld [vmem:[%s3 + $0x840] sm:$0xff]
      %v1378 = vld [vmem:[%s3 + $0x848] sm:$0xff]
      %v1379 = vld [vmem:[%s3 + $0x850] sm:$0xff]
      %v1380 = vld [vmem:[%s3 + $0x858] sm:$0xff]
      %v1381 = vld [vmem:[%s3 + $0x860] sm:$0xff]
      %v1382 = vld [vmem:[%s3 + $0x868] sm:$0xff]
      %v1383 = vld [vmem:[%s3 + $0x870] sm:$0xff]
      %v1384 = vld [vmem:[%s3 + $0x878] sm:$0xff]
      %v1385 = vld [vmem:[%s3 + $0x880] sm:$0xff]
      %v1386 = vld [vmem:[%s3 + $0x888] sm:$0xff]
      %v1387 = vld [vmem:[%s3 + $0x890] sm:$0xff]
      %v1388 = vld [vmem:[%s3 + $0x898] sm:$0xff]
      %v1389 = vld [vmem:[%s3 + $0x8a0] sm:$0xff]
      %v1390 = vld [vmem:[%s3 + $0x8a8] sm:$0xff]
      %v1391 = vld [vmem:[%s3 + $0x8b0] sm:$0xff]
      %v1392 = vld [vmem:[%s3 + $0x8b8] sm:$0xff]
      %v1393 = vld [vmem:[%s3 + $0x8c0] sm:$0xff]
      %v1394 = vld [vmem:[%s3 + $0x8c8] sm:$0xff]
      %v1395 = vld [vmem:[%s3 + $0x8d0] sm:$0xff]
      %v1396 = vld [vmem:[%s3 + $0x8d8] sm:$0xff]
      %v1397 = vld [vmem:[%s3 + $0x8e0] sm:$0xff]
      %v1398 = vld [vmem:[%s3 + $0x8e8] sm:$0xff]
      %v1399 = vld [vmem:[%s3 + $0x8f0] sm:$0xff]
      %v1400 = vld [vmem:[%s3 + $0x8f8] sm:$0xff]
      %v1401 = vld [vmem:[%s3 + $0x900] sm:$0xff]
      %v1402 = vld [vmem:[%s3 + $0x908] sm:$0xff]
      %v1403 = vld [vmem:[%s3 + $0x910] sm:$0xff]
      %v1404 = vld [vmem:[%s3 + $0x918] sm:$0xff]
      %v1405 = vld [vmem:[%s3 + $0x920] sm:$0xff]
      %v1406 = vld [vmem:[%s3 + $0x928] sm:$0xff]
      %v1407 = vld [vmem:[%s3 + $0x930] sm:$0xff]
      %v1408 = vld [vmem:[%s3 + $0x938] sm:$0xff]
      %v1409 = vld [vmem:[%s3 + $0x940] sm:$0xff]
      %v1410 = vld [vmem:[%s3 + $0x948] sm:$0xff]
      %v1411 = vld [vmem:[%s3 + $0x950] sm:$0xff]
      %v1412 = vld [vmem:[%s3 + $0x958] sm:$0xff]
      %v1413 = vld [vmem:[%s3 + $0x960] sm:$0xff]
      %v1414 = vld [vmem:[%s3 + $0x968] sm:$0xff]
      %v1415 = vld [vmem:[%s3 + $0x970] sm:$0xff]
      %v1416 = vld [vmem:[%s3 + $0x978] sm:$0xff]
      %v1417 = vld [vmem:[%s3 + $0x980] sm:$0xff]
      %v1418 = vld [vmem:[%s3 + $0x988] sm:$0xff]
      %v1419 = vld [vmem:[%s3 + $0x990] sm:$0xff]
      %v1420 = vld [vmem:[%s3 + $0x998] sm:$0xff]
      %v1421 = vld [vmem:[%s3 + $0x9a0] sm:$0xff]
      %v1422 = vld [vmem:[%s3 + $0x9a8] sm:$0xff]
      %v1423 = vld [vmem:[%s3 + $0x9b0] sm:$0xff]
      %v1424 = vld [vmem:[%s3 + $0x9b8] sm:$0xff]
      %v1425 = vld [vmem:[%s3 + $0x9c0] sm:$0xff]
      %v1426 = vld [vmem:[%s3 + $0x9c8] sm:$0xff]
      %v1427 = vld [vmem:[%s3 + $0x9d0] sm:$0xff]
      %v1428 = vld [vmem:[%s3 + $0x9d8] sm:$0xff]
      %v1429 = vld [vmem:[%s3 + $0x9e0] sm:$0xff]
      %v1430 = vld [vmem:[%s3 + $0x9e8] sm:$0xff]
      %v1431 = vld [vmem:[%s3 + $0x9f0] sm:$0xff]
      %v1432 = vld [vmem:[%s3 + $0x9f8] sm:$0xff]
      %v1433 = vld [vmem:[%s3 + $0xa00] sm:$0xff]
      %v1434 = vld [vmem:[%s3 + $0xa08] sm:$0xff]
      %v1435 = vld [vmem:[%s3 + $0xa10] sm:$0xff]
      %v1436 = vld [vmem:[%s3 + $0xa18] sm:$0xff]
      %v1437 = vld [vmem:[%s3 + $0xa20] sm:$0xff]
      %v1438 = vld [vmem:[%s3 + $0xa28] sm:$0xff]
      %v1439 = vld [vmem:[%s3 + $0xa30] sm:$0xff]
      %v1440 = vld [vmem:[%s3 + $0xa38] sm:$0xff]
      %v1441 = vld [vmem:[%s3 + $0xa40] sm:$0xff]
      %v1442 = vld [vmem:[%s3 + $0xa48] sm:$0xff]
      %v1443 = vld [vmem:[%s3 + $0xa50] sm:$0xff]
      %v1444 = vld [vmem:[%s3 + $0xa58] sm:$0xff]
      %v1445 = vld [vmem:[%s3 + $0xa60] sm:$0xff]
      %v1446 = vld [vmem:[%s3 + $0xa68] sm:$0xff]
      %v1447 = vld [vmem:[%s3 + $0xa70] sm:$0xff]
      %v1448 = vld [vmem:[%s3 + $0xa78] sm:$0xff]
      %v1449 = vld [vmem:[%s3 + $0xa80] sm:$0xff]
      %v1450 = vld [vmem:[%s3 + $0xa88] sm:$0xff]
      %v1451 = vld [vmem:[%s3 + $0xa90] sm:$0xff]
      %v1452 = vld [vmem:[%s3 + $0xa98] sm:$0xff]
      %v1453 = vld [vmem:[%s3 + $0xaa0] sm:$0xff]
      %v1454 = vld [vmem:[%s3 + $0xaa8] sm:$0xff]
      %v1455 = vld [vmem:[%s3 + $0xab0] sm:$0xff]
      %v1456 = vld [vmem:[%s3 + $0xab8] sm:$0xff]
      %v1457 = vld [vmem:[%s3 + $0xac0] sm:$0xff]
      %v1458 = vld [vmem:[%s3 + $0xac8] sm:$0xff]
      %v1459 = vld [vmem:[%s3 + $0xad0] sm:$0xff]
      %v1460 = vld [vmem:[%s3 + $0xad8] sm:$0xff]
      %v1461 = vld [vmem:[%s3 + $0xae0] sm:$0xff]
      %v1462 = vld [vmem:[%s3 + $0xae8] sm:$0xff]
      %v1463 = vld [vmem:[%s3 + $0xaf0] sm:$0xff]
      %v1464 = vld [vmem:[%s3 + $0xaf8] sm:$0xff]
      %v1465 = vld [vmem:[%s3 + $0xb00] sm:$0xff]
      %v1466 = vld [vmem:[%s3 + $0xb08] sm:$0xff]
      %v1467 = vld [vmem:[%s3 + $0xb10] sm:$0xff]
      %v1468 = vld [vmem:[%s3 + $0xb18] sm:$0xff]
      %v1469 = vld [vmem:[%s3 + $0xb20] sm:$0xff]
      %v1470 = vld [vmem:[%s3 + $0xb28] sm:$0xff]
      %v1471 = vld [vmem:[%s3 + $0xb30] sm:$0xff]
      %v1472 = vld [vmem:[%s3 + $0xb38] sm:$0xff]
      %v1473 = vld [vmem:[%s3 + $0xb40] sm:$0xff]
      %v1474 = vld [vmem:[%s3 + $0xb48] sm:$0xff]
      %v1475 = vld [vmem:[%s3 + $0xb50] sm:$0xff]
      %v1476 = vld [vmem:[%s3 + $0xb58] sm:$0xff]
      %v1477 = vld [vmem:[%s3 + $0xb60] sm:$0xff]
      %v1478 = vld [vmem:[%s3 + $0xb68] sm:$0xff]
      %v1479 = vld [vmem:[%s3 + $0xb70] sm:$0xff]
      %v1480 = vld [vmem:[%s3 + $0xb78] sm:$0xff]
      %v1481 = vld [vmem:[%s3 + $0xb80] sm:$0xff]
      %v1482 = vld [vmem:[%s3 + $0xb88] sm:$0xff]
      %v1483 = vld [vmem:[%s3 + $0xb90] sm:$0xff]
      %v1484 = vld [vmem:[%s3 + $0xb98] sm:$0xff]
      %v1485 = vld [vmem:[%s3 + $0xba0] sm:$0xff]
      %v1486 = vld [vmem:[%s3 + $0xba8] sm:$0xff]
      %v1487 = vld [vmem:[%s3 + $0xbb0] sm:$0xff]
      %v1488 = vld [vmem:[%s3 + $0xbb8] sm:$0xff]
      %v1489 = vld [vmem:[%s3 + $0xbc0] sm:$0xff]
      %v1490 = vld [vmem:[%s3 + $0xbc8] sm:$0xff]
      %v1491 = vld [vmem:[%s3 + $0xbd0] sm:$0xff]
      %v1492 = vld [vmem:[%s3 + $0xbd8] sm:$0xff]
      %v1493 = vld [vmem:[%s3 + $0xbe0] sm:$0xff]
      %v1494 = vld [vmem:[%s3 + $0xbe8] sm:$0xff]
      %v1495 = vld [vmem:[%s3 + $0xbf0] sm:$0xff]
      %v1496 = vld [vmem:[%s3 + $0xbf8] sm:$0xff]
      %v1497 = vld [vmem:[%s3 + $0xc00] sm:$0xff]
      %v1498 = vld [vmem:[%s3 + $0xc08] sm:$0xff]
      %v1499 = vld [vmem:[%s3 + $0xc10] sm:$0xff]
      %v1500 = vld [vmem:[%s3 + $0xc18] sm:$0xff]
      %v1501 = vld [vmem:[%s3 + $0xc20] sm:$0xff]
      %v1502 = vld [vmem:[%s3 + $0xc28] sm:$0xff]
      %v1503 = vld [vmem:[%s3 + $0xc30] sm:$0xff]
      %v1504 = vld [vmem:[%s3 + $0xc38] sm:$0xff]
      %v1505 = vld [vmem:[%s3 + $0xc40] sm:$0xff]
      %v1506 = vld [vmem:[%s3 + $0xc48] sm:$0xff]
      %v1507 = vld [vmem:[%s3 + $0xc50] sm:$0xff]
      %v1508 = vld [vmem:[%s3 + $0xc58] sm:$0xff]
      %v1509 = vld [vmem:[%s3 + $0xc60] sm:$0xff]
      %v1510 = vld [vmem:[%s3 + $0xc68] sm:$0xff]
      %v1511 = vld [vmem:[%s3 + $0xc70] sm:$0xff]
      %v1512 = vld [vmem:[%s3 + $0xc78] sm:$0xff]
      %v1513 = vld [vmem:[%s3 + $0xc80] sm:$0xff]
      %v1514 = vld [vmem:[%s3 + $0xc88] sm:$0xff]
      %v1515 = vld [vmem:[%s3 + $0xc90] sm:$0xff]
      %v1516 = vld [vmem:[%s3 + $0xc98] sm:$0xff]
      %v1517 = vld [vmem:[%s3 + $0xca0] sm:$0xff]
      %v1518 = vld [vmem:[%s3 + $0xca8] sm:$0xff]
      %v1519 = vld [vmem:[%s3 + $0xcb0] sm:$0xff]
      %v1520 = vld [vmem:[%s3 + $0xcb8] sm:$0xff]
      %v1521 = vld [vmem:[%s3 + $0xcc0] sm:$0xff]
      %v1522 = vld [vmem:[%s3 + $0xcc8] sm:$0xff]
      %v1523 = vld [vmem:[%s3 + $0xcd0] sm:$0xff]
      %v1524 = vld [vmem:[%s3 + $0xcd8] sm:$0xff]
      %v1525 = vld [vmem:[%s3 + $0xce0] sm:$0xff]
      %v1526 = vld [vmem:[%s3 + $0xce8] sm:$0xff]
      %v1527 = vld [vmem:[%s3 + $0xcf0] sm:$0xff]
      %v1528 = vld [vmem:[%s3 + $0xcf8] sm:$0xff]
      %v1529 = vld [vmem:[%s3 + $0xd00] sm:$0xff]
      %v1530 = vld [vmem:[%s3 + $0xd08] sm:$0xff]
      %v1531 = vld [vmem:[%s3 + $0xd10] sm:$0xff]
      %v1532 = vld [vmem:[%s3 + $0xd18] sm:$0xff]
      %v1533 = vld [vmem:[%s3 + $0xd20] sm:$0xff]
      %v1534 = vld [vmem:[%s3 + $0xd28] sm:$0xff]
      %v1535 = vld [vmem:[%s3 + $0xd30] sm:$0xff]
      %v1536 = vld [vmem:[%s3 + $0xd38] sm:$0xff]
      %v1537 = vld [vmem:[%s3 + $0xd40] sm:$0xff]
      %v1538 = vld [vmem:[%s3 + $0xd48] sm:$0xff]
      %v1539 = vld [vmem:[%s3 + $0xd50] sm:$0xff]
      %v1540 = vld [vmem:[%s3 + $0xd58] sm:$0xff]
      %v1541 = vld [vmem:[%s3 + $0xd60] sm:$0xff]
      %v1542 = vld [vmem:[%s3 + $0xd68] sm:$0xff]
      %v1543 = vld [vmem:[%s3 + $0xd70] sm:$0xff]
      %v1544 = vld [vmem:[%s3 + $0xd78] sm:$0xff]
      %v1545 = vld [vmem:[%s3 + $0xd80] sm:$0xff]
      %v1546 = vld [vmem:[%s3 + $0xd88] sm:$0xff]
      %v1547 = vld [vmem:[%s3 + $0xd90] sm:$0xff]
      %v1548 = vld [vmem:[%s3 + $0xd98] sm:$0xff]
      %v1549 = vld [vmem:[%s3 + $0xda0] sm:$0xff]
      %v1550 = vld [vmem:[%s3 + $0xda8] sm:$0xff]
      %v1551 = vld [vmem:[%s3 + $0xdb0] sm:$0xff]
      %v1552 = vld [vmem:[%s3 + $0xdb8] sm:$0xff]
      %v1553 = vld [vmem:[%s3 + $0xdc0] sm:$0xff]
      %v1554 = vld [vmem:[%s3 + $0xdc8] sm:$0xff]
      %v1555 = vld [vmem:[%s3 + $0xdd0] sm:$0xff]
      %v1556 = vld [vmem:[%s3 + $0xdd8] sm:$0xff]
      %v1557 = vld [vmem:[%s3 + $0xde0] sm:$0xff]
      %v1558 = vld [vmem:[%s3 + $0xde8] sm:$0xff]
      %v1559 = vld [vmem:[%s3 + $0xdf0] sm:$0xff]
      %v1560 = vld [vmem:[%s3 + $0xdf8] sm:$0xff]
      %v1561 = vld [vmem:[%s3 + $0xe00] sm:$0xff]
      %v1562 = vld [vmem:[%s3 + $0xe08] sm:$0xff]
      %v1563 = vld [vmem:[%s3 + $0xe10] sm:$0xff]
      %v1564 = vld [vmem:[%s3 + $0xe18] sm:$0xff]
      %v1565 = vld [vmem:[%s3 + $0xe20] sm:$0xff]
      %v1566 = vld [vmem:[%s3 + $0xe28] sm:$0xff]
      %v1567 = vld [vmem:[%s3 + $0xe30] sm:$0xff]
      %v1568 = vld [vmem:[%s3 + $0xe38] sm:$0xff]
      %v1569 = vld [vmem:[%s3 + $0xe40] sm:$0xff]
      %v1570 = vld [vmem:[%s3 + $0xe48] sm:$0xff]
      %v1571 = vld [vmem:[%s3 + $0xe50] sm:$0xff]
      %v1572 = vld [vmem:[%s3 + $0xe58] sm:$0xff]
      %v1573 = vld [vmem:[%s3 + $0xe60] sm:$0xff]
      %v1574 = vld [vmem:[%s3 + $0xe68] sm:$0xff]
      %v1575 = vld [vmem:[%s3 + $0xe70] sm:$0xff]
      %v1576 = vld [vmem:[%s3 + $0xe78] sm:$0xff]
      %v1577 = vld [vmem:[%s3 + $0xe80] sm:$0xff]
      %v1578 = vld [vmem:[%s3 + $0xe88] sm:$0xff]
      %v1579 = vld [vmem:[%s3 + $0xe90] sm:$0xff]
      %v1580 = vld [vmem:[%s3 + $0xe98] sm:$0xff]
      %v1581 = vld [vmem:[%s3 + $0xea0] sm:$0xff]
      %v1582 = vld [vmem:[%s3 + $0xea8] sm:$0xff]
      %v1583 = vld [vmem:[%s3 + $0xeb0] sm:$0xff]
      %v1584 = vld [vmem:[%s3 + $0xeb8] sm:$0xff]
      %v1585 = vld [vmem:[%s3 + $0xec0] sm:$0xff]
      %v1586 = vld [vmem:[%s3 + $0xec8] sm:$0xff]
      %v1587 = vld [vmem:[%s3 + $0xed0] sm:$0xff]
      %v1588 = vld [vmem:[%s3 + $0xed8] sm:$0xff]
      %v1589 = vld [vmem:[%s3 + $0xee0] sm:$0xff]
      %v1590 = vld [vmem:[%s3 + $0xee8] sm:$0xff]
      %v1591 = vld [vmem:[%s3 + $0xef0] sm:$0xff]
      %v1592 = vld [vmem:[%s3 + $0xef8] sm:$0xff]
      %v1593 = vld [vmem:[%s3 + $0xf00] sm:$0xff]
      %v1594 = vld [vmem:[%s3 + $0xf08] sm:$0xff]
      %v1595 = vld [vmem:[%s3 + $0xf10] sm:$0xff]
      %v1596 = vld [vmem:[%s3 + $0xf18] sm:$0xff]
      %v1597 = vld [vmem:[%s3 + $0xf20] sm:$0xff]
      %v1598 = vld [vmem:[%s3 + $0xf28] sm:$0xff]
      %v1599 = vld [vmem:[%s3 + $0xf30] sm:$0xff]
      %v1600 = vld [vmem:[%s3 + $0xf38] sm:$0xff]
      %v1601 = vld [vmem:[%s3 + $0xf40] sm:$0xff]
      %v1602 = vld [vmem:[%s3 + $0xf48] sm:$0xff]
      %v1603 = vld [vmem:[%s3 + $0xf50] sm:$0xff]
      %v1604 = vld [vmem:[%s3 + $0xf58] sm:$0xff]
      %v1605 = vld [vmem:[%s3 + $0xf60] sm:$0xff]
      %v1606 = vld [vmem:[%s3 + $0xf68] sm:$0xff]
      %v1607 = vld [vmem:[%s3 + $0xf70] sm:$0xff]
      %v1608 = vld [vmem:[%s3 + $0xf78] sm:$0xff]
      %v1609 = vld [vmem:[%s3 + $0xf80] sm:$0xff]
      %v1610 = vld [vmem:[%s3 + $0xf88] sm:$0xff]
      %v1611 = vld [vmem:[%s3 + $0xf90] sm:$0xff]
      %v1612 = vld [vmem:[%s3 + $0xf98] sm:$0xff]
      %v1613 = vld [vmem:[%s3 + $0xfa0] sm:$0xff]
      %v1614 = vld [vmem:[%s3 + $0xfa8] sm:$0xff]
      %v1615 = vld [vmem:[%s3 + $0xfb0] sm:$0xff]
      %v1616 = vld [vmem:[%s3 + $0xfb8] sm:$0xff]
      %v1617 = vld [vmem:[%s3 + $0xfc0] sm:$0xff]
      %v1618 = vld [vmem:[%s3 + $0xfc8] sm:$0xff]
      %v1619 = vld [vmem:[%s3 + $0xfd0] sm:$0xff]
      %v1620 = vld [vmem:[%s3 + $0xfd8] sm:$0xff]
      %v1621 = vld [vmem:[%s3 + $0xfe0] sm:$0xff]
      %v1622 = vld [vmem:[%s3 + $0xfe8] sm:$0xff]
      %v1623 = vld [vmem:[%s3 + $0xff0] sm:$0xff]
      %v1624 = vld [vmem:[%s3 + $0xff8] sm:$0xff]
      %v1625 = vld [vmem:[%s3 + $0x1000] sm:$0xff]
      %v1626 = vld [vmem:[%s3 + $0x1008] sm:$0xff]
      %v1627 = vld [vmem:[%s3 + $0x1010] sm:$0xff]
      %v1628 = vld [vmem:[%s3 + $0x1018] sm:$0xff]
      %v1629 = vld [vmem:[%s3 + $0x1020] sm:$0xff]
      %v1630 = vld [vmem:[%s3 + $0x1028] sm:$0xff]
      %v1631 = vld [vmem:[%s3 + $0x1030] sm:$0xff]
      %v1632 = vld [vmem:[%s3 + $0x1038] sm:$0xff]
      %v1633 = vld [vmem:[%s3 + $0x1040] sm:$0xff]
      %v1634 = vld [vmem:[%s3 + $0x1048] sm:$0xff]
      %v1635 = vld [vmem:[%s3 + $0x1050] sm:$0xff]
      %v1636 = vld [vmem:[%s3 + $0x1058] sm:$0xff]
      %v1637 = vld [vmem:[%s3 + $0x1060] sm:$0xff]
      %v1638 = vld [vmem:[%s3 + $0x1068] sm:$0xff]
      %v1639 = vld [vmem:[%s3 + $0x1070] sm:$0xff]
      %v1640 = vld [vmem:[%s3 + $0x1078] sm:$0xff]
      %v1641 = vld [vmem:[%s3 + $0x1080] sm:$0xff]
      %v1642 = vld [vmem:[%s3 + $0x1088] sm:$0xff]
      %v1643 = vld [vmem:[%s3 + $0x1090] sm:$0xff]
      %v1644 = vld [vmem:[%s3 + $0x1098] sm:$0xff]
      %v1645 = vld [vmem:[%s3 + $0x10a0] sm:$0xff]
      %v1646 = vld [vmem:[%s3 + $0x10a8] sm:$0xff]
      %v1647 = vld [vmem:[%s3 + $0x10b0] sm:$0xff]
      %v1648 = vld [vmem:[%s3 + $0x10b8] sm:$0xff]
      %v1649 = vld [vmem:[%s3 + $0x10c0] sm:$0xff]
      %v1650 = vld [vmem:[%s3 + $0x10c8] sm:$0xff]
      %v1651 = vld [vmem:[%s3 + $0x10d0] sm:$0xff]
      %v1652 = vld [vmem:[%s3 + $0x10d8] sm:$0xff]
      %v1653 = vld [vmem:[%s3 + $0x10e0] sm:$0xff]
      %v1654 = vld [vmem:[%s3 + $0x10e8] sm:$0xff]
      %v1655 = vld [vmem:[%s3 + $0x10f0] sm:$0xff]
      %v1656 = vld [vmem:[%s3 + $0x10f8] sm:$0xff]
      %v1657 = vld [vmem:[%s3 + $0x1100] sm:$0xff]
      %v1658 = vld [vmem:[%s3 + $0x1108] sm:$0xff]
      %v1659 = vld [vmem:[%s3 + $0x1110] sm:$0xff]
      %v1660 = vld [vmem:[%s3 + $0x1118] sm:$0xff]
      %v1661 = vld [vmem:[%s3 + $0x1120] sm:$0xff]
      %v1662 = vld [vmem:[%s3 + $0x1128] sm:$0xff]
      %v1663 = vld [vmem:[%s3 + $0x1130] sm:$0xff]
      %v1664 = vld [vmem:[%s3 + $0x1138] sm:$0xff]
      %v1665 = vld [vmem:[%s3 + $0x1140] sm:$0xff]
      %v1666 = vld [vmem:[%s3 + $0x1148] sm:$0xff]
      %v1667 = vld [vmem:[%s3 + $0x1150] sm:$0xff]
      %v1668 = vld [vmem:[%s3 + $0x1158] sm:$0xff]
      %v1669 = vld [vmem:[%s3 + $0x1160] sm:$0xff]
      %v1670 = vld [vmem:[%s3 + $0x1168] sm:$0xff]
      %v1671 = vld [vmem:[%s3 + $0x1170] sm:$0xff]
      %v1672 = vld [vmem:[%s3 + $0x1178] sm:$0xff]
      %v1673 = vld [vmem:[%s3 + $0x1180] sm:$0xff]
      %v1674 = vld [vmem:[%s3 + $0x1188] sm:$0xff]
      %v1675 = vld [vmem:[%s3 + $0x1190] sm:$0xff]
      %v1676 = vld [vmem:[%s3 + $0x1198] sm:$0xff]
      %v1677 = vld [vmem:[%s3 + $0x11a0] sm:$0xff]
      %v1678 = vld [vmem:[%s3 + $0x11a8] sm:$0xff]
      %v1679 = vld [vmem:[%s3 + $0x11b0] sm:$0xff]
      %v1680 = vld [vmem:[%s3 + $0x11b8] sm:$0xff]
      %v1681 = vld [vmem:[%s3 + $0x11c0] sm:$0xff]
      %v1682 = vld [vmem:[%s3 + $0x11c8] sm:$0xff]
      %v1683 = vld [vmem:[%s3 + $0x11d0] sm:$0xff]
      %v1684 = vld [vmem:[%s3 + $0x11d8] sm:$0xff]
      %v1685 = vld [vmem:[%s3 + $0x11e0] sm:$0xff]
      %v1686 = vld [vmem:[%s3 + $0x11e8] sm:$0xff]
      %v1687 = vld [vmem:[%s3 + $0x11f0] sm:$0xff]
      %v1688 = vld [vmem:[%s3 + $0x11f8] sm:$0xff]
      %v1689 = vld [vmem:[%s3 + $0x1200] sm:$0xff]
      %v1690 = vld [vmem:[%s3 + $0x1208] sm:$0xff]
      %v1691 = vld [vmem:[%s3 + $0x1210] sm:$0xff]
      %v1692 = vld [vmem:[%s3 + $0x1218] sm:$0xff]
      %v1693 = vld [vmem:[%s3 + $0x1220] sm:$0xff]
      %v1694 = vld [vmem:[%s3 + $0x1228] sm:$0xff]
      %v1695 = vld [vmem:[%s3 + $0x1230] sm:$0xff]
      %v1696 = vld [vmem:[%s3 + $0x1238] sm:$0xff]
      %v1697 = vld [vmem:[%s3 + $0x1240] sm:$0xff]
      %v1698 = vld [vmem:[%s3 + $0x1248] sm:$0xff]
      %v1699 = vld [vmem:[%s3 + $0x1250] sm:$0xff]
      %v1700 = vld [vmem:[%s3 + $0x1258] sm:$0xff]
      %v1701 = vld [vmem:[%s3 + $0x1260] sm:$0xff]
      %v1702 = vld [vmem:[%s3 + $0x1268] sm:$0xff]
      %v1703 = vld [vmem:[%s3 + $0x1270] sm:$0xff]
      %v1704 = vld [vmem:[%s3 + $0x1278] sm:$0xff]
      %v1705 = vld [vmem:[%s3 + $0x1280] sm:$0xff]
      %v1706 = vld [vmem:[%s3 + $0x1288] sm:$0xff]
      %v1707 = vld [vmem:[%s3 + $0x1290] sm:$0xff]
      %v1708 = vld [vmem:[%s3 + $0x1298] sm:$0xff]
      %v1709 = vld [vmem:[%s3 + $0x12a0] sm:$0xff]
      %v1710 = vld [vmem:[%s3 + $0x12a8] sm:$0xff]
      %v1711 = vld [vmem:[%s3 + $0x12b0] sm:$0xff]
      %v1712 = vld [vmem:[%s3 + $0x12b8] sm:$0xff]
      %v1713 = vld [vmem:[%s3 + $0x12c0] sm:$0xff]
      %v1714 = vld [vmem:[%s3 + $0x12c8] sm:$0xff]
      %v1715 = vld [vmem:[%s3 + $0x12d0] sm:$0xff]
      %v1716 = vld [vmem:[%s3 + $0x12d8] sm:$0xff]
      %v1717 = vld [vmem:[%s3 + $0x12e0] sm:$0xff]
      %v1718 = vld [vmem:[%s3 + $0x12e8] sm:$0xff]
      %v1719 = vld [vmem:[%s3 + $0x12f0] sm:$0xff]
      %v1720 = vld [vmem:[%s3 + $0x12f8] sm:$0xff]
      %v1721 = vld [vmem:[%s3 + $0x1300] sm:$0xff]
      %v1722 = vld [vmem:[%s3 + $0x1308] sm:$0xff]
      %v1723 = vld [vmem:[%s3 + $0x1310] sm:$0xff]
      %v1724 = vld [vmem:[%s3 + $0x1318] sm:$0xff]
      %v1725 = vld [vmem:[%s3 + $0x1320] sm:$0xff]
      %v1726 = vld [vmem:[%s3 + $0x1328] sm:$0xff]
      %v1727 = vld [vmem:[%s3 + $0x1330] sm:$0xff]
      %v1728 = vld [vmem:[%s3 + $0x1338] sm:$0xff]
      %v1729 = vld [vmem:[%s3 + $0x1340] sm:$0xff]
      %v1730 = vld [vmem:[%s3 + $0x1348] sm:$0xff]
      %v1731 = vld [vmem:[%s3 + $0x1350] sm:$0xff]
      %v1732 = vld [vmem:[%s3 + $0x1358] sm:$0xff]
      %v1733 = vld [vmem:[%s3 + $0x1360] sm:$0xff]
      %v1734 = vld [vmem:[%s3 + $0x1368] sm:$0xff]
      %v1735 = vld [vmem:[%s3 + $0x1370] sm:$0xff]
      %v1736 = vld [vmem:[%s3 + $0x1378] sm:$0xff]
      %v1737 = vld [vmem:[%s3 + $0x1380] sm:$0xff]
      %v1738 = vld [vmem:[%s3 + $0x1388] sm:$0xff]
      %v1739 = vld [vmem:[%s3 + $0x1390] sm:$0xff]
      %v1740 = vld [vmem:[%s3 + $0x1398] sm:$0xff]
      %v1741 = vld [vmem:[%s3 + $0x13a0] sm:$0xff]
      %v1742 = vld [vmem:[%s3 + $0x13a8] sm:$0xff]
      %v1743 = vld [vmem:[%s3 + $0x13b0] sm:$0xff]
      %v1744 = vld [vmem:[%s3 + $0x13b8] sm:$0xff]
      %v1745 = vld [vmem:[%s3 + $0x13c0] sm:$0xff]
      %v1746 = vld [vmem:[%s3 + $0x13c8] sm:$0xff]
      %v1747 = vld [vmem:[%s3 + $0x13d0] sm:$0xff]
      %v1748 = vld [vmem:[%s3 + $0x13d8] sm:$0xff]
      %v1749 = vld [vmem:[%s3 + $0x13e0] sm:$0xff]
      %v1750 = vld [vmem:[%s3 + $0x13e8] sm:$0xff]
      %v1751 = vld [vmem:[%s3 + $0x13f0] sm:$0xff]
      %v1752 = vld [vmem:[%s3 + $0x13f8] sm:$0xff]
      %v1753 = vld [vmem:[%s3 + $0x1400] sm:$0xff]
      %v1754 = vld [vmem:[%s3 + $0x1408] sm:$0xff]
      %v1755 = vld [vmem:[%s3 + $0x1410] sm:$0xff]
      %v1756 = vld [vmem:[%s3 + $0x1418] sm:$0xff]
      %v1757 = vld [vmem:[%s3 + $0x1420] sm:$0xff]
      %v1758 = vld [vmem:[%s3 + $0x1428] sm:$0xff]
      %v1759 = vld [vmem:[%s3 + $0x1430] sm:$0xff]
      %v1760 = vld [vmem:[%s3 + $0x1438] sm:$0xff]
      %v1761 = vld [vmem:[%s3 + $0x1440] sm:$0xff]
      %v1762 = vld [vmem:[%s3 + $0x1448] sm:$0xff]
      %v1763 = vld [vmem:[%s3 + $0x1450] sm:$0xff]
      %v1764 = vld [vmem:[%s3 + $0x1458] sm:$0xff]
      %v1765 = vld [vmem:[%s3 + $0x1460] sm:$0xff]
      %v1766 = vld [vmem:[%s3 + $0x1468] sm:$0xff]
      %v1767 = vld [vmem:[%s3 + $0x1470] sm:$0xff]
      %v1768 = vld [vmem:[%s3 + $0x1478] sm:$0xff]
      %v1769 = vld [vmem:[%s3 + $0x1480] sm:$0xff]
      %v1770 = vld [vmem:[%s3 + $0x1488] sm:$0xff]
      %v1771 = vld [vmem:[%s3 + $0x1490] sm:$0xff]
      %v1772 = vld [vmem:[%s3 + $0x1498] sm:$0xff]
      %v1773 = vld [vmem:[%s3 + $0x14a0] sm:$0xff]
      %v1774 = vld [vmem:[%s3 + $0x14a8] sm:$0xff]
      %v1775 = vld [vmem:[%s3 + $0x14b0] sm:$0xff]
      %v1776 = vld [vmem:[%s3 + $0x14b8] sm:$0xff]
      %v1777 = vld [vmem:[%s3 + $0x14c0] sm:$0xff]
      %v1778 = vld [vmem:[%s3 + $0x14c8] sm:$0xff]
      %v1779 = vld [vmem:[%s3 + $0x14d0] sm:$0xff]
      %v1780 = vld [vmem:[%s3 + $0x14d8] sm:$0xff]
      %v1781 = vld [vmem:[%s3 + $0x14e0] sm:$0xff]
      %v1782 = vld [vmem:[%s3 + $0x14e8] sm:$0xff]
      %v1783 = vld [vmem:[%s3 + $0x14f0] sm:$0xff]
      %v1784 = vld [vmem:[%s3 + $0x14f8] sm:$0xff]
      %v1785 = vld [vmem:[%s3 + $0x1500] sm:$0xff]
      %v1786 = vld [vmem:[%s3 + $0x1508] sm:$0xff]
      %v1787 = vld [vmem:[%s3 + $0x1510] sm:$0xff]
      %v1788 = vld [vmem:[%s3 + $0x1518] sm:$0xff]
      %v1789 = vld [vmem:[%s3 + $0x1520] sm:$0xff]
      %v1790 = vld [vmem:[%s3 + $0x1528] sm:$0xff]
      %v1791 = vld [vmem:[%s3 + $0x1530] sm:$0xff]
      %v1792 = vld [vmem:[%s3 + $0x1538] sm:$0xff]
      %v1793 = vld [vmem:[%s3 + $0x1540] sm:$0xff]
      %v1794 = vld [vmem:[%s3 + $0x1548] sm:$0xff]
      %v1795 = vld [vmem:[%s3 + $0x1550] sm:$0xff]
      %v1796 = vld [vmem:[%s3 + $0x1558] sm:$0xff]
      %v1797 = vld [vmem:[%s3 + $0x1560] sm:$0xff]
      %v1798 = vld [vmem:[%s3 + $0x1568] sm:$0xff]
      %v1799 = vld [vmem:[%s3 + $0x1570] sm:$0xff]
      %v1800 = vld [vmem:[%s3 + $0x1578] sm:$0xff]
      %v1801 = vld [vmem:[%s3 + $0x1580] sm:$0xff]
      %v1802 = vld [vmem:[%s3 + $0x1588] sm:$0xff]
      %v1803 = vld [vmem:[%s3 + $0x1590] sm:$0xff]
      %v1804 = vld [vmem:[%s3 + $0x1598] sm:$0xff]
      %v1805 = vld [vmem:[%s3 + $0x15a0] sm:$0xff]
      %v1806 = vld [vmem:[%s3 + $0x15a8] sm:$0xff]
      %v1807 = vld [vmem:[%s3 + $0x15b0] sm:$0xff]
      %v1808 = vld [vmem:[%s3 + $0x15b8] sm:$0xff]
      %v1809 = vld [vmem:[%s3 + $0x15c0] sm:$0xff]
      %v1810 = vld [vmem:[%s3 + $0x15c8] sm:$0xff]
      %v1811 = vld [vmem:[%s3 + $0x15d0] sm:$0xff]
      %v1812 = vld [vmem:[%s3 + $0x15d8] sm:$0xff]
      %v1813 = vld [vmem:[%s3 + $0x15e0] sm:$0xff]
      %v1814 = vld [vmem:[%s3 + $0x15e8] sm:$0xff]
      %v1815 = vld [vmem:[%s3 + $0x15f0] sm:$0xff]
      %v1816 = vld [vmem:[%s3 + $0x15f8] sm:$0xff]
      %v1817 = vld [vmem:[%s3 + $0x1600] sm:$0xff]
      %v1818 = vld [vmem:[%s3 + $0x1608] sm:$0xff]
      %v1819 = vld [vmem:[%s3 + $0x1610] sm:$0xff]
      %v1820 = vld [vmem:[%s3 + $0x1618] sm:$0xff]
      %v1821 = vld [vmem:[%s3 + $0x1620] sm:$0xff]
      %v1822 = vld [vmem:[%s3 + $0x1628] sm:$0xff]
      %v1823 = vld [vmem:[%s3 + $0x1630] sm:$0xff]
      %v1824 = vld [vmem:[%s3 + $0x1638] sm:$0xff]
      %v1825 = vld [vmem:[%s3 + $0x1640] sm:$0xff]
      %v1826 = vld [vmem:[%s3 + $0x1648] sm:$0xff]
      %v1827 = vld [vmem:[%s3 + $0x1650] sm:$0xff]
      %v1828 = vld [vmem:[%s3 + $0x1658] sm:$0xff]
      %v1829 = vld [vmem:[%s3 + $0x1660] sm:$0xff]
      %v1830 = vld [vmem:[%s3 + $0x1668] sm:$0xff]
      %v1831 = vld [vmem:[%s3 + $0x1670] sm:$0xff]
      %v1832 = vld [vmem:[%s3 + $0x1678] sm:$0xff]
      %v1833 = vld [vmem:[%s3 + $0x1680] sm:$0xff]
      %v1834 = vld [vmem:[%s3 + $0x1688] sm:$0xff]
      %v1835 = vld [vmem:[%s3 + $0x1690] sm:$0xff]
      %v1836 = vld [vmem:[%s3 + $0x1698] sm:$0xff]
      %v1837 = vld [vmem:[%s3 + $0x16a0] sm:$0xff]
      %v1838 = vld [vmem:[%s3 + $0x16a8] sm:$0xff]
      %v1839 = vld [vmem:[%s3 + $0x16b0] sm:$0xff]
      %v1840 = vld [vmem:[%s3 + $0x16b8] sm:$0xff]
      %v1841 = vld [vmem:[%s3 + $0x16c0] sm:$0xff]
      %v1842 = vld [vmem:[%s3 + $0x16c8] sm:$0xff]
      %v1843 = vld [vmem:[%s3 + $0x16d0] sm:$0xff]
      %v1844 = vld [vmem:[%s3 + $0x16d8] sm:$0xff]
      %v1845 = vld [vmem:[%s3 + $0x16e0] sm:$0xff]
      %v1846 = vld [vmem:[%s3 + $0x16e8] sm:$0xff]
      %v1847 = vld [vmem:[%s3 + $0x16f0] sm:$0xff]
      %v1848 = vld [vmem:[%s3 + $0x16f8] sm:$0xff]
      %v1849 = vld [vmem:[%s3 + $0x1700] sm:$0xff]
      %v1850 = vld [vmem:[%s3 + $0x1708] sm:$0xff]
      %v1851 = vld [vmem:[%s3 + $0x1710] sm:$0xff]
      %v1852 = vld [vmem:[%s3 + $0x1718] sm:$0xff]
      %v1853 = vld [vmem:[%s3 + $0x1720] sm:$0xff]
      %v1854 = vld [vmem:[%s3 + $0x1728] sm:$0xff]
      %v1855 = vld [vmem:[%s3 + $0x1730] sm:$0xff]
      %v1856 = vld [vmem:[%s3 + $0x1738] sm:$0xff]
      %v1857 = vld [vmem:[%s3 + $0x1740] sm:$0xff]
      %v1858 = vld [vmem:[%s3 + $0x1748] sm:$0xff]
      %v1859 = vld [vmem:[%s3 + $0x1750] sm:$0xff]
      %v1860 = vld [vmem:[%s3 + $0x1758] sm:$0xff]
      %v1861 = vld [vmem:[%s3 + $0x1760] sm:$0xff]
      %v1862 = vld [vmem:[%s3 + $0x1768] sm:$0xff]
      %v1863 = vld [vmem:[%s3 + $0x1770] sm:$0xff]
      %v1864 = vld [vmem:[%s3 + $0x1778] sm:$0xff]
      %v1865 = vld [vmem:[%s3 + $0x1780] sm:$0xff]
      %v1866 = vld [vmem:[%s3 + $0x1788] sm:$0xff]
      %v1867 = vld [vmem:[%s3 + $0x1790] sm:$0xff]
      %v1868 = vld [vmem:[%s3 + $0x1798] sm:$0xff]
      %v1869 = vld [vmem:[%s3 + $0x17a0] sm:$0xff]
      %v1870 = vld [vmem:[%s3 + $0x17a8] sm:$0xff]
      %v1871 = vld [vmem:[%s3 + $0x17b0] sm:$0xff]
      %v1872 = vld [vmem:[%s3 + $0x17b8] sm:$0xff]
      %v1873 = vld [vmem:[%s3 + $0x17c0] sm:$0xff]
      %v1874 = vld [vmem:[%s3 + $0x17c8] sm:$0xff]
      %v1875 = vld [vmem:[%s3 + $0x17d0] sm:$0xff]
      %v1876 = vld [vmem:[%s3 + $0x17d8] sm:$0xff]
      %v1877 = vld [vmem:[%s3 + $0x17e0] sm:$0xff]
      %v1878 = vld [vmem:[%s3 + $0x17e8] sm:$0xff]
      %v1879 = vld [vmem:[%s3 + $0x17f0] sm:$0xff]
      %v1880 = vld [vmem:[%s3 + $0x17f8] sm:$0xff]
      %v1881 = vld [vmem:[%s3 + $0x1800] sm:$0xff]
      %v1882 = vld [vmem:[%s3 + $0x1808] sm:$0xff]
      %v1883 = vld [vmem:[%s3 + $0x1810] sm:$0xff]
      %v1884 = vld [vmem:[%s3 + $0x1818] sm:$0xff]
      %v1885 = vld [vmem:[%s3 + $0x1820] sm:$0xff]
      %v1886 = vld [vmem:[%s3 + $0x1828] sm:$0xff]
      %v1887 = vld [vmem:[%s3 + $0x1830] sm:$0xff]
      %v1888 = vld [vmem:[%s3 + $0x1838] sm:$0xff]
      %v1889 = vld [vmem:[%s3 + $0x1840] sm:$0xff]
      %v1890 = vld [vmem:[%s3 + $0x1848] sm:$0xff]
      %v1891 = vld [vmem:[%s3 + $0x1850] sm:$0xff]
      %v1892 = vld [vmem:[%s3 + $0x1858] sm:$0xff]
      %v1893 = vld [vmem:[%s3 + $0x1860] sm:$0xff]
      %v1894 = vld [vmem:[%s3 + $0x1868] sm:$0xff]
      %v1895 = vld [vmem:[%s3 + $0x1870] sm:$0xff]
      %v1896 = vld [vmem:[%s3 + $0x1878] sm:$0xff]
      %v1897 = vld [vmem:[%s3 + $0x1880] sm:$0xff]
      %v1898 = vld [vmem:[%s3 + $0x1888] sm:$0xff]
      %v1899 = vld [vmem:[%s3 + $0x1890] sm:$0xff]
      %v1900 = vld [vmem:[%s3 + $0x1898] sm:$0xff]
      %v1901 = vld [vmem:[%s3 + $0x18a0] sm:$0xff]
      %v1902 = vld [vmem:[%s3 + $0x18a8] sm:$0xff]
      %v1903 = vld [vmem:[%s3 + $0x18b0] sm:$0xff]
      %v1904 = vld [vmem:[%s3 + $0x18b8] sm:$0xff]
      %v1905 = vld [vmem:[%s3 + $0x18c0] sm:$0xff]
      %v1906 = vld [vmem:[%s3 + $0x18c8] sm:$0xff]
      %v1907 = vld [vmem:[%s3 + $0x18d0] sm:$0xff]
      %v1908 = vld [vmem:[%s3 + $0x18d8] sm:$0xff]
      %v1909 = vld [vmem:[%s3 + $0x18e0] sm:$0xff]
      %v1910 = vld [vmem:[%s3 + $0x18e8] sm:$0xff]
      %v1911 = vld [vmem:[%s3 + $0x18f0] sm:$0xff]
      %v1912 = vld [vmem:[%s3 + $0x18f8] sm:$0xff]
      %v1913 = vld [vmem:[%s3 + $0x1900] sm:$0xff]
      %v1914 = vld [vmem:[%s3 + $0x1908] sm:$0xff]
      %v1915 = vld [vmem:[%s3 + $0x1910] sm:$0xff]
      %v1916 = vld [vmem:[%s3 + $0x1918] sm:$0xff]
      %v1917 = vld [vmem:[%s3 + $0x1920] sm:$0xff]
      %v1918 = vld [vmem:[%s3 + $0x1928] sm:$0xff]
      %v1919 = vld [vmem:[%s3 + $0x1930] sm:$0xff]
      %v1920 = vld [vmem:[%s3 + $0x1938] sm:$0xff]
      %v1921 = vld [vmem:[%s3 + $0x1940] sm:$0xff]
      %v1922 = vld [vmem:[%s3 + $0x1948] sm:$0xff]
      %v1923 = vld [vmem:[%s3 + $0x1950] sm:$0xff]
      %v1924 = vld [vmem:[%s3 + $0x1958] sm:$0xff]
      %v1925 = vld [vmem:[%s3 + $0x1960] sm:$0xff]
      %v1926 = vld [vmem:[%s3 + $0x1968] sm:$0xff]
      %v1927 = vld [vmem:[%s3 + $0x1970] sm:$0xff]
      %v1928 = vld [vmem:[%s3 + $0x1978] sm:$0xff]
      %v1929 = vld [vmem:[%s3 + $0x1980] sm:$0xff]
      %v1930 = vld [vmem:[%s3 + $0x1988] sm:$0xff]
      %v1931 = vld [vmem:[%s3 + $0x1990] sm:$0xff]
      %v1932 = vld [vmem:[%s3 + $0x1998] sm:$0xff]
      %v1933 = vld [vmem:[%s3 + $0x19a0] sm:$0xff]
      %v1934 = vld [vmem:[%s3 + $0x19a8] sm:$0xff]
      %v1935 = vld [vmem:[%s3 + $0x19b0] sm:$0xff]
      %v1936 = vld [vmem:[%s3 + $0x19b8] sm:$0xff]
      %v1937 = vld [vmem:[%s3 + $0x19c0] sm:$0xff]
      %v1938 = vld [vmem:[%s3 + $0x19c8] sm:$0xff]
      %v1939 = vld [vmem:[%s3 + $0x19d0] sm:$0xff]
      %v1940 = vld [vmem:[%s3 + $0x19d8] sm:$0xff]
      %v1941 = vld [vmem:[%s3 + $0x19e0] sm:$0xff]
      %v1942 = vld [vmem:[%s3 + $0x19e8] sm:$0xff]
      %v1943 = vld [vmem:[%s3 + $0x19f0] sm:$0xff]
      %v1944 = vld [vmem:[%s3 + $0x19f8] sm:$0xff]
      %v1945 = vld [vmem:[%s3 + $0x1a00] sm:$0xff]
      %v1946 = vld [vmem:[%s3 + $0x1a08] sm:$0xff]
      %v1947 = vld [vmem:[%s3 + $0x1a10] sm:$0xff]
      %v1948 = vld [vmem:[%s3 + $0x1a18] sm:$0xff]
      %v1949 = vld [vmem:[%s3 + $0x1a20] sm:$0xff]
      %v1950 = vld [vmem:[%s3 + $0x1a28] sm:$0xff]
      %v1951 = vld [vmem:[%s3 + $0x1a30] sm:$0xff]
      %v1952 = vld [vmem:[%s3 + $0x1a38] sm:$0xff]
      %v1953 = vld [vmem:[%s3 + $0x1a40] sm:$0xff]
      %v1954 = vld [vmem:[%s3 + $0x1a48] sm:$0xff]
      %v1955 = vld [vmem:[%s3 + $0x1a50] sm:$0xff]
      %v1956 = vld [vmem:[%s3 + $0x1a58] sm:$0xff]
      %v1957 = vld [vmem:[%s3 + $0x1a60] sm:$0xff]
      %v1958 = vld [vmem:[%s3 + $0x1a68] sm:$0xff]
      %v1959 = vld [vmem:[%s3 + $0x1a70] sm:$0xff]
      %v1960 = vld [vmem:[%s3 + $0x1a78] sm:$0xff]
      %v1961 = vld [vmem:[%s3 + $0x1a80] sm:$0xff]
      %v1962 = vld [vmem:[%s3 + $0x1a88] sm:$0xff]
      %v1963 = vld [vmem:[%s3 + $0x1a90] sm:$0xff]
      %v1964 = vld [vmem:[%s3 + $0x1a98] sm:$0xff]
      %v1965 = vld [vmem:[%s3 + $0x1aa0] sm:$0xff]
      %v1966 = vld [vmem:[%s3 + $0x1aa8] sm:$0xff]
      %v1967 = vld [vmem:[%s3 + $0x1ab0] sm:$0xff]
      %v1968 = vld [vmem:[%s3 + $0x1ab8] sm:$0xff]
      %v1969 = vld [vmem:[%s3 + $0x1ac0] sm:$0xff]
      %v1970 = vld [vmem:[%s3 + $0x1ac8] sm:$0xff]
      %v1971 = vld [vmem:[%s3 + $0x1ad0] sm:$0xff]
      %v1972 = vld [vmem:[%s3 + $0x1ad8] sm:$0xff]
      %v1973 = vld [vmem:[%s3 + $0x1ae0] sm:$0xff]
      %v1974 = vld [vmem:[%s3 + $0x1ae8] sm:$0xff]
      %v1975 = vld [vmem:[%s3 + $0x1af0] sm:$0xff]
      %v1976 = vld [vmem:[%s3 + $0x1af8] sm:$0xff]
      %v1977 = vld [vmem:[%s3 + $0x1b00] sm:$0xff]
      %v1978 = vld [vmem:[%s3 + $0x1b08] sm:$0xff]
      %v1979 = vld [vmem:[%s3 + $0x1b10] sm:$0xff]
      %v1980 = vld [vmem:[%s3 + $0x1b18] sm:$0xff]
      %v1981 = vld [vmem:[%s3 + $0x1b20] sm:$0xff]
      %v1982 = vld [vmem:[%s3 + $0x1b28] sm:$0xff]
      %v1983 = vld [vmem:[%s3 + $0x1b30] sm:$0xff]
      %v1984 = vld [vmem:[%s3 + $0x1b38] sm:$0xff]
      %v1985 = vld [vmem:[%s3 + $0x1b40] sm:$0xff]
      %v1986 = vld [vmem:[%s3 + $0x1b48] sm:$0xff]
      %v1987 = vld [vmem:[%s3 + $0x1b50] sm:$0xff]
      %v1988 = vld [vmem:[%s3 + $0x1b58] sm:$0xff]
      %v1989 = vld [vmem:[%s3 + $0x1b60] sm:$0xff]
      %v1990 = vld [vmem:[%s3 + $0x1b68] sm:$0xff]
      %v1991 = vld [vmem:[%s3 + $0x1b70] sm:$0xff]
      %v1992 = vld [vmem:[%s3 + $0x1b78] sm:$0xff]
      %v1993 = vld [vmem:[%s3 + $0x1b80] sm:$0xff]
      %v1994 = vld [vmem:[%s3 + $0x1b88] sm:$0xff]
      %v1995 = vld [vmem:[%s3 + $0x1b90] sm:$0xff]
      %v1996 = vld [vmem:[%s3 + $0x1b98] sm:$0xff]
      %v1997 = vld [vmem:[%s3 + $0x1ba0] sm:$0xff]
      %v1998 = vld [vmem:[%s3 + $0x1ba8] sm:$0xff]
      %v1999 = vld [vmem:[%s3 + $0x1bb0] sm:$0xff]
      %v2000 = vld [vmem:[%s3 + $0x1bb8] sm:$0xff]
      %v2001 = vld [vmem:[%s3 + $0x1bc0] sm:$0xff]
      %v2002 = vld [vmem:[%s3 + $0x1bc8] sm:$0xff]
      %v2003 = vld [vmem:[%s3 + $0x1bd0] sm:$0xff]
      %v2004 = vld [vmem:[%s3 + $0x1bd8] sm:$0xff]
      %v2005 = vld [vmem:[%s3 + $0x1be0] sm:$0xff]
      %v2006 = vld [vmem:[%s3 + $0x1be8] sm:$0xff]
      %v2007 = vld [vmem:[%s3 + $0x1bf0] sm:$0xff]
      %v2008 = vld [vmem:[%s3 + $0x1bf8] sm:$0xff]
      %v2009 = vld [vmem:[%s3 + $0x1c00] sm:$0xff]
      %v2010 = vld [vmem:[%s3 + $0x1c08] sm:$0xff]
      %v2011 = vld [vmem:[%s3 + $0x1c10] sm:$0xff]
      %v2012 = vld [vmem:[%s3 + $0x1c18] sm:$0xff]
      %v2013 = vld [vmem:[%s3 + $0x1c20] sm:$0xff]
      %v2014 = vld [vmem:[%s3 + $0x1c28] sm:$0xff]
      %v2015 = vld [vmem:[%s3 + $0x1c30] sm:$0xff]
      %v2016 = vld [vmem:[%s3 + $0x1c38] sm:$0xff]
      %v2017 = vld [vmem:[%s3 + $0x1c40] sm:$0xff]
      %v2018 = vld [vmem:[%s3 + $0x1c48] sm:$0xff]
      %v2019 = vld [vmem:[%s3 + $0x1c50] sm:$0xff]
      %v2020 = vld [vmem:[%s3 + $0x1c58] sm:$0xff]
      %v2021 = vld [vmem:[%s3 + $0x1c60] sm:$0xff]
      %v2022 = vld [vmem:[%s3 + $0x1c68] sm:$0xff]
      %v2023 = vld [vmem:[%s3 + $0x1c70] sm:$0xff]
      %v2024 = vld [vmem:[%s3 + $0x1c78] sm:$0xff]
      %v2025 = vld [vmem:[%s3 + $0x1c80] sm:$0xff]
      %v2026 = vld [vmem:[%s3 + $0x1c88] sm:$0xff]
      %v2027 = vld [vmem:[%s3 + $0x1c90] sm:$0xff]
      %v2028 = vld [vmem:[%s3 + $0x1c98] sm:$0xff]
      %v2029 = vld [vmem:[%s3 + $0x1ca0] sm:$0xff]
      %v2030 = vld [vmem:[%s3 + $0x1ca8] sm:$0xff]
      %v2031 = vld [vmem:[%s3 + $0x1cb0] sm:$0xff]
      %v2032 = vld [vmem:[%s3 + $0x1cb8] sm:$0xff]
      %v2033 = vld [vmem:[%s3 + $0x1cc0] sm:$0xff]
      %v2034 = vld [vmem:[%s3 + $0x1cc8] sm:$0xff]
      %v2035 = vld [vmem:[%s3 + $0x1cd0] sm:$0xff]
      %v2036 = vld [vmem:[%s3 + $0x1cd8] sm:$0xff]
      %v2037 = vld [vmem:[%s3 + $0x1ce0] sm:$0xff]
      %v2038 = vld [vmem:[%s3 + $0x1ce8] sm:$0xff]
      %v2039 = vld [vmem:[%s3 + $0x1cf0] sm:$0xff]
      %v2040 = vld [vmem:[%s3 + $0x1cf8] sm:$0xff]
      %v2041 = vld [vmem:[%s3 + $0x1d00] sm:$0xff]
      %v2042 = vld [vmem:[%s3 + $0x1d08] sm:$0xff]
      %v2043 = vld [vmem:[%s3 + $0x1d10] sm:$0xff]
      %v2044 = vld [vmem:[%s3 + $0x1d18] sm:$0xff]
      %v2045 = vld [vmem:[%s3 + $0x1d20] sm:$0xff]
      %v2046 = vld [vmem:[%s3 + $0x1d28] sm:$0xff]
      %v2047 = vld [vmem:[%s3 + $0x1d30] sm:$0xff]
      %v2048 = vld [vmem:[%s3 + $0x1d38] sm:$0xff]
      %v2049 = vld [vmem:[%s3 + $0x1d40] sm:$0xff]
      %v2050 = vld [vmem:[%s3 + $0x1d48] sm:$0xff]
      %v2051 = vld [vmem:[%s3 + $0x1d50] sm:$0xff]
      %v2052 = vld [vmem:[%s3 + $0x1d58] sm:$0xff]
      %v2053 = vld [vmem:[%s3 + $0x1d60] sm:$0xff]
      %v2054 = vld [vmem:[%s3 + $0x1d68] sm:$0xff]
      %v2055 = vld [vmem:[%s3 + $0x1d70] sm:$0xff]
      %v2056 = vld [vmem:[%s3 + $0x1d78] sm:$0xff]
      %v2057 = vld [vmem:[%s3 + $0x1d80] sm:$0xff]
      %v2058 = vld [vmem:[%s3 + $0x1d88] sm:$0xff]
      %v2059 = vld [vmem:[%s3 + $0x1d90] sm:$0xff]
      %v2060 = vld [vmem:[%s3 + $0x1d98] sm:$0xff]
      %v2061 = vld [vmem:[%s3 + $0x1da0] sm:$0xff]
      %v2062 = vld [vmem:[%s3 + $0x1da8] sm:$0xff]
      %v2063 = vld [vmem:[%s3 + $0x1db0] sm:$0xff]
      %v2064 = vld [vmem:[%s3 + $0x1db8] sm:$0xff]
      %v2065 = vld [vmem:[%s3 + $0x1dc0] sm:$0xff]
      %v2066 = vld [vmem:[%s3 + $0x1dc8] sm:$0xff]
      %v2067 = vld [vmem:[%s3 + $0x1dd0] sm:$0xff]
      %v2068 = vld [vmem:[%s3 + $0x1dd8] sm:$0xff]
      %v2069 = vld [vmem:[%s3 + $0x1de0] sm:$0xff]
      %v2070 = vld [vmem:[%s3 + $0x1de8] sm:$0xff]
      %v2071 = vld [vmem:[%s3 + $0x1df0] sm:$0xff]
      %v2072 = vld [vmem:[%s3 + $0x1df8] sm:$0xff]
      %v2073 = vld [vmem:[%s3 + $0x1e00] sm:$0xff]
      %v2074 = vld [vmem:[%s3 + $0x1e08] sm:$0xff]
      %v2075 = vld [vmem:[%s3 + $0x1e10] sm:$0xff]
      %v2076 = vld [vmem:[%s3 + $0x1e18] sm:$0xff]
      %v2077 = vld [vmem:[%s3 + $0x1e20] sm:$0xff]
      %v2078 = vld [vmem:[%s3 + $0x1e28] sm:$0xff]
      %v2079 = vld [vmem:[%s3 + $0x1e30] sm:$0xff]
      %v2080 = vld [vmem:[%s3 + $0x1e38] sm:$0xff]
      %v2081 = vld [vmem:[%s3 + $0x1e40] sm:$0xff]
      %v2082 = vld [vmem:[%s3 + $0x1e48] sm:$0xff]
      %v2083 = vld [vmem:[%s3 + $0x1e50] sm:$0xff]
      %v2084 = vld [vmem:[%s3 + $0x1e58] sm:$0xff]
      %v2085 = vld [vmem:[%s3 + $0x1e60] sm:$0xff]
      %v2086 = vld [vmem:[%s3 + $0x1e68] sm:$0xff]
      %v2087 = vld [vmem:[%s3 + $0x1e70] sm:$0xff]
      %v2088 = vld [vmem:[%s3 + $0x1e78] sm:$0xff]
      %v2089 = vld [vmem:[%s3 + $0x1e80] sm:$0xff]
      %v2090 = vld [vmem:[%s3 + $0x1e88] sm:$0xff]
      %v2091 = vld [vmem:[%s3 + $0x1e90] sm:$0xff]
      %v2092 = vld [vmem:[%s3 + $0x1e98] sm:$0xff]
      %v2093 = vld [vmem:[%s3 + $0x1ea0] sm:$0xff]
      %v2094 = vld [vmem:[%s3 + $0x1ea8] sm:$0xff]
      %v2095 = vld [vmem:[%s3 + $0x1eb0] sm:$0xff]
      %v2096 = vld [vmem:[%s3 + $0x1eb8] sm:$0xff]
      %v2097 = vld [vmem:[%s3 + $0x1ec0] sm:$0xff]
      %v2098 = vld [vmem:[%s3 + $0x1ec8] sm:$0xff]
      %v2099 = vld [vmem:[%s3 + $0x1ed0] sm:$0xff]
      %v2100 = vld [vmem:[%s3 + $0x1ed8] sm:$0xff]
      %v2101 = vld [vmem:[%s3 + $0x1ee0] sm:$0xff]
      %v2102 = vld [vmem:[%s3 + $0x1ee8] sm:$0xff]
      %v2103 = vld [vmem:[%s3 + $0x1ef0] sm:$0xff]
      %v2104 = vld [vmem:[%s3 + $0x1ef8] sm:$0xff]
      %v2105 = vld [vmem:[%s3 + $0x1f00] sm:$0xff]
      %v2106 = vld [vmem:[%s3 + $0x1f08] sm:$0xff]
      %v2107 = vld [vmem:[%s3 + $0x1f10] sm:$0xff]
      %v2108 = vld [vmem:[%s3 + $0x1f18] sm:$0xff]
      %v2109 = vld [vmem:[%s3 + $0x1f20] sm:$0xff]
      %v2110 = vld [vmem:[%s3 + $0x1f28] sm:$0xff]
      %v2111 = vld [vmem:[%s3 + $0x1f30] sm:$0xff]
      %v2112 = vld [vmem:[%s3 + $0x1f38] sm:$0xff]
      %v2113 = vld [vmem:[%s3 + $0x1f40] sm:$0xff]
      %v2114 = vld [vmem:[%s3 + $0x1f48] sm:$0xff]
      %v2115 = vld [vmem:[%s3 + $0x1f50] sm:$0xff]
      %v2116 = vld [vmem:[%s3 + $0x1f58] sm:$0xff]
      %v2117 = vld [vmem:[%s3 + $0x1f60] sm:$0xff]
      %v2118 = vld [vmem:[%s3 + $0x1f68] sm:$0xff]
      %v2119 = vld [vmem:[%s3 + $0x1f70] sm:$0xff]
      %v2120 = vld [vmem:[%s3 + $0x1f78] sm:$0xff]
      %v2121 = vld [vmem:[%s3 + $0x1f80] sm:$0xff]
      %v2122 = vld [vmem:[%s3 + $0x1f88] sm:$0xff]
      %v2123 = vld [vmem:[%s3 + $0x1f90] sm:$0xff]
      %v2124 = vld [vmem:[%s3 + $0x1f98] sm:$0xff]
      %v2125 = vld [vmem:[%s3 + $0x1fa0] sm:$0xff]
      %v2126 = vld [vmem:[%s3 + $0x1fa8] sm:$0xff]
      %v2127 = vld [vmem:[%s3 + $0x1fb0] sm:$0xff]
      %v2128 = vld [vmem:[%s3 + $0x1fb8] sm:$0xff]
      %v2129 = vld [vmem:[%s3 + $0x1fc0] sm:$0xff]
      %v2130 = vld [vmem:[%s3 + $0x1fc8] sm:$0xff]
      %v2131 = vld [vmem:[%s3 + $0x1fd0] sm:$0xff]
      %v2132 = vld [vmem:[%s3 + $0x1fd8] sm:$0xff]
      %v2133 = vld [vmem:[%s3 + $0x1fe0] sm:$0xff]
      %v2134 = vld [vmem:[%s3 + $0x1fe8] sm:$0xff]
      %v2135 = vld [vmem:[%s3 + $0x1ff0] sm:$0xff]
      %v2136 = vld [vmem:[%s3 + $0x1ff8] sm:$0xff]
      %v2137 = vld [vmem:[%s3 + $0x2000] sm:$0xff]
      %v2138 = vld [vmem:[%s3 + $0x2008] sm:$0xff]
      %v2139 = vld [vmem:[%s3 + $0x2010] sm:$0xff]
      %v2140 = vld [vmem:[%s3 + $0x2018] sm:$0xff]
      %v2141 = vld [vmem:[%s3 + $0x2020] sm:$0xff]
      %v2142 = vld [vmem:[%s3 + $0x2028] sm:$0xff]
      %v2143 = vld [vmem:[%s3 + $0x2030] sm:$0xff]
      %v2144 = vld [vmem:[%s3 + $0x2038] sm:$0xff]
      %v2145 = vld [vmem:[%s3 + $0x2040] sm:$0xff]
      %v2146 = vld [vmem:[%s3 + $0x2048] sm:$0xff]
      %v2147 = vld [vmem:[%s3 + $0x2050] sm:$0xff]
      %v2148 = vld [vmem:[%s3 + $0x2058] sm:$0xff]
      %v2149 = vld [vmem:[%s3 + $0x2060] sm:$0xff]
      %v2150 = vld [vmem:[%s3 + $0x2068] sm:$0xff]
      %v2151 = vld [vmem:[%s3 + $0x2070] sm:$0xff]
      %v2152 = vld [vmem:[%s3 + $0x2078] sm:$0xff]
      %v2153 = vld [vmem:[%s3 + $0x2080] sm:$0xff]
      %v2154 = vld [vmem:[%s3 + $0x2088] sm:$0xff]
      %v2155 = vld [vmem:[%s3 + $0x2090] sm:$0xff]
      %v2156 = vld [vmem:[%s3 + $0x2098] sm:$0xff]
      %v2157 = vld [vmem:[%s3 + $0x20a0] sm:$0xff]
      %v2158 = vld [vmem:[%s3 + $0x20a8] sm:$0xff]
      %v2159 = vld [vmem:[%s3 + $0x20b0] sm:$0xff]
      %v2160 = vld [vmem:[%s3 + $0x20b8] sm:$0xff]
      %v2161 = vld [vmem:[%s3 + $0x20c0] sm:$0xff]
      %v2162 = vld [vmem:[%s3 + $0x20c8] sm:$0xff]
      %v2163 = vld [vmem:[%s3 + $0x20d0] sm:$0xff]
      %v2164 = vld [vmem:[%s3 + $0x20d8] sm:$0xff]
      %v2165 = vld [vmem:[%s3 + $0x20e0] sm:$0xff]
      %v2166 = vld [vmem:[%s3 + $0x20e8] sm:$0xff]
      %v2167 = vld [vmem:[%s3 + $0x20f0] sm:$0xff]
      %v2168 = vld [vmem:[%s3 + $0x20f8] sm:$0xff]
      %v2169 = vld [vmem:[%s3 + $0x2100] sm:$0xff]
      %v2170 = vld [vmem:[%s3 + $0x2108] sm:$0xff]
      %v2171 = vld [vmem:[%s3 + $0x2110] sm:$0xff]
      %v2172 = vld [vmem:[%s3 + $0x2118] sm:$0xff]
      %v2173 = vld [vmem:[%s3 + $0x2120] sm:$0xff]
      %v2174 = vld [vmem:[%s3 + $0x2128] sm:$0xff]
      %v2175 = vld [vmem:[%s3 + $0x2130] sm:$0xff]
      %v2176 = vld [vmem:[%s3 + $0x2138] sm:$0xff]
      %v2177 = vld [vmem:[%s3 + $0x2140] sm:$0xff]
      %v2178 = vld [vmem:[%s3 + $0x2148] sm:$0xff]
      %v2179 = vld [vmem:[%s3 + $0x2150] sm:$0xff]
      %v2180 = vld [vmem:[%s3 + $0x2158] sm:$0xff]
      %v2181 = vld [vmem:[%s3 + $0x2160] sm:$0xff]
      %v2182 = vld [vmem:[%s3 + $0x2168] sm:$0xff]
      %v2183 = vld [vmem:[%s3 + $0x2170] sm:$0xff]
      %v2184 = vld [vmem:[%s3 + $0x2178] sm:$0xff]
      %v2185 = vld [vmem:[%s3 + $0x2180] sm:$0xff]
      %v2186 = vld [vmem:[%s3 + $0x2188] sm:$0xff]
      %v2187 = vld [vmem:[%s3 + $0x2190] sm:$0xff]
      %v2188 = vld [vmem:[%s3 + $0x2198] sm:$0xff]
      %v2189 = vld [vmem:[%s3 + $0x21a0] sm:$0xff]
      %v2190 = vld [vmem:[%s3 + $0x21a8] sm:$0xff]
      %v2191 = vld [vmem:[%s3 + $0x21b0] sm:$0xff]
      %v2192 = vld [vmem:[%s3 + $0x21b8] sm:$0xff]
      %v2193 = vld [vmem:[%s3 + $0x21c0] sm:$0xff]
      %v2194 = vld [vmem:[%s3 + $0x21c8] sm:$0xff]
      %v2195 = vld [vmem:[%s3 + $0x21d0] sm:$0xff]
      %v2196 = vld [vmem:[%s3 + $0x21d8] sm:$0xff]
      %v2197 = vld [vmem:[%s3 + $0x21e0] sm:$0xff]
      %v2198 = vld [vmem:[%s3 + $0x21e8] sm:$0xff]
      %v2199 = vld [vmem:[%s3 + $0x21f0] sm:$0xff]
      %v2200 = vld [vmem:[%s3 + $0x21f8] sm:$0xff]
      %v2201 = vld [vmem:[%s3 + $0x2200] sm:$0xff]
      %v2202 = vld [vmem:[%s3 + $0x2208] sm:$0xff]
      %v2203 = vld [vmem:[%s3 + $0x2210] sm:$0xff]
      %v2204 = vld [vmem:[%s3 + $0x2218] sm:$0xff]
      %v2205 = vld [vmem:[%s3 + $0x2220] sm:$0xff]
      %v2206 = vld [vmem:[%s3 + $0x2228] sm:$0xff]
      %v2207 = vld [vmem:[%s3 + $0x2230] sm:$0xff]
      %v2208 = vld [vmem:[%s3 + $0x2238] sm:$0xff]
      %v2209 = vld [vmem:[%s3 + $0x2240] sm:$0xff]
      %v2210 = vld [vmem:[%s3 + $0x2248] sm:$0xff]
      %v2211 = vld [vmem:[%s3 + $0x2250] sm:$0xff]
      %v2212 = vld [vmem:[%s3 + $0x2258] sm:$0xff]
      %v2213 = vld [vmem:[%s3 + $0x2260] sm:$0xff]
      %v2214 = vld [vmem:[%s3 + $0x2268] sm:$0xff]
      %v2215 = vld [vmem:[%s3 + $0x2270] sm:$0xff]
      %v2216 = vld [vmem:[%s3 + $0x2278] sm:$0xff]
      %v2217 = vld [vmem:[%s3 + $0x2280] sm:$0xff]
      %v2218 = vld [vmem:[%s3 + $0x2288] sm:$0xff]
      %v2219 = vld [vmem:[%s3 + $0x2290] sm:$0xff]
      %v2220 = vld [vmem:[%s3 + $0x2298] sm:$0xff]
      %v2221 = vld [vmem:[%s3 + $0x22a0] sm:$0xff]
      %v2222 = vld [vmem:[%s3 + $0x22a8] sm:$0xff]
      %v2223 = vld [vmem:[%s3 + $0x22b0] sm:$0xff]
      %v2224 = vld [vmem:[%s3 + $0x22b8] sm:$0xff]
      %v2225 = vld [vmem:[%s3 + $0x22c0] sm:$0xff]
      %v2226 = vld [vmem:[%s3 + $0x22c8] sm:$0xff]
      %v2227 = vld [vmem:[%s3 + $0x22d0] sm:$0xff]
      %v2228 = vld [vmem:[%s3 + $0x22d8] sm:$0xff]
      %v2229 = vld [vmem:[%s3 + $0x22e0] sm:$0xff]
      %v2230 = vld [vmem:[%s3 + $0x22e8] sm:$0xff]
      %v2231 = vld [vmem:[%s3 + $0x22f0] sm:$0xff]
      %v2232 = vld [vmem:[%s3 + $0x22f8] sm:$0xff]
      %v2233 = vld [vmem:[%s3 + $0x2300] sm:$0xff]
      %v2234 = vld [vmem:[%s3 + $0x2308] sm:$0xff]
      %v2235 = vld [vmem:[%s3 + $0x2310] sm:$0xff]
      %v2236 = vld [vmem:[%s3 + $0x2318] sm:$0xff]
      %v2237 = vld [vmem:[%s3 + $0x2320] sm:$0xff]
      %v2238 = vld [vmem:[%s3 + $0x2328] sm:$0xff]
      %v2239 = vld [vmem:[%s3 + $0x2330] sm:$0xff]
      %v2240 = vld [vmem:[%s3 + $0x2338] sm:$0xff]
      %v2241 = vld [vmem:[%s3 + $0x2340] sm:$0xff]
      %v2242 = vld [vmem:[%s3 + $0x2348] sm:$0xff]
      %v2243 = vld [vmem:[%s3 + $0x2350] sm:$0xff]
      %v2244 = vld [vmem:[%s3 + $0x2358] sm:$0xff]
      %v2245 = vld [vmem:[%s3 + $0x2360] sm:$0xff]
      %v2246 = vld [vmem:[%s3 + $0x2368] sm:$0xff]
      %v2247 = vld [vmem:[%s3 + $0x2370] sm:$0xff]
      %v2248 = vld [vmem:[%s3 + $0x2378] sm:$0xff]
      %v2249 = vld [vmem:[%s3 + $0x2380] sm:$0xff]
      %v2250 = vld [vmem:[%s3 + $0x2388] sm:$0xff]
      %v2251 = vld [vmem:[%s3 + $0x2390] sm:$0xff]
      %v2252 = vld [vmem:[%s3 + $0x2398] sm:$0xff]
      %v2253 = vld [vmem:[%s3 + $0x23a0] sm:$0xff]
      %v2254 = vld [vmem:[%s3 + $0x23a8] sm:$0xff]
      %v2255 = vld [vmem:[%s3 + $0x23b0] sm:$0xff]
      %v2256 = vld [vmem:[%s3 + $0x23b8] sm:$0xff]
      %v2257 = vld [vmem:[%s3 + $0x23c0] sm:$0xff]
      %v2258 = vld [vmem:[%s3 + $0x23c8] sm:$0xff]
      %v2259 = vld [vmem:[%s3 + $0x23d0] sm:$0xff]
      %v2260 = vld [vmem:[%s3 + $0x23d8] sm:$0xff]
      %v2261 = vld [vmem:[%s3 + $0x23e0] sm:$0xff]
      %v2262 = vld [vmem:[%s3 + $0x23e8] sm:$0xff]
      %v2263 = vld [vmem:[%s3 + $0x23f0] sm:$0xff]
      %v2264 = vld [vmem:[%s3 + $0x23f8] sm:$0xff]
      %v2270 = vcombine.high %v1108, %v1108
      %v2272 = vunpack.c.l.s4 1983009808
      %v2273 = vunpack.c.0.s8 %v2272
      %v2274 = vlaneseq
      %v2275 = vshrl.u32 %v2274, 7
      %v2276 = vsub.s32 %v2273, %v2275
      %v2277 = vrot.slane %v1108, %v2276
      %v2279 = vunpack.c.l.s4 1983009808
      %v2280 = vunpack.c.0.s8 %v2279
      %v2281 = vlaneseq
      %v2282 = vshrl.u32 %v2281, 7
      %v2283 = vsub.s32 %v2280, %v2282
      %v2284 = vrot.slane %v2270, %v2283
      %v2285 = vcombine.high %v2277, %v2277
      %v2286 = vcombine.high %v2284, %v2284
      %v2287 = vcombine.high %v1109, %v1109
      %v2289 = vunpack.c.l.s4 1983009808
      %v2290 = vunpack.c.0.s8 %v2289
      %v2291 = vlaneseq
      %v2292 = vshrl.u32 %v2291, 7
      %v2293 = vsub.s32 %v2290, %v2292
      %v2294 = vrot.slane %v1109, %v2293
      %v2296 = vunpack.c.l.s4 1983009808
      %v2297 = vunpack.c.0.s8 %v2296
      %v2298 = vlaneseq
      %v2299 = vshrl.u32 %v2298, 7
      %v2300 = vsub.s32 %v2297, %v2299
      %v2301 = vrot.slane %v2287, %v2300
      %v2302 = vcombine.high %v2294, %v2294
      %v2303 = vcombine.high %v2301, %v2301
      %v2304 = vcombine.high %v1110, %v1110
      %v2306 = vunpack.c.l.s4 1983009808
      %v2307 = vunpack.c.0.s8 %v2306
      %v2308 = vlaneseq
      %v2309 = vshrl.u32 %v2308, 7
      %v2310 = vsub.s32 %v2307, %v2309
      %v2311 = vrot.slane %v1110, %v2310
      %v2313 = vunpack.c.l.s4 1983009808
      %v2314 = vunpack.c.0.s8 %v2313
      %v2315 = vlaneseq
      %v2316 = vshrl.u32 %v2315, 7
      %v2317 = vsub.s32 %v2314, %v2316
      %v2318 = vrot.slane %v2304, %v2317
      %v2319 = vcombine.high %v2311, %v2311
      %v2320 = vcombine.high %v2318, %v2318
      %v2321 = vcombine.high %v1111, %v1111
      %v2323 = vunpack.c.l.s4 1983009808
      %v2324 = vunpack.c.0.s8 %v2323
      %v2325 = vlaneseq
      %v2326 = vshrl.u32 %v2325, 7
      %v2327 = vsub.s32 %v2324, %v2326
      %v2328 = vrot.slane %v1111, %v2327
      %v2330 = vunpack.c.l.s4 1983009808
      %v2331 = vunpack.c.0.s8 %v2330
      %v2332 = vlaneseq
      %v2333 = vshrl.u32 %v2332, 7
      %v2334 = vsub.s32 %v2331, %v2333
      %v2335 = vrot.slane %v2321, %v2334
      %v2336 = vcombine.high %v2328, %v2328
      %v2337 = vcombine.high %v2335, %v2335
      %v2339 = vunpack.c.l.s4 1983009808
      %v2340 = vunpack.c.0.s8 %v2339
      %v2341 = vlaneseq
      %v2342 = vshrl.u32 %v2341, 7
      %v2343 = vsub.s32 %v2340, %v2342
      %v2344 = vrot.slane %v1112, %v2343
      %v2345 = vcombine.high %v2344, %v2344
      %v3516 = vunpack.c.l.b16 %v1113
      %v3517 = vunpack.c.h.b16 %v1113
      %v3518 = vunpack.c.l.b16 %v1114
      %v3519 = vunpack.c.h.b16 %v1114
      %v3520 = vunpack.c.l.b16 %v1115
      %v3521 = vunpack.c.h.b16 %v1115
      %v3522 = vunpack.c.l.b16 %v1116
      %v3523 = vunpack.c.h.b16 %v1116
      %v3524 = vunpack.c.l.b16 %v1117
      %v3525 = vunpack.c.h.b16 %v1117
      %v3526 = vunpack.c.l.b16 %v1118
      %v3527 = vunpack.c.h.b16 %v1118
      %v3528 = vunpack.c.l.b16 %v1119
      %v3529 = vunpack.c.h.b16 %v1119
      %v3530 = vunpack.c.l.b16 %v1120
      %v3531 = vunpack.c.h.b16 %v1120
      %v3532 = vunpack.c.l.b16 %v1121
      %v3533 = vunpack.c.h.b16 %v1121
      %v3534 = vunpack.c.l.b16 %v1122
      %v3535 = vunpack.c.h.b16 %v1122
      %v3536 = vunpack.c.l.b16 %v1123
      %v3537 = vunpack.c.h.b16 %v1123
      %v3538 = vunpack.c.l.b16 %v1124
      %v3539 = vunpack.c.h.b16 %v1124
      %v3540 = vunpack.c.l.b16 %v1125
      %v3541 = vunpack.c.h.b16 %v1125
      %v3542 = vunpack.c.l.b16 %v1126
      %v3543 = vunpack.c.h.b16 %v1126
      %v3544 = vunpack.c.l.b16 %v1127
      %v3545 = vunpack.c.h.b16 %v1127
      %v3546 = vunpack.c.l.b16 %v1128
      %v3547 = vunpack.c.h.b16 %v1128
      %v3548 = vunpack.c.l.b16 %v1129
      %v3549 = vunpack.c.h.b16 %v1129
      %v3550 = vunpack.c.l.b16 %v1130
      %v3551 = vunpack.c.h.b16 %v1130
      %v3552 = vunpack.c.l.b16 %v1131
      %v3553 = vunpack.c.h.b16 %v1131
      %v3554 = vunpack.c.l.b16 %v1132
      %v3555 = vunpack.c.h.b16 %v1132
      %v3556 = vunpack.c.l.b16 %v1133
      %v3557 = vunpack.c.h.b16 %v1133
      %v3558 = vunpack.c.l.b16 %v1134
      %v3559 = vunpack.c.h.b16 %v1134
      %v3560 = vunpack.c.l.b16 %v1135
      %v3561 = vunpack.c.h.b16 %v1135
      %v3562 = vunpack.c.l.b16 %v1136
      %v3563 = vunpack.c.h.b16 %v1136
      %v3564 = vunpack.c.l.b16 %v1137
      %v3565 = vunpack.c.h.b16 %v1137
      %v3566 = vunpack.c.l.b16 %v1138
      %v3567 = vunpack.c.h.b16 %v1138
      %v3568 = vunpack.c.l.b16 %v1139
      %v3569 = vunpack.c.h.b16 %v1139
      %v3570 = vunpack.c.l.b16 %v1140
      %v3571 = vunpack.c.h.b16 %v1140
      %v3572 = vunpack.c.l.b16 %v1141
      %v3573 = vunpack.c.h.b16 %v1141
      %v3574 = vunpack.c.l.b16 %v1142
      %v3575 = vunpack.c.h.b16 %v1142
      %v3576 = vunpack.c.l.b16 %v1143
      %v3577 = vunpack.c.h.b16 %v1143
      %v3578 = vunpack.c.l.b16 %v1144
      %v3579 = vunpack.c.h.b16 %v1144
      %v3580 = vunpack.c.l.b16 %v1145
      %v3581 = vunpack.c.h.b16 %v1145
      %v3582 = vunpack.c.l.b16 %v1146
      %v3583 = vunpack.c.h.b16 %v1146
      %v3584 = vunpack.c.l.b16 %v1147
      %v3585 = vunpack.c.h.b16 %v1147
      %v3586 = vunpack.c.l.b16 %v1148
      %v3587 = vunpack.c.h.b16 %v1148
      %v3588 = vunpack.c.l.b16 %v1149
      %v3589 = vunpack.c.h.b16 %v1149
      %v3590 = vunpack.c.l.b16 %v1150
      %v3591 = vunpack.c.h.b16 %v1150
      %v3592 = vunpack.c.l.b16 %v1151
      %v3593 = vunpack.c.h.b16 %v1151
      %v3594 = vunpack.c.l.b16 %v1152
      %v3595 = vunpack.c.h.b16 %v1152
      %v3596 = vunpack.c.l.b16 %v1153
      %v3597 = vunpack.c.h.b16 %v1153
      %v3598 = vunpack.c.l.b16 %v1154
      %v3599 = vunpack.c.h.b16 %v1154
      %v3600 = vunpack.c.l.b16 %v1155
      %v3601 = vunpack.c.h.b16 %v1155
      %v3602 = vunpack.c.l.b16 %v1156
      %v3603 = vunpack.c.h.b16 %v1156
      %v3604 = vunpack.c.l.b16 %v1157
      %v3605 = vunpack.c.h.b16 %v1157
      %v3606 = vunpack.c.l.b16 %v1158
      %v3607 = vunpack.c.h.b16 %v1158
      %v3608 = vunpack.c.l.b16 %v1159
      %v3609 = vunpack.c.h.b16 %v1159
      %v3610 = vunpack.c.l.b16 %v1160
      %v3611 = vunpack.c.h.b16 %v1160
      %v3612 = vunpack.c.l.b16 %v1161
      %v3613 = vunpack.c.h.b16 %v1161
      %v3614 = vunpack.c.l.b16 %v1162
      %v3615 = vunpack.c.h.b16 %v1162
      %v3616 = vunpack.c.l.b16 %v1163
      %v3617 = vunpack.c.h.b16 %v1163
      %v3618 = vunpack.c.l.b16 %v1164
      %v3619 = vunpack.c.h.b16 %v1164
      %v3620 = vunpack.c.l.b16 %v1165
      %v3621 = vunpack.c.h.b16 %v1165
      %v3622 = vunpack.c.l.b16 %v1166
      %v3623 = vunpack.c.h.b16 %v1166
      %v3624 = vunpack.c.l.b16 %v1167
      %v3625 = vunpack.c.h.b16 %v1167
      %v3626 = vunpack.c.l.b16 %v1168
      %v3627 = vunpack.c.h.b16 %v1168
      %v3628 = vunpack.c.l.b16 %v1169
      %v3629 = vunpack.c.h.b16 %v1169
      %v3630 = vunpack.c.l.b16 %v1170
      %v3631 = vunpack.c.h.b16 %v1170
      %v3632 = vunpack.c.l.b16 %v1171
      %v3633 = vunpack.c.h.b16 %v1171
      %v3634 = vunpack.c.l.b16 %v1172
      %v3635 = vunpack.c.h.b16 %v1172
      %v3636 = vunpack.c.l.b16 %v1173
      %v3637 = vunpack.c.h.b16 %v1173
      %v3638 = vunpack.c.l.b16 %v1174
      %v3639 = vunpack.c.h.b16 %v1174
      %v3640 = vunpack.c.l.b16 %v1175
      %v3641 = vunpack.c.h.b16 %v1175
      %v3642 = vunpack.c.l.b16 %v1176
      %v3643 = vunpack.c.h.b16 %v1176
      %v3644 = vunpack.c.l.b16 %v1177
      %v3645 = vunpack.c.h.b16 %v1177
      %v3646 = vunpack.c.l.b16 %v1178
      %v3647 = vunpack.c.h.b16 %v1178
      %v3648 = vunpack.c.l.b16 %v1179
      %v3649 = vunpack.c.h.b16 %v1179
      %v3650 = vunpack.c.l.b16 %v1180
      %v3651 = vunpack.c.h.b16 %v1180
      %v3652 = vunpack.c.l.b16 %v1181
      %v3653 = vunpack.c.h.b16 %v1181
      %v3654 = vunpack.c.l.b16 %v1182
      %v3655 = vunpack.c.h.b16 %v1182
      %v3656 = vunpack.c.l.b16 %v1183
      %v3657 = vunpack.c.h.b16 %v1183
      %v3658 = vunpack.c.l.b16 %v1184
      %v3659 = vunpack.c.h.b16 %v1184
      %v3660 = vunpack.c.l.b16 %v1185
      %v3661 = vunpack.c.h.b16 %v1185
      %v3662 = vunpack.c.l.b16 %v1186
      %v3663 = vunpack.c.h.b16 %v1186
      %v3664 = vunpack.c.l.b16 %v1187
      %v3665 = vunpack.c.h.b16 %v1187
      %v3666 = vunpack.c.l.b16 %v1188
      %v3667 = vunpack.c.h.b16 %v1188
      %v3668 = vunpack.c.l.b16 %v1189
      %v3669 = vunpack.c.h.b16 %v1189
      %v3670 = vunpack.c.l.b16 %v1190
      %v3671 = vunpack.c.h.b16 %v1190
      %v3672 = vunpack.c.l.b16 %v1191
      %v3673 = vunpack.c.h.b16 %v1191
      %v3674 = vunpack.c.l.b16 %v1192
      %v3675 = vunpack.c.h.b16 %v1192
      %v3676 = vunpack.c.l.b16 %v1193
      %v3677 = vunpack.c.h.b16 %v1193
      %v3678 = vunpack.c.l.b16 %v1194
      %v3679 = vunpack.c.h.b16 %v1194
      %v3680 = vunpack.c.l.b16 %v1195
      %v3681 = vunpack.c.h.b16 %v1195
      %v3682 = vunpack.c.l.b16 %v1196
      %v3683 = vunpack.c.h.b16 %v1196
      %v3684 = vunpack.c.l.b16 %v1197
      %v3685 = vunpack.c.h.b16 %v1197
      %v3686 = vunpack.c.l.b16 %v1198
      %v3687 = vunpack.c.h.b16 %v1198
      %v3688 = vunpack.c.l.b16 %v1199
      %v3689 = vunpack.c.h.b16 %v1199
      %v3690 = vunpack.c.l.b16 %v1200
      %v3691 = vunpack.c.h.b16 %v1200
      %v3692 = vunpack.c.l.b16 %v1201
      %v3693 = vunpack.c.h.b16 %v1201
      %v3694 = vunpack.c.l.b16 %v1202
      %v3695 = vunpack.c.h.b16 %v1202
      %v3696 = vunpack.c.l.b16 %v1203
      %v3697 = vunpack.c.h.b16 %v1203
      %v3698 = vunpack.c.l.b16 %v1204
      %v3699 = vunpack.c.h.b16 %v1204
      %v3700 = vunpack.c.l.b16 %v1205
      %v3701 = vunpack.c.h.b16 %v1205
      %v3702 = vunpack.c.l.b16 %v1206
      %v3703 = vunpack.c.h.b16 %v1206
      %v3704 = vunpack.c.l.b16 %v1207
      %v3705 = vunpack.c.h.b16 %v1207
      %v3706 = vunpack.c.l.b16 %v1208
      %v3707 = vunpack.c.h.b16 %v1208
      %v3708 = vunpack.c.l.b16 %v1209
      %v3709 = vunpack.c.h.b16 %v1209
      %v3710 = vunpack.c.l.b16 %v1210
      %v3711 = vunpack.c.h.b16 %v1210
      %v3712 = vunpack.c.l.b16 %v1211
      %v3713 = vunpack.c.h.b16 %v1211
      %v3714 = vunpack.c.l.b16 %v1212
      %v3715 = vunpack.c.h.b16 %v1212
      %v3716 = vunpack.c.l.b16 %v1213
      %v3717 = vunpack.c.h.b16 %v1213
      %v3718 = vunpack.c.l.b16 %v1214
      %v3719 = vunpack.c.h.b16 %v1214
      %v3720 = vunpack.c.l.b16 %v1215
      %v3721 = vunpack.c.h.b16 %v1215
      %v3722 = vunpack.c.l.b16 %v1216
      %v3723 = vunpack.c.h.b16 %v1216
      %v3724 = vunpack.c.l.b16 %v1217
      %v3725 = vunpack.c.h.b16 %v1217
      %v3726 = vunpack.c.l.b16 %v1218
      %v3727 = vunpack.c.h.b16 %v1218
      %v3728 = vunpack.c.l.b16 %v1219
      %v3729 = vunpack.c.h.b16 %v1219
      %v3730 = vunpack.c.l.b16 %v1220
      %v3731 = vunpack.c.h.b16 %v1220
      %v3732 = vunpack.c.l.b16 %v1221
      %v3733 = vunpack.c.h.b16 %v1221
      %v3734 = vunpack.c.l.b16 %v1222
      %v3735 = vunpack.c.h.b16 %v1222
      %v3736 = vunpack.c.l.b16 %v1223
      %v3737 = vunpack.c.h.b16 %v1223
      %v3738 = vunpack.c.l.b16 %v1224
      %v3739 = vunpack.c.h.b16 %v1224
      %v3740 = vunpack.c.l.b16 %v1225
      %v3741 = vunpack.c.h.b16 %v1225
      %v3742 = vunpack.c.l.b16 %v1226
      %v3743 = vunpack.c.h.b16 %v1226
      %v3744 = vunpack.c.l.b16 %v1227
      %v3745 = vunpack.c.h.b16 %v1227
      %v3746 = vunpack.c.l.b16 %v1228
      %v3747 = vunpack.c.h.b16 %v1228
      %v3748 = vunpack.c.l.b16 %v1229
      %v3749 = vunpack.c.h.b16 %v1229
      %v3750 = vunpack.c.l.b16 %v1230
      %v3751 = vunpack.c.h.b16 %v1230
      %v3752 = vunpack.c.l.b16 %v1231
      %v3753 = vunpack.c.h.b16 %v1231
      %v3754 = vunpack.c.l.b16 %v1232
      %v3755 = vunpack.c.h.b16 %v1232
      %v3756 = vunpack.c.l.b16 %v1233
      %v3757 = vunpack.c.h.b16 %v1233
      %v3758 = vunpack.c.l.b16 %v1234
      %v3759 = vunpack.c.h.b16 %v1234
      %v3760 = vunpack.c.l.b16 %v1235
      %v3761 = vunpack.c.h.b16 %v1235
      %v3762 = vunpack.c.l.b16 %v1236
      %v3763 = vunpack.c.h.b16 %v1236
      %v3764 = vunpack.c.l.b16 %v1237
      %v3765 = vunpack.c.h.b16 %v1237
      %v3766 = vunpack.c.l.b16 %v1238
      %v3767 = vunpack.c.h.b16 %v1238
      %v3768 = vunpack.c.l.b16 %v1239
      %v3769 = vunpack.c.h.b16 %v1239
      %v3770 = vunpack.c.l.b16 %v1240
      %v3771 = vunpack.c.h.b16 %v1240
      %v3772 = vunpack.c.l.b16 %v1241
      %v3773 = vunpack.c.h.b16 %v1241
      %v3774 = vunpack.c.l.b16 %v1242
      %v3775 = vunpack.c.h.b16 %v1242
      %v3776 = vunpack.c.l.b16 %v1243
      %v3777 = vunpack.c.h.b16 %v1243
      %v3778 = vunpack.c.l.b16 %v1244
      %v3779 = vunpack.c.h.b16 %v1244
      %v3780 = vunpack.c.l.b16 %v1245
      %v3781 = vunpack.c.h.b16 %v1245
      %v3782 = vunpack.c.l.b16 %v1246
      %v3783 = vunpack.c.h.b16 %v1246
      %v3784 = vunpack.c.l.b16 %v1247
      %v3785 = vunpack.c.h.b16 %v1247
      %v3786 = vunpack.c.l.b16 %v1248
      %v3787 = vunpack.c.h.b16 %v1248
      %v3788 = vunpack.c.l.b16 %v1249
      %v3789 = vunpack.c.h.b16 %v1249
      %v3790 = vunpack.c.l.b16 %v1250
      %v3791 = vunpack.c.h.b16 %v1250
      %v3792 = vunpack.c.l.b16 %v1251
      %v3793 = vunpack.c.h.b16 %v1251
      %v3794 = vunpack.c.l.b16 %v1252
      %v3795 = vunpack.c.h.b16 %v1252
      %v3796 = vunpack.c.l.b16 %v1253
      %v3797 = vunpack.c.h.b16 %v1253
      %v3798 = vunpack.c.l.b16 %v1254
      %v3799 = vunpack.c.h.b16 %v1254
      %v3800 = vunpack.c.l.b16 %v1255
      %v3801 = vunpack.c.h.b16 %v1255
      %v3802 = vunpack.c.l.b16 %v1256
      %v3803 = vunpack.c.h.b16 %v1256
      %v3804 = vunpack.c.l.b16 %v1257
      %v3805 = vunpack.c.h.b16 %v1257
      %v3806 = vunpack.c.l.b16 %v1258
      %v3807 = vunpack.c.h.b16 %v1258
      %v3808 = vunpack.c.l.b16 %v1259
      %v3809 = vunpack.c.h.b16 %v1259
      %v3810 = vunpack.c.l.b16 %v1260
      %v3811 = vunpack.c.h.b16 %v1260
      %v3812 = vunpack.c.l.b16 %v1261
      %v3813 = vunpack.c.h.b16 %v1261
      %v3814 = vunpack.c.l.b16 %v1262
      %v3815 = vunpack.c.h.b16 %v1262
      %v3816 = vunpack.c.l.b16 %v1263
      %v3817 = vunpack.c.h.b16 %v1263
      %v3818 = vunpack.c.l.b16 %v1264
      %v3819 = vunpack.c.h.b16 %v1264
      %v3820 = vunpack.c.l.b16 %v1265
      %v3821 = vunpack.c.h.b16 %v1265
      %v3822 = vunpack.c.l.b16 %v1266
      %v3823 = vunpack.c.h.b16 %v1266
      %v3824 = vunpack.c.l.b16 %v1267
      %v3825 = vunpack.c.h.b16 %v1267
      %v3826 = vunpack.c.l.b16 %v1268
      %v3827 = vunpack.c.h.b16 %v1268
      %v3828 = vunpack.c.l.b16 %v1269
      %v3829 = vunpack.c.h.b16 %v1269
      %v3830 = vunpack.c.l.b16 %v1270
      %v3831 = vunpack.c.h.b16 %v1270
      %v3832 = vunpack.c.l.b16 %v1271
      %v3833 = vunpack.c.h.b16 %v1271
      %v3834 = vunpack.c.l.b16 %v1272
      %v3835 = vunpack.c.h.b16 %v1272
      %v3836 = vunpack.c.l.b16 %v1273
      %v3837 = vunpack.c.h.b16 %v1273
      %v3838 = vunpack.c.l.b16 %v1274
      %v3839 = vunpack.c.h.b16 %v1274
      %v3840 = vunpack.c.l.b16 %v1275
      %v3841 = vunpack.c.h.b16 %v1275
      %v3842 = vunpack.c.l.b16 %v1276
      %v3843 = vunpack.c.h.b16 %v1276
      %v3844 = vunpack.c.l.b16 %v1277
      %v3845 = vunpack.c.h.b16 %v1277
      %v3846 = vunpack.c.l.b16 %v1278
      %v3847 = vunpack.c.h.b16 %v1278
      %v3848 = vunpack.c.l.b16 %v1279
      %v3849 = vunpack.c.h.b16 %v1279
      %v3850 = vunpack.c.l.b16 %v1280
      %v3851 = vunpack.c.h.b16 %v1280
      %v3852 = vunpack.c.l.b16 %v1281
      %v3853 = vunpack.c.h.b16 %v1281
      %v3854 = vunpack.c.l.b16 %v1282
      %v3855 = vunpack.c.h.b16 %v1282
      %v3856 = vunpack.c.l.b16 %v1283
      %v3857 = vunpack.c.h.b16 %v1283
      %v3858 = vunpack.c.l.b16 %v1284
      %v3859 = vunpack.c.h.b16 %v1284
      %v3860 = vunpack.c.l.b16 %v1285
      %v3861 = vunpack.c.h.b16 %v1285
      %v3862 = vunpack.c.l.b16 %v1286
      %v3863 = vunpack.c.h.b16 %v1286
      %v3864 = vunpack.c.l.b16 %v1287
      %v3865 = vunpack.c.h.b16 %v1287
      %v3866 = vunpack.c.l.b16 %v1288
      %v3867 = vunpack.c.h.b16 %v1288
      %v3868 = vunpack.c.l.b16 %v1289
      %v3869 = vunpack.c.h.b16 %v1289
      %v3870 = vunpack.c.l.b16 %v1290
      %v3871 = vunpack.c.h.b16 %v1290
      %v3872 = vunpack.c.l.b16 %v1291
      %v3873 = vunpack.c.h.b16 %v1291
      %v3874 = vunpack.c.l.b16 %v1292
      %v3875 = vunpack.c.h.b16 %v1292
      %v3876 = vunpack.c.l.b16 %v1293
      %v3877 = vunpack.c.h.b16 %v1293
      %v3878 = vunpack.c.l.b16 %v1294
      %v3879 = vunpack.c.h.b16 %v1294
      %v3880 = vunpack.c.l.b16 %v1295
      %v3881 = vunpack.c.h.b16 %v1295
      %v3882 = vunpack.c.l.b16 %v1296
      %v3883 = vunpack.c.h.b16 %v1296
      %v3884 = vunpack.c.l.b16 %v1297
      %v3885 = vunpack.c.h.b16 %v1297
      %v3886 = vunpack.c.l.b16 %v1298
      %v3887 = vunpack.c.h.b16 %v1298
      %v3888 = vunpack.c.l.b16 %v1299
      %v3889 = vunpack.c.h.b16 %v1299
      %v3890 = vunpack.c.l.b16 %v1300
      %v3891 = vunpack.c.h.b16 %v1300
      %v3892 = vunpack.c.l.b16 %v1301
      %v3893 = vunpack.c.h.b16 %v1301
      %v3894 = vunpack.c.l.b16 %v1302
      %v3895 = vunpack.c.h.b16 %v1302
      %v3896 = vunpack.c.l.b16 %v1303
      %v3897 = vunpack.c.h.b16 %v1303
      %v3898 = vunpack.c.l.b16 %v1304
      %v3899 = vunpack.c.h.b16 %v1304
      %v3900 = vunpack.c.l.b16 %v1305
      %v3901 = vunpack.c.h.b16 %v1305
      %v3902 = vunpack.c.l.b16 %v1306
      %v3903 = vunpack.c.h.b16 %v1306
      %v3904 = vunpack.c.l.b16 %v1307
      %v3905 = vunpack.c.h.b16 %v1307
      %v3906 = vunpack.c.l.b16 %v1308
      %v3907 = vunpack.c.h.b16 %v1308
      %v3908 = vunpack.c.l.b16 %v1309
      %v3909 = vunpack.c.h.b16 %v1309
      %v3910 = vunpack.c.l.b16 %v1310
      %v3911 = vunpack.c.h.b16 %v1310
      %v3912 = vunpack.c.l.b16 %v1311
      %v3913 = vunpack.c.h.b16 %v1311
      %v3914 = vunpack.c.l.b16 %v1312
      %v3915 = vunpack.c.h.b16 %v1312
      %v3916 = vunpack.c.l.b16 %v1313
      %v3917 = vunpack.c.h.b16 %v1313
      %v3918 = vunpack.c.l.b16 %v1314
      %v3919 = vunpack.c.h.b16 %v1314
      %v3920 = vunpack.c.l.b16 %v1315
      %v3921 = vunpack.c.h.b16 %v1315
      %v3922 = vunpack.c.l.b16 %v1316
      %v3923 = vunpack.c.h.b16 %v1316
      %v3924 = vunpack.c.l.b16 %v1317
      %v3925 = vunpack.c.h.b16 %v1317
      %v3926 = vunpack.c.l.b16 %v1318
      %v3927 = vunpack.c.h.b16 %v1318
      %v3928 = vunpack.c.l.b16 %v1319
      %v3929 = vunpack.c.h.b16 %v1319
      %v3930 = vunpack.c.l.b16 %v1320
      %v3931 = vunpack.c.h.b16 %v1320
      %v3932 = vunpack.c.l.b16 %v1321
      %v3933 = vunpack.c.h.b16 %v1321
      %v3934 = vunpack.c.l.b16 %v1322
      %v3935 = vunpack.c.h.b16 %v1322
      %v3936 = vunpack.c.l.b16 %v1323
      %v3937 = vunpack.c.h.b16 %v1323
      %v3938 = vunpack.c.l.b16 %v1324
      %v3939 = vunpack.c.h.b16 %v1324
      %v3940 = vunpack.c.l.b16 %v1325
      %v3941 = vunpack.c.h.b16 %v1325
      %v3942 = vunpack.c.l.b16 %v1326
      %v3943 = vunpack.c.h.b16 %v1326
      %v3944 = vunpack.c.l.b16 %v1327
      %v3945 = vunpack.c.h.b16 %v1327
      %v3946 = vunpack.c.l.b16 %v1328
      %v3947 = vunpack.c.h.b16 %v1328
      %v3948 = vunpack.c.l.b16 %v1329
      %v3949 = vunpack.c.h.b16 %v1329
      %v3950 = vunpack.c.l.b16 %v1330
      %v3951 = vunpack.c.h.b16 %v1330
      %v3952 = vunpack.c.l.b16 %v1331
      %v3953 = vunpack.c.h.b16 %v1331
      %v3954 = vunpack.c.l.b16 %v1332
      %v3955 = vunpack.c.h.b16 %v1332
      %v3956 = vunpack.c.l.b16 %v1333
      %v3957 = vunpack.c.h.b16 %v1333
      %v3958 = vunpack.c.l.b16 %v1334
      %v3959 = vunpack.c.h.b16 %v1334
      %v3960 = vunpack.c.l.b16 %v1335
      %v3961 = vunpack.c.h.b16 %v1335
      %v3962 = vunpack.c.l.b16 %v1336
      %v3963 = vunpack.c.h.b16 %v1336
      %v3964 = vunpack.c.l.b16 %v1337
      %v3965 = vunpack.c.h.b16 %v1337
      %v3966 = vunpack.c.l.b16 %v1338
      %v3967 = vunpack.c.h.b16 %v1338
      %v3968 = vunpack.c.l.b16 %v1339
      %v3969 = vunpack.c.h.b16 %v1339
      %v3970 = vunpack.c.l.b16 %v1340
      %v3971 = vunpack.c.h.b16 %v1340
      %v3972 = vunpack.c.l.b16 %v1341
      %v3973 = vunpack.c.h.b16 %v1341
      %v3974 = vunpack.c.l.b16 %v1342
      %v3975 = vunpack.c.h.b16 %v1342
      %v3976 = vunpack.c.l.b16 %v1343
      %v3977 = vunpack.c.h.b16 %v1343
      %v3978 = vunpack.c.l.b16 %v1344
      %v3979 = vunpack.c.h.b16 %v1344
      %v3980 = vunpack.c.l.b16 %v1345
      %v3981 = vunpack.c.h.b16 %v1345
      %v3982 = vunpack.c.l.b16 %v1346
      %v3983 = vunpack.c.h.b16 %v1346
      %v3984 = vunpack.c.l.b16 %v1347
      %v3985 = vunpack.c.h.b16 %v1347
      %v3986 = vunpack.c.l.b16 %v1348
      %v3987 = vunpack.c.h.b16 %v1348
      %v3988 = vunpack.c.l.b16 %v1349
      %v3989 = vunpack.c.h.b16 %v1349
      %v3990 = vunpack.c.l.b16 %v1350
      %v3991 = vunpack.c.h.b16 %v1350
      %v3992 = vunpack.c.l.b16 %v1351
      %v3993 = vunpack.c.h.b16 %v1351
      %v3994 = vunpack.c.l.b16 %v1352
      %v3995 = vunpack.c.h.b16 %v1352
      %v3996 = vunpack.c.l.b16 %v1353
      %v3997 = vunpack.c.h.b16 %v1353
      %v3998 = vunpack.c.l.b16 %v1354
      %v3999 = vunpack.c.h.b16 %v1354
      %v4000 = vunpack.c.l.b16 %v1355
      %v4001 = vunpack.c.h.b16 %v1355
      %v4002 = vunpack.c.l.b16 %v1356
      %v4003 = vunpack.c.h.b16 %v1356
      %v4004 = vunpack.c.l.b16 %v1357
      %v4005 = vunpack.c.h.b16 %v1357
      %v4006 = vunpack.c.l.b16 %v1358
      %v4007 = vunpack.c.h.b16 %v1358
      %v4008 = vunpack.c.l.b16 %v1359
      %v4009 = vunpack.c.h.b16 %v1359
      %v4010 = vunpack.c.l.b16 %v1360
      %v4011 = vunpack.c.h.b16 %v1360
      %v4012 = vunpack.c.l.b16 %v1361
      %v4013 = vunpack.c.h.b16 %v1361
      %v4014 = vunpack.c.l.b16 %v1362
      %v4015 = vunpack.c.h.b16 %v1362
      %v4016 = vunpack.c.l.b16 %v1363
      %v4017 = vunpack.c.h.b16 %v1363
      %v4018 = vunpack.c.l.b16 %v1364
      %v4019 = vunpack.c.h.b16 %v1364
      %v4020 = vunpack.c.l.b16 %v1365
      %v4021 = vunpack.c.h.b16 %v1365
      %v4022 = vunpack.c.l.b16 %v1366
      %v4023 = vunpack.c.h.b16 %v1366
      %v4024 = vunpack.c.l.b16 %v1367
      %v4025 = vunpack.c.h.b16 %v1367
      %v4026 = vunpack.c.l.b16 %v1368
      %v4027 = vunpack.c.h.b16 %v1368
      %v4028 = vunpack.c.l.b16 %v1369
      %v4029 = vunpack.c.h.b16 %v1369
      %v4030 = vunpack.c.l.b16 %v1370
      %v4031 = vunpack.c.h.b16 %v1370
      %v4032 = vunpack.c.l.b16 %v1371
      %v4033 = vunpack.c.h.b16 %v1371
      %v4034 = vunpack.c.l.b16 %v1372
      %v4035 = vunpack.c.h.b16 %v1372
      %v4036 = vunpack.c.l.b16 %v1373
      %v4037 = vunpack.c.h.b16 %v1373
      %v4038 = vunpack.c.l.b16 %v1374
      %v4039 = vunpack.c.h.b16 %v1374
      %v4040 = vunpack.c.l.b16 %v1375
      %v4041 = vunpack.c.h.b16 %v1375
      %v4042 = vunpack.c.l.b16 %v1376
      %v4043 = vunpack.c.h.b16 %v1376
      %v4044 = vunpack.c.l.b16 %v1377
      %v4045 = vunpack.c.h.b16 %v1377
      %v4046 = vunpack.c.l.b16 %v1378
      %v4047 = vunpack.c.h.b16 %v1378
      %v4048 = vunpack.c.l.b16 %v1379
      %v4049 = vunpack.c.h.b16 %v1379
      %v4050 = vunpack.c.l.b16 %v1380
      %v4051 = vunpack.c.h.b16 %v1380
      %v4052 = vunpack.c.l.b16 %v1381
      %v4053 = vunpack.c.h.b16 %v1381
      %v4054 = vunpack.c.l.b16 %v1382
      %v4055 = vunpack.c.h.b16 %v1382
      %v4056 = vunpack.c.l.b16 %v1383
      %v4057 = vunpack.c.h.b16 %v1383
      %v4058 = vunpack.c.l.b16 %v1384
      %v4059 = vunpack.c.h.b16 %v1384
      %v4060 = vunpack.c.l.b16 %v1385
      %v4061 = vunpack.c.h.b16 %v1385
      %v4062 = vunpack.c.l.b16 %v1386
      %v4063 = vunpack.c.h.b16 %v1386
      %v4064 = vunpack.c.l.b16 %v1387
      %v4065 = vunpack.c.h.b16 %v1387
      %v4066 = vunpack.c.l.b16 %v1388
      %v4067 = vunpack.c.h.b16 %v1388
      %v4068 = vunpack.c.l.b16 %v1389
      %v4069 = vunpack.c.h.b16 %v1389
      %v4070 = vunpack.c.l.b16 %v1390
      %v4071 = vunpack.c.h.b16 %v1390
      %v4072 = vunpack.c.l.b16 %v1391
      %v4073 = vunpack.c.h.b16 %v1391
      %v4074 = vunpack.c.l.b16 %v1392
      %v4075 = vunpack.c.h.b16 %v1392
      %v4076 = vunpack.c.l.b16 %v1393
      %v4077 = vunpack.c.h.b16 %v1393
      %v4078 = vunpack.c.l.b16 %v1394
      %v4079 = vunpack.c.h.b16 %v1394
      %v4080 = vunpack.c.l.b16 %v1395
      %v4081 = vunpack.c.h.b16 %v1395
      %v4082 = vunpack.c.l.b16 %v1396
      %v4083 = vunpack.c.h.b16 %v1396
      %v4084 = vunpack.c.l.b16 %v1397
      %v4085 = vunpack.c.h.b16 %v1397
      %v4086 = vunpack.c.l.b16 %v1398
      %v4087 = vunpack.c.h.b16 %v1398
      %v4088 = vunpack.c.l.b16 %v1399
      %v4089 = vunpack.c.h.b16 %v1399
      %v4090 = vunpack.c.l.b16 %v1400
      %v4091 = vunpack.c.h.b16 %v1400
      %v4092 = vunpack.c.l.b16 %v1401
      %v4093 = vunpack.c.h.b16 %v1401
      %v4094 = vunpack.c.l.b16 %v1402
      %v4095 = vunpack.c.h.b16 %v1402
      %v4096 = vunpack.c.l.b16 %v1403
      %v4097 = vunpack.c.h.b16 %v1403
      %v4098 = vunpack.c.l.b16 %v1404
      %v4099 = vunpack.c.h.b16 %v1404
      %v4100 = vunpack.c.l.b16 %v1405
      %v4101 = vunpack.c.h.b16 %v1405
      %v4102 = vunpack.c.l.b16 %v1406
      %v4103 = vunpack.c.h.b16 %v1406
      %v4104 = vunpack.c.l.b16 %v1407
      %v4105 = vunpack.c.h.b16 %v1407
      %v4106 = vunpack.c.l.b16 %v1408
      %v4107 = vunpack.c.h.b16 %v1408
      %v4108 = vunpack.c.l.b16 %v1409
      %v4109 = vunpack.c.h.b16 %v1409
      %v4110 = vunpack.c.l.b16 %v1410
      %v4111 = vunpack.c.h.b16 %v1410
      %v4112 = vunpack.c.l.b16 %v1411
      %v4113 = vunpack.c.h.b16 %v1411
      %v4114 = vunpack.c.l.b16 %v1412
      %v4115 = vunpack.c.h.b16 %v1412
      %v4116 = vunpack.c.l.b16 %v1413
      %v4117 = vunpack.c.h.b16 %v1413
      %v4118 = vunpack.c.l.b16 %v1414
      %v4119 = vunpack.c.h.b16 %v1414
      %v4120 = vunpack.c.l.b16 %v1415
      %v4121 = vunpack.c.h.b16 %v1415
      %v4122 = vunpack.c.l.b16 %v1416
      %v4123 = vunpack.c.h.b16 %v1416
      %v4124 = vunpack.c.l.b16 %v1417
      %v4125 = vunpack.c.h.b16 %v1417
      %v4126 = vunpack.c.l.b16 %v1418
      %v4127 = vunpack.c.h.b16 %v1418
      %v4128 = vunpack.c.l.b16 %v1419
      %v4129 = vunpack.c.h.b16 %v1419
      %v4130 = vunpack.c.l.b16 %v1420
      %v4131 = vunpack.c.h.b16 %v1420
      %v4132 = vunpack.c.l.b16 %v1421
      %v4133 = vunpack.c.h.b16 %v1421
      %v4134 = vunpack.c.l.b16 %v1422
      %v4135 = vunpack.c.h.b16 %v1422
      %v4136 = vunpack.c.l.b16 %v1423
      %v4137 = vunpack.c.h.b16 %v1423
      %v4138 = vunpack.c.l.b16 %v1424
      %v4139 = vunpack.c.h.b16 %v1424
      %v4140 = vunpack.c.l.b16 %v1425
      %v4141 = vunpack.c.h.b16 %v1425
      %v4142 = vunpack.c.l.b16 %v1426
      %v4143 = vunpack.c.h.b16 %v1426
      %v4144 = vunpack.c.l.b16 %v1427
      %v4145 = vunpack.c.h.b16 %v1427
      %v4146 = vunpack.c.l.b16 %v1428
      %v4147 = vunpack.c.h.b16 %v1428
      %v4148 = vunpack.c.l.b16 %v1429
      %v4149 = vunpack.c.h.b16 %v1429
      %v4150 = vunpack.c.l.b16 %v1430
      %v4151 = vunpack.c.h.b16 %v1430
      %v4152 = vunpack.c.l.b16 %v1431
      %v4153 = vunpack.c.h.b16 %v1431
      %v4154 = vunpack.c.l.b16 %v1432
      %v4155 = vunpack.c.h.b16 %v1432
      %v4156 = vunpack.c.l.b16 %v1433
      %v4157 = vunpack.c.h.b16 %v1433
      %v4158 = vunpack.c.l.b16 %v1434
      %v4159 = vunpack.c.h.b16 %v1434
      %v4160 = vunpack.c.l.b16 %v1435
      %v4161 = vunpack.c.h.b16 %v1435
      %v4162 = vunpack.c.l.b16 %v1436
      %v4163 = vunpack.c.h.b16 %v1436
      %v4164 = vunpack.c.l.b16 %v1437
      %v4165 = vunpack.c.h.b16 %v1437
      %v4166 = vunpack.c.l.b16 %v1438
      %v4167 = vunpack.c.h.b16 %v1438
      %v4168 = vunpack.c.l.b16 %v1439
      %v4169 = vunpack.c.h.b16 %v1439
      %v4170 = vunpack.c.l.b16 %v1440
      %v4171 = vunpack.c.h.b16 %v1440
      %v4172 = vunpack.c.l.b16 %v1441
      %v4173 = vunpack.c.h.b16 %v1441
      %v4174 = vunpack.c.l.b16 %v1442
      %v4175 = vunpack.c.h.b16 %v1442
      %v4176 = vunpack.c.l.b16 %v1443
      %v4177 = vunpack.c.h.b16 %v1443
      %v4178 = vunpack.c.l.b16 %v1444
      %v4179 = vunpack.c.h.b16 %v1444
      %v4180 = vunpack.c.l.b16 %v1445
      %v4181 = vunpack.c.h.b16 %v1445
      %v4182 = vunpack.c.l.b16 %v1446
      %v4183 = vunpack.c.h.b16 %v1446
      %v4184 = vunpack.c.l.b16 %v1447
      %v4185 = vunpack.c.h.b16 %v1447
      %v4186 = vunpack.c.l.b16 %v1448
      %v4187 = vunpack.c.h.b16 %v1448
      %v4188 = vunpack.c.l.b16 %v1449
      %v4189 = vunpack.c.h.b16 %v1449
      %v4190 = vunpack.c.l.b16 %v1450
      %v4191 = vunpack.c.h.b16 %v1450
      %v4192 = vunpack.c.l.b16 %v1451
      %v4193 = vunpack.c.h.b16 %v1451
      %v4194 = vunpack.c.l.b16 %v1452
      %v4195 = vunpack.c.h.b16 %v1452
      %v4196 = vunpack.c.l.b16 %v1453
      %v4197 = vunpack.c.h.b16 %v1453
      %v4198 = vunpack.c.l.b16 %v1454
      %v4199 = vunpack.c.h.b16 %v1454
      %v4200 = vunpack.c.l.b16 %v1455
      %v4201 = vunpack.c.h.b16 %v1455
      %v4202 = vunpack.c.l.b16 %v1456
      %v4203 = vunpack.c.h.b16 %v1456
      %v4204 = vunpack.c.l.b16 %v1457
      %v4205 = vunpack.c.h.b16 %v1457
      %v4206 = vunpack.c.l.b16 %v1458
      %v4207 = vunpack.c.h.b16 %v1458
      %v4208 = vunpack.c.l.b16 %v1459
      %v4209 = vunpack.c.h.b16 %v1459
      %v4210 = vunpack.c.l.b16 %v1460
      %v4211 = vunpack.c.h.b16 %v1460
      %v4212 = vunpack.c.l.b16 %v1461
      %v4213 = vunpack.c.h.b16 %v1461
      %v4214 = vunpack.c.l.b16 %v1462
      %v4215 = vunpack.c.h.b16 %v1462
      %v4216 = vunpack.c.l.b16 %v1463
      %v4217 = vunpack.c.h.b16 %v1463
      %v4218 = vunpack.c.l.b16 %v1464
      %v4219 = vunpack.c.h.b16 %v1464
      %v4220 = vunpack.c.l.b16 %v1465
      %v4221 = vunpack.c.h.b16 %v1465
      %v4222 = vunpack.c.l.b16 %v1466
      %v4223 = vunpack.c.h.b16 %v1466
      %v4224 = vunpack.c.l.b16 %v1467
      %v4225 = vunpack.c.h.b16 %v1467
      %v4226 = vunpack.c.l.b16 %v1468
      %v4227 = vunpack.c.h.b16 %v1468
      %v4228 = vunpack.c.l.b16 %v1469
      %v4229 = vunpack.c.h.b16 %v1469
      %v4230 = vunpack.c.l.b16 %v1470
      %v4231 = vunpack.c.h.b16 %v1470
      %v4232 = vunpack.c.l.b16 %v1471
      %v4233 = vunpack.c.h.b16 %v1471
      %v4234 = vunpack.c.l.b16 %v1472
      %v4235 = vunpack.c.h.b16 %v1472
      %v4236 = vunpack.c.l.b16 %v1473
      %v4237 = vunpack.c.h.b16 %v1473
      %v4238 = vunpack.c.l.b16 %v1474
      %v4239 = vunpack.c.h.b16 %v1474
      %v4240 = vunpack.c.l.b16 %v1475
      %v4241 = vunpack.c.h.b16 %v1475
      %v4242 = vunpack.c.l.b16 %v1476
      %v4243 = vunpack.c.h.b16 %v1476
      %v4244 = vunpack.c.l.b16 %v1477
      %v4245 = vunpack.c.h.b16 %v1477
      %v4246 = vunpack.c.l.b16 %v1478
      %v4247 = vunpack.c.h.b16 %v1478
      %v4248 = vunpack.c.l.b16 %v1479
      %v4249 = vunpack.c.h.b16 %v1479
      %v4250 = vunpack.c.l.b16 %v1480
      %v4251 = vunpack.c.h.b16 %v1480
      %v4252 = vunpack.c.l.b16 %v1481
      %v4253 = vunpack.c.h.b16 %v1481
      %v4254 = vunpack.c.l.b16 %v1482
      %v4255 = vunpack.c.h.b16 %v1482
      %v4256 = vunpack.c.l.b16 %v1483
      %v4257 = vunpack.c.h.b16 %v1483
      %v4258 = vunpack.c.l.b16 %v1484
      %v4259 = vunpack.c.h.b16 %v1484
      %v4260 = vunpack.c.l.b16 %v1485
      %v4261 = vunpack.c.h.b16 %v1485
      %v4262 = vunpack.c.l.b16 %v1486
      %v4263 = vunpack.c.h.b16 %v1486
      %v4264 = vunpack.c.l.b16 %v1487
      %v4265 = vunpack.c.h.b16 %v1487
      %v4266 = vunpack.c.l.b16 %v1488
      %v4267 = vunpack.c.h.b16 %v1488
      %v4268 = vunpack.c.l.b16 %v1489
      %v4269 = vunpack.c.h.b16 %v1489
      %v4270 = vunpack.c.l.b16 %v1490
      %v4271 = vunpack.c.h.b16 %v1490
      %v4272 = vunpack.c.l.b16 %v1491
      %v4273 = vunpack.c.h.b16 %v1491
      %v4274 = vunpack.c.l.b16 %v1492
      %v4275 = vunpack.c.h.b16 %v1492
      %v4276 = vunpack.c.l.b16 %v1493
      %v4277 = vunpack.c.h.b16 %v1493
      %v4278 = vunpack.c.l.b16 %v1494
      %v4279 = vunpack.c.h.b16 %v1494
      %v4280 = vunpack.c.l.b16 %v1495
      %v4281 = vunpack.c.h.b16 %v1495
      %v4282 = vunpack.c.l.b16 %v1496
      %v4283 = vunpack.c.h.b16 %v1496
      %v4284 = vunpack.c.l.b16 %v1497
      %v4285 = vunpack.c.h.b16 %v1497
      %v4286 = vunpack.c.l.b16 %v1498
      %v4287 = vunpack.c.h.b16 %v1498
      %v4288 = vunpack.c.l.b16 %v1499
      %v4289 = vunpack.c.h.b16 %v1499
      %v4290 = vunpack.c.l.b16 %v1500
      %v4291 = vunpack.c.h.b16 %v1500
      %v4292 = vunpack.c.l.b16 %v1501
      %v4293 = vunpack.c.h.b16 %v1501
      %v4294 = vunpack.c.l.b16 %v1502
      %v4295 = vunpack.c.h.b16 %v1502
      %v4296 = vunpack.c.l.b16 %v1503
      %v4297 = vunpack.c.h.b16 %v1503
      %v4298 = vunpack.c.l.b16 %v1504
      %v4299 = vunpack.c.h.b16 %v1504
      %v4300 = vunpack.c.l.b16 %v1505
      %v4301 = vunpack.c.h.b16 %v1505
      %v4302 = vunpack.c.l.b16 %v1506
      %v4303 = vunpack.c.h.b16 %v1506
      %v4304 = vunpack.c.l.b16 %v1507
      %v4305 = vunpack.c.h.b16 %v1507
      %v4306 = vunpack.c.l.b16 %v1508
      %v4307 = vunpack.c.h.b16 %v1508
      %v4308 = vunpack.c.l.b16 %v1509
      %v4309 = vunpack.c.h.b16 %v1509
      %v4310 = vunpack.c.l.b16 %v1510
      %v4311 = vunpack.c.h.b16 %v1510
      %v4312 = vunpack.c.l.b16 %v1511
      %v4313 = vunpack.c.h.b16 %v1511
      %v4314 = vunpack.c.l.b16 %v1512
      %v4315 = vunpack.c.h.b16 %v1512
      %v4316 = vunpack.c.l.b16 %v1513
      %v4317 = vunpack.c.h.b16 %v1513
      %v4318 = vunpack.c.l.b16 %v1514
      %v4319 = vunpack.c.h.b16 %v1514
      %v4320 = vunpack.c.l.b16 %v1515
      %v4321 = vunpack.c.h.b16 %v1515
      %v4322 = vunpack.c.l.b16 %v1516
      %v4323 = vunpack.c.h.b16 %v1516
      %v4324 = vunpack.c.l.b16 %v1517
      %v4325 = vunpack.c.h.b16 %v1517
      %v4326 = vunpack.c.l.b16 %v1518
      %v4327 = vunpack.c.h.b16 %v1518
      %v4328 = vunpack.c.l.b16 %v1519
      %v4329 = vunpack.c.h.b16 %v1519
      %v4330 = vunpack.c.l.b16 %v1520
      %v4331 = vunpack.c.h.b16 %v1520
      %v4332 = vunpack.c.l.b16 %v1521
      %v4333 = vunpack.c.h.b16 %v1521
      %v4334 = vunpack.c.l.b16 %v1522
      %v4335 = vunpack.c.h.b16 %v1522
      %v4336 = vunpack.c.l.b16 %v1523
      %v4337 = vunpack.c.h.b16 %v1523
      %v4338 = vunpack.c.l.b16 %v1524
      %v4339 = vunpack.c.h.b16 %v1524
      %v4340 = vunpack.c.l.b16 %v1525
      %v4341 = vunpack.c.h.b16 %v1525
      %v4342 = vunpack.c.l.b16 %v1526
      %v4343 = vunpack.c.h.b16 %v1526
      %v4344 = vunpack.c.l.b16 %v1527
      %v4345 = vunpack.c.h.b16 %v1527
      %v4346 = vunpack.c.l.b16 %v1528
      %v4347 = vunpack.c.h.b16 %v1528
      %v4348 = vunpack.c.l.b16 %v1529
      %v4349 = vunpack.c.h.b16 %v1529
      %v4350 = vunpack.c.l.b16 %v1530
      %v4351 = vunpack.c.h.b16 %v1530
      %v4352 = vunpack.c.l.b16 %v1531
      %v4353 = vunpack.c.h.b16 %v1531
      %v4354 = vunpack.c.l.b16 %v1532
      %v4355 = vunpack.c.h.b16 %v1532
      %v4356 = vunpack.c.l.b16 %v1533
      %v4357 = vunpack.c.h.b16 %v1533
      %v4358 = vunpack.c.l.b16 %v1534
      %v4359 = vunpack.c.h.b16 %v1534
      %v4360 = vunpack.c.l.b16 %v1535
      %v4361 = vunpack.c.h.b16 %v1535
      %v4362 = vunpack.c.l.b16 %v1536
      %v4363 = vunpack.c.h.b16 %v1536
      %v4364 = vunpack.c.l.b16 %v1537
      %v4365 = vunpack.c.h.b16 %v1537
      %v4366 = vunpack.c.l.b16 %v1538
      %v4367 = vunpack.c.h.b16 %v1538
      %v4368 = vunpack.c.l.b16 %v1539
      %v4369 = vunpack.c.h.b16 %v1539
      %v4370 = vunpack.c.l.b16 %v1540
      %v4371 = vunpack.c.h.b16 %v1540
      %v4372 = vunpack.c.l.b16 %v1541
      %v4373 = vunpack.c.h.b16 %v1541
      %v4374 = vunpack.c.l.b16 %v1542
      %v4375 = vunpack.c.h.b16 %v1542
      %v4376 = vunpack.c.l.b16 %v1543
      %v4377 = vunpack.c.h.b16 %v1543
      %v4378 = vunpack.c.l.b16 %v1544
      %v4379 = vunpack.c.h.b16 %v1544
      %v4380 = vunpack.c.l.b16 %v1545
      %v4381 = vunpack.c.h.b16 %v1545
      %v4382 = vunpack.c.l.b16 %v1546
      %v4383 = vunpack.c.h.b16 %v1546
      %v4384 = vunpack.c.l.b16 %v1547
      %v4385 = vunpack.c.h.b16 %v1547
      %v4386 = vunpack.c.l.b16 %v1548
      %v4387 = vunpack.c.h.b16 %v1548
      %v4388 = vunpack.c.l.b16 %v1549
      %v4389 = vunpack.c.h.b16 %v1549
      %v4390 = vunpack.c.l.b16 %v1550
      %v4391 = vunpack.c.h.b16 %v1550
      %v4392 = vunpack.c.l.b16 %v1551
      %v4393 = vunpack.c.h.b16 %v1551
      %v4394 = vunpack.c.l.b16 %v1552
      %v4395 = vunpack.c.h.b16 %v1552
      %v4396 = vunpack.c.l.b16 %v1553
      %v4397 = vunpack.c.h.b16 %v1553
      %v4398 = vunpack.c.l.b16 %v1554
      %v4399 = vunpack.c.h.b16 %v1554
      %v4400 = vunpack.c.l.b16 %v1555
      %v4401 = vunpack.c.h.b16 %v1555
      %v4402 = vunpack.c.l.b16 %v1556
      %v4403 = vunpack.c.h.b16 %v1556
      %v4404 = vunpack.c.l.b16 %v1557
      %v4405 = vunpack.c.h.b16 %v1557
      %v4406 = vunpack.c.l.b16 %v1558
      %v4407 = vunpack.c.h.b16 %v1558
      %v4408 = vunpack.c.l.b16 %v1559
      %v4409 = vunpack.c.h.b16 %v1559
      %v4410 = vunpack.c.l.b16 %v1560
      %v4411 = vunpack.c.h.b16 %v1560
      %v4412 = vunpack.c.l.b16 %v1561
      %v4413 = vunpack.c.h.b16 %v1561
      %v4414 = vunpack.c.l.b16 %v1562
      %v4415 = vunpack.c.h.b16 %v1562
      %v4416 = vunpack.c.l.b16 %v1563
      %v4417 = vunpack.c.h.b16 %v1563
      %v4418 = vunpack.c.l.b16 %v1564
      %v4419 = vunpack.c.h.b16 %v1564
      %v4420 = vunpack.c.l.b16 %v1565
      %v4421 = vunpack.c.h.b16 %v1565
      %v4422 = vunpack.c.l.b16 %v1566
      %v4423 = vunpack.c.h.b16 %v1566
      %v4424 = vunpack.c.l.b16 %v1567
      %v4425 = vunpack.c.h.b16 %v1567
      %v4426 = vunpack.c.l.b16 %v1568
      %v4427 = vunpack.c.h.b16 %v1568
      %v4428 = vunpack.c.l.b16 %v1569
      %v4429 = vunpack.c.h.b16 %v1569
      %v4430 = vunpack.c.l.b16 %v1570
      %v4431 = vunpack.c.h.b16 %v1570
      %v4432 = vunpack.c.l.b16 %v1571
      %v4433 = vunpack.c.h.b16 %v1571
      %v4434 = vunpack.c.l.b16 %v1572
      %v4435 = vunpack.c.h.b16 %v1572
      %v4436 = vunpack.c.l.b16 %v1573
      %v4437 = vunpack.c.h.b16 %v1573
      %v4438 = vunpack.c.l.b16 %v1574
      %v4439 = vunpack.c.h.b16 %v1574
      %v4440 = vunpack.c.l.b16 %v1575
      %v4441 = vunpack.c.h.b16 %v1575
      %v4442 = vunpack.c.l.b16 %v1576
      %v4443 = vunpack.c.h.b16 %v1576
      %v4444 = vunpack.c.l.b16 %v1577
      %v4445 = vunpack.c.h.b16 %v1577
      %v4446 = vunpack.c.l.b16 %v1578
      %v4447 = vunpack.c.h.b16 %v1578
      %v4448 = vunpack.c.l.b16 %v1579
      %v4449 = vunpack.c.h.b16 %v1579
      %v4450 = vunpack.c.l.b16 %v1580
      %v4451 = vunpack.c.h.b16 %v1580
      %v4452 = vunpack.c.l.b16 %v1581
      %v4453 = vunpack.c.h.b16 %v1581
      %v4454 = vunpack.c.l.b16 %v1582
      %v4455 = vunpack.c.h.b16 %v1582
      %v4456 = vunpack.c.l.b16 %v1583
      %v4457 = vunpack.c.h.b16 %v1583
      %v4458 = vunpack.c.l.b16 %v1584
      %v4459 = vunpack.c.h.b16 %v1584
      %v4460 = vunpack.c.l.b16 %v1585
      %v4461 = vunpack.c.h.b16 %v1585
      %v4462 = vunpack.c.l.b16 %v1586
      %v4463 = vunpack.c.h.b16 %v1586
      %v4464 = vunpack.c.l.b16 %v1587
      %v4465 = vunpack.c.h.b16 %v1587
      %v4466 = vunpack.c.l.b16 %v1588
      %v4467 = vunpack.c.h.b16 %v1588
      %v4468 = vunpack.c.l.b16 %v1589
      %v4469 = vunpack.c.h.b16 %v1589
      %v4470 = vunpack.c.l.b16 %v1590
      %v4471 = vunpack.c.h.b16 %v1590
      %v4472 = vunpack.c.l.b16 %v1591
      %v4473 = vunpack.c.h.b16 %v1591
      %v4474 = vunpack.c.l.b16 %v1592
      %v4475 = vunpack.c.h.b16 %v1592
      %v4476 = vunpack.c.l.b16 %v1593
      %v4477 = vunpack.c.h.b16 %v1593
      %v4478 = vunpack.c.l.b16 %v1594
      %v4479 = vunpack.c.h.b16 %v1594
      %v4480 = vunpack.c.l.b16 %v1595
      %v4481 = vunpack.c.h.b16 %v1595
      %v4482 = vunpack.c.l.b16 %v1596
      %v4483 = vunpack.c.h.b16 %v1596
      %v4484 = vunpack.c.l.b16 %v1597
      %v4485 = vunpack.c.h.b16 %v1597
      %v4486 = vunpack.c.l.b16 %v1598
      %v4487 = vunpack.c.h.b16 %v1598
      %v4488 = vunpack.c.l.b16 %v1599
      %v4489 = vunpack.c.h.b16 %v1599
      %v4490 = vunpack.c.l.b16 %v1600
      %v4491 = vunpack.c.h.b16 %v1600
      %v4492 = vunpack.c.l.b16 %v1601
      %v4493 = vunpack.c.h.b16 %v1601
      %v4494 = vunpack.c.l.b16 %v1602
      %v4495 = vunpack.c.h.b16 %v1602
      %v4496 = vunpack.c.l.b16 %v1603
      %v4497 = vunpack.c.h.b16 %v1603
      %v4498 = vunpack.c.l.b16 %v1604
      %v4499 = vunpack.c.h.b16 %v1604
      %v4500 = vunpack.c.l.b16 %v1605
      %v4501 = vunpack.c.h.b16 %v1605
      %v4502 = vunpack.c.l.b16 %v1606
      %v4503 = vunpack.c.h.b16 %v1606
      %v4504 = vunpack.c.l.b16 %v1607
      %v4505 = vunpack.c.h.b16 %v1607
      %v4506 = vunpack.c.l.b16 %v1608
      %v4507 = vunpack.c.h.b16 %v1608
      %v4508 = vunpack.c.l.b16 %v1609
      %v4509 = vunpack.c.h.b16 %v1609
      %v4510 = vunpack.c.l.b16 %v1610
      %v4511 = vunpack.c.h.b16 %v1610
      %v4512 = vunpack.c.l.b16 %v1611
      %v4513 = vunpack.c.h.b16 %v1611
      %v4514 = vunpack.c.l.b16 %v1612
      %v4515 = vunpack.c.h.b16 %v1612
      %v4516 = vunpack.c.l.b16 %v1613
      %v4517 = vunpack.c.h.b16 %v1613
      %v4518 = vunpack.c.l.b16 %v1614
      %v4519 = vunpack.c.h.b16 %v1614
      %v4520 = vunpack.c.l.b16 %v1615
      %v4521 = vunpack.c.h.b16 %v1615
      %v4522 = vunpack.c.l.b16 %v1616
      %v4523 = vunpack.c.h.b16 %v1616
      %v4524 = vunpack.c.l.b16 %v1617
      %v4525 = vunpack.c.h.b16 %v1617
      %v4526 = vunpack.c.l.b16 %v1618
      %v4527 = vunpack.c.h.b16 %v1618
      %v4528 = vunpack.c.l.b16 %v1619
      %v4529 = vunpack.c.h.b16 %v1619
      %v4530 = vunpack.c.l.b16 %v1620
      %v4531 = vunpack.c.h.b16 %v1620
      %v4532 = vunpack.c.l.b16 %v1621
      %v4533 = vunpack.c.h.b16 %v1621
      %v4534 = vunpack.c.l.b16 %v1622
      %v4535 = vunpack.c.h.b16 %v1622
      %v4536 = vunpack.c.l.b16 %v1623
      %v4537 = vunpack.c.h.b16 %v1623
      %v4538 = vunpack.c.l.b16 %v1624
      %v4539 = vunpack.c.h.b16 %v1624
      %v4540 = vunpack.c.l.b16 %v1625
      %v4541 = vunpack.c.h.b16 %v1625
      %v4542 = vunpack.c.l.b16 %v1626
      %v4543 = vunpack.c.h.b16 %v1626
      %v4544 = vunpack.c.l.b16 %v1627
      %v4545 = vunpack.c.h.b16 %v1627
      %v4546 = vunpack.c.l.b16 %v1628
      %v4547 = vunpack.c.h.b16 %v1628
      %v4548 = vunpack.c.l.b16 %v1629
      %v4549 = vunpack.c.h.b16 %v1629
      %v4550 = vunpack.c.l.b16 %v1630
      %v4551 = vunpack.c.h.b16 %v1630
      %v4552 = vunpack.c.l.b16 %v1631
      %v4553 = vunpack.c.h.b16 %v1631
      %v4554 = vunpack.c.l.b16 %v1632
      %v4555 = vunpack.c.h.b16 %v1632
      %v4556 = vunpack.c.l.b16 %v1633
      %v4557 = vunpack.c.h.b16 %v1633
      %v4558 = vunpack.c.l.b16 %v1634
      %v4559 = vunpack.c.h.b16 %v1634
      %v4560 = vunpack.c.l.b16 %v1635
      %v4561 = vunpack.c.h.b16 %v1635
      %v4562 = vunpack.c.l.b16 %v1636
      %v4563 = vunpack.c.h.b16 %v1636
      %v4564 = vunpack.c.l.b16 %v1637
      %v4565 = vunpack.c.h.b16 %v1637
      %v4566 = vunpack.c.l.b16 %v1638
      %v4567 = vunpack.c.h.b16 %v1638
      %v4568 = vunpack.c.l.b16 %v1639
      %v4569 = vunpack.c.h.b16 %v1639
      %v4570 = vunpack.c.l.b16 %v1640
      %v4571 = vunpack.c.h.b16 %v1640
      %v4572 = vunpack.c.l.b16 %v1641
      %v4573 = vunpack.c.h.b16 %v1641
      %v4574 = vunpack.c.l.b16 %v1642
      %v4575 = vunpack.c.h.b16 %v1642
      %v4576 = vunpack.c.l.b16 %v1643
      %v4577 = vunpack.c.h.b16 %v1643
      %v4578 = vunpack.c.l.b16 %v1644
      %v4579 = vunpack.c.h.b16 %v1644
      %v4580 = vunpack.c.l.b16 %v1645
      %v4581 = vunpack.c.h.b16 %v1645
      %v4582 = vunpack.c.l.b16 %v1646
      %v4583 = vunpack.c.h.b16 %v1646
      %v4584 = vunpack.c.l.b16 %v1647
      %v4585 = vunpack.c.h.b16 %v1647
      %v4586 = vunpack.c.l.b16 %v1648
      %v4587 = vunpack.c.h.b16 %v1648
      %v4588 = vunpack.c.l.b16 %v1649
      %v4589 = vunpack.c.h.b16 %v1649
      %v4590 = vunpack.c.l.b16 %v1650
      %v4591 = vunpack.c.h.b16 %v1650
      %v4592 = vunpack.c.l.b16 %v1651
      %v4593 = vunpack.c.h.b16 %v1651
      %v4594 = vunpack.c.l.b16 %v1652
      %v4595 = vunpack.c.h.b16 %v1652
      %v4596 = vunpack.c.l.b16 %v1653
      %v4597 = vunpack.c.h.b16 %v1653
      %v4598 = vunpack.c.l.b16 %v1654
      %v4599 = vunpack.c.h.b16 %v1654
      %v4600 = vunpack.c.l.b16 %v1655
      %v4601 = vunpack.c.h.b16 %v1655
      %v4602 = vunpack.c.l.b16 %v1656
      %v4603 = vunpack.c.h.b16 %v1656
      %v4604 = vunpack.c.l.b16 %v1657
      %v4605 = vunpack.c.h.b16 %v1657
      %v4606 = vunpack.c.l.b16 %v1658
      %v4607 = vunpack.c.h.b16 %v1658
      %v4608 = vunpack.c.l.b16 %v1659
      %v4609 = vunpack.c.h.b16 %v1659
      %v4610 = vunpack.c.l.b16 %v1660
      %v4611 = vunpack.c.h.b16 %v1660
      %v4612 = vunpack.c.l.b16 %v1661
      %v4613 = vunpack.c.h.b16 %v1661
      %v4614 = vunpack.c.l.b16 %v1662
      %v4615 = vunpack.c.h.b16 %v1662
      %v4616 = vunpack.c.l.b16 %v1663
      %v4617 = vunpack.c.h.b16 %v1663
      %v4618 = vunpack.c.l.b16 %v1664
      %v4619 = vunpack.c.h.b16 %v1664
      %v4620 = vunpack.c.l.b16 %v1665
      %v4621 = vunpack.c.h.b16 %v1665
      %v4622 = vunpack.c.l.b16 %v1666
      %v4623 = vunpack.c.h.b16 %v1666
      %v4624 = vunpack.c.l.b16 %v1667
      %v4625 = vunpack.c.h.b16 %v1667
      %v4626 = vunpack.c.l.b16 %v1668
      %v4627 = vunpack.c.h.b16 %v1668
      %v4628 = vunpack.c.l.b16 %v1669
      %v4629 = vunpack.c.h.b16 %v1669
      %v4630 = vunpack.c.l.b16 %v1670
      %v4631 = vunpack.c.h.b16 %v1670
      %v4632 = vunpack.c.l.b16 %v1671
      %v4633 = vunpack.c.h.b16 %v1671
      %v4634 = vunpack.c.l.b16 %v1672
      %v4635 = vunpack.c.h.b16 %v1672
      %v4636 = vunpack.c.l.b16 %v1673
      %v4637 = vunpack.c.h.b16 %v1673
      %v4638 = vunpack.c.l.b16 %v1674
      %v4639 = vunpack.c.h.b16 %v1674
      %v4640 = vunpack.c.l.b16 %v1675
      %v4641 = vunpack.c.h.b16 %v1675
      %v4642 = vunpack.c.l.b16 %v1676
      %v4643 = vunpack.c.h.b16 %v1676
      %v4644 = vunpack.c.l.b16 %v1677
      %v4645 = vunpack.c.h.b16 %v1677
      %v4646 = vunpack.c.l.b16 %v1678
      %v4647 = vunpack.c.h.b16 %v1678
      %v4648 = vunpack.c.l.b16 %v1679
      %v4649 = vunpack.c.h.b16 %v1679
      %v4650 = vunpack.c.l.b16 %v1680
      %v4651 = vunpack.c.h.b16 %v1680
      %v4652 = vunpack.c.l.b16 %v1681
      %v4653 = vunpack.c.h.b16 %v1681
      %v4654 = vunpack.c.l.b16 %v1682
      %v4655 = vunpack.c.h.b16 %v1682
      %v4656 = vunpack.c.l.b16 %v1683
      %v4657 = vunpack.c.h.b16 %v1683
      %v4658 = vunpack.c.l.b16 %v1684
      %v4659 = vunpack.c.h.b16 %v1684
      %v4660 = vunpack.c.l.b16 %v1685
      %v4661 = vunpack.c.h.b16 %v1685
      %v4662 = vunpack.c.l.b16 %v1686
      %v4663 = vunpack.c.h.b16 %v1686
      %v4664 = vunpack.c.l.b16 %v1687
      %v4665 = vunpack.c.h.b16 %v1687
      %v4666 = vunpack.c.l.b16 %v1688
      %v4667 = vunpack.c.h.b16 %v1688
      %v4668 = vunpack.c.l.b16 %v1689
      %v4669 = vunpack.c.h.b16 %v1689
      %v4670 = vunpack.c.l.b16 %v1690
      %v4671 = vunpack.c.h.b16 %v1690
      %v4672 = vunpack.c.l.b16 %v1691
      %v4673 = vunpack.c.h.b16 %v1691
      %v4674 = vunpack.c.l.b16 %v1692
      %v4675 = vunpack.c.h.b16 %v1692
      %v4676 = vunpack.c.l.b16 %v1693
      %v4677 = vunpack.c.h.b16 %v1693
      %v4678 = vunpack.c.l.b16 %v1694
      %v4679 = vunpack.c.h.b16 %v1694
      %v4680 = vunpack.c.l.b16 %v1695
      %v4681 = vunpack.c.h.b16 %v1695
      %v4682 = vunpack.c.l.b16 %v1696
      %v4683 = vunpack.c.h.b16 %v1696
      %v4684 = vunpack.c.l.b16 %v1697
      %v4685 = vunpack.c.h.b16 %v1697
      %v4686 = vunpack.c.l.b16 %v1698
      %v4687 = vunpack.c.h.b16 %v1698
      %v4688 = vunpack.c.l.b16 %v1699
      %v4689 = vunpack.c.h.b16 %v1699
      %v4690 = vunpack.c.l.b16 %v1700
      %v4691 = vunpack.c.h.b16 %v1700
      %v4692 = vunpack.c.l.b16 %v1701
      %v4693 = vunpack.c.h.b16 %v1701
      %v4694 = vunpack.c.l.b16 %v1702
      %v4695 = vunpack.c.h.b16 %v1702
      %v4696 = vunpack.c.l.b16 %v1703
      %v4697 = vunpack.c.h.b16 %v1703
      %v4698 = vunpack.c.l.b16 %v1704
      %v4699 = vunpack.c.h.b16 %v1704
      %v4700 = vunpack.c.l.b16 %v1705
      %v4701 = vunpack.c.h.b16 %v1705
      %v4702 = vunpack.c.l.b16 %v1706
      %v4703 = vunpack.c.h.b16 %v1706
      %v4704 = vunpack.c.l.b16 %v1707
      %v4705 = vunpack.c.h.b16 %v1707
      %v4706 = vunpack.c.l.b16 %v1708
      %v4707 = vunpack.c.h.b16 %v1708
      %v4708 = vunpack.c.l.b16 %v1709
      %v4709 = vunpack.c.h.b16 %v1709
      %v4710 = vunpack.c.l.b16 %v1710
      %v4711 = vunpack.c.h.b16 %v1710
      %v4712 = vunpack.c.l.b16 %v1711
      %v4713 = vunpack.c.h.b16 %v1711
      %v4714 = vunpack.c.l.b16 %v1712
      %v4715 = vunpack.c.h.b16 %v1712
      %v4716 = vunpack.c.l.b16 %v1713
      %v4717 = vunpack.c.h.b16 %v1713
      %v4718 = vunpack.c.l.b16 %v1714
      %v4719 = vunpack.c.h.b16 %v1714
      %v4720 = vunpack.c.l.b16 %v1715
      %v4721 = vunpack.c.h.b16 %v1715
      %v4722 = vunpack.c.l.b16 %v1716
      %v4723 = vunpack.c.h.b16 %v1716
      %v4724 = vunpack.c.l.b16 %v1717
      %v4725 = vunpack.c.h.b16 %v1717
      %v4726 = vunpack.c.l.b16 %v1718
      %v4727 = vunpack.c.h.b16 %v1718
      %v4728 = vunpack.c.l.b16 %v1719
      %v4729 = vunpack.c.h.b16 %v1719
      %v4730 = vunpack.c.l.b16 %v1720
      %v4731 = vunpack.c.h.b16 %v1720
      %v4732 = vunpack.c.l.b16 %v1721
      %v4733 = vunpack.c.h.b16 %v1721
      %v4734 = vunpack.c.l.b16 %v1722
      %v4735 = vunpack.c.h.b16 %v1722
      %v4736 = vunpack.c.l.b16 %v1723
      %v4737 = vunpack.c.h.b16 %v1723
      %v4738 = vunpack.c.l.b16 %v1724
      %v4739 = vunpack.c.h.b16 %v1724
      %v4740 = vunpack.c.l.b16 %v1725
      %v4741 = vunpack.c.h.b16 %v1725
      %v4742 = vunpack.c.l.b16 %v1726
      %v4743 = vunpack.c.h.b16 %v1726
      %v4744 = vunpack.c.l.b16 %v1727
      %v4745 = vunpack.c.h.b16 %v1727
      %v4746 = vunpack.c.l.b16 %v1728
      %v4747 = vunpack.c.h.b16 %v1728
      %v4748 = vunpack.c.l.b16 %v1729
      %v4749 = vunpack.c.h.b16 %v1729
      %v4750 = vunpack.c.l.b16 %v1730
      %v4751 = vunpack.c.h.b16 %v1730
      %v4752 = vunpack.c.l.b16 %v1731
      %v4753 = vunpack.c.h.b16 %v1731
      %v4754 = vunpack.c.l.b16 %v1732
      %v4755 = vunpack.c.h.b16 %v1732
      %v4756 = vunpack.c.l.b16 %v1733
      %v4757 = vunpack.c.h.b16 %v1733
      %v4758 = vunpack.c.l.b16 %v1734
      %v4759 = vunpack.c.h.b16 %v1734
      %v4760 = vunpack.c.l.b16 %v1735
      %v4761 = vunpack.c.h.b16 %v1735
      %v4762 = vunpack.c.l.b16 %v1736
      %v4763 = vunpack.c.h.b16 %v1736
      %v4764 = vunpack.c.l.b16 %v1737
      %v4765 = vunpack.c.h.b16 %v1737
      %v4766 = vunpack.c.l.b16 %v1738
      %v4767 = vunpack.c.h.b16 %v1738
      %v4768 = vunpack.c.l.b16 %v1739
      %v4769 = vunpack.c.h.b16 %v1739
      %v4770 = vunpack.c.l.b16 %v1740
      %v4771 = vunpack.c.h.b16 %v1740
      %v4772 = vunpack.c.l.b16 %v1741
      %v4773 = vunpack.c.h.b16 %v1741
      %v4774 = vunpack.c.l.b16 %v1742
      %v4775 = vunpack.c.h.b16 %v1742
      %v4776 = vunpack.c.l.b16 %v1743
      %v4777 = vunpack.c.h.b16 %v1743
      %v4778 = vunpack.c.l.b16 %v1744
      %v4779 = vunpack.c.h.b16 %v1744
      %v4780 = vunpack.c.l.b16 %v1745
      %v4781 = vunpack.c.h.b16 %v1745
      %v4782 = vunpack.c.l.b16 %v1746
      %v4783 = vunpack.c.h.b16 %v1746
      %v4784 = vunpack.c.l.b16 %v1747
      %v4785 = vunpack.c.h.b16 %v1747
      %v4786 = vunpack.c.l.b16 %v1748
      %v4787 = vunpack.c.h.b16 %v1748
      %v4788 = vunpack.c.l.b16 %v1749
      %v4789 = vunpack.c.h.b16 %v1749
      %v4790 = vunpack.c.l.b16 %v1750
      %v4791 = vunpack.c.h.b16 %v1750
      %v4792 = vunpack.c.l.b16 %v1751
      %v4793 = vunpack.c.h.b16 %v1751
      %v4794 = vunpack.c.l.b16 %v1752
      %v4795 = vunpack.c.h.b16 %v1752
      %v4796 = vunpack.c.l.b16 %v1753
      %v4797 = vunpack.c.h.b16 %v1753
      %v4798 = vunpack.c.l.b16 %v1754
      %v4799 = vunpack.c.h.b16 %v1754
      %v4800 = vunpack.c.l.b16 %v1755
      %v4801 = vunpack.c.h.b16 %v1755
      %v4802 = vunpack.c.l.b16 %v1756
      %v4803 = vunpack.c.h.b16 %v1756
      %v4804 = vunpack.c.l.b16 %v1757
      %v4805 = vunpack.c.h.b16 %v1757
      %v4806 = vunpack.c.l.b16 %v1758
      %v4807 = vunpack.c.h.b16 %v1758
      %v4808 = vunpack.c.l.b16 %v1759
      %v4809 = vunpack.c.h.b16 %v1759
      %v4810 = vunpack.c.l.b16 %v1760
      %v4811 = vunpack.c.h.b16 %v1760
      %v4812 = vunpack.c.l.b16 %v1761
      %v4813 = vunpack.c.h.b16 %v1761
      %v4814 = vunpack.c.l.b16 %v1762
      %v4815 = vunpack.c.h.b16 %v1762
      %v4816 = vunpack.c.l.b16 %v1763
      %v4817 = vunpack.c.h.b16 %v1763
      %v4818 = vunpack.c.l.b16 %v1764
      %v4819 = vunpack.c.h.b16 %v1764
      %v4820 = vunpack.c.l.b16 %v1765
      %v4821 = vunpack.c.h.b16 %v1765
      %v4822 = vunpack.c.l.b16 %v1766
      %v4823 = vunpack.c.h.b16 %v1766
      %v4824 = vunpack.c.l.b16 %v1767
      %v4825 = vunpack.c.h.b16 %v1767
      %v4826 = vunpack.c.l.b16 %v1768
      %v4827 = vunpack.c.h.b16 %v1768
      %v4828 = vunpack.c.l.b16 %v1769
      %v4829 = vunpack.c.h.b16 %v1769
      %v4830 = vunpack.c.l.b16 %v1770
      %v4831 = vunpack.c.h.b16 %v1770
      %v4832 = vunpack.c.l.b16 %v1771
      %v4833 = vunpack.c.h.b16 %v1771
      %v4834 = vunpack.c.l.b16 %v1772
      %v4835 = vunpack.c.h.b16 %v1772
      %v4836 = vunpack.c.l.b16 %v1773
      %v4837 = vunpack.c.h.b16 %v1773
      %v4838 = vunpack.c.l.b16 %v1774
      %v4839 = vunpack.c.h.b16 %v1774
      %v4840 = vunpack.c.l.b16 %v1775
      %v4841 = vunpack.c.h.b16 %v1775
      %v4842 = vunpack.c.l.b16 %v1776
      %v4843 = vunpack.c.h.b16 %v1776
      %v4844 = vunpack.c.l.b16 %v1777
      %v4845 = vunpack.c.h.b16 %v1777
      %v4846 = vunpack.c.l.b16 %v1778
      %v4847 = vunpack.c.h.b16 %v1778
      %v4848 = vunpack.c.l.b16 %v1779
      %v4849 = vunpack.c.h.b16 %v1779
      %v4850 = vunpack.c.l.b16 %v1780
      %v4851 = vunpack.c.h.b16 %v1780
      %v4852 = vunpack.c.l.b16 %v1781
      %v4853 = vunpack.c.h.b16 %v1781
      %v4854 = vunpack.c.l.b16 %v1782
      %v4855 = vunpack.c.h.b16 %v1782
      %v4856 = vunpack.c.l.b16 %v1783
      %v4857 = vunpack.c.h.b16 %v1783
      %v4858 = vunpack.c.l.b16 %v1784
      %v4859 = vunpack.c.h.b16 %v1784
      %v4860 = vunpack.c.l.b16 %v1785
      %v4861 = vunpack.c.h.b16 %v1785
      %v4862 = vunpack.c.l.b16 %v1786
      %v4863 = vunpack.c.h.b16 %v1786
      %v4864 = vunpack.c.l.b16 %v1787
      %v4865 = vunpack.c.h.b16 %v1787
      %v4866 = vunpack.c.l.b16 %v1788
      %v4867 = vunpack.c.h.b16 %v1788
      %v4868 = vunpack.c.l.b16 %v1789
      %v4869 = vunpack.c.h.b16 %v1789
      %v4870 = vunpack.c.l.b16 %v1790
      %v4871 = vunpack.c.h.b16 %v1790
      %v4872 = vunpack.c.l.b16 %v1791
      %v4873 = vunpack.c.h.b16 %v1791
      %v4874 = vunpack.c.l.b16 %v1792
      %v4875 = vunpack.c.h.b16 %v1792
      %v4876 = vunpack.c.l.b16 %v1793
      %v4877 = vunpack.c.h.b16 %v1793
      %v4878 = vunpack.c.l.b16 %v1794
      %v4879 = vunpack.c.h.b16 %v1794
      %v4880 = vunpack.c.l.b16 %v1795
      %v4881 = vunpack.c.h.b16 %v1795
      %v4882 = vunpack.c.l.b16 %v1796
      %v4883 = vunpack.c.h.b16 %v1796
      %v4884 = vunpack.c.l.b16 %v1797
      %v4885 = vunpack.c.h.b16 %v1797
      %v4886 = vunpack.c.l.b16 %v1798
      %v4887 = vunpack.c.h.b16 %v1798
      %v4888 = vunpack.c.l.b16 %v1799
      %v4889 = vunpack.c.h.b16 %v1799
      %v4890 = vunpack.c.l.b16 %v1800
      %v4891 = vunpack.c.h.b16 %v1800
      %v4892 = vunpack.c.l.b16 %v1801
      %v4893 = vunpack.c.h.b16 %v1801
      %v4894 = vunpack.c.l.b16 %v1802
      %v4895 = vunpack.c.h.b16 %v1802
      %v4896 = vunpack.c.l.b16 %v1803
      %v4897 = vunpack.c.h.b16 %v1803
      %v4898 = vunpack.c.l.b16 %v1804
      %v4899 = vunpack.c.h.b16 %v1804
      %v4900 = vunpack.c.l.b16 %v1805
      %v4901 = vunpack.c.h.b16 %v1805
      %v4902 = vunpack.c.l.b16 %v1806
      %v4903 = vunpack.c.h.b16 %v1806
      %v4904 = vunpack.c.l.b16 %v1807
      %v4905 = vunpack.c.h.b16 %v1807
      %v4906 = vunpack.c.l.b16 %v1808
      %v4907 = vunpack.c.h.b16 %v1808
      %v4908 = vunpack.c.l.b16 %v1809
      %v4909 = vunpack.c.h.b16 %v1809
      %v4910 = vunpack.c.l.b16 %v1810
      %v4911 = vunpack.c.h.b16 %v1810
      %v4912 = vunpack.c.l.b16 %v1811
      %v4913 = vunpack.c.h.b16 %v1811
      %v4914 = vunpack.c.l.b16 %v1812
      %v4915 = vunpack.c.h.b16 %v1812
      %v4916 = vunpack.c.l.b16 %v1813
      %v4917 = vunpack.c.h.b16 %v1813
      %v4918 = vunpack.c.l.b16 %v1814
      %v4919 = vunpack.c.h.b16 %v1814
      %v4920 = vunpack.c.l.b16 %v1815
      %v4921 = vunpack.c.h.b16 %v1815
      %v4922 = vunpack.c.l.b16 %v1816
      %v4923 = vunpack.c.h.b16 %v1816
      %v4924 = vunpack.c.l.b16 %v1817
      %v4925 = vunpack.c.h.b16 %v1817
      %v4926 = vunpack.c.l.b16 %v1818
      %v4927 = vunpack.c.h.b16 %v1818
      %v4928 = vunpack.c.l.b16 %v1819
      %v4929 = vunpack.c.h.b16 %v1819
      %v4930 = vunpack.c.l.b16 %v1820
      %v4931 = vunpack.c.h.b16 %v1820
      %v4932 = vunpack.c.l.b16 %v1821
      %v4933 = vunpack.c.h.b16 %v1821
      %v4934 = vunpack.c.l.b16 %v1822
      %v4935 = vunpack.c.h.b16 %v1822
      %v4936 = vunpack.c.l.b16 %v1823
      %v4937 = vunpack.c.h.b16 %v1823
      %v4938 = vunpack.c.l.b16 %v1824
      %v4939 = vunpack.c.h.b16 %v1824
      %v4940 = vunpack.c.l.b16 %v1825
      %v4941 = vunpack.c.h.b16 %v1825
      %v4942 = vunpack.c.l.b16 %v1826
      %v4943 = vunpack.c.h.b16 %v1826
      %v4944 = vunpack.c.l.b16 %v1827
      %v4945 = vunpack.c.h.b16 %v1827
      %v4946 = vunpack.c.l.b16 %v1828
      %v4947 = vunpack.c.h.b16 %v1828
      %v4948 = vunpack.c.l.b16 %v1829
      %v4949 = vunpack.c.h.b16 %v1829
      %v4950 = vunpack.c.l.b16 %v1830
      %v4951 = vunpack.c.h.b16 %v1830
      %v4952 = vunpack.c.l.b16 %v1831
      %v4953 = vunpack.c.h.b16 %v1831
      %v4954 = vunpack.c.l.b16 %v1832
      %v4955 = vunpack.c.h.b16 %v1832
      %v4956 = vunpack.c.l.b16 %v1833
      %v4957 = vunpack.c.h.b16 %v1833
      %v4958 = vunpack.c.l.b16 %v1834
      %v4959 = vunpack.c.h.b16 %v1834
      %v4960 = vunpack.c.l.b16 %v1835
      %v4961 = vunpack.c.h.b16 %v1835
      %v4962 = vunpack.c.l.b16 %v1836
      %v4963 = vunpack.c.h.b16 %v1836
      %v4964 = vunpack.c.l.b16 %v1837
      %v4965 = vunpack.c.h.b16 %v1837
      %v4966 = vunpack.c.l.b16 %v1838
      %v4967 = vunpack.c.h.b16 %v1838
      %v4968 = vunpack.c.l.b16 %v1839
      %v4969 = vunpack.c.h.b16 %v1839
      %v4970 = vunpack.c.l.b16 %v1840
      %v4971 = vunpack.c.h.b16 %v1840
      %v4972 = vunpack.c.l.b16 %v1841
      %v4973 = vunpack.c.h.b16 %v1841
      %v4974 = vunpack.c.l.b16 %v1842
      %v4975 = vunpack.c.h.b16 %v1842
      %v4976 = vunpack.c.l.b16 %v1843
      %v4977 = vunpack.c.h.b16 %v1843
      %v4978 = vunpack.c.l.b16 %v1844
      %v4979 = vunpack.c.h.b16 %v1844
      %v4980 = vunpack.c.l.b16 %v1845
      %v4981 = vunpack.c.h.b16 %v1845
      %v4982 = vunpack.c.l.b16 %v1846
      %v4983 = vunpack.c.h.b16 %v1846
      %v4984 = vunpack.c.l.b16 %v1847
      %v4985 = vunpack.c.h.b16 %v1847
      %v4986 = vunpack.c.l.b16 %v1848
      %v4987 = vunpack.c.h.b16 %v1848
      %v4988 = vunpack.c.l.b16 %v1849
      %v4989 = vunpack.c.h.b16 %v1849
      %v4990 = vunpack.c.l.b16 %v1850
      %v4991 = vunpack.c.h.b16 %v1850
      %v4992 = vunpack.c.l.b16 %v1851
      %v4993 = vunpack.c.h.b16 %v1851
      %v4994 = vunpack.c.l.b16 %v1852
      %v4995 = vunpack.c.h.b16 %v1852
      %v4996 = vunpack.c.l.b16 %v1853
      %v4997 = vunpack.c.h.b16 %v1853
      %v4998 = vunpack.c.l.b16 %v1854
      %v4999 = vunpack.c.h.b16 %v1854
      %v5000 = vunpack.c.l.b16 %v1855
      %v5001 = vunpack.c.h.b16 %v1855
      %v5002 = vunpack.c.l.b16 %v1856
      %v5003 = vunpack.c.h.b16 %v1856
      %v5004 = vunpack.c.l.b16 %v1857
      %v5005 = vunpack.c.h.b16 %v1857
      %v5006 = vunpack.c.l.b16 %v1858
      %v5007 = vunpack.c.h.b16 %v1858
      %v5008 = vunpack.c.l.b16 %v1859
      %v5009 = vunpack.c.h.b16 %v1859
      %v5010 = vunpack.c.l.b16 %v1860
      %v5011 = vunpack.c.h.b16 %v1860
      %v5012 = vunpack.c.l.b16 %v1861
      %v5013 = vunpack.c.h.b16 %v1861
      %v5014 = vunpack.c.l.b16 %v1862
      %v5015 = vunpack.c.h.b16 %v1862
      %v5016 = vunpack.c.l.b16 %v1863
      %v5017 = vunpack.c.h.b16 %v1863
      %v5018 = vunpack.c.l.b16 %v1864
      %v5019 = vunpack.c.h.b16 %v1864
      %v5020 = vunpack.c.l.b16 %v1865
      %v5021 = vunpack.c.h.b16 %v1865
      %v5022 = vunpack.c.l.b16 %v1866
      %v5023 = vunpack.c.h.b16 %v1866
      %v5024 = vunpack.c.l.b16 %v1867
      %v5025 = vunpack.c.h.b16 %v1867
      %v5026 = vunpack.c.l.b16 %v1868
      %v5027 = vunpack.c.h.b16 %v1868
      %v5028 = vunpack.c.l.b16 %v1869
      %v5029 = vunpack.c.h.b16 %v1869
      %v5030 = vunpack.c.l.b16 %v1870
      %v5031 = vunpack.c.h.b16 %v1870
      %v5032 = vunpack.c.l.b16 %v1871
      %v5033 = vunpack.c.h.b16 %v1871
      %v5034 = vunpack.c.l.b16 %v1872
      %v5035 = vunpack.c.h.b16 %v1872
      %v5036 = vunpack.c.l.b16 %v1873
      %v5037 = vunpack.c.h.b16 %v1873
      %v5038 = vunpack.c.l.b16 %v1874
      %v5039 = vunpack.c.h.b16 %v1874
      %v5040 = vunpack.c.l.b16 %v1875
      %v5041 = vunpack.c.h.b16 %v1875
      %v5042 = vunpack.c.l.b16 %v1876
      %v5043 = vunpack.c.h.b16 %v1876
      %v5044 = vunpack.c.l.b16 %v1877
      %v5045 = vunpack.c.h.b16 %v1877
      %v5046 = vunpack.c.l.b16 %v1878
      %v5047 = vunpack.c.h.b16 %v1878
      %v5048 = vunpack.c.l.b16 %v1879
      %v5049 = vunpack.c.h.b16 %v1879
      %v5050 = vunpack.c.l.b16 %v1880
      %v5051 = vunpack.c.h.b16 %v1880
      %v5052 = vunpack.c.l.b16 %v1881
      %v5053 = vunpack.c.h.b16 %v1881
      %v5054 = vunpack.c.l.b16 %v1882
      %v5055 = vunpack.c.h.b16 %v1882
      %v5056 = vunpack.c.l.b16 %v1883
      %v5057 = vunpack.c.h.b16 %v1883
      %v5058 = vunpack.c.l.b16 %v1884
      %v5059 = vunpack.c.h.b16 %v1884
      %v5060 = vunpack.c.l.b16 %v1885
      %v5061 = vunpack.c.h.b16 %v1885
      %v5062 = vunpack.c.l.b16 %v1886
      %v5063 = vunpack.c.h.b16 %v1886
      %v5064 = vunpack.c.l.b16 %v1887
      %v5065 = vunpack.c.h.b16 %v1887
      %v5066 = vunpack.c.l.b16 %v1888
      %v5067 = vunpack.c.h.b16 %v1888
      %v5068 = vunpack.c.l.b16 %v1889
      %v5069 = vunpack.c.h.b16 %v1889
      %v5070 = vunpack.c.l.b16 %v1890
      %v5071 = vunpack.c.h.b16 %v1890
      %v5072 = vunpack.c.l.b16 %v1891
      %v5073 = vunpack.c.h.b16 %v1891
      %v5074 = vunpack.c.l.b16 %v1892
      %v5075 = vunpack.c.h.b16 %v1892
      %v5076 = vunpack.c.l.b16 %v1893
      %v5077 = vunpack.c.h.b16 %v1893
      %v5078 = vunpack.c.l.b16 %v1894
      %v5079 = vunpack.c.h.b16 %v1894
      %v5080 = vunpack.c.l.b16 %v1895
      %v5081 = vunpack.c.h.b16 %v1895
      %v5082 = vunpack.c.l.b16 %v1896
      %v5083 = vunpack.c.h.b16 %v1896
      %v5084 = vunpack.c.l.b16 %v1897
      %v5085 = vunpack.c.h.b16 %v1897
      %v5086 = vunpack.c.l.b16 %v1898
      %v5087 = vunpack.c.h.b16 %v1898
      %v5088 = vunpack.c.l.b16 %v1899
      %v5089 = vunpack.c.h.b16 %v1899
      %v5090 = vunpack.c.l.b16 %v1900
      %v5091 = vunpack.c.h.b16 %v1900
      %v5092 = vunpack.c.l.b16 %v1901
      %v5093 = vunpack.c.h.b16 %v1901
      %v5094 = vunpack.c.l.b16 %v1902
      %v5095 = vunpack.c.h.b16 %v1902
      %v5096 = vunpack.c.l.b16 %v1903
      %v5097 = vunpack.c.h.b16 %v1903
      %v5098 = vunpack.c.l.b16 %v1904
      %v5099 = vunpack.c.h.b16 %v1904
      %v5100 = vunpack.c.l.b16 %v1905
      %v5101 = vunpack.c.h.b16 %v1905
      %v5102 = vunpack.c.l.b16 %v1906
      %v5103 = vunpack.c.h.b16 %v1906
      %v5104 = vunpack.c.l.b16 %v1907
      %v5105 = vunpack.c.h.b16 %v1907
      %v5106 = vunpack.c.l.b16 %v1908
      %v5107 = vunpack.c.h.b16 %v1908
      %v5108 = vunpack.c.l.b16 %v1909
      %v5109 = vunpack.c.h.b16 %v1909
      %v5110 = vunpack.c.l.b16 %v1910
      %v5111 = vunpack.c.h.b16 %v1910
      %v5112 = vunpack.c.l.b16 %v1911
      %v5113 = vunpack.c.h.b16 %v1911
      %v5114 = vunpack.c.l.b16 %v1912
      %v5115 = vunpack.c.h.b16 %v1912
      %v5116 = vunpack.c.l.b16 %v1913
      %v5117 = vunpack.c.h.b16 %v1913
      %v5118 = vunpack.c.l.b16 %v1914
      %v5119 = vunpack.c.h.b16 %v1914
      %v5120 = vunpack.c.l.b16 %v1915
      %v5121 = vunpack.c.h.b16 %v1915
      %v5122 = vunpack.c.l.b16 %v1916
      %v5123 = vunpack.c.h.b16 %v1916
      %v5124 = vunpack.c.l.b16 %v1917
      %v5125 = vunpack.c.h.b16 %v1917
      %v5126 = vunpack.c.l.b16 %v1918
      %v5127 = vunpack.c.h.b16 %v1918
      %v5128 = vunpack.c.l.b16 %v1919
      %v5129 = vunpack.c.h.b16 %v1919
      %v5130 = vunpack.c.l.b16 %v1920
      %v5131 = vunpack.c.h.b16 %v1920
      %v5132 = vunpack.c.l.b16 %v1921
      %v5133 = vunpack.c.h.b16 %v1921
      %v5134 = vunpack.c.l.b16 %v1922
      %v5135 = vunpack.c.h.b16 %v1922
      %v5136 = vunpack.c.l.b16 %v1923
      %v5137 = vunpack.c.h.b16 %v1923
      %v5138 = vunpack.c.l.b16 %v1924
      %v5139 = vunpack.c.h.b16 %v1924
      %v5140 = vunpack.c.l.b16 %v1925
      %v5141 = vunpack.c.h.b16 %v1925
      %v5142 = vunpack.c.l.b16 %v1926
      %v5143 = vunpack.c.h.b16 %v1926
      %v5144 = vunpack.c.l.b16 %v1927
      %v5145 = vunpack.c.h.b16 %v1927
      %v5146 = vunpack.c.l.b16 %v1928
      %v5147 = vunpack.c.h.b16 %v1928
      %v5148 = vunpack.c.l.b16 %v1929
      %v5149 = vunpack.c.h.b16 %v1929
      %v5150 = vunpack.c.l.b16 %v1930
      %v5151 = vunpack.c.h.b16 %v1930
      %v5152 = vunpack.c.l.b16 %v1931
      %v5153 = vunpack.c.h.b16 %v1931
      %v5154 = vunpack.c.l.b16 %v1932
      %v5155 = vunpack.c.h.b16 %v1932
      %v5156 = vunpack.c.l.b16 %v1933
      %v5157 = vunpack.c.h.b16 %v1933
      %v5158 = vunpack.c.l.b16 %v1934
      %v5159 = vunpack.c.h.b16 %v1934
      %v5160 = vunpack.c.l.b16 %v1935
      %v5161 = vunpack.c.h.b16 %v1935
      %v5162 = vunpack.c.l.b16 %v1936
      %v5163 = vunpack.c.h.b16 %v1936
      %v5164 = vunpack.c.l.b16 %v1937
      %v5165 = vunpack.c.h.b16 %v1937
      %v5166 = vunpack.c.l.b16 %v1938
      %v5167 = vunpack.c.h.b16 %v1938
      %v5168 = vunpack.c.l.b16 %v1939
      %v5169 = vunpack.c.h.b16 %v1939
      %v5170 = vunpack.c.l.b16 %v1940
      %v5171 = vunpack.c.h.b16 %v1940
      %v5172 = vunpack.c.l.b16 %v1941
      %v5173 = vunpack.c.h.b16 %v1941
      %v5174 = vunpack.c.l.b16 %v1942
      %v5175 = vunpack.c.h.b16 %v1942
      %v5176 = vunpack.c.l.b16 %v1943
      %v5177 = vunpack.c.h.b16 %v1943
      %v5178 = vunpack.c.l.b16 %v1944
      %v5179 = vunpack.c.h.b16 %v1944
      %v5180 = vunpack.c.l.b16 %v1945
      %v5181 = vunpack.c.h.b16 %v1945
      %v5182 = vunpack.c.l.b16 %v1946
      %v5183 = vunpack.c.h.b16 %v1946
      %v5184 = vunpack.c.l.b16 %v1947
      %v5185 = vunpack.c.h.b16 %v1947
      %v5186 = vunpack.c.l.b16 %v1948
      %v5187 = vunpack.c.h.b16 %v1948
      %v5188 = vunpack.c.l.b16 %v1949
      %v5189 = vunpack.c.h.b16 %v1949
      %v5190 = vunpack.c.l.b16 %v1950
      %v5191 = vunpack.c.h.b16 %v1950
      %v5192 = vunpack.c.l.b16 %v1951
      %v5193 = vunpack.c.h.b16 %v1951
      %v5194 = vunpack.c.l.b16 %v1952
      %v5195 = vunpack.c.h.b16 %v1952
      %v5196 = vunpack.c.l.b16 %v1953
      %v5197 = vunpack.c.h.b16 %v1953
      %v5198 = vunpack.c.l.b16 %v1954
      %v5199 = vunpack.c.h.b16 %v1954
      %v5200 = vunpack.c.l.b16 %v1955
      %v5201 = vunpack.c.h.b16 %v1955
      %v5202 = vunpack.c.l.b16 %v1956
      %v5203 = vunpack.c.h.b16 %v1956
      %v5204 = vunpack.c.l.b16 %v1957
      %v5205 = vunpack.c.h.b16 %v1957
      %v5206 = vunpack.c.l.b16 %v1958
      %v5207 = vunpack.c.h.b16 %v1958
      %v5208 = vunpack.c.l.b16 %v1959
      %v5209 = vunpack.c.h.b16 %v1959
      %v5210 = vunpack.c.l.b16 %v1960
      %v5211 = vunpack.c.h.b16 %v1960
      %v5212 = vunpack.c.l.b16 %v1961
      %v5213 = vunpack.c.h.b16 %v1961
      %v5214 = vunpack.c.l.b16 %v1962
      %v5215 = vunpack.c.h.b16 %v1962
      %v5216 = vunpack.c.l.b16 %v1963
      %v5217 = vunpack.c.h.b16 %v1963
      %v5218 = vunpack.c.l.b16 %v1964
      %v5219 = vunpack.c.h.b16 %v1964
      %v5220 = vunpack.c.l.b16 %v1965
      %v5221 = vunpack.c.h.b16 %v1965
      %v5222 = vunpack.c.l.b16 %v1966
      %v5223 = vunpack.c.h.b16 %v1966
      %v5224 = vunpack.c.l.b16 %v1967
      %v5225 = vunpack.c.h.b16 %v1967
      %v5226 = vunpack.c.l.b16 %v1968
      %v5227 = vunpack.c.h.b16 %v1968
      %v5228 = vunpack.c.l.b16 %v1969
      %v5229 = vunpack.c.h.b16 %v1969
      %v5230 = vunpack.c.l.b16 %v1970
      %v5231 = vunpack.c.h.b16 %v1970
      %v5232 = vunpack.c.l.b16 %v1971
      %v5233 = vunpack.c.h.b16 %v1971
      %v5234 = vunpack.c.l.b16 %v1972
      %v5235 = vunpack.c.h.b16 %v1972
      %v5236 = vunpack.c.l.b16 %v1973
      %v5237 = vunpack.c.h.b16 %v1973
      %v5238 = vunpack.c.l.b16 %v1974
      %v5239 = vunpack.c.h.b16 %v1974
      %v5240 = vunpack.c.l.b16 %v1975
      %v5241 = vunpack.c.h.b16 %v1975
      %v5242 = vunpack.c.l.b16 %v1976
      %v5243 = vunpack.c.h.b16 %v1976
      %v5244 = vunpack.c.l.b16 %v1977
      %v5245 = vunpack.c.h.b16 %v1977
      %v5246 = vunpack.c.l.b16 %v1978
      %v5247 = vunpack.c.h.b16 %v1978
      %v5248 = vunpack.c.l.b16 %v1979
      %v5249 = vunpack.c.h.b16 %v1979
      %v5250 = vunpack.c.l.b16 %v1980
      %v5251 = vunpack.c.h.b16 %v1980
      %v5252 = vunpack.c.l.b16 %v1981
      %v5253 = vunpack.c.h.b16 %v1981
      %v5254 = vunpack.c.l.b16 %v1982
      %v5255 = vunpack.c.h.b16 %v1982
      %v5256 = vunpack.c.l.b16 %v1983
      %v5257 = vunpack.c.h.b16 %v1983
      %v5258 = vunpack.c.l.b16 %v1984
      %v5259 = vunpack.c.h.b16 %v1984
      %v5260 = vunpack.c.l.b16 %v1985
      %v5261 = vunpack.c.h.b16 %v1985
      %v5262 = vunpack.c.l.b16 %v1986
      %v5263 = vunpack.c.h.b16 %v1986
      %v5264 = vunpack.c.l.b16 %v1987
      %v5265 = vunpack.c.h.b16 %v1987
      %v5266 = vunpack.c.l.b16 %v1988
      %v5267 = vunpack.c.h.b16 %v1988
      %v5268 = vunpack.c.l.b16 %v1989
      %v5269 = vunpack.c.h.b16 %v1989
      %v5270 = vunpack.c.l.b16 %v1990
      %v5271 = vunpack.c.h.b16 %v1990
      %v5272 = vunpack.c.l.b16 %v1991
      %v5273 = vunpack.c.h.b16 %v1991
      %v5274 = vunpack.c.l.b16 %v1992
      %v5275 = vunpack.c.h.b16 %v1992
      %v5276 = vunpack.c.l.b16 %v1993
      %v5277 = vunpack.c.h.b16 %v1993
      %v5278 = vunpack.c.l.b16 %v1994
      %v5279 = vunpack.c.h.b16 %v1994
      %v5280 = vunpack.c.l.b16 %v1995
      %v5281 = vunpack.c.h.b16 %v1995
      %v5282 = vunpack.c.l.b16 %v1996
      %v5283 = vunpack.c.h.b16 %v1996
      %v5284 = vunpack.c.l.b16 %v1997
      %v5285 = vunpack.c.h.b16 %v1997
      %v5286 = vunpack.c.l.b16 %v1998
      %v5287 = vunpack.c.h.b16 %v1998
      %v5288 = vunpack.c.l.b16 %v1999
      %v5289 = vunpack.c.h.b16 %v1999
      %v5290 = vunpack.c.l.b16 %v2000
      %v5291 = vunpack.c.h.b16 %v2000
      %v5292 = vunpack.c.l.b16 %v2001
      %v5293 = vunpack.c.h.b16 %v2001
      %v5294 = vunpack.c.l.b16 %v2002
      %v5295 = vunpack.c.h.b16 %v2002
      %v5296 = vunpack.c.l.b16 %v2003
      %v5297 = vunpack.c.h.b16 %v2003
      %v5298 = vunpack.c.l.b16 %v2004
      %v5299 = vunpack.c.h.b16 %v2004
      %v5300 = vunpack.c.l.b16 %v2005
      %v5301 = vunpack.c.h.b16 %v2005
      %v5302 = vunpack.c.l.b16 %v2006
      %v5303 = vunpack.c.h.b16 %v2006
      %v5304 = vunpack.c.l.b16 %v2007
      %v5305 = vunpack.c.h.b16 %v2007
      %v5306 = vunpack.c.l.b16 %v2008
      %v5307 = vunpack.c.h.b16 %v2008
      %v5308 = vunpack.c.l.b16 %v2009
      %v5309 = vunpack.c.h.b16 %v2009
      %v5310 = vunpack.c.l.b16 %v2010
      %v5311 = vunpack.c.h.b16 %v2010
      %v5312 = vunpack.c.l.b16 %v2011
      %v5313 = vunpack.c.h.b16 %v2011
      %v5314 = vunpack.c.l.b16 %v2012
      %v5315 = vunpack.c.h.b16 %v2012
      %v5316 = vunpack.c.l.b16 %v2013
      %v5317 = vunpack.c.h.b16 %v2013
      %v5318 = vunpack.c.l.b16 %v2014
      %v5319 = vunpack.c.h.b16 %v2014
      %v5320 = vunpack.c.l.b16 %v2015
      %v5321 = vunpack.c.h.b16 %v2015
      %v5322 = vunpack.c.l.b16 %v2016
      %v5323 = vunpack.c.h.b16 %v2016
      %v5324 = vunpack.c.l.b16 %v2017
      %v5325 = vunpack.c.h.b16 %v2017
      %v5326 = vunpack.c.l.b16 %v2018
      %v5327 = vunpack.c.h.b16 %v2018
      %v5328 = vunpack.c.l.b16 %v2019
      %v5329 = vunpack.c.h.b16 %v2019
      %v5330 = vunpack.c.l.b16 %v2020
      %v5331 = vunpack.c.h.b16 %v2020
      %v5332 = vunpack.c.l.b16 %v2021
      %v5333 = vunpack.c.h.b16 %v2021
      %v5334 = vunpack.c.l.b16 %v2022
      %v5335 = vunpack.c.h.b16 %v2022
      %v5336 = vunpack.c.l.b16 %v2023
      %v5337 = vunpack.c.h.b16 %v2023
      %v5338 = vunpack.c.l.b16 %v2024
      %v5339 = vunpack.c.h.b16 %v2024
      %v5340 = vunpack.c.l.b16 %v2025
      %v5341 = vunpack.c.h.b16 %v2025
      %v5342 = vunpack.c.l.b16 %v2026
      %v5343 = vunpack.c.h.b16 %v2026
      %v5344 = vunpack.c.l.b16 %v2027
      %v5345 = vunpack.c.h.b16 %v2027
      %v5346 = vunpack.c.l.b16 %v2028
      %v5347 = vunpack.c.h.b16 %v2028
      %v5348 = vunpack.c.l.b16 %v2029
      %v5349 = vunpack.c.h.b16 %v2029
      %v5350 = vunpack.c.l.b16 %v2030
      %v5351 = vunpack.c.h.b16 %v2030
      %v5352 = vunpack.c.l.b16 %v2031
      %v5353 = vunpack.c.h.b16 %v2031
      %v5354 = vunpack.c.l.b16 %v2032
      %v5355 = vunpack.c.h.b16 %v2032
      %v5356 = vunpack.c.l.b16 %v2033
      %v5357 = vunpack.c.h.b16 %v2033
      %v5358 = vunpack.c.l.b16 %v2034
      %v5359 = vunpack.c.h.b16 %v2034
      %v5360 = vunpack.c.l.b16 %v2035
      %v5361 = vunpack.c.h.b16 %v2035
      %v5362 = vunpack.c.l.b16 %v2036
      %v5363 = vunpack.c.h.b16 %v2036
      %v5364 = vunpack.c.l.b16 %v2037
      %v5365 = vunpack.c.h.b16 %v2037
      %v5366 = vunpack.c.l.b16 %v2038
      %v5367 = vunpack.c.h.b16 %v2038
      %v5368 = vunpack.c.l.b16 %v2039
      %v5369 = vunpack.c.h.b16 %v2039
      %v5370 = vunpack.c.l.b16 %v2040
      %v5371 = vunpack.c.h.b16 %v2040
      %v5372 = vunpack.c.l.b16 %v2041
      %v5373 = vunpack.c.h.b16 %v2041
      %v5374 = vunpack.c.l.b16 %v2042
      %v5375 = vunpack.c.h.b16 %v2042
      %v5376 = vunpack.c.l.b16 %v2043
      %v5377 = vunpack.c.h.b16 %v2043
      %v5378 = vunpack.c.l.b16 %v2044
      %v5379 = vunpack.c.h.b16 %v2044
      %v5380 = vunpack.c.l.b16 %v2045
      %v5381 = vunpack.c.h.b16 %v2045
      %v5382 = vunpack.c.l.b16 %v2046
      %v5383 = vunpack.c.h.b16 %v2046
      %v5384 = vunpack.c.l.b16 %v2047
      %v5385 = vunpack.c.h.b16 %v2047
      %v5386 = vunpack.c.l.b16 %v2048
      %v5387 = vunpack.c.h.b16 %v2048
      %v5388 = vunpack.c.l.b16 %v2049
      %v5389 = vunpack.c.h.b16 %v2049
      %v5390 = vunpack.c.l.b16 %v2050
      %v5391 = vunpack.c.h.b16 %v2050
      %v5392 = vunpack.c.l.b16 %v2051
      %v5393 = vunpack.c.h.b16 %v2051
      %v5394 = vunpack.c.l.b16 %v2052
      %v5395 = vunpack.c.h.b16 %v2052
      %v5396 = vunpack.c.l.b16 %v2053
      %v5397 = vunpack.c.h.b16 %v2053
      %v5398 = vunpack.c.l.b16 %v2054
      %v5399 = vunpack.c.h.b16 %v2054
      %v5400 = vunpack.c.l.b16 %v2055
      %v5401 = vunpack.c.h.b16 %v2055
      %v5402 = vunpack.c.l.b16 %v2056
      %v5403 = vunpack.c.h.b16 %v2056
      %v5404 = vunpack.c.l.b16 %v2057
      %v5405 = vunpack.c.h.b16 %v2057
      %v5406 = vunpack.c.l.b16 %v2058
      %v5407 = vunpack.c.h.b16 %v2058
      %v5408 = vunpack.c.l.b16 %v2059
      %v5409 = vunpack.c.h.b16 %v2059
      %v5410 = vunpack.c.l.b16 %v2060
      %v5411 = vunpack.c.h.b16 %v2060
      %v5412 = vunpack.c.l.b16 %v2061
      %v5413 = vunpack.c.h.b16 %v2061
      %v5414 = vunpack.c.l.b16 %v2062
      %v5415 = vunpack.c.h.b16 %v2062
      %v5416 = vunpack.c.l.b16 %v2063
      %v5417 = vunpack.c.h.b16 %v2063
      %v5418 = vunpack.c.l.b16 %v2064
      %v5419 = vunpack.c.h.b16 %v2064
      %v5420 = vunpack.c.l.b16 %v2065
      %v5421 = vunpack.c.h.b16 %v2065
      %v5422 = vunpack.c.l.b16 %v2066
      %v5423 = vunpack.c.h.b16 %v2066
      %v5424 = vunpack.c.l.b16 %v2067
      %v5425 = vunpack.c.h.b16 %v2067
      %v5426 = vunpack.c.l.b16 %v2068
      %v5427 = vunpack.c.h.b16 %v2068
      %v5428 = vunpack.c.l.b16 %v2069
      %v5429 = vunpack.c.h.b16 %v2069
      %v5430 = vunpack.c.l.b16 %v2070
      %v5431 = vunpack.c.h.b16 %v2070
      %v5432 = vunpack.c.l.b16 %v2071
      %v5433 = vunpack.c.h.b16 %v2071
      %v5434 = vunpack.c.l.b16 %v2072
      %v5435 = vunpack.c.h.b16 %v2072
      %v5436 = vunpack.c.l.b16 %v2073
      %v5437 = vunpack.c.h.b16 %v2073
      %v5438 = vunpack.c.l.b16 %v2074
      %v5439 = vunpack.c.h.b16 %v2074
      %v5440 = vunpack.c.l.b16 %v2075
      %v5441 = vunpack.c.h.b16 %v2075
      %v5442 = vunpack.c.l.b16 %v2076
      %v5443 = vunpack.c.h.b16 %v2076
      %v5444 = vunpack.c.l.b16 %v2077
      %v5445 = vunpack.c.h.b16 %v2077
      %v5446 = vunpack.c.l.b16 %v2078
      %v5447 = vunpack.c.h.b16 %v2078
      %v5448 = vunpack.c.l.b16 %v2079
      %v5449 = vunpack.c.h.b16 %v2079
      %v5450 = vunpack.c.l.b16 %v2080
      %v5451 = vunpack.c.h.b16 %v2080
      %v5452 = vunpack.c.l.b16 %v2081
      %v5453 = vunpack.c.h.b16 %v2081
      %v5454 = vunpack.c.l.b16 %v2082
      %v5455 = vunpack.c.h.b16 %v2082
      %v5456 = vunpack.c.l.b16 %v2083
      %v5457 = vunpack.c.h.b16 %v2083
      %v5458 = vunpack.c.l.b16 %v2084
      %v5459 = vunpack.c.h.b16 %v2084
      %v5460 = vunpack.c.l.b16 %v2085
      %v5461 = vunpack.c.h.b16 %v2085
      %v5462 = vunpack.c.l.b16 %v2086
      %v5463 = vunpack.c.h.b16 %v2086
      %v5464 = vunpack.c.l.b16 %v2087
      %v5465 = vunpack.c.h.b16 %v2087
      %v5466 = vunpack.c.l.b16 %v2088
      %v5467 = vunpack.c.h.b16 %v2088
      %v5468 = vunpack.c.l.b16 %v2089
      %v5469 = vunpack.c.h.b16 %v2089
      %v5470 = vunpack.c.l.b16 %v2090
      %v5471 = vunpack.c.h.b16 %v2090
      %v5472 = vunpack.c.l.b16 %v2091
      %v5473 = vunpack.c.h.b16 %v2091
      %v5474 = vunpack.c.l.b16 %v2092
      %v5475 = vunpack.c.h.b16 %v2092
      %v5476 = vunpack.c.l.b16 %v2093
      %v5477 = vunpack.c.h.b16 %v2093
      %v5478 = vunpack.c.l.b16 %v2094
      %v5479 = vunpack.c.h.b16 %v2094
      %v5480 = vunpack.c.l.b16 %v2095
      %v5481 = vunpack.c.h.b16 %v2095
      %v5482 = vunpack.c.l.b16 %v2096
      %v5483 = vunpack.c.h.b16 %v2096
      %v5484 = vunpack.c.l.b16 %v2097
      %v5485 = vunpack.c.h.b16 %v2097
      %v5486 = vunpack.c.l.b16 %v2098
      %v5487 = vunpack.c.h.b16 %v2098
      %v5488 = vunpack.c.l.b16 %v2099
      %v5489 = vunpack.c.h.b16 %v2099
      %v5490 = vunpack.c.l.b16 %v2100
      %v5491 = vunpack.c.h.b16 %v2100
      %v5492 = vunpack.c.l.b16 %v2101
      %v5493 = vunpack.c.h.b16 %v2101
      %v5494 = vunpack.c.l.b16 %v2102
      %v5495 = vunpack.c.h.b16 %v2102
      %v5496 = vunpack.c.l.b16 %v2103
      %v5497 = vunpack.c.h.b16 %v2103
      %v5498 = vunpack.c.l.b16 %v2104
      %v5499 = vunpack.c.h.b16 %v2104
      %v5500 = vunpack.c.l.b16 %v2105
      %v5501 = vunpack.c.h.b16 %v2105
      %v5502 = vunpack.c.l.b16 %v2106
      %v5503 = vunpack.c.h.b16 %v2106
      %v5504 = vunpack.c.l.b16 %v2107
      %v5505 = vunpack.c.h.b16 %v2107
      %v5506 = vunpack.c.l.b16 %v2108
      %v5507 = vunpack.c.h.b16 %v2108
      %v5508 = vunpack.c.l.b16 %v2109
      %v5509 = vunpack.c.h.b16 %v2109
      %v5510 = vunpack.c.l.b16 %v2110
      %v5511 = vunpack.c.h.b16 %v2110
      %v5512 = vunpack.c.l.b16 %v2111
      %v5513 = vunpack.c.h.b16 %v2111
      %v5514 = vunpack.c.l.b16 %v2112
      %v5515 = vunpack.c.h.b16 %v2112
      %v5516 = vunpack.c.l.b16 %v2113
      %v5517 = vunpack.c.h.b16 %v2113
      %v5518 = vunpack.c.l.b16 %v2114
      %v5519 = vunpack.c.h.b16 %v2114
      %v5520 = vunpack.c.l.b16 %v2115
      %v5521 = vunpack.c.h.b16 %v2115
      %v5522 = vunpack.c.l.b16 %v2116
      %v5523 = vunpack.c.h.b16 %v2116
      %v5524 = vunpack.c.l.b16 %v2117
      %v5525 = vunpack.c.h.b16 %v2117
      %v5526 = vunpack.c.l.b16 %v2118
      %v5527 = vunpack.c.h.b16 %v2118
      %v5528 = vunpack.c.l.b16 %v2119
      %v5529 = vunpack.c.h.b16 %v2119
      %v5530 = vunpack.c.l.b16 %v2120
      %v5531 = vunpack.c.h.b16 %v2120
      %v5532 = vunpack.c.l.b16 %v2121
      %v5533 = vunpack.c.h.b16 %v2121
      %v5534 = vunpack.c.l.b16 %v2122
      %v5535 = vunpack.c.h.b16 %v2122
      %v5536 = vunpack.c.l.b16 %v2123
      %v5537 = vunpack.c.h.b16 %v2123
      %v5538 = vunpack.c.l.b16 %v2124
      %v5539 = vunpack.c.h.b16 %v2124
      %v5540 = vunpack.c.l.b16 %v2125
      %v5541 = vunpack.c.h.b16 %v2125
      %v5542 = vunpack.c.l.b16 %v2126
      %v5543 = vunpack.c.h.b16 %v2126
      %v5544 = vunpack.c.l.b16 %v2127
      %v5545 = vunpack.c.h.b16 %v2127
      %v5546 = vunpack.c.l.b16 %v2128
      %v5547 = vunpack.c.h.b16 %v2128
      %v5548 = vunpack.c.l.b16 %v2129
      %v5549 = vunpack.c.h.b16 %v2129
      %v5550 = vunpack.c.l.b16 %v2130
      %v5551 = vunpack.c.h.b16 %v2130
      %v5552 = vunpack.c.l.b16 %v2131
      %v5553 = vunpack.c.h.b16 %v2131
      %v5554 = vunpack.c.l.b16 %v2132
      %v5555 = vunpack.c.h.b16 %v2132
      %v5556 = vunpack.c.l.b16 %v2133
      %v5557 = vunpack.c.h.b16 %v2133
      %v5558 = vunpack.c.l.b16 %v2134
      %v5559 = vunpack.c.h.b16 %v2134
      %v5560 = vunpack.c.l.b16 %v2135
      %v5561 = vunpack.c.h.b16 %v2135
      %v5562 = vunpack.c.l.b16 %v2136
      %v5563 = vunpack.c.h.b16 %v2136
      %v5564 = vunpack.c.l.b16 %v2137
      %v5565 = vunpack.c.h.b16 %v2137
      %v5566 = vunpack.c.l.b16 %v2138
      %v5567 = vunpack.c.h.b16 %v2138
      %v5568 = vunpack.c.l.b16 %v2139
      %v5569 = vunpack.c.h.b16 %v2139
      %v5570 = vunpack.c.l.b16 %v2140
      %v5571 = vunpack.c.h.b16 %v2140
      %v5572 = vunpack.c.l.b16 %v2141
      %v5573 = vunpack.c.h.b16 %v2141
      %v5574 = vunpack.c.l.b16 %v2142
      %v5575 = vunpack.c.h.b16 %v2142
      %v5576 = vunpack.c.l.b16 %v2143
      %v5577 = vunpack.c.h.b16 %v2143
      %v5578 = vunpack.c.l.b16 %v2144
      %v5579 = vunpack.c.h.b16 %v2144
      %v5580 = vunpack.c.l.b16 %v2145
      %v5581 = vunpack.c.h.b16 %v2145
      %v5582 = vunpack.c.l.b16 %v2146
      %v5583 = vunpack.c.h.b16 %v2146
      %v5584 = vunpack.c.l.b16 %v2147
      %v5585 = vunpack.c.h.b16 %v2147
      %v5586 = vunpack.c.l.b16 %v2148
      %v5587 = vunpack.c.h.b16 %v2148
      %v5588 = vunpack.c.l.b16 %v2149
      %v5589 = vunpack.c.h.b16 %v2149
      %v5590 = vunpack.c.l.b16 %v2150
      %v5591 = vunpack.c.h.b16 %v2150
      %v5592 = vunpack.c.l.b16 %v2151
      %v5593 = vunpack.c.h.b16 %v2151
      %v5594 = vunpack.c.l.b16 %v2152
      %v5595 = vunpack.c.h.b16 %v2152
      %v5596 = vunpack.c.l.b16 %v2153
      %v5597 = vunpack.c.h.b16 %v2153
      %v5598 = vunpack.c.l.b16 %v2154
      %v5599 = vunpack.c.h.b16 %v2154
      %v5600 = vunpack.c.l.b16 %v2155
      %v5601 = vunpack.c.h.b16 %v2155
      %v5602 = vunpack.c.l.b16 %v2156
      %v5603 = vunpack.c.h.b16 %v2156
      %v5604 = vunpack.c.l.b16 %v2157
      %v5605 = vunpack.c.h.b16 %v2157
      %v5606 = vunpack.c.l.b16 %v2158
      %v5607 = vunpack.c.h.b16 %v2158
      %v5608 = vunpack.c.l.b16 %v2159
      %v5609 = vunpack.c.h.b16 %v2159
      %v5610 = vunpack.c.l.b16 %v2160
      %v5611 = vunpack.c.h.b16 %v2160
      %v5612 = vunpack.c.l.b16 %v2161
      %v5613 = vunpack.c.h.b16 %v2161
      %v5614 = vunpack.c.l.b16 %v2162
      %v5615 = vunpack.c.h.b16 %v2162
      %v5616 = vunpack.c.l.b16 %v2163
      %v5617 = vunpack.c.h.b16 %v2163
      %v5618 = vunpack.c.l.b16 %v2164
      %v5619 = vunpack.c.h.b16 %v2164
      %v5620 = vunpack.c.l.b16 %v2165
      %v5621 = vunpack.c.h.b16 %v2165
      %v5622 = vunpack.c.l.b16 %v2166
      %v5623 = vunpack.c.h.b16 %v2166
      %v5624 = vunpack.c.l.b16 %v2167
      %v5625 = vunpack.c.h.b16 %v2167
      %v5626 = vunpack.c.l.b16 %v2168
      %v5627 = vunpack.c.h.b16 %v2168
      %v5628 = vunpack.c.l.b16 %v2169
      %v5629 = vunpack.c.h.b16 %v2169
      %v5630 = vunpack.c.l.b16 %v2170
      %v5631 = vunpack.c.h.b16 %v2170
      %v5632 = vunpack.c.l.b16 %v2171
      %v5633 = vunpack.c.h.b16 %v2171
      %v5634 = vunpack.c.l.b16 %v2172
      %v5635 = vunpack.c.h.b16 %v2172
      %v5636 = vunpack.c.l.b16 %v2173
      %v5637 = vunpack.c.h.b16 %v2173
      %v5638 = vunpack.c.l.b16 %v2174
      %v5639 = vunpack.c.h.b16 %v2174
      %v5640 = vunpack.c.l.b16 %v2175
      %v5641 = vunpack.c.h.b16 %v2175
      %v5642 = vunpack.c.l.b16 %v2176
      %v5643 = vunpack.c.h.b16 %v2176
      %v5644 = vunpack.c.l.b16 %v2177
      %v5645 = vunpack.c.h.b16 %v2177
      %v5646 = vunpack.c.l.b16 %v2178
      %v5647 = vunpack.c.h.b16 %v2178
      %v5648 = vunpack.c.l.b16 %v2179
      %v5649 = vunpack.c.h.b16 %v2179
      %v5650 = vunpack.c.l.b16 %v2180
      %v5651 = vunpack.c.h.b16 %v2180
      %v5652 = vunpack.c.l.b16 %v2181
      %v5653 = vunpack.c.h.b16 %v2181
      %v5654 = vunpack.c.l.b16 %v2182
      %v5655 = vunpack.c.h.b16 %v2182
      %v5656 = vunpack.c.l.b16 %v2183
      %v5657 = vunpack.c.h.b16 %v2183
      %v5658 = vunpack.c.l.b16 %v2184
      %v5659 = vunpack.c.h.b16 %v2184
      %v5660 = vunpack.c.l.b16 %v2185
      %v5661 = vunpack.c.h.b16 %v2185
      %v5662 = vunpack.c.l.b16 %v2186
      %v5663 = vunpack.c.h.b16 %v2186
      %v5664 = vunpack.c.l.b16 %v2187
      %v5665 = vunpack.c.h.b16 %v2187
      %v5666 = vunpack.c.l.b16 %v2188
      %v5667 = vunpack.c.h.b16 %v2188
      %v5668 = vunpack.c.l.b16 %v2189
      %v5669 = vunpack.c.h.b16 %v2189
      %v5670 = vunpack.c.l.b16 %v2190
      %v5671 = vunpack.c.h.b16 %v2190
      %v5672 = vunpack.c.l.b16 %v2191
      %v5673 = vunpack.c.h.b16 %v2191
      %v5674 = vunpack.c.l.b16 %v2192
      %v5675 = vunpack.c.h.b16 %v2192
      %v5676 = vunpack.c.l.b16 %v2193
      %v5677 = vunpack.c.h.b16 %v2193
      %v5678 = vunpack.c.l.b16 %v2194
      %v5679 = vunpack.c.h.b16 %v2194
      %v5680 = vunpack.c.l.b16 %v2195
      %v5681 = vunpack.c.h.b16 %v2195
      %v5682 = vunpack.c.l.b16 %v2196
      %v5683 = vunpack.c.h.b16 %v2196
      %v5684 = vunpack.c.l.b16 %v2197
      %v5685 = vunpack.c.h.b16 %v2197
      %v5686 = vunpack.c.l.b16 %v2198
      %v5687 = vunpack.c.h.b16 %v2198
      %v5688 = vunpack.c.l.b16 %v2199
      %v5689 = vunpack.c.h.b16 %v2199
      %v5690 = vunpack.c.l.b16 %v2200
      %v5691 = vunpack.c.h.b16 %v2200
      %v5692 = vunpack.c.l.b16 %v2201
      %v5693 = vunpack.c.h.b16 %v2201
      %v5694 = vunpack.c.l.b16 %v2202
      %v5695 = vunpack.c.h.b16 %v2202
      %v5696 = vunpack.c.l.b16 %v2203
      %v5697 = vunpack.c.h.b16 %v2203
      %v5698 = vunpack.c.l.b16 %v2204
      %v5699 = vunpack.c.h.b16 %v2204
      %v5700 = vunpack.c.l.b16 %v2205
      %v5701 = vunpack.c.h.b16 %v2205
      %v5702 = vunpack.c.l.b16 %v2206
      %v5703 = vunpack.c.h.b16 %v2206
      %v5704 = vunpack.c.l.b16 %v2207
      %v5705 = vunpack.c.h.b16 %v2207
      %v5706 = vunpack.c.l.b16 %v2208
      %v5707 = vunpack.c.h.b16 %v2208
      %v5708 = vunpack.c.l.b16 %v2209
      %v5709 = vunpack.c.h.b16 %v2209
      %v5710 = vunpack.c.l.b16 %v2210
      %v5711 = vunpack.c.h.b16 %v2210
      %v5712 = vunpack.c.l.b16 %v2211
      %v5713 = vunpack.c.h.b16 %v2211
      %v5714 = vunpack.c.l.b16 %v2212
      %v5715 = vunpack.c.h.b16 %v2212
      %v5716 = vunpack.c.l.b16 %v2213
      %v5717 = vunpack.c.h.b16 %v2213
      %v5718 = vunpack.c.l.b16 %v2214
      %v5719 = vunpack.c.h.b16 %v2214
      %v5720 = vunpack.c.l.b16 %v2215
      %v5721 = vunpack.c.h.b16 %v2215
      %v5722 = vunpack.c.l.b16 %v2216
      %v5723 = vunpack.c.h.b16 %v2216
      %v5724 = vunpack.c.l.b16 %v2217
      %v5725 = vunpack.c.h.b16 %v2217
      %v5726 = vunpack.c.l.b16 %v2218
      %v5727 = vunpack.c.h.b16 %v2218
      %v5728 = vunpack.c.l.b16 %v2219
      %v5729 = vunpack.c.h.b16 %v2219
      %v5730 = vunpack.c.l.b16 %v2220
      %v5731 = vunpack.c.h.b16 %v2220
      %v5732 = vunpack.c.l.b16 %v2221
      %v5733 = vunpack.c.h.b16 %v2221
      %v5734 = vunpack.c.l.b16 %v2222
      %v5735 = vunpack.c.h.b16 %v2222
      %v5736 = vunpack.c.l.b16 %v2223
      %v5737 = vunpack.c.h.b16 %v2223
      %v5738 = vunpack.c.l.b16 %v2224
      %v5739 = vunpack.c.h.b16 %v2224
      %v5740 = vunpack.c.l.b16 %v2225
      %v5741 = vunpack.c.h.b16 %v2225
      %v5742 = vunpack.c.l.b16 %v2226
      %v5743 = vunpack.c.h.b16 %v2226
      %v5744 = vunpack.c.l.b16 %v2227
      %v5745 = vunpack.c.h.b16 %v2227
      %v5746 = vunpack.c.l.b16 %v2228
      %v5747 = vunpack.c.h.b16 %v2228
      %v5748 = vunpack.c.l.b16 %v2229
      %v5749 = vunpack.c.h.b16 %v2229
      %v5750 = vunpack.c.l.b16 %v2230
      %v5751 = vunpack.c.h.b16 %v2230
      %v5752 = vunpack.c.l.b16 %v2231
      %v5753 = vunpack.c.h.b16 %v2231
      %v5754 = vunpack.c.l.b16 %v2232
      %v5755 = vunpack.c.h.b16 %v2232
      %v5756 = vunpack.c.l.b16 %v2233
      %v5757 = vunpack.c.h.b16 %v2233
      %v5758 = vunpack.c.l.b16 %v2234
      %v5759 = vunpack.c.h.b16 %v2234
      %v5760 = vunpack.c.l.b16 %v2235
      %v5761 = vunpack.c.h.b16 %v2235
      %v5762 = vunpack.c.l.b16 %v2236
      %v5763 = vunpack.c.h.b16 %v2236
      %v5764 = vunpack.c.l.b16 %v2237
      %v5765 = vunpack.c.h.b16 %v2237
      %v5766 = vunpack.c.l.b16 %v2238
      %v5767 = vunpack.c.h.b16 %v2238
      %v5768 = vunpack.c.l.b16 %v2239
      %v5769 = vunpack.c.h.b16 %v2239
      %v5770 = vunpack.c.l.b16 %v2240
      %v5771 = vunpack.c.h.b16 %v2240
      %v5772 = vunpack.c.l.b16 %v2241
      %v5773 = vunpack.c.h.b16 %v2241
      %v5774 = vunpack.c.l.b16 %v2242
      %v5775 = vunpack.c.h.b16 %v2242
      %v5776 = vunpack.c.l.b16 %v2243
      %v5777 = vunpack.c.h.b16 %v2243
      %v5778 = vunpack.c.l.b16 %v2244
      %v5779 = vunpack.c.h.b16 %v2244
      %v5780 = vunpack.c.l.b16 %v2245
      %v5781 = vunpack.c.h.b16 %v2245
      %v5782 = vunpack.c.l.b16 %v2246
      %v5783 = vunpack.c.h.b16 %v2246
      %v5784 = vunpack.c.l.b16 %v2247
      %v5785 = vunpack.c.h.b16 %v2247
      %v5786 = vunpack.c.l.b16 %v2248
      %v5787 = vunpack.c.h.b16 %v2248
      %v5788 = vunpack.c.l.b16 %v2249
      %v5789 = vunpack.c.h.b16 %v2249
      %v5790 = vunpack.c.l.b16 %v2250
      %v5791 = vunpack.c.h.b16 %v2250
      %v5792 = vunpack.c.l.b16 %v2251
      %v5793 = vunpack.c.h.b16 %v2251
      %v5794 = vunpack.c.l.b16 %v2252
      %v5795 = vunpack.c.h.b16 %v2252
      %v5796 = vunpack.c.l.b16 %v2253
      %v5797 = vunpack.c.h.b16 %v2253
      %v5798 = vunpack.c.l.b16 %v2254
      %v5799 = vunpack.c.h.b16 %v2254
      %v5800 = vunpack.c.l.b16 %v2255
      %v5801 = vunpack.c.h.b16 %v2255
      %v5802 = vunpack.c.l.b16 %v2256
      %v5803 = vunpack.c.h.b16 %v2256
      %v5804 = vunpack.c.l.b16 %v2257
      %v5805 = vunpack.c.h.b16 %v2257
      %v5806 = vunpack.c.l.b16 %v2258
      %v5807 = vunpack.c.h.b16 %v2258
      %v5808 = vunpack.c.l.b16 %v2259
      %v5809 = vunpack.c.h.b16 %v2259
      %v5810 = vunpack.c.l.b16 %v2260
      %v5811 = vunpack.c.h.b16 %v2260
      %v5812 = vunpack.c.l.b16 %v2261
      %v5813 = vunpack.c.h.b16 %v2261
      %v5814 = vunpack.c.l.b16 %v2262
      %v5815 = vunpack.c.h.b16 %v2262
      %v5816 = vunpack.c.l.b16 %v2263
      %v5817 = vunpack.c.h.b16 %v2263
      %v5818 = vunpack.c.l.b16 %v2264
      %v5819 = vunpack.c.h.b16 %v2264
      %v5820 = vpack.c.b16 %v3524, %v3516
      %v5821 = vpack.c.b16 %v3525, %v3517
      %v5822 = vpack.c.b16 %v3526, %v3518
      %v5823 = vpack.c.b16 %v3527, %v3519
      %v5824 = vpack.c.b16 %v3528, %v3520
      %v5825 = vpack.c.b16 %v3529, %v3521
      %v5826 = vpack.c.b16 %v3530, %v3522
      %v5827 = vpack.c.b16 %v3531, %v3523
      %v5828 = vpack.c.b16 %v3540, %v3532
      %v5829 = vpack.c.b16 %v3541, %v3533
      %v5830 = vpack.c.b16 %v3542, %v3534
      %v5831 = vpack.c.b16 %v3543, %v3535
      %v5832 = vpack.c.b16 %v3544, %v3536
      %v5833 = vpack.c.b16 %v3545, %v3537
      %v5834 = vpack.c.b16 %v3546, %v3538
      %v5835 = vpack.c.b16 %v3547, %v3539
      %v5836 = vpack.c.b16 %v3556, %v3548
      %v5837 = vpack.c.b16 %v3557, %v3549
      %v5838 = vpack.c.b16 %v3558, %v3550
      %v5839 = vpack.c.b16 %v3559, %v3551
      %v5840 = vpack.c.b16 %v3560, %v3552
      %v5841 = vpack.c.b16 %v3561, %v3553
      %v5842 = vpack.c.b16 %v3562, %v3554
      %v5843 = vpack.c.b16 %v3563, %v3555
      %v5844 = vpack.c.b16 %v3572, %v3564
      %v5845 = vpack.c.b16 %v3573, %v3565
      %v5846 = vpack.c.b16 %v3574, %v3566
      %v5847 = vpack.c.b16 %v3575, %v3567
      %v5848 = vpack.c.b16 %v3576, %v3568
      %v5849 = vpack.c.b16 %v3577, %v3569
      %v5850 = vpack.c.b16 %v3578, %v3570
      %v5851 = vpack.c.b16 %v3579, %v3571
      %v5852 = vpack.c.b16 %v3588, %v3580
      %v5853 = vpack.c.b16 %v3589, %v3581
      %v5854 = vpack.c.b16 %v3590, %v3582
      %v5855 = vpack.c.b16 %v3591, %v3583
      %v5856 = vpack.c.b16 %v3592, %v3584
      %v5857 = vpack.c.b16 %v3593, %v3585
      %v5858 = vpack.c.b16 %v3594, %v3586
      %v5859 = vpack.c.b16 %v3595, %v3587
      %v5860 = vpack.c.b16 %v3604, %v3596
      %v5861 = vpack.c.b16 %v3605, %v3597
      %v5862 = vpack.c.b16 %v3606, %v3598
      %v5863 = vpack.c.b16 %v3607, %v3599
      %v5864 = vpack.c.b16 %v3608, %v3600
      %v5865 = vpack.c.b16 %v3609, %v3601
      %v5866 = vpack.c.b16 %v3610, %v3602
      %v5867 = vpack.c.b16 %v3611, %v3603
      %v5868 = vpack.c.b16 %v3620, %v3612
      %v5869 = vpack.c.b16 %v3621, %v3613
      %v5870 = vpack.c.b16 %v3622, %v3614
      %v5871 = vpack.c.b16 %v3623, %v3615
      %v5872 = vpack.c.b16 %v3624, %v3616
      %v5873 = vpack.c.b16 %v3625, %v3617
      %v5874 = vpack.c.b16 %v3626, %v3618
      %v5875 = vpack.c.b16 %v3627, %v3619
      %v5876 = vpack.c.b16 %v3636, %v3628
      %v5877 = vpack.c.b16 %v3637, %v3629
      %v5878 = vpack.c.b16 %v3638, %v3630
      %v5879 = vpack.c.b16 %v3639, %v3631
      %v5880 = vpack.c.b16 %v3640, %v3632
      %v5881 = vpack.c.b16 %v3641, %v3633
      %v5882 = vpack.c.b16 %v3642, %v3634
      %v5883 = vpack.c.b16 %v3643, %v3635
      %v5884 = vpack.c.b16 %v3652, %v3644
      %v5885 = vpack.c.b16 %v3653, %v3645
      %v5886 = vpack.c.b16 %v3654, %v3646
      %v5887 = vpack.c.b16 %v3655, %v3647
      %v5888 = vpack.c.b16 %v3656, %v3648
      %v5889 = vpack.c.b16 %v3657, %v3649
      %v5890 = vpack.c.b16 %v3658, %v3650
      %v5891 = vpack.c.b16 %v3659, %v3651
      %v5892 = vpack.c.b16 %v3668, %v3660
      %v5893 = vpack.c.b16 %v3669, %v3661
      %v5894 = vpack.c.b16 %v3670, %v3662
      %v5895 = vpack.c.b16 %v3671, %v3663
      %v5896 = vpack.c.b16 %v3672, %v3664
      %v5897 = vpack.c.b16 %v3673, %v3665
      %v5898 = vpack.c.b16 %v3674, %v3666
      %v5899 = vpack.c.b16 %v3675, %v3667
      %v5900 = vpack.c.b16 %v3684, %v3676
      %v5901 = vpack.c.b16 %v3685, %v3677
      %v5902 = vpack.c.b16 %v3686, %v3678
      %v5903 = vpack.c.b16 %v3687, %v3679
      %v5904 = vpack.c.b16 %v3688, %v3680
      %v5905 = vpack.c.b16 %v3689, %v3681
      %v5906 = vpack.c.b16 %v3690, %v3682
      %v5907 = vpack.c.b16 %v3691, %v3683
      %v5908 = vpack.c.b16 %v3700, %v3692
      %v5909 = vpack.c.b16 %v3701, %v3693
      %v5910 = vpack.c.b16 %v3702, %v3694
      %v5911 = vpack.c.b16 %v3703, %v3695
      %v5912 = vpack.c.b16 %v3704, %v3696
      %v5913 = vpack.c.b16 %v3705, %v3697
      %v5914 = vpack.c.b16 %v3706, %v3698
      %v5915 = vpack.c.b16 %v3707, %v3699
      %v5916 = vpack.c.b16 %v3716, %v3708
      %v5917 = vpack.c.b16 %v3717, %v3709
      %v5918 = vpack.c.b16 %v3718, %v3710
      %v5919 = vpack.c.b16 %v3719, %v3711
      %v5920 = vpack.c.b16 %v3720, %v3712
      %v5921 = vpack.c.b16 %v3721, %v3713
      %v5922 = vpack.c.b16 %v3722, %v3714
      %v5923 = vpack.c.b16 %v3723, %v3715
      %v5924 = vpack.c.b16 %v3732, %v3724
      %v5925 = vpack.c.b16 %v3733, %v3725
      %v5926 = vpack.c.b16 %v3734, %v3726
      %v5927 = vpack.c.b16 %v3735, %v3727
      %v5928 = vpack.c.b16 %v3736, %v3728
      %v5929 = vpack.c.b16 %v3737, %v3729
      %v5930 = vpack.c.b16 %v3738, %v3730
      %v5931 = vpack.c.b16 %v3739, %v3731
      %v5932 = vpack.c.b16 %v3748, %v3740
      %v5933 = vpack.c.b16 %v3749, %v3741
      %v5934 = vpack.c.b16 %v3750, %v3742
      %v5935 = vpack.c.b16 %v3751, %v3743
      %v5936 = vpack.c.b16 %v3752, %v3744
      %v5937 = vpack.c.b16 %v3753, %v3745
      %v5938 = vpack.c.b16 %v3754, %v3746
      %v5939 = vpack.c.b16 %v3755, %v3747
      %v5940 = vpack.c.b16 %v3764, %v3756
      %v5941 = vpack.c.b16 %v3765, %v3757
      %v5942 = vpack.c.b16 %v3766, %v3758
      %v5943 = vpack.c.b16 %v3767, %v3759
      %v5944 = vpack.c.b16 %v3768, %v3760
      %v5945 = vpack.c.b16 %v3769, %v3761
      %v5946 = vpack.c.b16 %v3770, %v3762
      %v5947 = vpack.c.b16 %v3771, %v3763
      %v5948 = vpack.c.b16 %v3780, %v3772
      %v5949 = vpack.c.b16 %v3781, %v3773
      %v5950 = vpack.c.b16 %v3782, %v3774
      %v5951 = vpack.c.b16 %v3783, %v3775
      %v5952 = vpack.c.b16 %v3784, %v3776
      %v5953 = vpack.c.b16 %v3785, %v3777
      %v5954 = vpack.c.b16 %v3786, %v3778
      %v5955 = vpack.c.b16 %v3787, %v3779
      %v5956 = vpack.c.b16 %v3796, %v3788
      %v5957 = vpack.c.b16 %v3797, %v3789
      %v5958 = vpack.c.b16 %v3798, %v3790
      %v5959 = vpack.c.b16 %v3799, %v3791
      %v5960 = vpack.c.b16 %v3800, %v3792
      %v5961 = vpack.c.b16 %v3801, %v3793
      %v5962 = vpack.c.b16 %v3802, %v3794
      %v5963 = vpack.c.b16 %v3803, %v3795
      %v5964 = vpack.c.b16 %v3812, %v3804
      %v5965 = vpack.c.b16 %v3813, %v3805
      %v5966 = vpack.c.b16 %v3814, %v3806
      %v5967 = vpack.c.b16 %v3815, %v3807
      %v5968 = vpack.c.b16 %v3816, %v3808
      %v5969 = vpack.c.b16 %v3817, %v3809
      %v5970 = vpack.c.b16 %v3818, %v3810
      %v5971 = vpack.c.b16 %v3819, %v3811
      %v5972 = vpack.c.b16 %v3828, %v3820
      %v5973 = vpack.c.b16 %v3829, %v3821
      %v5974 = vpack.c.b16 %v3830, %v3822
      %v5975 = vpack.c.b16 %v3831, %v3823
      %v5976 = vpack.c.b16 %v3832, %v3824
      %v5977 = vpack.c.b16 %v3833, %v3825
      %v5978 = vpack.c.b16 %v3834, %v3826
      %v5979 = vpack.c.b16 %v3835, %v3827
      %v5980 = vpack.c.b16 %v3844, %v3836
      %v5981 = vpack.c.b16 %v3845, %v3837
      %v5982 = vpack.c.b16 %v3846, %v3838
      %v5983 = vpack.c.b16 %v3847, %v3839
      %v5984 = vpack.c.b16 %v3848, %v3840
      %v5985 = vpack.c.b16 %v3849, %v3841
      %v5986 = vpack.c.b16 %v3850, %v3842
      %v5987 = vpack.c.b16 %v3851, %v3843
      %v5988 = vpack.c.b16 %v3860, %v3852
      %v5989 = vpack.c.b16 %v3861, %v3853
      %v5990 = vpack.c.b16 %v3862, %v3854
      %v5991 = vpack.c.b16 %v3863, %v3855
      %v5992 = vpack.c.b16 %v3864, %v3856
      %v5993 = vpack.c.b16 %v3865, %v3857
      %v5994 = vpack.c.b16 %v3866, %v3858
      %v5995 = vpack.c.b16 %v3867, %v3859
      %v5996 = vpack.c.b16 %v3876, %v3868
      %v5997 = vpack.c.b16 %v3877, %v3869
      %v5998 = vpack.c.b16 %v3878, %v3870
      %v5999 = vpack.c.b16 %v3879, %v3871
      %v6000 = vpack.c.b16 %v3880, %v3872
      %v6001 = vpack.c.b16 %v3881, %v3873
      %v6002 = vpack.c.b16 %v3882, %v3874
      %v6003 = vpack.c.b16 %v3883, %v3875
      %v6004 = vpack.c.b16 %v3892, %v3884
      %v6005 = vpack.c.b16 %v3893, %v3885
      %v6006 = vpack.c.b16 %v3894, %v3886
      %v6007 = vpack.c.b16 %v3895, %v3887
      %v6008 = vpack.c.b16 %v3896, %v3888
      %v6009 = vpack.c.b16 %v3897, %v3889
      %v6010 = vpack.c.b16 %v3898, %v3890
      %v6011 = vpack.c.b16 %v3899, %v3891
      %v6012 = vpack.c.b16 %v3908, %v3900
      %v6013 = vpack.c.b16 %v3909, %v3901
      %v6014 = vpack.c.b16 %v3910, %v3902
      %v6015 = vpack.c.b16 %v3911, %v3903
      %v6016 = vpack.c.b16 %v3912, %v3904
      %v6017 = vpack.c.b16 %v3913, %v3905
      %v6018 = vpack.c.b16 %v3914, %v3906
      %v6019 = vpack.c.b16 %v3915, %v3907
      %v6020 = vpack.c.b16 %v3924, %v3916
      %v6021 = vpack.c.b16 %v3925, %v3917
      %v6022 = vpack.c.b16 %v3926, %v3918
      %v6023 = vpack.c.b16 %v3927, %v3919
      %v6024 = vpack.c.b16 %v3928, %v3920
      %v6025 = vpack.c.b16 %v3929, %v3921
      %v6026 = vpack.c.b16 %v3930, %v3922
      %v6027 = vpack.c.b16 %v3931, %v3923
      %v6028 = vpack.c.b16 %v3940, %v3932
      %v6029 = vpack.c.b16 %v3941, %v3933
      %v6030 = vpack.c.b16 %v3942, %v3934
      %v6031 = vpack.c.b16 %v3943, %v3935
      %v6032 = vpack.c.b16 %v3944, %v3936
      %v6033 = vpack.c.b16 %v3945, %v3937
      %v6034 = vpack.c.b16 %v3946, %v3938
      %v6035 = vpack.c.b16 %v3947, %v3939
      %v6036 = vpack.c.b16 %v3956, %v3948
      %v6037 = vpack.c.b16 %v3957, %v3949
      %v6038 = vpack.c.b16 %v3958, %v3950
      %v6039 = vpack.c.b16 %v3959, %v3951
      %v6040 = vpack.c.b16 %v3960, %v3952
      %v6041 = vpack.c.b16 %v3961, %v3953
      %v6042 = vpack.c.b16 %v3962, %v3954
      %v6043 = vpack.c.b16 %v3963, %v3955
      %v6044 = vpack.c.b16 %v3972, %v3964
      %v6045 = vpack.c.b16 %v3973, %v3965
      %v6046 = vpack.c.b16 %v3974, %v3966
      %v6047 = vpack.c.b16 %v3975, %v3967
      %v6048 = vpack.c.b16 %v3976, %v3968
      %v6049 = vpack.c.b16 %v3977, %v3969
      %v6050 = vpack.c.b16 %v3978, %v3970
      %v6051 = vpack.c.b16 %v3979, %v3971
      %v6052 = vpack.c.b16 %v3988, %v3980
      %v6053 = vpack.c.b16 %v3989, %v3981
      %v6054 = vpack.c.b16 %v3990, %v3982
      %v6055 = vpack.c.b16 %v3991, %v3983
      %v6056 = vpack.c.b16 %v3992, %v3984
      %v6057 = vpack.c.b16 %v3993, %v3985
      %v6058 = vpack.c.b16 %v3994, %v3986
      %v6059 = vpack.c.b16 %v3995, %v3987
      %v6060 = vpack.c.b16 %v4004, %v3996
      %v6061 = vpack.c.b16 %v4005, %v3997
      %v6062 = vpack.c.b16 %v4006, %v3998
      %v6063 = vpack.c.b16 %v4007, %v3999
      %v6064 = vpack.c.b16 %v4008, %v4000
      %v6065 = vpack.c.b16 %v4009, %v4001
      %v6066 = vpack.c.b16 %v4010, %v4002
      %v6067 = vpack.c.b16 %v4011, %v4003
      %v6068 = vpack.c.b16 %v4020, %v4012
      %v6069 = vpack.c.b16 %v4021, %v4013
      %v6070 = vpack.c.b16 %v4022, %v4014
      %v6071 = vpack.c.b16 %v4023, %v4015
      %v6072 = vpack.c.b16 %v4024, %v4016
      %v6073 = vpack.c.b16 %v4025, %v4017
      %v6074 = vpack.c.b16 %v4026, %v4018
      %v6075 = vpack.c.b16 %v4027, %v4019
      %v6076 = vpack.c.b16 %v4036, %v4028
      %v6077 = vpack.c.b16 %v4037, %v4029
      %v6078 = vpack.c.b16 %v4038, %v4030
      %v6079 = vpack.c.b16 %v4039, %v4031
      %v6080 = vpack.c.b16 %v4040, %v4032
      %v6081 = vpack.c.b16 %v4041, %v4033
      %v6082 = vpack.c.b16 %v4042, %v4034
      %v6083 = vpack.c.b16 %v4043, %v4035
      %v6084 = vpack.c.b16 %v4052, %v4044
      %v6085 = vpack.c.b16 %v4053, %v4045
      %v6086 = vpack.c.b16 %v4054, %v4046
      %v6087 = vpack.c.b16 %v4055, %v4047
      %v6088 = vpack.c.b16 %v4056, %v4048
      %v6089 = vpack.c.b16 %v4057, %v4049
      %v6090 = vpack.c.b16 %v4058, %v4050
      %v6091 = vpack.c.b16 %v4059, %v4051
      %v6092 = vpack.c.b16 %v4068, %v4060
      %v6093 = vpack.c.b16 %v4069, %v4061
      %v6094 = vpack.c.b16 %v4070, %v4062
      %v6095 = vpack.c.b16 %v4071, %v4063
      %v6096 = vpack.c.b16 %v4072, %v4064
      %v6097 = vpack.c.b16 %v4073, %v4065
      %v6098 = vpack.c.b16 %v4074, %v4066
      %v6099 = vpack.c.b16 %v4075, %v4067
      %v6100 = vpack.c.b16 %v4084, %v4076
      %v6101 = vpack.c.b16 %v4085, %v4077
      %v6102 = vpack.c.b16 %v4086, %v4078
      %v6103 = vpack.c.b16 %v4087, %v4079
      %v6104 = vpack.c.b16 %v4088, %v4080
      %v6105 = vpack.c.b16 %v4089, %v4081
      %v6106 = vpack.c.b16 %v4090, %v4082
      %v6107 = vpack.c.b16 %v4091, %v4083
      %v6108 = vpack.c.b16 %v4100, %v4092
      %v6109 = vpack.c.b16 %v4101, %v4093
      %v6110 = vpack.c.b16 %v4102, %v4094
      %v6111 = vpack.c.b16 %v4103, %v4095
      %v6112 = vpack.c.b16 %v4104, %v4096
      %v6113 = vpack.c.b16 %v4105, %v4097
      %v6114 = vpack.c.b16 %v4106, %v4098
      %v6115 = vpack.c.b16 %v4107, %v4099
      %v6116 = vpack.c.b16 %v4116, %v4108
      %v6117 = vpack.c.b16 %v4117, %v4109
      %v6118 = vpack.c.b16 %v4118, %v4110
      %v6119 = vpack.c.b16 %v4119, %v4111
      %v6120 = vpack.c.b16 %v4120, %v4112
      %v6121 = vpack.c.b16 %v4121, %v4113
      %v6122 = vpack.c.b16 %v4122, %v4114
      %v6123 = vpack.c.b16 %v4123, %v4115
      %v6124 = vpack.c.b16 %v4132, %v4124
      %v6125 = vpack.c.b16 %v4133, %v4125
      %v6126 = vpack.c.b16 %v4134, %v4126
      %v6127 = vpack.c.b16 %v4135, %v4127
      %v6128 = vpack.c.b16 %v4136, %v4128
      %v6129 = vpack.c.b16 %v4137, %v4129
      %v6130 = vpack.c.b16 %v4138, %v4130
      %v6131 = vpack.c.b16 %v4139, %v4131
      %v6132 = vpack.c.b16 %v4148, %v4140
      %v6133 = vpack.c.b16 %v4149, %v4141
      %v6134 = vpack.c.b16 %v4150, %v4142
      %v6135 = vpack.c.b16 %v4151, %v4143
      %v6136 = vpack.c.b16 %v4152, %v4144
      %v6137 = vpack.c.b16 %v4153, %v4145
      %v6138 = vpack.c.b16 %v4154, %v4146
      %v6139 = vpack.c.b16 %v4155, %v4147
      %v6140 = vpack.c.b16 %v4164, %v4156
      %v6141 = vpack.c.b16 %v4165, %v4157
      %v6142 = vpack.c.b16 %v4166, %v4158
      %v6143 = vpack.c.b16 %v4167, %v4159
      %v6144 = vpack.c.b16 %v4168, %v4160
      %v6145 = vpack.c.b16 %v4169, %v4161
      %v6146 = vpack.c.b16 %v4170, %v4162
      %v6147 = vpack.c.b16 %v4171, %v4163
      %v6148 = vpack.c.b16 %v4180, %v4172
      %v6149 = vpack.c.b16 %v4181, %v4173
      %v6150 = vpack.c.b16 %v4182, %v4174
      %v6151 = vpack.c.b16 %v4183, %v4175
      %v6152 = vpack.c.b16 %v4184, %v4176
      %v6153 = vpack.c.b16 %v4185, %v4177
      %v6154 = vpack.c.b16 %v4186, %v4178
      %v6155 = vpack.c.b16 %v4187, %v4179
      %v6156 = vpack.c.b16 %v4196, %v4188
      %v6157 = vpack.c.b16 %v4197, %v4189
      %v6158 = vpack.c.b16 %v4198, %v4190
      %v6159 = vpack.c.b16 %v4199, %v4191
      %v6160 = vpack.c.b16 %v4200, %v4192
      %v6161 = vpack.c.b16 %v4201, %v4193
      %v6162 = vpack.c.b16 %v4202, %v4194
      %v6163 = vpack.c.b16 %v4203, %v4195
      %v6164 = vpack.c.b16 %v4212, %v4204
      %v6165 = vpack.c.b16 %v4213, %v4205
      %v6166 = vpack.c.b16 %v4214, %v4206
      %v6167 = vpack.c.b16 %v4215, %v4207
      %v6168 = vpack.c.b16 %v4216, %v4208
      %v6169 = vpack.c.b16 %v4217, %v4209
      %v6170 = vpack.c.b16 %v4218, %v4210
      %v6171 = vpack.c.b16 %v4219, %v4211
      %v6172 = vpack.c.b16 %v4228, %v4220
      %v6173 = vpack.c.b16 %v4229, %v4221
      %v6174 = vpack.c.b16 %v4230, %v4222
      %v6175 = vpack.c.b16 %v4231, %v4223
      %v6176 = vpack.c.b16 %v4232, %v4224
      %v6177 = vpack.c.b16 %v4233, %v4225
      %v6178 = vpack.c.b16 %v4234, %v4226
      %v6179 = vpack.c.b16 %v4235, %v4227
      %v6180 = vpack.c.b16 %v4244, %v4236
      %v6181 = vpack.c.b16 %v4245, %v4237
      %v6182 = vpack.c.b16 %v4246, %v4238
      %v6183 = vpack.c.b16 %v4247, %v4239
      %v6184 = vpack.c.b16 %v4248, %v4240
      %v6185 = vpack.c.b16 %v4249, %v4241
      %v6186 = vpack.c.b16 %v4250, %v4242
      %v6187 = vpack.c.b16 %v4251, %v4243
      %v6188 = vpack.c.b16 %v4260, %v4252
      %v6189 = vpack.c.b16 %v4261, %v4253
      %v6190 = vpack.c.b16 %v4262, %v4254
      %v6191 = vpack.c.b16 %v4263, %v4255
      %v6192 = vpack.c.b16 %v4264, %v4256
      %v6193 = vpack.c.b16 %v4265, %v4257
      %v6194 = vpack.c.b16 %v4266, %v4258
      %v6195 = vpack.c.b16 %v4267, %v4259
      %v6196 = vpack.c.b16 %v4276, %v4268
      %v6197 = vpack.c.b16 %v4277, %v4269
      %v6198 = vpack.c.b16 %v4278, %v4270
      %v6199 = vpack.c.b16 %v4279, %v4271
      %v6200 = vpack.c.b16 %v4280, %v4272
      %v6201 = vpack.c.b16 %v4281, %v4273
      %v6202 = vpack.c.b16 %v4282, %v4274
      %v6203 = vpack.c.b16 %v4283, %v4275
      %v6204 = vpack.c.b16 %v4292, %v4284
      %v6205 = vpack.c.b16 %v4293, %v4285
      %v6206 = vpack.c.b16 %v4294, %v4286
      %v6207 = vpack.c.b16 %v4295, %v4287
      %v6208 = vpack.c.b16 %v4296, %v4288
      %v6209 = vpack.c.b16 %v4297, %v4289
      %v6210 = vpack.c.b16 %v4298, %v4290
      %v6211 = vpack.c.b16 %v4299, %v4291
      %v6212 = vpack.c.b16 %v4308, %v4300
      %v6213 = vpack.c.b16 %v4309, %v4301
      %v6214 = vpack.c.b16 %v4310, %v4302
      %v6215 = vpack.c.b16 %v4311, %v4303
      %v6216 = vpack.c.b16 %v4312, %v4304
      %v6217 = vpack.c.b16 %v4313, %v4305
      %v6218 = vpack.c.b16 %v4314, %v4306
      %v6219 = vpack.c.b16 %v4315, %v4307
      %v6220 = vpack.c.b16 %v4324, %v4316
      %v6221 = vpack.c.b16 %v4325, %v4317
      %v6222 = vpack.c.b16 %v4326, %v4318
      %v6223 = vpack.c.b16 %v4327, %v4319
      %v6224 = vpack.c.b16 %v4328, %v4320
      %v6225 = vpack.c.b16 %v4329, %v4321
      %v6226 = vpack.c.b16 %v4330, %v4322
      %v6227 = vpack.c.b16 %v4331, %v4323
      %v6228 = vpack.c.b16 %v4340, %v4332
      %v6229 = vpack.c.b16 %v4341, %v4333
      %v6230 = vpack.c.b16 %v4342, %v4334
      %v6231 = vpack.c.b16 %v4343, %v4335
      %v6232 = vpack.c.b16 %v4344, %v4336
      %v6233 = vpack.c.b16 %v4345, %v4337
      %v6234 = vpack.c.b16 %v4346, %v4338
      %v6235 = vpack.c.b16 %v4347, %v4339
      %v6236 = vpack.c.b16 %v4356, %v4348
      %v6237 = vpack.c.b16 %v4357, %v4349
      %v6238 = vpack.c.b16 %v4358, %v4350
      %v6239 = vpack.c.b16 %v4359, %v4351
      %v6240 = vpack.c.b16 %v4360, %v4352
      %v6241 = vpack.c.b16 %v4361, %v4353
      %v6242 = vpack.c.b16 %v4362, %v4354
      %v6243 = vpack.c.b16 %v4363, %v4355
      %v6244 = vpack.c.b16 %v4372, %v4364
      %v6245 = vpack.c.b16 %v4373, %v4365
      %v6246 = vpack.c.b16 %v4374, %v4366
      %v6247 = vpack.c.b16 %v4375, %v4367
      %v6248 = vpack.c.b16 %v4376, %v4368
      %v6249 = vpack.c.b16 %v4377, %v4369
      %v6250 = vpack.c.b16 %v4378, %v4370
      %v6251 = vpack.c.b16 %v4379, %v4371
      %v6252 = vpack.c.b16 %v4388, %v4380
      %v6253 = vpack.c.b16 %v4389, %v4381
      %v6254 = vpack.c.b16 %v4390, %v4382
      %v6255 = vpack.c.b16 %v4391, %v4383
      %v6256 = vpack.c.b16 %v4392, %v4384
      %v6257 = vpack.c.b16 %v4393, %v4385
      %v6258 = vpack.c.b16 %v4394, %v4386
      %v6259 = vpack.c.b16 %v4395, %v4387
      %v6260 = vpack.c.b16 %v4404, %v4396
      %v6261 = vpack.c.b16 %v4405, %v4397
      %v6262 = vpack.c.b16 %v4406, %v4398
      %v6263 = vpack.c.b16 %v4407, %v4399
      %v6264 = vpack.c.b16 %v4408, %v4400
      %v6265 = vpack.c.b16 %v4409, %v4401
      %v6266 = vpack.c.b16 %v4410, %v4402
      %v6267 = vpack.c.b16 %v4411, %v4403
      %v6268 = vpack.c.b16 %v4420, %v4412
      %v6269 = vpack.c.b16 %v4421, %v4413
      %v6270 = vpack.c.b16 %v4422, %v4414
      %v6271 = vpack.c.b16 %v4423, %v4415
      %v6272 = vpack.c.b16 %v4424, %v4416
      %v6273 = vpack.c.b16 %v4425, %v4417
      %v6274 = vpack.c.b16 %v4426, %v4418
      %v6275 = vpack.c.b16 %v4427, %v4419
      %v6276 = vpack.c.b16 %v4436, %v4428
      %v6277 = vpack.c.b16 %v4437, %v4429
      %v6278 = vpack.c.b16 %v4438, %v4430
      %v6279 = vpack.c.b16 %v4439, %v4431
      %v6280 = vpack.c.b16 %v4440, %v4432
      %v6281 = vpack.c.b16 %v4441, %v4433
      %v6282 = vpack.c.b16 %v4442, %v4434
      %v6283 = vpack.c.b16 %v4443, %v4435
      %v6284 = vpack.c.b16 %v4452, %v4444
      %v6285 = vpack.c.b16 %v4453, %v4445
      %v6286 = vpack.c.b16 %v4454, %v4446
      %v6287 = vpack.c.b16 %v4455, %v4447
      %v6288 = vpack.c.b16 %v4456, %v4448
      %v6289 = vpack.c.b16 %v4457, %v4449
      %v6290 = vpack.c.b16 %v4458, %v4450
      %v6291 = vpack.c.b16 %v4459, %v4451
      %v6292 = vpack.c.b16 %v4468, %v4460
      %v6293 = vpack.c.b16 %v4469, %v4461
      %v6294 = vpack.c.b16 %v4470, %v4462
      %v6295 = vpack.c.b16 %v4471, %v4463
      %v6296 = vpack.c.b16 %v4472, %v4464
      %v6297 = vpack.c.b16 %v4473, %v4465
      %v6298 = vpack.c.b16 %v4474, %v4466
      %v6299 = vpack.c.b16 %v4475, %v4467
      %v6300 = vpack.c.b16 %v4484, %v4476
      %v6301 = vpack.c.b16 %v4485, %v4477
      %v6302 = vpack.c.b16 %v4486, %v4478
      %v6303 = vpack.c.b16 %v4487, %v4479
      %v6304 = vpack.c.b16 %v4488, %v4480
      %v6305 = vpack.c.b16 %v4489, %v4481
      %v6306 = vpack.c.b16 %v4490, %v4482
      %v6307 = vpack.c.b16 %v4491, %v4483
      %v6308 = vpack.c.b16 %v4500, %v4492
      %v6309 = vpack.c.b16 %v4501, %v4493
      %v6310 = vpack.c.b16 %v4502, %v4494
      %v6311 = vpack.c.b16 %v4503, %v4495
      %v6312 = vpack.c.b16 %v4504, %v4496
      %v6313 = vpack.c.b16 %v4505, %v4497
      %v6314 = vpack.c.b16 %v4506, %v4498
      %v6315 = vpack.c.b16 %v4507, %v4499
      %v6316 = vpack.c.b16 %v4516, %v4508
      %v6317 = vpack.c.b16 %v4517, %v4509
      %v6318 = vpack.c.b16 %v4518, %v4510
      %v6319 = vpack.c.b16 %v4519, %v4511
      %v6320 = vpack.c.b16 %v4520, %v4512
      %v6321 = vpack.c.b16 %v4521, %v4513
      %v6322 = vpack.c.b16 %v4522, %v4514
      %v6323 = vpack.c.b16 %v4523, %v4515
      %v6324 = vpack.c.b16 %v4532, %v4524
      %v6325 = vpack.c.b16 %v4533, %v4525
      %v6326 = vpack.c.b16 %v4534, %v4526
      %v6327 = vpack.c.b16 %v4535, %v4527
      %v6328 = vpack.c.b16 %v4536, %v4528
      %v6329 = vpack.c.b16 %v4537, %v4529
      %v6330 = vpack.c.b16 %v4538, %v4530
      %v6331 = vpack.c.b16 %v4539, %v4531
      %v6332 = vpack.c.b16 %v4548, %v4540
      %v6333 = vpack.c.b16 %v4549, %v4541
      %v6334 = vpack.c.b16 %v4550, %v4542
      %v6335 = vpack.c.b16 %v4551, %v4543
      %v6336 = vpack.c.b16 %v4552, %v4544
      %v6337 = vpack.c.b16 %v4553, %v4545
      %v6338 = vpack.c.b16 %v4554, %v4546
      %v6339 = vpack.c.b16 %v4555, %v4547
      %v6340 = vpack.c.b16 %v4564, %v4556
      %v6341 = vpack.c.b16 %v4565, %v4557
      %v6342 = vpack.c.b16 %v4566, %v4558
      %v6343 = vpack.c.b16 %v4567, %v4559
      %v6344 = vpack.c.b16 %v4568, %v4560
      %v6345 = vpack.c.b16 %v4569, %v4561
      %v6346 = vpack.c.b16 %v4570, %v4562
      %v6347 = vpack.c.b16 %v4571, %v4563
      %v6348 = vpack.c.b16 %v4580, %v4572
      %v6349 = vpack.c.b16 %v4581, %v4573
      %v6350 = vpack.c.b16 %v4582, %v4574
      %v6351 = vpack.c.b16 %v4583, %v4575
      %v6352 = vpack.c.b16 %v4584, %v4576
      %v6353 = vpack.c.b16 %v4585, %v4577
      %v6354 = vpack.c.b16 %v4586, %v4578
      %v6355 = vpack.c.b16 %v4587, %v4579
      %v6356 = vpack.c.b16 %v4596, %v4588
      %v6357 = vpack.c.b16 %v4597, %v4589
      %v6358 = vpack.c.b16 %v4598, %v4590
      %v6359 = vpack.c.b16 %v4599, %v4591
      %v6360 = vpack.c.b16 %v4600, %v4592
      %v6361 = vpack.c.b16 %v4601, %v4593
      %v6362 = vpack.c.b16 %v4602, %v4594
      %v6363 = vpack.c.b16 %v4603, %v4595
      %v6364 = vpack.c.b16 %v4612, %v4604
      %v6365 = vpack.c.b16 %v4613, %v4605
      %v6366 = vpack.c.b16 %v4614, %v4606
      %v6367 = vpack.c.b16 %v4615, %v4607
      %v6368 = vpack.c.b16 %v4616, %v4608
      %v6369 = vpack.c.b16 %v4617, %v4609
      %v6370 = vpack.c.b16 %v4618, %v4610
      %v6371 = vpack.c.b16 %v4619, %v4611
      %v6372 = vpack.c.b16 %v4628, %v4620
      %v6373 = vpack.c.b16 %v4629, %v4621
      %v6374 = vpack.c.b16 %v4630, %v4622
      %v6375 = vpack.c.b16 %v4631, %v4623
      %v6376 = vpack.c.b16 %v4632, %v4624
      %v6377 = vpack.c.b16 %v4633, %v4625
      %v6378 = vpack.c.b16 %v4634, %v4626
      %v6379 = vpack.c.b16 %v4635, %v4627
      %v6380 = vpack.c.b16 %v4644, %v4636
      %v6381 = vpack.c.b16 %v4645, %v4637
      %v6382 = vpack.c.b16 %v4646, %v4638
      %v6383 = vpack.c.b16 %v4647, %v4639
      %v6384 = vpack.c.b16 %v4648, %v4640
      %v6385 = vpack.c.b16 %v4649, %v4641
      %v6386 = vpack.c.b16 %v4650, %v4642
      %v6387 = vpack.c.b16 %v4651, %v4643
      %v6388 = vpack.c.b16 %v4660, %v4652
      %v6389 = vpack.c.b16 %v4661, %v4653
      %v6390 = vpack.c.b16 %v4662, %v4654
      %v6391 = vpack.c.b16 %v4663, %v4655
      %v6392 = vpack.c.b16 %v4664, %v4656
      %v6393 = vpack.c.b16 %v4665, %v4657
      %v6394 = vpack.c.b16 %v4666, %v4658
      %v6395 = vpack.c.b16 %v4667, %v4659
      %v6396 = vpack.c.b16 %v4676, %v4668
      %v6397 = vpack.c.b16 %v4677, %v4669
      %v6398 = vpack.c.b16 %v4678, %v4670
      %v6399 = vpack.c.b16 %v4679, %v4671
      %v6400 = vpack.c.b16 %v4680, %v4672
      %v6401 = vpack.c.b16 %v4681, %v4673
      %v6402 = vpack.c.b16 %v4682, %v4674
      %v6403 = vpack.c.b16 %v4683, %v4675
      %v6404 = vpack.c.b16 %v4692, %v4684
      %v6405 = vpack.c.b16 %v4693, %v4685
      %v6406 = vpack.c.b16 %v4694, %v4686
      %v6407 = vpack.c.b16 %v4695, %v4687
      %v6408 = vpack.c.b16 %v4696, %v4688
      %v6409 = vpack.c.b16 %v4697, %v4689
      %v6410 = vpack.c.b16 %v4698, %v4690
      %v6411 = vpack.c.b16 %v4699, %v4691
      %v6412 = vpack.c.b16 %v4708, %v4700
      %v6413 = vpack.c.b16 %v4709, %v4701
      %v6414 = vpack.c.b16 %v4710, %v4702
      %v6415 = vpack.c.b16 %v4711, %v4703
      %v6416 = vpack.c.b16 %v4712, %v4704
      %v6417 = vpack.c.b16 %v4713, %v4705
      %v6418 = vpack.c.b16 %v4714, %v4706
      %v6419 = vpack.c.b16 %v4715, %v4707
      %v6420 = vpack.c.b16 %v4724, %v4716
      %v6421 = vpack.c.b16 %v4725, %v4717
      %v6422 = vpack.c.b16 %v4726, %v4718
      %v6423 = vpack.c.b16 %v4727, %v4719
      %v6424 = vpack.c.b16 %v4728, %v4720
      %v6425 = vpack.c.b16 %v4729, %v4721
      %v6426 = vpack.c.b16 %v4730, %v4722
      %v6427 = vpack.c.b16 %v4731, %v4723
      %v6428 = vpack.c.b16 %v4740, %v4732
      %v6429 = vpack.c.b16 %v4741, %v4733
      %v6430 = vpack.c.b16 %v4742, %v4734
      %v6431 = vpack.c.b16 %v4743, %v4735
      %v6432 = vpack.c.b16 %v4744, %v4736
      %v6433 = vpack.c.b16 %v4745, %v4737
      %v6434 = vpack.c.b16 %v4746, %v4738
      %v6435 = vpack.c.b16 %v4747, %v4739
      %v6436 = vpack.c.b16 %v4756, %v4748
      %v6437 = vpack.c.b16 %v4757, %v4749
      %v6438 = vpack.c.b16 %v4758, %v4750
      %v6439 = vpack.c.b16 %v4759, %v4751
      %v6440 = vpack.c.b16 %v4760, %v4752
      %v6441 = vpack.c.b16 %v4761, %v4753
      %v6442 = vpack.c.b16 %v4762, %v4754
      %v6443 = vpack.c.b16 %v4763, %v4755
      %v6444 = vpack.c.b16 %v4772, %v4764
      %v6445 = vpack.c.b16 %v4773, %v4765
      %v6446 = vpack.c.b16 %v4774, %v4766
      %v6447 = vpack.c.b16 %v4775, %v4767
      %v6448 = vpack.c.b16 %v4776, %v4768
      %v6449 = vpack.c.b16 %v4777, %v4769
      %v6450 = vpack.c.b16 %v4778, %v4770
      %v6451 = vpack.c.b16 %v4779, %v4771
      %v6452 = vpack.c.b16 %v4788, %v4780
      %v6453 = vpack.c.b16 %v4789, %v4781
      %v6454 = vpack.c.b16 %v4790, %v4782
      %v6455 = vpack.c.b16 %v4791, %v4783
      %v6456 = vpack.c.b16 %v4792, %v4784
      %v6457 = vpack.c.b16 %v4793, %v4785
      %v6458 = vpack.c.b16 %v4794, %v4786
      %v6459 = vpack.c.b16 %v4795, %v4787
      %v6460 = vpack.c.b16 %v4804, %v4796
      %v6461 = vpack.c.b16 %v4805, %v4797
      %v6462 = vpack.c.b16 %v4806, %v4798
      %v6463 = vpack.c.b16 %v4807, %v4799
      %v6464 = vpack.c.b16 %v4808, %v4800
      %v6465 = vpack.c.b16 %v4809, %v4801
      %v6466 = vpack.c.b16 %v4810, %v4802
      %v6467 = vpack.c.b16 %v4811, %v4803
      %v6468 = vpack.c.b16 %v4820, %v4812
      %v6469 = vpack.c.b16 %v4821, %v4813
      %v6470 = vpack.c.b16 %v4822, %v4814
      %v6471 = vpack.c.b16 %v4823, %v4815
      %v6472 = vpack.c.b16 %v4824, %v4816
      %v6473 = vpack.c.b16 %v4825, %v4817
      %v6474 = vpack.c.b16 %v4826, %v4818
      %v6475 = vpack.c.b16 %v4827, %v4819
      %v6476 = vpack.c.b16 %v4836, %v4828
      %v6477 = vpack.c.b16 %v4837, %v4829
      %v6478 = vpack.c.b16 %v4838, %v4830
      %v6479 = vpack.c.b16 %v4839, %v4831
      %v6480 = vpack.c.b16 %v4840, %v4832
      %v6481 = vpack.c.b16 %v4841, %v4833
      %v6482 = vpack.c.b16 %v4842, %v4834
      %v6483 = vpack.c.b16 %v4843, %v4835
      %v6484 = vpack.c.b16 %v4852, %v4844
      %v6485 = vpack.c.b16 %v4853, %v4845
      %v6486 = vpack.c.b16 %v4854, %v4846
      %v6487 = vpack.c.b16 %v4855, %v4847
      %v6488 = vpack.c.b16 %v4856, %v4848
      %v6489 = vpack.c.b16 %v4857, %v4849
      %v6490 = vpack.c.b16 %v4858, %v4850
      %v6491 = vpack.c.b16 %v4859, %v4851
      %v6492 = vpack.c.b16 %v4868, %v4860
      %v6493 = vpack.c.b16 %v4869, %v4861
      %v6494 = vpack.c.b16 %v4870, %v4862
      %v6495 = vpack.c.b16 %v4871, %v4863
      %v6496 = vpack.c.b16 %v4872, %v4864
      %v6497 = vpack.c.b16 %v4873, %v4865
      %v6498 = vpack.c.b16 %v4874, %v4866
      %v6499 = vpack.c.b16 %v4875, %v4867
      %v6500 = vpack.c.b16 %v4884, %v4876
      %v6501 = vpack.c.b16 %v4885, %v4877
      %v6502 = vpack.c.b16 %v4886, %v4878
      %v6503 = vpack.c.b16 %v4887, %v4879
      %v6504 = vpack.c.b16 %v4888, %v4880
      %v6505 = vpack.c.b16 %v4889, %v4881
      %v6506 = vpack.c.b16 %v4890, %v4882
      %v6507 = vpack.c.b16 %v4891, %v4883
      %v6508 = vpack.c.b16 %v4900, %v4892
      %v6509 = vpack.c.b16 %v4901, %v4893
      %v6510 = vpack.c.b16 %v4902, %v4894
      %v6511 = vpack.c.b16 %v4903, %v4895
      %v6512 = vpack.c.b16 %v4904, %v4896
      %v6513 = vpack.c.b16 %v4905, %v4897
      %v6514 = vpack.c.b16 %v4906, %v4898
      %v6515 = vpack.c.b16 %v4907, %v4899
      %v6516 = vpack.c.b16 %v4916, %v4908
      %v6517 = vpack.c.b16 %v4917, %v4909
      %v6518 = vpack.c.b16 %v4918, %v4910
      %v6519 = vpack.c.b16 %v4919, %v4911
      %v6520 = vpack.c.b16 %v4920, %v4912
      %v6521 = vpack.c.b16 %v4921, %v4913
      %v6522 = vpack.c.b16 %v4922, %v4914
      %v6523 = vpack.c.b16 %v4923, %v4915
      %v6524 = vpack.c.b16 %v4932, %v4924
      %v6525 = vpack.c.b16 %v4933, %v4925
      %v6526 = vpack.c.b16 %v4934, %v4926
      %v6527 = vpack.c.b16 %v4935, %v4927
      %v6528 = vpack.c.b16 %v4936, %v4928
      %v6529 = vpack.c.b16 %v4937, %v4929
      %v6530 = vpack.c.b16 %v4938, %v4930
      %v6531 = vpack.c.b16 %v4939, %v4931
      %v6532 = vpack.c.b16 %v4948, %v4940
      %v6533 = vpack.c.b16 %v4949, %v4941
      %v6534 = vpack.c.b16 %v4950, %v4942
      %v6535 = vpack.c.b16 %v4951, %v4943
      %v6536 = vpack.c.b16 %v4952, %v4944
      %v6537 = vpack.c.b16 %v4953, %v4945
      %v6538 = vpack.c.b16 %v4954, %v4946
      %v6539 = vpack.c.b16 %v4955, %v4947
      %v6540 = vpack.c.b16 %v4964, %v4956
      %v6541 = vpack.c.b16 %v4965, %v4957
      %v6542 = vpack.c.b16 %v4966, %v4958
      %v6543 = vpack.c.b16 %v4967, %v4959
      %v6544 = vpack.c.b16 %v4968, %v4960
      %v6545 = vpack.c.b16 %v4969, %v4961
      %v6546 = vpack.c.b16 %v4970, %v4962
      %v6547 = vpack.c.b16 %v4971, %v4963
      %v6548 = vpack.c.b16 %v4980, %v4972
      %v6549 = vpack.c.b16 %v4981, %v4973
      %v6550 = vpack.c.b16 %v4982, %v4974
      %v6551 = vpack.c.b16 %v4983, %v4975
      %v6552 = vpack.c.b16 %v4984, %v4976
      %v6553 = vpack.c.b16 %v4985, %v4977
      %v6554 = vpack.c.b16 %v4986, %v4978
      %v6555 = vpack.c.b16 %v4987, %v4979
      %v6556 = vpack.c.b16 %v4996, %v4988
      %v6557 = vpack.c.b16 %v4997, %v4989
      %v6558 = vpack.c.b16 %v4998, %v4990
      %v6559 = vpack.c.b16 %v4999, %v4991
      %v6560 = vpack.c.b16 %v5000, %v4992
      %v6561 = vpack.c.b16 %v5001, %v4993
      %v6562 = vpack.c.b16 %v5002, %v4994
      %v6563 = vpack.c.b16 %v5003, %v4995
      %v6564 = vpack.c.b16 %v5012, %v5004
      %v6565 = vpack.c.b16 %v5013, %v5005
      %v6566 = vpack.c.b16 %v5014, %v5006
      %v6567 = vpack.c.b16 %v5015, %v5007
      %v6568 = vpack.c.b16 %v5016, %v5008
      %v6569 = vpack.c.b16 %v5017, %v5009
      %v6570 = vpack.c.b16 %v5018, %v5010
      %v6571 = vpack.c.b16 %v5019, %v5011
      %v6572 = vpack.c.b16 %v5028, %v5020
      %v6573 = vpack.c.b16 %v5029, %v5021
      %v6574 = vpack.c.b16 %v5030, %v5022
      %v6575 = vpack.c.b16 %v5031, %v5023
      %v6576 = vpack.c.b16 %v5032, %v5024
      %v6577 = vpack.c.b16 %v5033, %v5025
      %v6578 = vpack.c.b16 %v5034, %v5026
      %v6579 = vpack.c.b16 %v5035, %v5027
      %v6580 = vpack.c.b16 %v5044, %v5036
      %v6581 = vpack.c.b16 %v5045, %v5037
      %v6582 = vpack.c.b16 %v5046, %v5038
      %v6583 = vpack.c.b16 %v5047, %v5039
      %v6584 = vpack.c.b16 %v5048, %v5040
      %v6585 = vpack.c.b16 %v5049, %v5041
      %v6586 = vpack.c.b16 %v5050, %v5042
      %v6587 = vpack.c.b16 %v5051, %v5043
      %v6588 = vpack.c.b16 %v5060, %v5052
      %v6589 = vpack.c.b16 %v5061, %v5053
      %v6590 = vpack.c.b16 %v5062, %v5054
      %v6591 = vpack.c.b16 %v5063, %v5055
      %v6592 = vpack.c.b16 %v5064, %v5056
      %v6593 = vpack.c.b16 %v5065, %v5057
      %v6594 = vpack.c.b16 %v5066, %v5058
      %v6595 = vpack.c.b16 %v5067, %v5059
      %v6596 = vpack.c.b16 %v5076, %v5068
      %v6597 = vpack.c.b16 %v5077, %v5069
      %v6598 = vpack.c.b16 %v5078, %v5070
      %v6599 = vpack.c.b16 %v5079, %v5071
      %v6600 = vpack.c.b16 %v5080, %v5072
      %v6601 = vpack.c.b16 %v5081, %v5073
      %v6602 = vpack.c.b16 %v5082, %v5074
      %v6603 = vpack.c.b16 %v5083, %v5075
      %v6604 = vpack.c.b16 %v5092, %v5084
      %v6605 = vpack.c.b16 %v5093, %v5085
      %v6606 = vpack.c.b16 %v5094, %v5086
      %v6607 = vpack.c.b16 %v5095, %v5087
      %v6608 = vpack.c.b16 %v5096, %v5088
      %v6609 = vpack.c.b16 %v5097, %v5089
      %v6610 = vpack.c.b16 %v5098, %v5090
      %v6611 = vpack.c.b16 %v5099, %v5091
      %v6612 = vpack.c.b16 %v5108, %v5100
      %v6613 = vpack.c.b16 %v5109, %v5101
      %v6614 = vpack.c.b16 %v5110, %v5102
      %v6615 = vpack.c.b16 %v5111, %v5103
      %v6616 = vpack.c.b16 %v5112, %v5104
      %v6617 = vpack.c.b16 %v5113, %v5105
      %v6618 = vpack.c.b16 %v5114, %v5106
      %v6619 = vpack.c.b16 %v5115, %v5107
      %v6620 = vpack.c.b16 %v5124, %v5116
      %v6621 = vpack.c.b16 %v5125, %v5117
      %v6622 = vpack.c.b16 %v5126, %v5118
      %v6623 = vpack.c.b16 %v5127, %v5119
      %v6624 = vpack.c.b16 %v5128, %v5120
      %v6625 = vpack.c.b16 %v5129, %v5121
      %v6626 = vpack.c.b16 %v5130, %v5122
      %v6627 = vpack.c.b16 %v5131, %v5123
      %v6628 = vpack.c.b16 %v5140, %v5132
      %v6629 = vpack.c.b16 %v5141, %v5133
      %v6630 = vpack.c.b16 %v5142, %v5134
      %v6631 = vpack.c.b16 %v5143, %v5135
      %v6632 = vpack.c.b16 %v5144, %v5136
      %v6633 = vpack.c.b16 %v5145, %v5137
      %v6634 = vpack.c.b16 %v5146, %v5138
      %v6635 = vpack.c.b16 %v5147, %v5139
      %v6636 = vpack.c.b16 %v5156, %v5148
      %v6637 = vpack.c.b16 %v5157, %v5149
      %v6638 = vpack.c.b16 %v5158, %v5150
      %v6639 = vpack.c.b16 %v5159, %v5151
      %v6640 = vpack.c.b16 %v5160, %v5152
      %v6641 = vpack.c.b16 %v5161, %v5153
      %v6642 = vpack.c.b16 %v5162, %v5154
      %v6643 = vpack.c.b16 %v5163, %v5155
      %v6644 = vpack.c.b16 %v5172, %v5164
      %v6645 = vpack.c.b16 %v5173, %v5165
      %v6646 = vpack.c.b16 %v5174, %v5166
      %v6647 = vpack.c.b16 %v5175, %v5167
      %v6648 = vpack.c.b16 %v5176, %v5168
      %v6649 = vpack.c.b16 %v5177, %v5169
      %v6650 = vpack.c.b16 %v5178, %v5170
      %v6651 = vpack.c.b16 %v5179, %v5171
      %v6652 = vpack.c.b16 %v5188, %v5180
      %v6653 = vpack.c.b16 %v5189, %v5181
      %v6654 = vpack.c.b16 %v5190, %v5182
      %v6655 = vpack.c.b16 %v5191, %v5183
      %v6656 = vpack.c.b16 %v5192, %v5184
      %v6657 = vpack.c.b16 %v5193, %v5185
      %v6658 = vpack.c.b16 %v5194, %v5186
      %v6659 = vpack.c.b16 %v5195, %v5187
      %v6660 = vpack.c.b16 %v5204, %v5196
      %v6661 = vpack.c.b16 %v5205, %v5197
      %v6662 = vpack.c.b16 %v5206, %v5198
      %v6663 = vpack.c.b16 %v5207, %v5199
      %v6664 = vpack.c.b16 %v5208, %v5200
      %v6665 = vpack.c.b16 %v5209, %v5201
      %v6666 = vpack.c.b16 %v5210, %v5202
      %v6667 = vpack.c.b16 %v5211, %v5203
      %v6668 = vpack.c.b16 %v5220, %v5212
      %v6669 = vpack.c.b16 %v5221, %v5213
      %v6670 = vpack.c.b16 %v5222, %v5214
      %v6671 = vpack.c.b16 %v5223, %v5215
      %v6672 = vpack.c.b16 %v5224, %v5216
      %v6673 = vpack.c.b16 %v5225, %v5217
      %v6674 = vpack.c.b16 %v5226, %v5218
      %v6675 = vpack.c.b16 %v5227, %v5219
      %v6676 = vpack.c.b16 %v5236, %v5228
      %v6677 = vpack.c.b16 %v5237, %v5229
      %v6678 = vpack.c.b16 %v5238, %v5230
      %v6679 = vpack.c.b16 %v5239, %v5231
      %v6680 = vpack.c.b16 %v5240, %v5232
      %v6681 = vpack.c.b16 %v5241, %v5233
      %v6682 = vpack.c.b16 %v5242, %v5234
      %v6683 = vpack.c.b16 %v5243, %v5235
      %v6684 = vpack.c.b16 %v5252, %v5244
      %v6685 = vpack.c.b16 %v5253, %v5245
      %v6686 = vpack.c.b16 %v5254, %v5246
      %v6687 = vpack.c.b16 %v5255, %v5247
      %v6688 = vpack.c.b16 %v5256, %v5248
      %v6689 = vpack.c.b16 %v5257, %v5249
      %v6690 = vpack.c.b16 %v5258, %v5250
      %v6691 = vpack.c.b16 %v5259, %v5251
      %v6692 = vpack.c.b16 %v5268, %v5260
      %v6693 = vpack.c.b16 %v5269, %v5261
      %v6694 = vpack.c.b16 %v5270, %v5262
      %v6695 = vpack.c.b16 %v5271, %v5263
      %v6696 = vpack.c.b16 %v5272, %v5264
      %v6697 = vpack.c.b16 %v5273, %v5265
      %v6698 = vpack.c.b16 %v5274, %v5266
      %v6699 = vpack.c.b16 %v5275, %v5267
      %v6700 = vpack.c.b16 %v5284, %v5276
      %v6701 = vpack.c.b16 %v5285, %v5277
      %v6702 = vpack.c.b16 %v5286, %v5278
      %v6703 = vpack.c.b16 %v5287, %v5279
      %v6704 = vpack.c.b16 %v5288, %v5280
      %v6705 = vpack.c.b16 %v5289, %v5281
      %v6706 = vpack.c.b16 %v5290, %v5282
      %v6707 = vpack.c.b16 %v5291, %v5283
      %v6708 = vpack.c.b16 %v5300, %v5292
      %v6709 = vpack.c.b16 %v5301, %v5293
      %v6710 = vpack.c.b16 %v5302, %v5294
      %v6711 = vpack.c.b16 %v5303, %v5295
      %v6712 = vpack.c.b16 %v5304, %v5296
      %v6713 = vpack.c.b16 %v5305, %v5297
      %v6714 = vpack.c.b16 %v5306, %v5298
      %v6715 = vpack.c.b16 %v5307, %v5299
      %v6716 = vpack.c.b16 %v5316, %v5308
      %v6717 = vpack.c.b16 %v5317, %v5309
      %v6718 = vpack.c.b16 %v5318, %v5310
      %v6719 = vpack.c.b16 %v5319, %v5311
      %v6720 = vpack.c.b16 %v5320, %v5312
      %v6721 = vpack.c.b16 %v5321, %v5313
      %v6722 = vpack.c.b16 %v5322, %v5314
      %v6723 = vpack.c.b16 %v5323, %v5315
      %v6724 = vpack.c.b16 %v5332, %v5324
      %v6725 = vpack.c.b16 %v5333, %v5325
      %v6726 = vpack.c.b16 %v5334, %v5326
      %v6727 = vpack.c.b16 %v5335, %v5327
      %v6728 = vpack.c.b16 %v5336, %v5328
      %v6729 = vpack.c.b16 %v5337, %v5329
      %v6730 = vpack.c.b16 %v5338, %v5330
      %v6731 = vpack.c.b16 %v5339, %v5331
      %v6732 = vpack.c.b16 %v5348, %v5340
      %v6733 = vpack.c.b16 %v5349, %v5341
      %v6734 = vpack.c.b16 %v5350, %v5342
      %v6735 = vpack.c.b16 %v5351, %v5343
      %v6736 = vpack.c.b16 %v5352, %v5344
      %v6737 = vpack.c.b16 %v5353, %v5345
      %v6738 = vpack.c.b16 %v5354, %v5346
      %v6739 = vpack.c.b16 %v5355, %v5347
      %v6740 = vpack.c.b16 %v5364, %v5356
      %v6741 = vpack.c.b16 %v5365, %v5357
      %v6742 = vpack.c.b16 %v5366, %v5358
      %v6743 = vpack.c.b16 %v5367, %v5359
      %v6744 = vpack.c.b16 %v5368, %v5360
      %v6745 = vpack.c.b16 %v5369, %v5361
      %v6746 = vpack.c.b16 %v5370, %v5362
      %v6747 = vpack.c.b16 %v5371, %v5363
      %v6748 = vpack.c.b16 %v5380, %v5372
      %v6749 = vpack.c.b16 %v5381, %v5373
      %v6750 = vpack.c.b16 %v5382, %v5374
      %v6751 = vpack.c.b16 %v5383, %v5375
      %v6752 = vpack.c.b16 %v5384, %v5376
      %v6753 = vpack.c.b16 %v5385, %v5377
      %v6754 = vpack.c.b16 %v5386, %v5378
      %v6755 = vpack.c.b16 %v5387, %v5379
      %v6756 = vpack.c.b16 %v5396, %v5388
      %v6757 = vpack.c.b16 %v5397, %v5389
      %v6758 = vpack.c.b16 %v5398, %v5390
      %v6759 = vpack.c.b16 %v5399, %v5391
      %v6760 = vpack.c.b16 %v5400, %v5392
      %v6761 = vpack.c.b16 %v5401, %v5393
      %v6762 = vpack.c.b16 %v5402, %v5394
      %v6763 = vpack.c.b16 %v5403, %v5395
      %v6764 = vpack.c.b16 %v5412, %v5404
      %v6765 = vpack.c.b16 %v5413, %v5405
      %v6766 = vpack.c.b16 %v5414, %v5406
      %v6767 = vpack.c.b16 %v5415, %v5407
      %v6768 = vpack.c.b16 %v5416, %v5408
      %v6769 = vpack.c.b16 %v5417, %v5409
      %v6770 = vpack.c.b16 %v5418, %v5410
      %v6771 = vpack.c.b16 %v5419, %v5411
      %v6772 = vpack.c.b16 %v5428, %v5420
      %v6773 = vpack.c.b16 %v5429, %v5421
      %v6774 = vpack.c.b16 %v5430, %v5422
      %v6775 = vpack.c.b16 %v5431, %v5423
      %v6776 = vpack.c.b16 %v5432, %v5424
      %v6777 = vpack.c.b16 %v5433, %v5425
      %v6778 = vpack.c.b16 %v5434, %v5426
      %v6779 = vpack.c.b16 %v5435, %v5427
      %v6780 = vpack.c.b16 %v5444, %v5436
      %v6781 = vpack.c.b16 %v5445, %v5437
      %v6782 = vpack.c.b16 %v5446, %v5438
      %v6783 = vpack.c.b16 %v5447, %v5439
      %v6784 = vpack.c.b16 %v5448, %v5440
      %v6785 = vpack.c.b16 %v5449, %v5441
      %v6786 = vpack.c.b16 %v5450, %v5442
      %v6787 = vpack.c.b16 %v5451, %v5443
      %v6788 = vpack.c.b16 %v5460, %v5452
      %v6789 = vpack.c.b16 %v5461, %v5453
      %v6790 = vpack.c.b16 %v5462, %v5454
      %v6791 = vpack.c.b16 %v5463, %v5455
      %v6792 = vpack.c.b16 %v5464, %v5456
      %v6793 = vpack.c.b16 %v5465, %v5457
      %v6794 = vpack.c.b16 %v5466, %v5458
      %v6795 = vpack.c.b16 %v5467, %v5459
      %v6796 = vpack.c.b16 %v5476, %v5468
      %v6797 = vpack.c.b16 %v5477, %v5469
      %v6798 = vpack.c.b16 %v5478, %v5470
      %v6799 = vpack.c.b16 %v5479, %v5471
      %v6800 = vpack.c.b16 %v5480, %v5472
      %v6801 = vpack.c.b16 %v5481, %v5473
      %v6802 = vpack.c.b16 %v5482, %v5474
      %v6803 = vpack.c.b16 %v5483, %v5475
      %v6804 = vpack.c.b16 %v5492, %v5484
      %v6805 = vpack.c.b16 %v5493, %v5485
      %v6806 = vpack.c.b16 %v5494, %v5486
      %v6807 = vpack.c.b16 %v5495, %v5487
      %v6808 = vpack.c.b16 %v5496, %v5488
      %v6809 = vpack.c.b16 %v5497, %v5489
      %v6810 = vpack.c.b16 %v5498, %v5490
      %v6811 = vpack.c.b16 %v5499, %v5491
      %v6812 = vpack.c.b16 %v5508, %v5500
      %v6813 = vpack.c.b16 %v5509, %v5501
      %v6814 = vpack.c.b16 %v5510, %v5502
      %v6815 = vpack.c.b16 %v5511, %v5503
      %v6816 = vpack.c.b16 %v5512, %v5504
      %v6817 = vpack.c.b16 %v5513, %v5505
      %v6818 = vpack.c.b16 %v5514, %v5506
      %v6819 = vpack.c.b16 %v5515, %v5507
      %v6820 = vpack.c.b16 %v5524, %v5516
      %v6821 = vpack.c.b16 %v5525, %v5517
      %v6822 = vpack.c.b16 %v5526, %v5518
      %v6823 = vpack.c.b16 %v5527, %v5519
      %v6824 = vpack.c.b16 %v5528, %v5520
      %v6825 = vpack.c.b16 %v5529, %v5521
      %v6826 = vpack.c.b16 %v5530, %v5522
      %v6827 = vpack.c.b16 %v5531, %v5523
      %v6828 = vpack.c.b16 %v5540, %v5532
      %v6829 = vpack.c.b16 %v5541, %v5533
      %v6830 = vpack.c.b16 %v5542, %v5534
      %v6831 = vpack.c.b16 %v5543, %v5535
      %v6832 = vpack.c.b16 %v5544, %v5536
      %v6833 = vpack.c.b16 %v5545, %v5537
      %v6834 = vpack.c.b16 %v5546, %v5538
      %v6835 = vpack.c.b16 %v5547, %v5539
      %v6836 = vpack.c.b16 %v5556, %v5548
      %v6837 = vpack.c.b16 %v5557, %v5549
      %v6838 = vpack.c.b16 %v5558, %v5550
      %v6839 = vpack.c.b16 %v5559, %v5551
      %v6840 = vpack.c.b16 %v5560, %v5552
      %v6841 = vpack.c.b16 %v5561, %v5553
      %v6842 = vpack.c.b16 %v5562, %v5554
      %v6843 = vpack.c.b16 %v5563, %v5555
      %v6844 = vpack.c.b16 %v5572, %v5564
      %v6845 = vpack.c.b16 %v5573, %v5565
      %v6846 = vpack.c.b16 %v5574, %v5566
      %v6847 = vpack.c.b16 %v5575, %v5567
      %v6848 = vpack.c.b16 %v5576, %v5568
      %v6849 = vpack.c.b16 %v5577, %v5569
      %v6850 = vpack.c.b16 %v5578, %v5570
      %v6851 = vpack.c.b16 %v5579, %v5571
      %v6852 = vpack.c.b16 %v5588, %v5580
      %v6853 = vpack.c.b16 %v5589, %v5581
      %v6854 = vpack.c.b16 %v5590, %v5582
      %v6855 = vpack.c.b16 %v5591, %v5583
      %v6856 = vpack.c.b16 %v5592, %v5584
      %v6857 = vpack.c.b16 %v5593, %v5585
      %v6858 = vpack.c.b16 %v5594, %v5586
      %v6859 = vpack.c.b16 %v5595, %v5587
      %v6860 = vpack.c.b16 %v5604, %v5596
      %v6861 = vpack.c.b16 %v5605, %v5597
      %v6862 = vpack.c.b16 %v5606, %v5598
      %v6863 = vpack.c.b16 %v5607, %v5599
      %v6864 = vpack.c.b16 %v5608, %v5600
      %v6865 = vpack.c.b16 %v5609, %v5601
      %v6866 = vpack.c.b16 %v5610, %v5602
      %v6867 = vpack.c.b16 %v5611, %v5603
      %v6868 = vpack.c.b16 %v5620, %v5612
      %v6869 = vpack.c.b16 %v5621, %v5613
      %v6870 = vpack.c.b16 %v5622, %v5614
      %v6871 = vpack.c.b16 %v5623, %v5615
      %v6872 = vpack.c.b16 %v5624, %v5616
      %v6873 = vpack.c.b16 %v5625, %v5617
      %v6874 = vpack.c.b16 %v5626, %v5618
      %v6875 = vpack.c.b16 %v5627, %v5619
      %v6876 = vpack.c.b16 %v5636, %v5628
      %v6877 = vpack.c.b16 %v5637, %v5629
      %v6878 = vpack.c.b16 %v5638, %v5630
      %v6879 = vpack.c.b16 %v5639, %v5631
      %v6880 = vpack.c.b16 %v5640, %v5632
      %v6881 = vpack.c.b16 %v5641, %v5633
      %v6882 = vpack.c.b16 %v5642, %v5634
      %v6883 = vpack.c.b16 %v5643, %v5635
      %v6884 = vpack.c.b16 %v5652, %v5644
      %v6885 = vpack.c.b16 %v5653, %v5645
      %v6886 = vpack.c.b16 %v5654, %v5646
      %v6887 = vpack.c.b16 %v5655, %v5647
      %v6888 = vpack.c.b16 %v5656, %v5648
      %v6889 = vpack.c.b16 %v5657, %v5649
      %v6890 = vpack.c.b16 %v5658, %v5650
      %v6891 = vpack.c.b16 %v5659, %v5651
      %v6892 = vpack.c.b16 %v5668, %v5660
      %v6893 = vpack.c.b16 %v5669, %v5661
      %v6894 = vpack.c.b16 %v5670, %v5662
      %v6895 = vpack.c.b16 %v5671, %v5663
      %v6896 = vpack.c.b16 %v5672, %v5664
      %v6897 = vpack.c.b16 %v5673, %v5665
      %v6898 = vpack.c.b16 %v5674, %v5666
      %v6899 = vpack.c.b16 %v5675, %v5667
      %v6900 = vpack.c.b16 %v5684, %v5676
      %v6901 = vpack.c.b16 %v5685, %v5677
      %v6902 = vpack.c.b16 %v5686, %v5678
      %v6903 = vpack.c.b16 %v5687, %v5679
      %v6904 = vpack.c.b16 %v5688, %v5680
      %v6905 = vpack.c.b16 %v5689, %v5681
      %v6906 = vpack.c.b16 %v5690, %v5682
      %v6907 = vpack.c.b16 %v5691, %v5683
      %v6908 = vpack.c.b16 %v5700, %v5692
      %v6909 = vpack.c.b16 %v5701, %v5693
      %v6910 = vpack.c.b16 %v5702, %v5694
      %v6911 = vpack.c.b16 %v5703, %v5695
      %v6912 = vpack.c.b16 %v5704, %v5696
      %v6913 = vpack.c.b16 %v5705, %v5697
      %v6914 = vpack.c.b16 %v5706, %v5698
      %v6915 = vpack.c.b16 %v5707, %v5699
      %v6916 = vpack.c.b16 %v5716, %v5708
      %v6917 = vpack.c.b16 %v5717, %v5709
      %v6918 = vpack.c.b16 %v5718, %v5710
      %v6919 = vpack.c.b16 %v5719, %v5711
      %v6920 = vpack.c.b16 %v5720, %v5712
      %v6921 = vpack.c.b16 %v5721, %v5713
      %v6922 = vpack.c.b16 %v5722, %v5714
      %v6923 = vpack.c.b16 %v5723, %v5715
      %v6924 = vpack.c.b16 %v5732, %v5724
      %v6925 = vpack.c.b16 %v5733, %v5725
      %v6926 = vpack.c.b16 %v5734, %v5726
      %v6927 = vpack.c.b16 %v5735, %v5727
      %v6928 = vpack.c.b16 %v5736, %v5728
      %v6929 = vpack.c.b16 %v5737, %v5729
      %v6930 = vpack.c.b16 %v5738, %v5730
      %v6931 = vpack.c.b16 %v5739, %v5731
      %v6932 = vpack.c.b16 %v5748, %v5740
      %v6933 = vpack.c.b16 %v5749, %v5741
      %v6934 = vpack.c.b16 %v5750, %v5742
      %v6935 = vpack.c.b16 %v5751, %v5743
      %v6936 = vpack.c.b16 %v5752, %v5744
      %v6937 = vpack.c.b16 %v5753, %v5745
      %v6938 = vpack.c.b16 %v5754, %v5746
      %v6939 = vpack.c.b16 %v5755, %v5747
      %v6940 = vpack.c.b16 %v5764, %v5756
      %v6941 = vpack.c.b16 %v5765, %v5757
      %v6942 = vpack.c.b16 %v5766, %v5758
      %v6943 = vpack.c.b16 %v5767, %v5759
      %v6944 = vpack.c.b16 %v5768, %v5760
      %v6945 = vpack.c.b16 %v5769, %v5761
      %v6946 = vpack.c.b16 %v5770, %v5762
      %v6947 = vpack.c.b16 %v5771, %v5763
      %v6948 = vpack.c.b16 %v5780, %v5772
      %v6949 = vpack.c.b16 %v5781, %v5773
      %v6950 = vpack.c.b16 %v5782, %v5774
      %v6951 = vpack.c.b16 %v5783, %v5775
      %v6952 = vpack.c.b16 %v5784, %v5776
      %v6953 = vpack.c.b16 %v5785, %v5777
      %v6954 = vpack.c.b16 %v5786, %v5778
      %v6955 = vpack.c.b16 %v5787, %v5779
      %v6956 = vpack.c.b16 %v5796, %v5788
      %v6957 = vpack.c.b16 %v5797, %v5789
      %v6958 = vpack.c.b16 %v5798, %v5790
      %v6959 = vpack.c.b16 %v5799, %v5791
      %v6960 = vpack.c.b16 %v5800, %v5792
      %v6961 = vpack.c.b16 %v5801, %v5793
      %v6962 = vpack.c.b16 %v5802, %v5794
      %v6963 = vpack.c.b16 %v5803, %v5795
      %v6964 = vpack.c.b16 %v5812, %v5804
      %v6965 = vpack.c.b16 %v5813, %v5805
      %v6966 = vpack.c.b16 %v5814, %v5806
      %v6967 = vpack.c.b16 %v5815, %v5807
      %v6968 = vpack.c.b16 %v5816, %v5808
      %v6969 = vpack.c.b16 %v5817, %v5809
      %v6970 = vpack.c.b16 %v5818, %v5810
      %v6971 = vpack.c.b16 %v5819, %v5811
      %8124 = vmatprep.subr.bf16.mxu0 %v5821
      %8125 = vmatpush1.bf16.msra.mxu0 %v5820
      %8126 = vmatprep.subr.bf16.mxu0 %v5829
      %8127 = vmatpush1.bf16.msra.mxu0 %v5828
      %8128 = vmatprep.subr.bf16.mxu0 %v5837
      %8129 = vmatpush1.bf16.msra.mxu0 %v5836
      %8130 = vmatprep.subr.bf16.mxu0 %v5845
      %8131 = vmatpush1.bf16.msra.mxu0 %v5844
      %8132 = vmatprep.subr.bf16.mxu0 %v5853
      %8133 = vmatpush1.bf16.msra.mxu0 %v5852
      %8134 = vmatprep.subr.bf16.mxu0 %v5861
      %8135 = vmatpush1.bf16.msra.mxu0 %v5860
      %8136 = vmatprep.subr.bf16.mxu0 %v5869
      %8137 = vmatpush1.bf16.msra.mxu0 %v5868
      %8138 = vmatprep.subr.bf16.mxu0 %v5877
      %8139 = vmatpush1.bf16.msra.mxu0 %v5876
      %8140 = vmatprep.subr.bf16.mxu0 %v5885
      %8141 = vmatpush1.bf16.msra.mxu0 %v5884
      %8142 = vmatprep.subr.bf16.mxu0 %v5893
      %8143 = vmatpush1.bf16.msra.mxu0 %v5892
      %8144 = vmatprep.subr.bf16.mxu0 %v5901
      %8145 = vmatpush1.bf16.msra.mxu0 %v5900
      %8146 = vmatprep.subr.bf16.mxu0 %v5909
      %8147 = vmatpush1.bf16.msra.mxu0 %v5908
      %8148 = vmatprep.subr.bf16.mxu0 %v5917
      %8149 = vmatpush1.bf16.msra.mxu0 %v5916
      %8150 = vmatprep.subr.bf16.mxu0 %v5925
      %8151 = vmatpush1.bf16.msra.mxu0 %v5924
      %8152 = vmatprep.subr.bf16.mxu0 %v5933
      %8153 = vmatpush1.bf16.msra.mxu0 %v5932
      %8154 = vmatprep.subr.bf16.mxu0 %v5941
      %8155 = vmatpush1.bf16.msra.mxu0 %v5940
      %8156 = vmatprep.mubr.bf16.mxu0 %v2285
      %8157 = vmatmul.mubr.bf16.gmra.mrb[0].mxu0 %v2277
      %v8158 = vpop.f32.mrb[0].mxu0
      %v8159 = vadd.f32 0.0, %v8158
      %v8160 = vpop.f32.mrb[0].mxu0
      %v8161 = vadd.f32 0.0, %v8160
      %v8162 = vpop.f32.mrb[0].mxu0
      %v8163 = vpop.f32.mrb[0].mxu0
      %8164 = vdwg.mxu0
      %8165 = vmatprep.subr.bf16.mxu0 %v5949
      %8166 = vmatpush1.bf16.msra.mxu0 %v5948
      %8167 = vmatprep.subr.bf16.mxu0 %v5957
      %8168 = vmatpush1.bf16.msra.mxu0 %v5956
      %8169 = vmatprep.subr.bf16.mxu0 %v5965
      %8170 = vmatpush1.bf16.msra.mxu0 %v5964
      %8171 = vmatprep.subr.bf16.mxu0 %v5973
      %8172 = vmatpush1.bf16.msra.mxu0 %v5972
      %8173 = vmatprep.subr.bf16.mxu0 %v5981
      %8174 = vmatpush1.bf16.msra.mxu0 %v5980
      %8175 = vmatprep.subr.bf16.mxu0 %v5989
      %8176 = vmatpush1.bf16.msra.mxu0 %v5988
      %8177 = vmatprep.subr.bf16.mxu0 %v5997
      %8178 = vmatpush1.bf16.msra.mxu0 %v5996
      %8179 = vmatprep.subr.bf16.mxu0 %v6005
      %8180 = vmatpush1.bf16.msra.mxu0 %v6004
      %8181 = vmatprep.subr.bf16.mxu0 %v6013
      %8182 = vmatpush1.bf16.msra.mxu0 %v6012
      %8183 = vmatprep.subr.bf16.mxu0 %v6021
      %8184 = vmatpush1.bf16.msra.mxu0 %v6020
      %8185 = vmatprep.subr.bf16.mxu0 %v6029
      %8186 = vmatpush1.bf16.msra.mxu0 %v6028
      %8187 = vmatprep.subr.bf16.mxu0 %v6037
      %8188 = vmatpush1.bf16.msra.mxu0 %v6036
      %8189 = vmatprep.subr.bf16.mxu0 %v6045
      %8190 = vmatpush1.bf16.msra.mxu0 %v6044
      %8191 = vmatprep.subr.bf16.mxu0 %v6053
      %8192 = vmatpush1.bf16.msra.mxu0 %v6052
      %8193 = vmatprep.subr.bf16.mxu0 %v6061
      %8194 = vmatpush1.bf16.msra.mxu0 %v6060
      %8195 = vmatprep.subr.bf16.mxu0 %v6069
      %8196 = vmatpush1.bf16.msra.mxu0 %v6068
      %8197 = vmatprep.mubr.bf16.mxu0 %v2286
      %8198 = vmatmul.mubr.bf16.gmra.mrb[0].mxu0 %v2284
      %v8199 = vpop.f32.mrb[0].mxu0
      %v8200 = vadd.f32 %v8159, %v8199
      %v8201 = vpop.f32.mrb[0].mxu0
      %v8202 = vadd.f32 %v8161, %v8201
      %v8203 = vpop.f32.mrb[0].mxu0
      %v8204 = vpop.f32.mrb[0].mxu0
      %8205 = vdwg.mxu0
      %8206 = vmatprep.subr.bf16.mxu0 %v6077
      %8207 = vmatpush1.bf16.msra.mxu0 %v6076
      %8208 = vmatprep.subr.bf16.mxu0 %v6085
      %8209 = vmatpush1.bf16.msra.mxu0 %v6084
      %8210 = vmatprep.subr.bf16.mxu0 %v6093
      %8211 = vmatpush1.bf16.msra.mxu0 %v6092
      %8212 = vmatprep.subr.bf16.mxu0 %v6101
      %8213 = vmatpush1.bf16.msra.mxu0 %v6100
      %8214 = vmatprep.subr.bf16.mxu0 %v6109
      %8215 = vmatpush1.bf16.msra.mxu0 %v6108
      %8216 = vmatprep.subr.bf16.mxu0 %v6117
      %8217 = vmatpush1.bf16.msra.mxu0 %v6116
      %8218 = vmatprep.subr.bf16.mxu0 %v6125
      %8219 = vmatpush1.bf16.msra.mxu0 %v6124
      %8220 = vmatprep.subr.bf16.mxu0 %v6133
      %8221 = vmatpush1.bf16.msra.mxu0 %v6132
      %8222 = vmatprep.subr.bf16.mxu0 %v6141
      %8223 = vmatpush1.bf16.msra.mxu0 %v6140
      %8224 = vmatprep.subr.bf16.mxu0 %v6149
      %8225 = vmatpush1.bf16.msra.mxu0 %v6148
      %8226 = vmatprep.subr.bf16.mxu0 %v6157
      %8227 = vmatpush1.bf16.msra.mxu0 %v6156
      %8228 = vmatprep.subr.bf16.mxu0 %v6165
      %8229 = vmatpush1.bf16.msra.mxu0 %v6164
      %8230 = vmatprep.subr.bf16.mxu0 %v6173
      %8231 = vmatpush1.bf16.msra.mxu0 %v6172
      %8232 = vmatprep.subr.bf16.mxu0 %v6181
      %8233 = vmatpush1.bf16.msra.mxu0 %v6180
      %8234 = vmatprep.subr.bf16.mxu0 %v6189
      %8235 = vmatpush1.bf16.msra.mxu0 %v6188
      %8236 = vmatprep.subr.bf16.mxu0 %v6197
      %8237 = vmatpush1.bf16.msra.mxu0 %v6196
      %8238 = vmatprep.mubr.bf16.mxu0 %v2302
      %8239 = vmatmul.mubr.bf16.gmra.mrb[0].mxu0 %v2294
      %v8240 = vpop.f32.mrb[0].mxu0
      %v8241 = vadd.f32 %v8200, %v8240
      %v8242 = vpop.f32.mrb[0].mxu0
      %v8243 = vadd.f32 %v8202, %v8242
      %v8244 = vpop.f32.mrb[0].mxu0
      %v8245 = vpop.f32.mrb[0].mxu0
      %8246 = vdwg.mxu0
      %8247 = vmatprep.subr.bf16.mxu0 %v6205
      %8248 = vmatpush1.bf16.msra.mxu0 %v6204
      %8249 = vmatprep.subr.bf16.mxu0 %v6213
      %8250 = vmatpush1.bf16.msra.mxu0 %v6212
      %8251 = vmatprep.subr.bf16.mxu0 %v6221
      %8252 = vmatpush1.bf16.msra.mxu0 %v6220
      %8253 = vmatprep.subr.bf16.mxu0 %v6229
      %8254 = vmatpush1.bf16.msra.mxu0 %v6228
      %8255 = vmatprep.subr.bf16.mxu0 %v6237
      %8256 = vmatpush1.bf16.msra.mxu0 %v6236
      %8257 = vmatprep.subr.bf16.mxu0 %v6245
      %8258 = vmatpush1.bf16.msra.mxu0 %v6244
      %8259 = vmatprep.subr.bf16.mxu0 %v6253
      %8260 = vmatpush1.bf16.msra.mxu0 %v6252
      %8261 = vmatprep.subr.bf16.mxu0 %v6261
      %8262 = vmatpush1.bf16.msra.mxu0 %v6260
      %8263 = vmatprep.subr.bf16.mxu0 %v6269
      %8264 = vmatpush1.bf16.msra.mxu0 %v6268
      %8265 = vmatprep.subr.bf16.mxu0 %v6277
      %8266 = vmatpush1.bf16.msra.mxu0 %v6276
      %8267 = vmatprep.subr.bf16.mxu0 %v6285
      %8268 = vmatpush1.bf16.msra.mxu0 %v6284
      %8269 = vmatprep.subr.bf16.mxu0 %v6293
      %8270 = vmatpush1.bf16.msra.mxu0 %v6292
      %8271 = vmatprep.subr.bf16.mxu0 %v6301
      %8272 = vmatpush1.bf16.msra.mxu0 %v6300
      %8273 = vmatprep.subr.bf16.mxu0 %v6309
      %8274 = vmatpush1.bf16.msra.mxu0 %v6308
      %8275 = vmatprep.subr.bf16.mxu0 %v6317
      %8276 = vmatpush1.bf16.msra.mxu0 %v6316
      %8277 = vmatprep.subr.bf16.mxu0 %v6325
      %8278 = vmatpush1.bf16.msra.mxu0 %v6324
      %8279 = vmatprep.mubr.bf16.mxu0 %v2303
      %8280 = vmatmul.mubr.bf16.gmra.mrb[0].mxu0 %v2301
      %v8281 = vpop.f32.mrb[0].mxu0
      %v8282 = vadd.f32 %v8241, %v8281
      %v8283 = vpop.f32.mrb[0].mxu0
      %v8284 = vadd.f32 %v8243, %v8283
      %v8285 = vpop.f32.mrb[0].mxu0
      %v8286 = vpop.f32.mrb[0].mxu0
      %8287 = vdwg.mxu0
      %8288 = vmatprep.subr.bf16.mxu0 %v6333
      %8289 = vmatpush1.bf16.msra.mxu0 %v6332
      %8290 = vmatprep.subr.bf16.mxu0 %v6341
      %8291 = vmatpush1.bf16.msra.mxu0 %v6340
      %8292 = vmatprep.subr.bf16.mxu0 %v6349
      %8293 = vmatpush1.bf16.msra.mxu0 %v6348
      %8294 = vmatprep.subr.bf16.mxu0 %v6357
      %8295 = vmatpush1.bf16.msra.mxu0 %v6356
      %8296 = vmatprep.subr.bf16.mxu0 %v6365
      %8297 = vmatpush1.bf16.msra.mxu0 %v6364
      %8298 = vmatprep.subr.bf16.mxu0 %v6373
      %8299 = vmatpush1.bf16.msra.mxu0 %v6372
      %8300 = vmatprep.subr.bf16.mxu0 %v6381
      %8301 = vmatpush1.bf16.msra.mxu0 %v6380
      %8302 = vmatprep.subr.bf16.mxu0 %v6389
      %8303 = vmatpush1.bf16.msra.mxu0 %v6388
      %8304 = vmatprep.subr.bf16.mxu0 %v6397
      %8305 = vmatpush1.bf16.msra.mxu0 %v6396
      %8306 = vmatprep.subr.bf16.mxu0 %v6405
      %8307 = vmatpush1.bf16.msra.mxu0 %v6404
      %8308 = vmatprep.subr.bf16.mxu0 %v6413
      %8309 = vmatpush1.bf16.msra.mxu0 %v6412
      %8310 = vmatprep.subr.bf16.mxu0 %v6421
      %8311 = vmatpush1.bf16.msra.mxu0 %v6420
      %8312 = vmatprep.subr.bf16.mxu0 %v6429
      %8313 = vmatpush1.bf16.msra.mxu0 %v6428
      %8314 = vmatprep.subr.bf16.mxu0 %v6437
      %8315 = vmatpush1.bf16.msra.mxu0 %v6436
      %8316 = vmatprep.subr.bf16.mxu0 %v6445
      %8317 = vmatpush1.bf16.msra.mxu0 %v6444
      %8318 = vmatprep.subr.bf16.mxu0 %v6453
      %8319 = vmatpush1.bf16.msra.mxu0 %v6452
      %8320 = vmatprep.mubr.bf16.mxu0 %v2319
      %8321 = vmatmul.mubr.bf16.gmra.mrb[0].mxu0 %v2311
      %v8322 = vpop.f32.mrb[0].mxu0
      %v8323 = vadd.f32 %v8282, %v8322
      %v8324 = vpop.f32.mrb[0].mxu0
      %v8325 = vadd.f32 %v8284, %v8324
      %v8326 = vpop.f32.mrb[0].mxu0
      %v8327 = vpop.f32.mrb[0].mxu0
      %8328 = vdwg.mxu0
      %8329 = vmatprep.subr.bf16.mxu0 %v6461
      %8330 = vmatpush1.bf16.msra.mxu0 %v6460
      %8331 = vmatprep.subr.bf16.mxu0 %v6469
      %8332 = vmatpush1.bf16.msra.mxu0 %v6468
      %8333 = vmatprep.subr.bf16.mxu0 %v6477
      %8334 = vmatpush1.bf16.msra.mxu0 %v6476
      %8335 = vmatprep.subr.bf16.mxu0 %v6485
      %8336 = vmatpush1.bf16.msra.mxu0 %v6484
      %8337 = vmatprep.subr.bf16.mxu0 %v6493
      %8338 = vmatpush1.bf16.msra.mxu0 %v6492
      %8339 = vmatprep.subr.bf16.mxu0 %v6501
      %8340 = vmatpush1.bf16.msra.mxu0 %v6500
      %8341 = vmatprep.subr.bf16.mxu0 %v6509
      %8342 = vmatpush1.bf16.msra.mxu0 %v6508
      %8343 = vmatprep.subr.bf16.mxu0 %v6517
      %8344 = vmatpush1.bf16.msra.mxu0 %v6516
      %8345 = vmatprep.subr.bf16.mxu0 %v6525
      %8346 = vmatpush1.bf16.msra.mxu0 %v6524
      %8347 = vmatprep.subr.bf16.mxu0 %v6533
      %8348 = vmatpush1.bf16.msra.mxu0 %v6532
      %8349 = vmatprep.subr.bf16.mxu0 %v6541
      %8350 = vmatpush1.bf16.msra.mxu0 %v6540
      %8351 = vmatprep.subr.bf16.mxu0 %v6549
      %8352 = vmatpush1.bf16.msra.mxu0 %v6548
      %8353 = vmatprep.subr.bf16.mxu0 %v6557
      %8354 = vmatpush1.bf16.msra.mxu0 %v6556
      %8355 = vmatprep.subr.bf16.mxu0 %v6565
      %8356 = vmatpush1.bf16.msra.mxu0 %v6564
      %8357 = vmatprep.subr.bf16.mxu0 %v6573
      %8358 = vmatpush1.bf16.msra.mxu0 %v6572
      %8359 = vmatprep.subr.bf16.mxu0 %v6581
      %8360 = vmatpush1.bf16.msra.mxu0 %v6580
      %8361 = vmatprep.mubr.bf16.mxu0 %v2320
      %8362 = vmatmul.mubr.bf16.gmra.mrb[0].mxu0 %v2318
      %v8363 = vpop.f32.mrb[0].mxu0
      %v8364 = vadd.f32 %v8323, %v8363
      %v8365 = vpop.f32.mrb[0].mxu0
      %v8366 = vadd.f32 %v8325, %v8365
      %v8367 = vpop.f32.mrb[0].mxu0
      %v8368 = vpop.f32.mrb[0].mxu0
      %8369 = vdwg.mxu0
      %8370 = vmatprep.subr.bf16.mxu0 %v6589
      %8371 = vmatpush1.bf16.msra.mxu0 %v6588
      %8372 = vmatprep.subr.bf16.mxu0 %v6597
      %8373 = vmatpush1.bf16.msra.mxu0 %v6596
      %8374 = vmatprep.subr.bf16.mxu0 %v6605
      %8375 = vmatpush1.bf16.msra.mxu0 %v6604
      %8376 = vmatprep.subr.bf16.mxu0 %v6613
      %8377 = vmatpush1.bf16.msra.mxu0 %v6612
      %8378 = vmatprep.subr.bf16.mxu0 %v6621
      %8379 = vmatpush1.bf16.msra.mxu0 %v6620
      %8380 = vmatprep.subr.bf16.mxu0 %v6629
      %8381 = vmatpush1.bf16.msra.mxu0 %v6628
      %8382 = vmatprep.subr.bf16.mxu0 %v6637
      %8383 = vmatpush1.bf16.msra.mxu0 %v6636
      %8384 = vmatprep.subr.bf16.mxu0 %v6645
      %8385 = vmatpush1.bf16.msra.mxu0 %v6644
      %8386 = vmatprep.subr.bf16.mxu0 %v6653
      %8387 = vmatpush1.bf16.msra.mxu0 %v6652
      %8388 = vmatprep.subr.bf16.mxu0 %v6661
      %8389 = vmatpush1.bf16.msra.mxu0 %v6660
      %8390 = vmatprep.subr.bf16.mxu0 %v6669
      %8391 = vmatpush1.bf16.msra.mxu0 %v6668
      %8392 = vmatprep.subr.bf16.mxu0 %v6677
      %8393 = vmatpush1.bf16.msra.mxu0 %v6676
      %8394 = vmatprep.subr.bf16.mxu0 %v6685
      %8395 = vmatpush1.bf16.msra.mxu0 %v6684
      %8396 = vmatprep.subr.bf16.mxu0 %v6693
      %8397 = vmatpush1.bf16.msra.mxu0 %v6692
      %8398 = vmatprep.subr.bf16.mxu0 %v6701
      %8399 = vmatpush1.bf16.msra.mxu0 %v6700
      %8400 = vmatprep.subr.bf16.mxu0 %v6709
      %8401 = vmatpush1.bf16.msra.mxu0 %v6708
      %8402 = vmatprep.mubr.bf16.mxu0 %v2336
      %8403 = vmatmul.mubr.bf16.gmra.mrb[0].mxu0 %v2328
      %v8404 = vpop.f32.mrb[0].mxu0
      %v8405 = vadd.f32 %v8364, %v8404
      %v8406 = vpop.f32.mrb[0].mxu0
      %v8407 = vadd.f32 %v8366, %v8406
      %v8408 = vpop.f32.mrb[0].mxu0
      %v8409 = vpop.f32.mrb[0].mxu0
      %8410 = vdwg.mxu0
      %8411 = vmatprep.subr.bf16.mxu0 %v6717
      %8412 = vmatpush1.bf16.msra.mxu0 %v6716
      %8413 = vmatprep.subr.bf16.mxu0 %v6725
      %8414 = vmatpush1.bf16.msra.mxu0 %v6724
      %8415 = vmatprep.subr.bf16.mxu0 %v6733
      %8416 = vmatpush1.bf16.msra.mxu0 %v6732
      %8417 = vmatprep.subr.bf16.mxu0 %v6741
      %8418 = vmatpush1.bf16.msra.mxu0 %v6740
      %8419 = vmatprep.subr.bf16.mxu0 %v6749
      %8420 = vmatpush1.bf16.msra.mxu0 %v6748
      %8421 = vmatprep.subr.bf16.mxu0 %v6757
      %8422 = vmatpush1.bf16.msra.mxu0 %v6756
      %8423 = vmatprep.subr.bf16.mxu0 %v6765
      %8424 = vmatpush1.bf16.msra.mxu0 %v6764
      %8425 = vmatprep.subr.bf16.mxu0 %v6773
      %8426 = vmatpush1.bf16.msra.mxu0 %v6772
      %8427 = vmatprep.subr.bf16.mxu0 %v6781
      %8428 = vmatpush1.bf16.msra.mxu0 %v6780
      %8429 = vmatprep.subr.bf16.mxu0 %v6789
      %8430 = vmatpush1.bf16.msra.mxu0 %v6788
      %8431 = vmatprep.subr.bf16.mxu0 %v6797
      %8432 = vmatpush1.bf16.msra.mxu0 %v6796
      %8433 = vmatprep.subr.bf16.mxu0 %v6805
      %8434 = vmatpush1.bf16.msra.mxu0 %v6804
      %8435 = vmatprep.subr.bf16.mxu0 %v6813
      %8436 = vmatpush1.bf16.msra.mxu0 %v6812
      %8437 = vmatprep.subr.bf16.mxu0 %v6821
      %8438 = vmatpush1.bf16.msra.mxu0 %v6820
      %8439 = vmatprep.subr.bf16.mxu0 %v6829
      %8440 = vmatpush1.bf16.msra.mxu0 %v6828
      %8441 = vmatprep.subr.bf16.mxu0 %v6837
      %8442 = vmatpush1.bf16.msra.mxu0 %v6836
      %8443 = vmatprep.mubr.bf16.mxu0 %v2337
      %8444 = vmatmul.mubr.bf16.gmra.mrb[0].mxu0 %v2335
      %v8445 = vpop.f32.mrb[0].mxu0
      %v8446 = vadd.f32 %v8405, %v8445
      %v8447 = vpop.f32.mrb[0].mxu0
      %v8448 = vadd.f32 %v8407, %v8447
      %v8449 = vpop.f32.mrb[0].mxu0
      %v8450 = vpop.f32.mrb[0].mxu0
      %8451 = vdwg.mxu0
      %8452 = vmatprep.subr.bf16.mxu0 %v6845
      %8453 = vmatpush1.bf16.msra.mxu0 %v6844
      %8454 = vmatprep.subr.bf16.mxu0 %v6853
      %8455 = vmatpush1.bf16.msra.mxu0 %v6852
      %8456 = vmatprep.subr.bf16.mxu0 %v6861
      %8457 = vmatpush1.bf16.msra.mxu0 %v6860
      %8458 = vmatprep.subr.bf16.mxu0 %v6869
      %8459 = vmatpush1.bf16.msra.mxu0 %v6868
      %8460 = vmatprep.subr.bf16.mxu0 %v6877
      %8461 = vmatpush1.bf16.msra.mxu0 %v6876
      %8462 = vmatprep.subr.bf16.mxu0 %v6885
      %8463 = vmatpush1.bf16.msra.mxu0 %v6884
      %8464 = vmatprep.subr.bf16.mxu0 %v6893
      %8465 = vmatpush1.bf16.msra.mxu0 %v6892
      %8466 = vmatprep.subr.bf16.mxu0 %v6901
      %8467 = vmatpush1.bf16.msra.mxu0 %v6900
      %8468 = vmatprep.subr.bf16.mxu0 %v6909
      %8469 = vmatpush1.bf16.msra.mxu0 %v6908
      %8470 = vmatprep.subr.bf16.mxu0 %v6917
      %8471 = vmatpush1.bf16.msra.mxu0 %v6916
      %8472 = vmatprep.subr.bf16.mxu0 %v6925
      %8473 = vmatpush1.bf16.msra.mxu0 %v6924
      %8474 = vmatprep.subr.bf16.mxu0 %v6933
      %8475 = vmatpush1.bf16.msra.mxu0 %v6932
      %8476 = vmatprep.subr.bf16.mxu0 %v6941
      %8477 = vmatpush1.bf16.msra.mxu0 %v6940
      %8478 = vmatprep.subr.bf16.mxu0 %v6949
      %8479 = vmatpush1.bf16.msra.mxu0 %v6948
      %8480 = vmatprep.subr.bf16.mxu0 %v6957
      %8481 = vmatpush1.bf16.msra.mxu0 %v6956
      %8482 = vmatprep.subr.bf16.mxu0 %v6965
      %8483 = vmatpush1.bf16.msra.mxu0 %v6964
      %8484 = vmatprep.mubr.bf16.mxu0 %v2345
      %8485 = vmatmul.mubr.bf16.gmra.mrb[0].mxu0 %v2344
      %v8486 = vpop.f32.mrb[0].mxu0
      %v8487 = vadd.f32 %v8446, %v8486
      %v8488 = vpop.f32.mrb[0].mxu0
      %v8489 = vadd.f32 %v8448, %v8488
      %v8490 = vpop.f32.mrb[0].mxu0
      %v8491 = vpop.f32.mrb[0].mxu0
      %8492 = vdwg.mxu0
      %8493 = vmatprep.subr.bf16.mxu0 %v5823
      %8494 = vmatpush1.bf16.msra.mxu0 %v5822
      %8495 = vmatprep.subr.bf16.mxu0 %v5831
      %8496 = vmatpush1.bf16.msra.mxu0 %v5830
      %8497 = vmatprep.subr.bf16.mxu0 %v5839
      %8498 = vmatpush1.bf16.msra.mxu0 %v5838
      %8499 = vmatprep.subr.bf16.mxu0 %v5847
      %8500 = vmatpush1.bf16.msra.mxu0 %v5846
      %8501 = vmatprep.subr.bf16.mxu0 %v5855
      %8502 = vmatpush1.bf16.msra.mxu0 %v5854
      %8503 = vmatprep.subr.bf16.mxu0 %v5863
      %8504 = vmatpush1.bf16.msra.mxu0 %v5862
      %8505 = vmatprep.subr.bf16.mxu0 %v5871
      %8506 = vmatpush1.bf16.msra.mxu0 %v5870
      %8507 = vmatprep.subr.bf16.mxu0 %v5879
      %8508 = vmatpush1.bf16.msra.mxu0 %v5878
      %8509 = vmatprep.subr.bf16.mxu0 %v5887
      %8510 = vmatpush1.bf16.msra.mxu0 %v5886
      %8511 = vmatprep.subr.bf16.mxu0 %v5895
      %8512 = vmatpush1.bf16.msra.mxu0 %v5894
      %8513 = vmatprep.subr.bf16.mxu0 %v5903
      %8514 = vmatpush1.bf16.msra.mxu0 %v5902
      %8515 = vmatprep.subr.bf16.mxu0 %v5911
      %8516 = vmatpush1.bf16.msra.mxu0 %v5910
      %8517 = vmatprep.subr.bf16.mxu0 %v5919
      %8518 = vmatpush1.bf16.msra.mxu0 %v5918
      %8519 = vmatprep.subr.bf16.mxu0 %v5927
      %8520 = vmatpush1.bf16.msra.mxu0 %v5926
      %8521 = vmatprep.subr.bf16.mxu0 %v5935
      %8522 = vmatpush1.bf16.msra.mxu0 %v5934
      %8523 = vmatprep.subr.bf16.mxu0 %v5943
      %8524 = vmatpush1.bf16.msra.mxu0 %v5942
      %8525 = vmatprep.mubr.bf16.mxu0 %v2285
      %8526 = vmatmul.mubr.bf16.gmra.mrb[0].mxu0 %v2277
      %v8527 = vpop.f32.mrb[0].mxu0
      %v8528 = vadd.f32 0.0, %v8527
      %v8529 = vpop.f32.mrb[0].mxu0
      %v8530 = vadd.f32 0.0, %v8529
      %v8531 = vpop.f32.mrb[0].mxu0
      %v8532 = vpop.f32.mrb[0].mxu0
      %8533 = vdwg.mxu0
      %8534 = vmatprep.subr.bf16.mxu0 %v5951
      %8535 = vmatpush1.bf16.msra.mxu0 %v5950
      %8536 = vmatprep.subr.bf16.mxu0 %v5959
      %8537 = vmatpush1.bf16.msra.mxu0 %v5958
      %8538 = vmatprep.subr.bf16.mxu0 %v5967
      %8539 = vmatpush1.bf16.msra.mxu0 %v5966
      %8540 = vmatprep.subr.bf16.mxu0 %v5975
      %8541 = vmatpush1.bf16.msra.mxu0 %v5974
      %8542 = vmatprep.subr.bf16.mxu0 %v5983
      %8543 = vmatpush1.bf16.msra.mxu0 %v5982
      %8544 = vmatprep.subr.bf16.mxu0 %v5991
      %8545 = vmatpush1.bf16.msra.mxu0 %v5990
      %8546 = vmatprep.subr.bf16.mxu0 %v5999
      %8547 = vmatpush1.bf16.msra.mxu0 %v5998
      %8548 = vmatprep.subr.bf16.mxu0 %v6007
      %8549 = vmatpush1.bf16.msra.mxu0 %v6006
      %8550 = vmatprep.subr.bf16.mxu0 %v6015
      %8551 = vmatpush1.bf16.msra.mxu0 %v6014
      %8552 = vmatprep.subr.bf16.mxu0 %v6023
      %8553 = vmatpush1.bf16.msra.mxu0 %v6022
      %8554 = vmatprep.subr.bf16.mxu0 %v6031
      %8555 = vmatpush1.bf16.msra.mxu0 %v6030
      %8556 = vmatprep.subr.bf16.mxu0 %v6039
      %8557 = vmatpush1.bf16.msra.mxu0 %v6038
      %8558 = vmatprep.subr.bf16.mxu0 %v6047
      %8559 = vmatpush1.bf16.msra.mxu0 %v6046
      %8560 = vmatprep.subr.bf16.mxu0 %v6055
      %8561 = vmatpush1.bf16.msra.mxu0 %v6054
      %8562 = vmatprep.subr.bf16.mxu0 %v6063
      %8563 = vmatpush1.bf16.msra.mxu0 %v6062
      %8564 = vmatprep.subr.bf16.mxu0 %v6071
      %8565 = vmatpush1.bf16.msra.mxu0 %v6070
      %8566 = vmatprep.mubr.bf16.mxu0 %v2286
      %8567 = vmatmul.mubr.bf16.gmra.mrb[0].mxu0 %v2284
      %v8568 = vpop.f32.mrb[0].mxu0
      %v8569 = vadd.f32 %v8528, %v8568
      %v8570 = vpop.f32.mrb[0].mxu0
      %v8571 = vadd.f32 %v8530, %v8570
      %v8572 = vpop.f32.mrb[0].mxu0
      %v8573 = vpop.f32.mrb[0].mxu0
      %8574 = vdwg.mxu0
      %8575 = vmatprep.subr.bf16.mxu0 %v6079
      %8576 = vmatpush1.bf16.msra.mxu0 %v6078
      %8577 = vmatprep.subr.bf16.mxu0 %v6087
      %8578 = vmatpush1.bf16.msra.mxu0 %v6086
      %8579 = vmatprep.subr.bf16.mxu0 %v6095
      %8580 = vmatpush1.bf16.msra.mxu0 %v6094
      %8581 = vmatprep.subr.bf16.mxu0 %v6103
      %8582 = vmatpush1.bf16.msra.mxu0 %v6102
      %8583 = vmatprep.subr.bf16.mxu0 %v6111
      %8584 = vmatpush1.bf16.msra.mxu0 %v6110
      %8585 = vmatprep.subr.bf16.mxu0 %v6119
      %8586 = vmatpush1.bf16.msra.mxu0 %v6118
      %8587 = vmatprep.subr.bf16.mxu0 %v6127
      %8588 = vmatpush1.bf16.msra.mxu0 %v6126
      %8589 = vmatprep.subr.bf16.mxu0 %v6135
      %8590 = vmatpush1.bf16.msra.mxu0 %v6134
      %8591 = vmatprep.subr.bf16.mxu0 %v6143
      %8592 = vmatpush1.bf16.msra.mxu0 %v6142
      %8593 = vmatprep.subr.bf16.mxu0 %v6151
      %8594 = vmatpush1.bf16.msra.mxu0 %v6150
      %8595 = vmatprep.subr.bf16.mxu0 %v6159
      %8596 = vmatpush1.bf16.msra.mxu0 %v6158
      %8597 = vmatprep.subr.bf16.mxu0 %v6167
      %8598 = vmatpush1.bf16.msra.mxu0 %v6166
      %8599 = vmatprep.subr.bf16.mxu0 %v6175
      %8600 = vmatpush1.bf16.msra.mxu0 %v6174
      %8601 = vmatprep.subr.bf16.mxu0 %v6183
      %8602 = vmatpush1.bf16.msra.mxu0 %v6182
      %8603 = vmatprep.subr.bf16.mxu0 %v6191
      %8604 = vmatpush1.bf16.msra.mxu0 %v6190
      %8605 = vmatprep.subr.bf16.mxu0 %v6199
      %8606 = vmatpush1.bf16.msra.mxu0 %v6198
      %8607 = vmatprep.mubr.bf16.mxu0 %v2302
      %8608 = vmatmul.mubr.bf16.gmra.mrb[0].mxu0 %v2294
      %v8609 = vpop.f32.mrb[0].mxu0
      %v8610 = vadd.f32 %v8569, %v8609
      %v8611 = vpop.f32.mrb[0].mxu0
      %v8612 = vadd.f32 %v8571, %v8611
      %v8613 = vpop.f32.mrb[0].mxu0
      %v8614 = vpop.f32.mrb[0].mxu0
      %8615 = vdwg.mxu0
      %8616 = vmatprep.subr.bf16.mxu0 %v6207
      %8617 = vmatpush1.bf16.msra.mxu0 %v6206
      %8618 = vmatprep.subr.bf16.mxu0 %v6215
      %8619 = vmatpush1.bf16.msra.mxu0 %v6214
      %8620 = vmatprep.subr.bf16.mxu0 %v6223
      %8621 = vmatpush1.bf16.msra.mxu0 %v6222
      %8622 = vmatprep.subr.bf16.mxu0 %v6231
      %8623 = vmatpush1.bf16.msra.mxu0 %v6230
      %8624 = vmatprep.subr.bf16.mxu0 %v6239
      %8625 = vmatpush1.bf16.msra.mxu0 %v6238
      %8626 = vmatprep.subr.bf16.mxu0 %v6247
      %8627 = vmatpush1.bf16.msra.mxu0 %v6246
      %8628 = vmatprep.subr.bf16.mxu0 %v6255
      %8629 = vmatpush1.bf16.msra.mxu0 %v6254
      %8630 = vmatprep.subr.bf16.mxu0 %v6263
      %8631 = vmatpush1.bf16.msra.mxu0 %v6262
      %8632 = vmatprep.subr.bf16.mxu0 %v6271
      %8633 = vmatpush1.bf16.msra.mxu0 %v6270
      %8634 = vmatprep.subr.bf16.mxu0 %v6279
      %8635 = vmatpush1.bf16.msra.mxu0 %v6278
      %8636 = vmatprep.subr.bf16.mxu0 %v6287
      %8637 = vmatpush1.bf16.msra.mxu0 %v6286
      %8638 = vmatprep.subr.bf16.mxu0 %v6295
      %8639 = vmatpush1.bf16.msra.mxu0 %v6294
      %8640 = vmatprep.subr.bf16.mxu0 %v6303
      %8641 = vmatpush1.bf16.msra.mxu0 %v6302
      %8642 = vmatprep.subr.bf16.mxu0 %v6311
      %8643 = vmatpush1.bf16.msra.mxu0 %v6310
      %8644 = vmatprep.subr.bf16.mxu0 %v6319
      %8645 = vmatpush1.bf16.msra.mxu0 %v6318
      %8646 = vmatprep.subr.bf16.mxu0 %v6327
      %8647 = vmatpush1.bf16.msra.mxu0 %v6326
      %8648 = vmatprep.mubr.bf16.mxu0 %v2303
      %8649 = vmatmul.mubr.bf16.gmra.mrb[0].mxu0 %v2301
      %v8650 = vpop.f32.mrb[0].mxu0
      %v8651 = vadd.f32 %v8610, %v8650
      %v8652 = vpop.f32.mrb[0].mxu0
      %v8653 = vadd.f32 %v8612, %v8652
      %v8654 = vpop.f32.mrb[0].mxu0
      %v8655 = vpop.f32.mrb[0].mxu0
      %8656 = vdwg.mxu0
      %8657 = vmatprep.subr.bf16.mxu0 %v6335
      %8658 = vmatpush1.bf16.msra.mxu0 %v6334
      %8659 = vmatprep.subr.bf16.mxu0 %v6343
      %8660 = vmatpush1.bf16.msra.mxu0 %v6342
      %8661 = vmatprep.subr.bf16.mxu0 %v6351
      %8662 = vmatpush1.bf16.msra.mxu0 %v6350
      %8663 = vmatprep.subr.bf16.mxu0 %v6359
      %8664 = vmatpush1.bf16.msra.mxu0 %v6358
      %8665 = vmatprep.subr.bf16.mxu0 %v6367
      %8666 = vmatpush1.bf16.msra.mxu0 %v6366
      %8667 = vmatprep.subr.bf16.mxu0 %v6375
      %8668 = vmatpush1.bf16.msra.mxu0 %v6374
      %8669 = vmatprep.subr.bf16.mxu0 %v6383
      %8670 = vmatpush1.bf16.msra.mxu0 %v6382
      %8671 = vmatprep.subr.bf16.mxu0 %v6391
      %8672 = vmatpush1.bf16.msra.mxu0 %v6390
      %8673 = vmatprep.subr.bf16.mxu0 %v6399
      %8674 = vmatpush1.bf16.msra.mxu0 %v6398
      %8675 = vmatprep.subr.bf16.mxu0 %v6407
      %8676 = vmatpush1.bf16.msra.mxu0 %v6406
      %8677 = vmatprep.subr.bf16.mxu0 %v6415
      %8678 = vmatpush1.bf16.msra.mxu0 %v6414
      %8679 = vmatprep.subr.bf16.mxu0 %v6423
      %8680 = vmatpush1.bf16.msra.mxu0 %v6422
      %8681 = vmatprep.subr.bf16.mxu0 %v6431
      %8682 = vmatpush1.bf16.msra.mxu0 %v6430
      %8683 = vmatprep.subr.bf16.mxu0 %v6439
      %8684 = vmatpush1.bf16.msra.mxu0 %v6438
      %8685 = vmatprep.subr.bf16.mxu0 %v6447
      %8686 = vmatpush1.bf16.msra.mxu0 %v6446
      %8687 = vmatprep.subr.bf16.mxu0 %v6455
      %8688 = vmatpush1.bf16.msra.mxu0 %v6454
      %8689 = vmatprep.mubr.bf16.mxu0 %v2319
      %8690 = vmatmul.mubr.bf16.gmra.mrb[0].mxu0 %v2311
      %v8691 = vpop.f32.mrb[0].mxu0
      %v8692 = vadd.f32 %v8651, %v8691
      %v8693 = vpop.f32.mrb[0].mxu0
      %v8694 = vadd.f32 %v8653, %v8693
      %v8695 = vpop.f32.mrb[0].mxu0
      %v8696 = vpop.f32.mrb[0].mxu0
      %8697 = vdwg.mxu0
      %8698 = vmatprep.subr.bf16.mxu0 %v6463
      %8699 = vmatpush1.bf16.msra.mxu0 %v6462
      %8700 = vmatprep.subr.bf16.mxu0 %v6471
      %8701 = vmatpush1.bf16.msra.mxu0 %v6470
      %8702 = vmatprep.subr.bf16.mxu0 %v6479
      %8703 = vmatpush1.bf16.msra.mxu0 %v6478
      %8704 = vmatprep.subr.bf16.mxu0 %v6487
      %8705 = vmatpush1.bf16.msra.mxu0 %v6486
      %8706 = vmatprep.subr.bf16.mxu0 %v6495
      %8707 = vmatpush1.bf16.msra.mxu0 %v6494
      %8708 = vmatprep.subr.bf16.mxu0 %v6503
      %8709 = vmatpush1.bf16.msra.mxu0 %v6502
      %8710 = vmatprep.subr.bf16.mxu0 %v6511
      %8711 = vmatpush1.bf16.msra.mxu0 %v6510
      %8712 = vmatprep.subr.bf16.mxu0 %v6519
      %8713 = vmatpush1.bf16.msra.mxu0 %v6518
      %8714 = vmatprep.subr.bf16.mxu0 %v6527
      %8715 = vmatpush1.bf16.msra.mxu0 %v6526
      %8716 = vmatprep.subr.bf16.mxu0 %v6535
      %8717 = vmatpush1.bf16.msra.mxu0 %v6534
      %8718 = vmatprep.subr.bf16.mxu0 %v6543
      %8719 = vmatpush1.bf16.msra.mxu0 %v6542
      %8720 = vmatprep.subr.bf16.mxu0 %v6551
      %8721 = vmatpush1.bf16.msra.mxu0 %v6550
      %8722 = vmatprep.subr.bf16.mxu0 %v6559
      %8723 = vmatpush1.bf16.msra.mxu0 %v6558
      %8724 = vmatprep.subr.bf16.mxu0 %v6567
      %8725 = vmatpush1.bf16.msra.mxu0 %v6566
      %8726 = vmatprep.subr.bf16.mxu0 %v6575
      %8727 = vmatpush1.bf16.msra.mxu0 %v6574
      %8728 = vmatprep.subr.bf16.mxu0 %v6583
      %8729 = vmatpush1.bf16.msra.mxu0 %v6582
      %8730 = vmatprep.mubr.bf16.mxu0 %v2320
      %8731 = vmatmul.mubr.bf16.gmra.mrb[0].mxu0 %v2318
      %v8732 = vpop.f32.mrb[0].mxu0
      %v8733 = vadd.f32 %v8692, %v8732
      %v8734 = vpop.f32.mrb[0].mxu0
      %v8735 = vadd.f32 %v8694, %v8734
      %v8736 = vpop.f32.mrb[0].mxu0
      %v8737 = vpop.f32.mrb[0].mxu0
      %8738 = vdwg.mxu0
      %8739 = vmatprep.subr.bf16.mxu0 %v6591
      %8740 = vmatpush1.bf16.msra.mxu0 %v6590
      %8741 = vmatprep.subr.bf16.mxu0 %v6599
      %8742 = vmatpush1.bf16.msra.mxu0 %v6598
      %8743 = vmatprep.subr.bf16.mxu0 %v6607
      %8744 = vmatpush1.bf16.msra.mxu0 %v6606
      %8745 = vmatprep.subr.bf16.mxu0 %v6615
      %8746 = vmatpush1.bf16.msra.mxu0 %v6614
      %8747 = vmatprep.subr.bf16.mxu0 %v6623
      %8748 = vmatpush1.bf16.msra.mxu0 %v6622
      %8749 = vmatprep.subr.bf16.mxu0 %v6631
      %8750 = vmatpush1.bf16.msra.mxu0 %v6630
      %8751 = vmatprep.subr.bf16.mxu0 %v6639
      %8752 = vmatpush1.bf16.msra.mxu0 %v6638
      %8753 = vmatprep.subr.bf16.mxu0 %v6647
      %8754 = vmatpush1.bf16.msra.mxu0 %v6646
      %8755 = vmatprep.subr.bf16.mxu0 %v6655
      %8756 = vmatpush1.bf16.msra.mxu0 %v6654
      %8757 = vmatprep.subr.bf16.mxu0 %v6663
      %8758 = vmatpush1.bf16.msra.mxu0 %v6662
      %8759 = vmatprep.subr.bf16.mxu0 %v6671
      %8760 = vmatpush1.bf16.msra.mxu0 %v6670
      %8761 = vmatprep.subr.bf16.mxu0 %v6679
      %8762 = vmatpush1.bf16.msra.mxu0 %v6678
      %8763 = vmatprep.subr.bf16.mxu0 %v6687
      %8764 = vmatpush1.bf16.msra.mxu0 %v6686
      %8765 = vmatprep.subr.bf16.mxu0 %v6695
      %8766 = vmatpush1.bf16.msra.mxu0 %v6694
      %8767 = vmatprep.subr.bf16.mxu0 %v6703
      %8768 = vmatpush1.bf16.msra.mxu0 %v6702
      %8769 = vmatprep.subr.bf16.mxu0 %v6711
      %8770 = vmatpush1.bf16.msra.mxu0 %v6710
      %8771 = vmatprep.mubr.bf16.mxu0 %v2336
      %8772 = vmatmul.mubr.bf16.gmra.mrb[0].mxu0 %v2328
      %v8773 = vpop.f32.mrb[0].mxu0
      %v8774 = vadd.f32 %v8733, %v8773
      %v8775 = vpop.f32.mrb[0].mxu0
      %v8776 = vadd.f32 %v8735, %v8775
      %v8777 = vpop.f32.mrb[0].mxu0
      %v8778 = vpop.f32.mrb[0].mxu0
      %8779 = vdwg.mxu0
      %8780 = vmatprep.subr.bf16.mxu0 %v6719
      %8781 = vmatpush1.bf16.msra.mxu0 %v6718
      %8782 = vmatprep.subr.bf16.mxu0 %v6727
      %8783 = vmatpush1.bf16.msra.mxu0 %v6726
      %8784 = vmatprep.subr.bf16.mxu0 %v6735
      %8785 = vmatpush1.bf16.msra.mxu0 %v6734
      %8786 = vmatprep.subr.bf16.mxu0 %v6743
      %8787 = vmatpush1.bf16.msra.mxu0 %v6742
      %8788 = vmatprep.subr.bf16.mxu0 %v6751
      %8789 = vmatpush1.bf16.msra.mxu0 %v6750
      %8790 = vmatprep.subr.bf16.mxu0 %v6759
      %8791 = vmatpush1.bf16.msra.mxu0 %v6758
      %8792 = vmatprep.subr.bf16.mxu0 %v6767
      %8793 = vmatpush1.bf16.msra.mxu0 %v6766
      %8794 = vmatprep.subr.bf16.mxu0 %v6775
      %8795 = vmatpush1.bf16.msra.mxu0 %v6774
      %8796 = vmatprep.subr.bf16.mxu0 %v6783
      %8797 = vmatpush1.bf16.msra.mxu0 %v6782
      %8798 = vmatprep.subr.bf16.mxu0 %v6791
      %8799 = vmatpush1.bf16.msra.mxu0 %v6790
      %8800 = vmatprep.subr.bf16.mxu0 %v6799
      %8801 = vmatpush1.bf16.msra.mxu0 %v6798
      %8802 = vmatprep.subr.bf16.mxu0 %v6807
      %8803 = vmatpush1.bf16.msra.mxu0 %v6806
      %8804 = vmatprep.subr.bf16.mxu0 %v6815
      %8805 = vmatpush1.bf16.msra.mxu0 %v6814
      %8806 = vmatprep.subr.bf16.mxu0 %v6823
      %8807 = vmatpush1.bf16.msra.mxu0 %v6822
      %8808 = vmatprep.subr.bf16.mxu0 %v6831
      %8809 = vmatpush1.bf16.msra.mxu0 %v6830
      %8810 = vmatprep.subr.bf16.mxu0 %v6839
      %8811 = vmatpush1.bf16.msra.mxu0 %v6838
      %8812 = vmatprep.mubr.bf16.mxu0 %v2337
      %8813 = vmatmul.mubr.bf16.gmra.mrb[0].mxu0 %v2335
      %v8814 = vpop.f32.mrb[0].mxu0
      %v8815 = vadd.f32 %v8774, %v8814
      %v8816 = vpop.f32.mrb[0].mxu0
      %v8817 = vadd.f32 %v8776, %v8816
      %v8818 = vpop.f32.mrb[0].mxu0
      %v8819 = vpop.f32.mrb[0].mxu0
      %8820 = vdwg.mxu0
      %8821 = vmatprep.subr.bf16.mxu0 %v6847
      %8822 = vmatpush1.bf16.msra.mxu0 %v6846
      %8823 = vmatprep.subr.bf16.mxu0 %v6855
      %8824 = vmatpush1.bf16.msra.mxu0 %v6854
      %8825 = vmatprep.subr.bf16.mxu0 %v6863
      %8826 = vmatpush1.bf16.msra.mxu0 %v6862
      %8827 = vmatprep.subr.bf16.mxu0 %v6871
      %8828 = vmatpush1.bf16.msra.mxu0 %v6870
      %8829 = vmatprep.subr.bf16.mxu0 %v6879
      %8830 = vmatpush1.bf16.msra.mxu0 %v6878
      %8831 = vmatprep.subr.bf16.mxu0 %v6887
      %8832 = vmatpush1.bf16.msra.mxu0 %v6886
      %8833 = vmatprep.subr.bf16.mxu0 %v6895
      %8834 = vmatpush1.bf16.msra.mxu0 %v6894
      %8835 = vmatprep.subr.bf16.mxu0 %v6903
      %8836 = vmatpush1.bf16.msra.mxu0 %v6902
      %8837 = vmatprep.subr.bf16.mxu0 %v6911
      %8838 = vmatpush1.bf16.msra.mxu0 %v6910
      %8839 = vmatprep.subr.bf16.mxu0 %v6919
      %8840 = vmatpush1.bf16.msra.mxu0 %v6918
      %8841 = vmatprep.subr.bf16.mxu0 %v6927
      %8842 = vmatpush1.bf16.msra.mxu0 %v6926
      %8843 = vmatprep.subr.bf16.mxu0 %v6935
      %8844 = vmatpush1.bf16.msra.mxu0 %v6934
      %8845 = vmatprep.subr.bf16.mxu0 %v6943
      %8846 = vmatpush1.bf16.msra.mxu0 %v6942
      %8847 = vmatprep.subr.bf16.mxu0 %v6951
      %8848 = vmatpush1.bf16.msra.mxu0 %v6950
      %8849 = vmatprep.subr.bf16.mxu0 %v6959
      %8850 = vmatpush1.bf16.msra.mxu0 %v6958
      %8851 = vmatprep.subr.bf16.mxu0 %v6967
      %8852 = vmatpush1.bf16.msra.mxu0 %v6966
      %8853 = vmatprep.mubr.bf16.mxu0 %v2345
      %8854 = vmatmul.mubr.bf16.gmra.mrb[0].mxu0 %v2344
      %v8855 = vpop.f32.mrb[0].mxu0
      %v8856 = vadd.f32 %v8815, %v8855
      %v8857 = vpop.f32.mrb[0].mxu0
      %v8858 = vadd.f32 %v8817, %v8857
      %v8859 = vpop.f32.mrb[0].mxu0
      %v8860 = vpop.f32.mrb[0].mxu0
      %8861 = vdwg.mxu0
      %8862 = vmatprep.subr.bf16.mxu0 %v5825
      %8863 = vmatpush1.bf16.msra.mxu0 %v5824
      %8864 = vmatprep.subr.bf16.mxu0 %v5833
      %8865 = vmatpush1.bf16.msra.mxu0 %v5832
      %8866 = vmatprep.subr.bf16.mxu0 %v5841
      %8867 = vmatpush1.bf16.msra.mxu0 %v5840
      %8868 = vmatprep.subr.bf16.mxu0 %v5849
      %8869 = vmatpush1.bf16.msra.mxu0 %v5848
      %8870 = vmatprep.subr.bf16.mxu0 %v5857
      %8871 = vmatpush1.bf16.msra.mxu0 %v5856
      %8872 = vmatprep.subr.bf16.mxu0 %v5865
      %8873 = vmatpush1.bf16.msra.mxu0 %v5864
      %8874 = vmatprep.subr.bf16.mxu0 %v5873
      %8875 = vmatpush1.bf16.msra.mxu0 %v5872
      %8876 = vmatprep.subr.bf16.mxu0 %v5881
      %8877 = vmatpush1.bf16.msra.mxu0 %v5880
      %8878 = vmatprep.subr.bf16.mxu0 %v5889
      %8879 = vmatpush1.bf16.msra.mxu0 %v5888
      %8880 = vmatprep.subr.bf16.mxu0 %v5897
      %8881 = vmatpush1.bf16.msra.mxu0 %v5896
      %8882 = vmatprep.subr.bf16.mxu0 %v5905
      %8883 = vmatpush1.bf16.msra.mxu0 %v5904
      %8884 = vmatprep.subr.bf16.mxu0 %v5913
      %8885 = vmatpush1.bf16.msra.mxu0 %v5912
      %8886 = vmatprep.subr.bf16.mxu0 %v5921
      %8887 = vmatpush1.bf16.msra.mxu0 %v5920
      %8888 = vmatprep.subr.bf16.mxu0 %v5929
      %8889 = vmatpush1.bf16.msra.mxu0 %v5928
      %8890 = vmatprep.subr.bf16.mxu0 %v5937
      %8891 = vmatpush1.bf16.msra.mxu0 %v5936
      %8892 = vmatprep.subr.bf16.mxu0 %v5945
      %8893 = vmatpush1.bf16.msra.mxu0 %v5944
      %8894 = vmatprep.mubr.bf16.mxu0 %v2285
      %8895 = vmatmul.mubr.bf16.gmra.mrb[0].mxu0 %v2277
      %v8896 = vpop.f32.mrb[0].mxu0
      %v8897 = vadd.f32 0.0, %v8896
      %v8898 = vpop.f32.mrb[0].mxu0
      %v8899 = vadd.f32 0.0, %v8898
      %v8900 = vpop.f32.mrb[0].mxu0
      %v8901 = vpop.f32.mrb[0].mxu0
      %8902 = vdwg.mxu0
      %8903 = vmatprep.subr.bf16.mxu0 %v5953
      %8904 = vmatpush1.bf16.msra.mxu0 %v5952
      %8905 = vmatprep.subr.bf16.mxu0 %v5961
      %8906 = vmatpush1.bf16.msra.mxu0 %v5960
      %8907 = vmatprep.subr.bf16.mxu0 %v5969
      %8908 = vmatpush1.bf16.msra.mxu0 %v5968
      %8909 = vmatprep.subr.bf16.mxu0 %v5977
      %8910 = vmatpush1.bf16.msra.mxu0 %v5976
      %8911 = vmatprep.subr.bf16.mxu0 %v5985
      %8912 = vmatpush1.bf16.msra.mxu0 %v5984
      %8913 = vmatprep.subr.bf16.mxu0 %v5993
      %8914 = vmatpush1.bf16.msra.mxu0 %v5992
      %8915 = vmatprep.subr.bf16.mxu0 %v6001
      %8916 = vmatpush1.bf16.msra.mxu0 %v6000
      %8917 = vmatprep.subr.bf16.mxu0 %v6009
      %8918 = vmatpush1.bf16.msra.mxu0 %v6008
      %8919 = vmatprep.subr.bf16.mxu0 %v6017
      %8920 = vmatpush1.bf16.msra.mxu0 %v6016
      %8921 = vmatprep.subr.bf16.mxu0 %v6025
      %8922 = vmatpush1.bf16.msra.mxu0 %v6024
      %8923 = vmatprep.subr.bf16.mxu0 %v6033
      %8924 = vmatpush1.bf16.msra.mxu0 %v6032
      %8925 = vmatprep.subr.bf16.mxu0 %v6041
      %8926 = vmatpush1.bf16.msra.mxu0 %v6040
      %8927 = vmatprep.subr.bf16.mxu0 %v6049
      %8928 = vmatpush1.bf16.msra.mxu0 %v6048
      %8929 = vmatprep.subr.bf16.mxu0 %v6057
      %8930 = vmatpush1.bf16.msra.mxu0 %v6056
      %8931 = vmatprep.subr.bf16.mxu0 %v6065
      %8932 = vmatpush1.bf16.msra.mxu0 %v6064
      %8933 = vmatprep.subr.bf16.mxu0 %v6073
      %8934 = vmatpush1.bf16.msra.mxu0 %v6072
      %8935 = vmatprep.mubr.bf16.mxu0 %v2286
      %8936 = vmatmul.mubr.bf16.gmra.mrb[0].mxu0 %v2284
      %v8937 = vpop.f32.mrb[0].mxu0
      %v8938 = vadd.f32 %v8897, %v8937
      %v8939 = vpop.f32.mrb[0].mxu0
      %v8940 = vadd.f32 %v8899, %v8939
      %v8941 = vpop.f32.mrb[0].mxu0
      %v8942 = vpop.f32.mrb[0].mxu0
      %8943 = vdwg.mxu0
      %8944 = vmatprep.subr.bf16.mxu0 %v6081
      %8945 = vmatpush1.bf16.msra.mxu0 %v6080
      %8946 = vmatprep.subr.bf16.mxu0 %v6089
      %8947 = vmatpush1.bf16.msra.mxu0 %v6088
      %8948 = vmatprep.subr.bf16.mxu0 %v6097
      %8949 = vmatpush1.bf16.msra.mxu0 %v6096
      %8950 = vmatprep.subr.bf16.mxu0 %v6105
      %8951 = vmatpush1.bf16.msra.mxu0 %v6104
      %8952 = vmatprep.subr.bf16.mxu0 %v6113
      %8953 = vmatpush1.bf16.msra.mxu0 %v6112
      %8954 = vmatprep.subr.bf16.mxu0 %v6121
      %8955 = vmatpush1.bf16.msra.mxu0 %v6120
      %8956 = vmatprep.subr.bf16.mxu0 %v6129
      %8957 = vmatpush1.bf16.msra.mxu0 %v6128
      %8958 = vmatprep.subr.bf16.mxu0 %v6137
      %8959 = vmatpush1.bf16.msra.mxu0 %v6136
      %8960 = vmatprep.subr.bf16.mxu0 %v6145
      %8961 = vmatpush1.bf16.msra.mxu0 %v6144
      %8962 = vmatprep.subr.bf16.mxu0 %v6153
      %8963 = vmatpush1.bf16.msra.mxu0 %v6152
      %8964 = vmatprep.subr.bf16.mxu0 %v6161
      %8965 = vmatpush1.bf16.msra.mxu0 %v6160
      %8966 = vmatprep.subr.bf16.mxu0 %v6169
      %8967 = vmatpush1.bf16.msra.mxu0 %v6168
      %8968 = vmatprep.subr.bf16.mxu0 %v6177
      %8969 = vmatpush1.bf16.msra.mxu0 %v6176
      %8970 = vmatprep.subr.bf16.mxu0 %v6185
      %8971 = vmatpush1.bf16.msra.mxu0 %v6184
      %8972 = vmatprep.subr.bf16.mxu0 %v6193
      %8973 = vmatpush1.bf16.msra.mxu0 %v6192
      %8974 = vmatprep.subr.bf16.mxu0 %v6201
      %8975 = vmatpush1.bf16.msra.mxu0 %v6200
      %8976 = vmatprep.mubr.bf16.mxu0 %v2302
      %8977 = vmatmul.mubr.bf16.gmra.mrb[0].mxu0 %v2294
      %v8978 = vpop.f32.mrb[0].mxu0
      %v8979 = vadd.f32 %v8938, %v8978
      %v8980 = vpop.f32.mrb[0].mxu0
      %v8981 = vadd.f32 %v8940, %v8980
      %v8982 = vpop.f32.mrb[0].mxu0
      %v8983 = vpop.f32.mrb[0].mxu0
      %8984 = vdwg.mxu0
      %8985 = vmatprep.subr.bf16.mxu0 %v6209
      %8986 = vmatpush1.bf16.msra.mxu0 %v6208
      %8987 = vmatprep.subr.bf16.mxu0 %v6217
      %8988 = vmatpush1.bf16.msra.mxu0 %v6216
      %8989 = vmatprep.subr.bf16.mxu0 %v6225
      %8990 = vmatpush1.bf16.msra.mxu0 %v6224
      %8991 = vmatprep.subr.bf16.mxu0 %v6233
      %8992 = vmatpush1.bf16.msra.mxu0 %v6232
      %8993 = vmatprep.subr.bf16.mxu0 %v6241
      %8994 = vmatpush1.bf16.msra.mxu0 %v6240
      %8995 = vmatprep.subr.bf16.mxu0 %v6249
      %8996 = vmatpush1.bf16.msra.mxu0 %v6248
      %8997 = vmatprep.subr.bf16.mxu0 %v6257
      %8998 = vmatpush1.bf16.msra.mxu0 %v6256
      %8999 = vmatprep.subr.bf16.mxu0 %v6265
      %9000 = vmatpush1.bf16.msra.mxu0 %v6264
      %9001 = vmatprep.subr.bf16.mxu0 %v6273
      %9002 = vmatpush1.bf16.msra.mxu0 %v6272
      %9003 = vmatprep.subr.bf16.mxu0 %v6281
      %9004 = vmatpush1.bf16.msra.mxu0 %v6280
      %9005 = vmatprep.subr.bf16.mxu0 %v6289
      %9006 = vmatpush1.bf16.msra.mxu0 %v6288
      %9007 = vmatprep.subr.bf16.mxu0 %v6297
      %9008 = vmatpush1.bf16.msra.mxu0 %v6296
      %9009 = vmatprep.subr.bf16.mxu0 %v6305
      %9010 = vmatpush1.bf16.msra.mxu0 %v6304
      %9011 = vmatprep.subr.bf16.mxu0 %v6313
      %9012 = vmatpush1.bf16.msra.mxu0 %v6312
      %9013 = vmatprep.subr.bf16.mxu0 %v6321
      %9014 = vmatpush1.bf16.msra.mxu0 %v6320
      %9015 = vmatprep.subr.bf16.mxu0 %v6329
      %9016 = vmatpush1.bf16.msra.mxu0 %v6328
      %9017 = vmatprep.mubr.bf16.mxu0 %v2303
      %9018 = vmatmul.mubr.bf16.gmra.mrb[0].mxu0 %v2301
      %v9019 = vpop.f32.mrb[0].mxu0
      %v9020 = vadd.f32 %v8979, %v9019
      %v9021 = vpop.f32.mrb[0].mxu0
      %v9022 = vadd.f32 %v8981, %v9021
      %v9023 = vpop.f32.mrb[0].mxu0
      %v9024 = vpop.f32.mrb[0].mxu0
      %9025 = vdwg.mxu0
      %9026 = vmatprep.subr.bf16.mxu0 %v6337
      %9027 = vmatpush1.bf16.msra.mxu0 %v6336
      %9028 = vmatprep.subr.bf16.mxu0 %v6345
      %9029 = vmatpush1.bf16.msra.mxu0 %v6344
      %9030 = vmatprep.subr.bf16.mxu0 %v6353
      %9031 = vmatpush1.bf16.msra.mxu0 %v6352
      %9032 = vmatprep.subr.bf16.mxu0 %v6361
      %9033 = vmatpush1.bf16.msra.mxu0 %v6360
      %9034 = vmatprep.subr.bf16.mxu0 %v6369
      %9035 = vmatpush1.bf16.msra.mxu0 %v6368
      %9036 = vmatprep.subr.bf16.mxu0 %v6377
      %9037 = vmatpush1.bf16.msra.mxu0 %v6376
      %9038 = vmatprep.subr.bf16.mxu0 %v6385
      %9039 = vmatpush1.bf16.msra.mxu0 %v6384
      %9040 = vmatprep.subr.bf16.mxu0 %v6393
      %9041 = vmatpush1.bf16.msra.mxu0 %v6392
      %9042 = vmatprep.subr.bf16.mxu0 %v6401
      %9043 = vmatpush1.bf16.msra.mxu0 %v6400
      %9044 = vmatprep.subr.bf16.mxu0 %v6409
      %9045 = vmatpush1.bf16.msra.mxu0 %v6408
      %9046 = vmatprep.subr.bf16.mxu0 %v6417
      %9047 = vmatpush1.bf16.msra.mxu0 %v6416
      %9048 = vmatprep.subr.bf16.mxu0 %v6425
      %9049 = vmatpush1.bf16.msra.mxu0 %v6424
      %9050 = vmatprep.subr.bf16.mxu0 %v6433
      %9051 = vmatpush1.bf16.msra.mxu0 %v6432
      %9052 = vmatprep.subr.bf16.mxu0 %v6441
      %9053 = vmatpush1.bf16.msra.mxu0 %v6440
      %9054 = vmatprep.subr.bf16.mxu0 %v6449
      %9055 = vmatpush1.bf16.msra.mxu0 %v6448
      %9056 = vmatprep.subr.bf16.mxu0 %v6457
      %9057 = vmatpush1.bf16.msra.mxu0 %v6456
      %9058 = vmatprep.mubr.bf16.mxu0 %v2319
      %9059 = vmatmul.mubr.bf16.gmra.mrb[0].mxu0 %v2311
      %v9060 = vpop.f32.mrb[0].mxu0
      %v9061 = vadd.f32 %v9020, %v9060
      %v9062 = vpop.f32.mrb[0].mxu0
      %v9063 = vadd.f32 %v9022, %v9062
      %v9064 = vpop.f32.mrb[0].mxu0
      %v9065 = vpop.f32.mrb[0].mxu0
      %9066 = vdwg.mxu0
      %9067 = vmatprep.subr.bf16.mxu0 %v6465
      %9068 = vmatpush1.bf16.msra.mxu0 %v6464
      %9069 = vmatprep.subr.bf16.mxu0 %v6473
      %9070 = vmatpush1.bf16.msra.mxu0 %v6472
      %9071 = vmatprep.subr.bf16.mxu0 %v6481
      %9072 = vmatpush1.bf16.msra.mxu0 %v6480
      %9073 = vmatprep.subr.bf16.mxu0 %v6489
      %9074 = vmatpush1.bf16.msra.mxu0 %v6488
      %9075 = vmatprep.subr.bf16.mxu0 %v6497
      %9076 = vmatpush1.bf16.msra.mxu0 %v6496
      %9077 = vmatprep.subr.bf16.mxu0 %v6505
      %9078 = vmatpush1.bf16.msra.mxu0 %v6504
      %9079 = vmatprep.subr.bf16.mxu0 %v6513
      %9080 = vmatpush1.bf16.msra.mxu0 %v6512
      %9081 = vmatprep.subr.bf16.mxu0 %v6521
      %9082 = vmatpush1.bf16.msra.mxu0 %v6520
      %9083 = vmatprep.subr.bf16.mxu0 %v6529
      %9084 = vmatpush1.bf16.msra.mxu0 %v6528
      %9085 = vmatprep.subr.bf16.mxu0 %v6537
      %9086 = vmatpush1.bf16.msra.mxu0 %v6536
      %9087 = vmatprep.subr.bf16.mxu0 %v6545
      %9088 = vmatpush1.bf16.msra.mxu0 %v6544
      %9089 = vmatprep.subr.bf16.mxu0 %v6553
      %9090 = vmatpush1.bf16.msra.mxu0 %v6552
      %9091 = vmatprep.subr.bf16.mxu0 %v6561
      %9092 = vmatpush1.bf16.msra.mxu0 %v6560
      %9093 = vmatprep.subr.bf16.mxu0 %v6569
      %9094 = vmatpush1.bf16.msra.mxu0 %v6568
      %9095 = vmatprep.subr.bf16.mxu0 %v6577
      %9096 = vmatpush1.bf16.msra.mxu0 %v6576
      %9097 = vmatprep.subr.bf16.mxu0 %v6585
      %9098 = vmatpush1.bf16.msra.mxu0 %v6584
      %9099 = vmatprep.mubr.bf16.mxu0 %v2320
      %9100 = vmatmul.mubr.bf16.gmra.mrb[0].mxu0 %v2318
      %v9101 = vpop.f32.mrb[0].mxu0
      %v9102 = vadd.f32 %v9061, %v9101
      %v9103 = vpop.f32.mrb[0].mxu0
      %v9104 = vadd.f32 %v9063, %v9103
      %v9105 = vpop.f32.mrb[0].mxu0
      %v9106 = vpop.f32.mrb[0].mxu0
      %9107 = vdwg.mxu0
      %9108 = vmatprep.subr.bf16.mxu0 %v6593
      %9109 = vmatpush1.bf16.msra.mxu0 %v6592
      %9110 = vmatprep.subr.bf16.mxu0 %v6601
      %9111 = vmatpush1.bf16.msra.mxu0 %v6600
      %9112 = vmatprep.subr.bf16.mxu0 %v6609
      %9113 = vmatpush1.bf16.msra.mxu0 %v6608
      %9114 = vmatprep.subr.bf16.mxu0 %v6617
      %9115 = vmatpush1.bf16.msra.mxu0 %v6616
      %9116 = vmatprep.subr.bf16.mxu0 %v6625
      %9117 = vmatpush1.bf16.msra.mxu0 %v6624
      %9118 = vmatprep.subr.bf16.mxu0 %v6633
      %9119 = vmatpush1.bf16.msra.mxu0 %v6632
      %9120 = vmatprep.subr.bf16.mxu0 %v6641
      %9121 = vmatpush1.bf16.msra.mxu0 %v6640
      %9122 = vmatprep.subr.bf16.mxu0 %v6649
      %9123 = vmatpush1.bf16.msra.mxu0 %v6648
      %9124 = vmatprep.subr.bf16.mxu0 %v6657
      %9125 = vmatpush1.bf16.msra.mxu0 %v6656
      %9126 = vmatprep.subr.bf16.mxu0 %v6665
      %9127 = vmatpush1.bf16.msra.mxu0 %v6664
      %9128 = vmatprep.subr.bf16.mxu0 %v6673
      %9129 = vmatpush1.bf16.msra.mxu0 %v6672
      %9130 = vmatprep.subr.bf16.mxu0 %v6681
      %9131 = vmatpush1.bf16.msra.mxu0 %v6680
      %9132 = vmatprep.subr.bf16.mxu0 %v6689
      %9133 = vmatpush1.bf16.msra.mxu0 %v6688
      %9134 = vmatprep.subr.bf16.mxu0 %v6697
      %9135 = vmatpush1.bf16.msra.mxu0 %v6696
      %9136 = vmatprep.subr.bf16.mxu0 %v6705
      %9137 = vmatpush1.bf16.msra.mxu0 %v6704
      %9138 = vmatprep.subr.bf16.mxu0 %v6713
      %9139 = vmatpush1.bf16.msra.mxu0 %v6712
      %9140 = vmatprep.mubr.bf16.mxu0 %v2336
      %9141 = vmatmul.mubr.bf16.gmra.mrb[0].mxu0 %v2328
      %v9142 = vpop.f32.mrb[0].mxu0
      %v9143 = vadd.f32 %v9102, %v9142
      %v9144 = vpop.f32.mrb[0].mxu0
      %v9145 = vadd.f32 %v9104, %v9144
      %v9146 = vpop.f32.mrb[0].mxu0
      %v9147 = vpop.f32.mrb[0].mxu0
      %9148 = vdwg.mxu0
      %9149 = vmatprep.subr.bf16.mxu0 %v6721
      %9150 = vmatpush1.bf16.msra.mxu0 %v6720
      %9151 = vmatprep.subr.bf16.mxu0 %v6729
      %9152 = vmatpush1.bf16.msra.mxu0 %v6728
      %9153 = vmatprep.subr.bf16.mxu0 %v6737
      %9154 = vmatpush1.bf16.msra.mxu0 %v6736
      %9155 = vmatprep.subr.bf16.mxu0 %v6745
      %9156 = vmatpush1.bf16.msra.mxu0 %v6744
      %9157 = vmatprep.subr.bf16.mxu0 %v6753
      %9158 = vmatpush1.bf16.msra.mxu0 %v6752
      %9159 = vmatprep.subr.bf16.mxu0 %v6761
      %9160 = vmatpush1.bf16.msra.mxu0 %v6760
      %9161 = vmatprep.subr.bf16.mxu0 %v6769
      %9162 = vmatpush1.bf16.msra.mxu0 %v6768
      %9163 = vmatprep.subr.bf16.mxu0 %v6777
      %9164 = vmatpush1.bf16.msra.mxu0 %v6776
      %9165 = vmatprep.subr.bf16.mxu0 %v6785
      %9166 = vmatpush1.bf16.msra.mxu0 %v6784
      %9167 = vmatprep.subr.bf16.mxu0 %v6793
      %9168 = vmatpush1.bf16.msra.mxu0 %v6792
      %9169 = vmatprep.subr.bf16.mxu0 %v6801
      %9170 = vmatpush1.bf16.msra.mxu0 %v6800
      %9171 = vmatprep.subr.bf16.mxu0 %v6809
      %9172 = vmatpush1.bf16.msra.mxu0 %v6808
      %9173 = vmatprep.subr.bf16.mxu0 %v6817
      %9174 = vmatpush1.bf16.msra.mxu0 %v6816
      %9175 = vmatprep.subr.bf16.mxu0 %v6825
      %9176 = vmatpush1.bf16.msra.mxu0 %v6824
      %9177 = vmatprep.subr.bf16.mxu0 %v6833
      %9178 = vmatpush1.bf16.msra.mxu0 %v6832
      %9179 = vmatprep.subr.bf16.mxu0 %v6841
      %9180 = vmatpush1.bf16.msra.mxu0 %v6840
      %9181 = vmatprep.mubr.bf16.mxu0 %v2337
      %9182 = vmatmul.mubr.bf16.gmra.mrb[0].mxu0 %v2335
      %v9183 = vpop.f32.mrb[0].mxu0
      %v9184 = vadd.f32 %v9143, %v9183
      %v9185 = vpop.f32.mrb[0].mxu0
      %v9186 = vadd.f32 %v9145, %v9185
      %v9187 = vpop.f32.mrb[0].mxu0
      %v9188 = vpop.f32.mrb[0].mxu0
      %9189 = vdwg.mxu0
      %9190 = vmatprep.subr.bf16.mxu0 %v6849
      %9191 = vmatpush1.bf16.msra.mxu0 %v6848
      %9192 = vmatprep.subr.bf16.mxu0 %v6857
      %9193 = vmatpush1.bf16.msra.mxu0 %v6856
      %9194 = vmatprep.subr.bf16.mxu0 %v6865
      %9195 = vmatpush1.bf16.msra.mxu0 %v6864
      %9196 = vmatprep.subr.bf16.mxu0 %v6873
      %9197 = vmatpush1.bf16.msra.mxu0 %v6872
      %9198 = vmatprep.subr.bf16.mxu0 %v6881
      %9199 = vmatpush1.bf16.msra.mxu0 %v6880
      %9200 = vmatprep.subr.bf16.mxu0 %v6889
      %9201 = vmatpush1.bf16.msra.mxu0 %v6888
      %9202 = vmatprep.subr.bf16.mxu0 %v6897
      %9203 = vmatpush1.bf16.msra.mxu0 %v6896
      %9204 = vmatprep.subr.bf16.mxu0 %v6905
      %9205 = vmatpush1.bf16.msra.mxu0 %v6904
      %9206 = vmatprep.subr.bf16.mxu0 %v6913
      %9207 = vmatpush1.bf16.msra.mxu0 %v6912
      %9208 = vmatprep.subr.bf16.mxu0 %v6921
      %9209 = vmatpush1.bf16.msra.mxu0 %v6920
      %9210 = vmatprep.subr.bf16.mxu0 %v6929
      %9211 = vmatpush1.bf16.msra.mxu0 %v6928
      %9212 = vmatprep.subr.bf16.mxu0 %v6937
      %9213 = vmatpush1.bf16.msra.mxu0 %v6936
      %9214 = vmatprep.subr.bf16.mxu0 %v6945
      %9215 = vmatpush1.bf16.msra.mxu0 %v6944
      %9216 = vmatprep.subr.bf16.mxu0 %v6953
      %9217 = vmatpush1.bf16.msra.mxu0 %v6952
      %9218 = vmatprep.subr.bf16.mxu0 %v6961
      %9219 = vmatpush1.bf16.msra.mxu0 %v6960
      %9220 = vmatprep.subr.bf16.mxu0 %v6969
      %9221 = vmatpush1.bf16.msra.mxu0 %v6968
      %9222 = vmatprep.mubr.bf16.mxu0 %v2345
      %9223 = vmatmul.mubr.bf16.gmra.mrb[0].mxu0 %v2344
      %v9224 = vpop.f32.mrb[0].mxu0
      %v9225 = vadd.f32 %v9184, %v9224
      %v9226 = vpop.f32.mrb[0].mxu0
      %v9227 = vadd.f32 %v9186, %v9226
      %v9228 = vpop.f32.mrb[0].mxu0
      %v9229 = vpop.f32.mrb[0].mxu0
      %9230 = vdwg.mxu0
      %9231 = vmatprep.subr.bf16.mxu0 %v5827
      %9232 = vmatpush1.bf16.msra.mxu0 %v5826
      %9233 = vmatprep.subr.bf16.mxu0 %v5835
      %9234 = vmatpush1.bf16.msra.mxu0 %v5834
      %9235 = vmatprep.subr.bf16.mxu0 %v5843
      %9236 = vmatpush1.bf16.msra.mxu0 %v5842
      %9237 = vmatprep.subr.bf16.mxu0 %v5851
      %9238 = vmatpush1.bf16.msra.mxu0 %v5850
      %9239 = vmatprep.subr.bf16.mxu0 %v5859
      %9240 = vmatpush1.bf16.msra.mxu0 %v5858
      %9241 = vmatprep.subr.bf16.mxu0 %v5867
      %9242 = vmatpush1.bf16.msra.mxu0 %v5866
      %9243 = vmatprep.subr.bf16.mxu0 %v5875
      %9244 = vmatpush1.bf16.msra.mxu0 %v5874
      %9245 = vmatprep.subr.bf16.mxu0 %v5883
      %9246 = vmatpush1.bf16.msra.mxu0 %v5882
      %9247 = vmatprep.subr.bf16.mxu0 %v5891
      %9248 = vmatpush1.bf16.msra.mxu0 %v5890
      %9249 = vmatprep.subr.bf16.mxu0 %v5899
      %9250 = vmatpush1.bf16.msra.mxu0 %v5898
      %9251 = vmatprep.subr.bf16.mxu0 %v5907
      %9252 = vmatpush1.bf16.msra.mxu0 %v5906
      %9253 = vmatprep.subr.bf16.mxu0 %v5915
      %9254 = vmatpush1.bf16.msra.mxu0 %v5914
      %9255 = vmatprep.subr.bf16.mxu0 %v5923
      %9256 = vmatpush1.bf16.msra.mxu0 %v5922
      %9257 = vmatprep.subr.bf16.mxu0 %v5931
      %9258 = vmatpush1.bf16.msra.mxu0 %v5930
      %9259 = vmatprep.subr.bf16.mxu0 %v5939
      %9260 = vmatpush1.bf16.msra.mxu0 %v5938
      %9261 = vmatprep.subr.bf16.mxu0 %v5947
      %9262 = vmatpush1.bf16.msra.mxu0 %v5946
      %9263 = vmatprep.mubr.bf16.mxu0 %v2285
      %9264 = vmatmul.mubr.bf16.gmra.mrb[0].mxu0 %v2277
      %v9265 = vpop.f32.mrb[0].mxu0
      %v9266 = vadd.f32 0.0, %v9265
      %v9267 = vpop.f32.mrb[0].mxu0
      %v9268 = vadd.f32 0.0, %v9267
      %v9269 = vpop.f32.mrb[0].mxu0
      %v9270 = vpop.f32.mrb[0].mxu0
      %9271 = vdwg.mxu0
      %9272 = vmatprep.subr.bf16.mxu0 %v5955
      %9273 = vmatpush1.bf16.msra.mxu0 %v5954
      %9274 = vmatprep.subr.bf16.mxu0 %v5963
      %9275 = vmatpush1.bf16.msra.mxu0 %v5962
      %9276 = vmatprep.subr.bf16.mxu0 %v5971
      %9277 = vmatpush1.bf16.msra.mxu0 %v5970
      %9278 = vmatprep.subr.bf16.mxu0 %v5979
      %9279 = vmatpush1.bf16.msra.mxu0 %v5978
      %9280 = vmatprep.subr.bf16.mxu0 %v5987
      %9281 = vmatpush1.bf16.msra.mxu0 %v5986
      %9282 = vmatprep.subr.bf16.mxu0 %v5995
      %9283 = vmatpush1.bf16.msra.mxu0 %v5994
      %9284 = vmatprep.subr.bf16.mxu0 %v6003
      %9285 = vmatpush1.bf16.msra.mxu0 %v6002
      %9286 = vmatprep.subr.bf16.mxu0 %v6011
      %9287 = vmatpush1.bf16.msra.mxu0 %v6010
      %9288 = vmatprep.subr.bf16.mxu0 %v6019
      %9289 = vmatpush1.bf16.msra.mxu0 %v6018
      %9290 = vmatprep.subr.bf16.mxu0 %v6027
      %9291 = vmatpush1.bf16.msra.mxu0 %v6026
      %9292 = vmatprep.subr.bf16.mxu0 %v6035
      %9293 = vmatpush1.bf16.msra.mxu0 %v6034
      %9294 = vmatprep.subr.bf16.mxu0 %v6043
      %9295 = vmatpush1.bf16.msra.mxu0 %v6042
      %9296 = vmatprep.subr.bf16.mxu0 %v6051
      %9297 = vmatpush1.bf16.msra.mxu0 %v6050
      %9298 = vmatprep.subr.bf16.mxu0 %v6059
      %9299 = vmatpush1.bf16.msra.mxu0 %v6058
      %9300 = vmatprep.subr.bf16.mxu0 %v6067
      %9301 = vmatpush1.bf16.msra.mxu0 %v6066
      %9302 = vmatprep.subr.bf16.mxu0 %v6075
      %9303 = vmatpush1.bf16.msra.mxu0 %v6074
      %9304 = vmatprep.mubr.bf16.mxu0 %v2286
      %9305 = vmatmul.mubr.bf16.gmra.mrb[0].mxu0 %v2284
      %v9306 = vpop.f32.mrb[0].mxu0
      %v9307 = vadd.f32 %v9266, %v9306
      %v9308 = vpop.f32.mrb[0].mxu0
      %v9309 = vadd.f32 %v9268, %v9308
      %v9310 = vpop.f32.mrb[0].mxu0
      %v9311 = vpop.f32.mrb[0].mxu0
      %9312 = vdwg.mxu0
      %9313 = vmatprep.subr.bf16.mxu0 %v6083
      %9314 = vmatpush1.bf16.msra.mxu0 %v6082
      %9315 = vmatprep.subr.bf16.mxu0 %v6091
      %9316 = vmatpush1.bf16.msra.mxu0 %v6090
      %9317 = vmatprep.subr.bf16.mxu0 %v6099
      %9318 = vmatpush1.bf16.msra.mxu0 %v6098
      %9319 = vmatprep.subr.bf16.mxu0 %v6107
      %9320 = vmatpush1.bf16.msra.mxu0 %v6106
      %9321 = vmatprep.subr.bf16.mxu0 %v6115
      %9322 = vmatpush1.bf16.msra.mxu0 %v6114
      %9323 = vmatprep.subr.bf16.mxu0 %v6123
      %9324 = vmatpush1.bf16.msra.mxu0 %v6122
      %9325 = vmatprep.subr.bf16.mxu0 %v6131
      %9326 = vmatpush1.bf16.msra.mxu0 %v6130
      %9327 = vmatprep.subr.bf16.mxu0 %v6139
      %9328 = vmatpush1.bf16.msra.mxu0 %v6138
      %9329 = vmatprep.subr.bf16.mxu0 %v6147
      %9330 = vmatpush1.bf16.msra.mxu0 %v6146
      %9331 = vmatprep.subr.bf16.mxu0 %v6155
      %9332 = vmatpush1.bf16.msra.mxu0 %v6154
      %9333 = vmatprep.subr.bf16.mxu0 %v6163
      %9334 = vmatpush1.bf16.msra.mxu0 %v6162
      %9335 = vmatprep.subr.bf16.mxu0 %v6171
      %9336 = vmatpush1.bf16.msra.mxu0 %v6170
      %9337 = vmatprep.subr.bf16.mxu0 %v6179
      %9338 = vmatpush1.bf16.msra.mxu0 %v6178
      %9339 = vmatprep.subr.bf16.mxu0 %v6187
      %9340 = vmatpush1.bf16.msra.mxu0 %v6186
      %9341 = vmatprep.subr.bf16.mxu0 %v6195
      %9342 = vmatpush1.bf16.msra.mxu0 %v6194
      %9343 = vmatprep.subr.bf16.mxu0 %v6203
      %9344 = vmatpush1.bf16.msra.mxu0 %v6202
      %9345 = vmatprep.mubr.bf16.mxu0 %v2302
      %9346 = vmatmul.mubr.bf16.gmra.mrb[0].mxu0 %v2294
      %v9347 = vpop.f32.mrb[0].mxu0
      %v9348 = vadd.f32 %v9307, %v9347
      %v9349 = vpop.f32.mrb[0].mxu0
      %v9350 = vadd.f32 %v9309, %v9349
      %v9351 = vpop.f32.mrb[0].mxu0
      %v9352 = vpop.f32.mrb[0].mxu0
      %9353 = vdwg.mxu0
      %9354 = vmatprep.subr.bf16.mxu0 %v6211
      %9355 = vmatpush1.bf16.msra.mxu0 %v6210
      %9356 = vmatprep.subr.bf16.mxu0 %v6219
      %9357 = vmatpush1.bf16.msra.mxu0 %v6218
      %9358 = vmatprep.subr.bf16.mxu0 %v6227
      %9359 = vmatpush1.bf16.msra.mxu0 %v6226
      %9360 = vmatprep.subr.bf16.mxu0 %v6235
      %9361 = vmatpush1.bf16.msra.mxu0 %v6234
      %9362 = vmatprep.subr.bf16.mxu0 %v6243
      %9363 = vmatpush1.bf16.msra.mxu0 %v6242
      %9364 = vmatprep.subr.bf16.mxu0 %v6251
      %9365 = vmatpush1.bf16.msra.mxu0 %v6250
      %9366 = vmatprep.subr.bf16.mxu0 %v6259
      %9367 = vmatpush1.bf16.msra.mxu0 %v6258
      %9368 = vmatprep.subr.bf16.mxu0 %v6267
      %9369 = vmatpush1.bf16.msra.mxu0 %v6266
      %9370 = vmatprep.subr.bf16.mxu0 %v6275
      %9371 = vmatpush1.bf16.msra.mxu0 %v6274
      %9372 = vmatprep.subr.bf16.mxu0 %v6283
      %9373 = vmatpush1.bf16.msra.mxu0 %v6282
      %9374 = vmatprep.subr.bf16.mxu0 %v6291
      %9375 = vmatpush1.bf16.msra.mxu0 %v6290
      %9376 = vmatprep.subr.bf16.mxu0 %v6299
      %9377 = vmatpush1.bf16.msra.mxu0 %v6298
      %9378 = vmatprep.subr.bf16.mxu0 %v6307
      %9379 = vmatpush1.bf16.msra.mxu0 %v6306
      %9380 = vmatprep.subr.bf16.mxu0 %v6315
      %9381 = vmatpush1.bf16.msra.mxu0 %v6314
      %9382 = vmatprep.subr.bf16.mxu0 %v6323
      %9383 = vmatpush1.bf16.msra.mxu0 %v6322
      %9384 = vmatprep.subr.bf16.mxu0 %v6331
      %9385 = vmatpush1.bf16.msra.mxu0 %v6330
      %9386 = vmatprep.mubr.bf16.mxu0 %v2303
      %9387 = vmatmul.mubr.bf16.gmra.mrb[0].mxu0 %v2301
      %v9388 = vpop.f32.mrb[0].mxu0
      %v9389 = vadd.f32 %v9348, %v9388
      %v9390 = vpop.f32.mrb[0].mxu0
      %v9391 = vadd.f32 %v9350, %v9390
      %v9392 = vpop.f32.mrb[0].mxu0
      %v9393 = vpop.f32.mrb[0].mxu0
      %9394 = vdwg.mxu0
      %9395 = vmatprep.subr.bf16.mxu0 %v6339
      %9396 = vmatpush1.bf16.msra.mxu0 %v6338
      %9397 = vmatprep.subr.bf16.mxu0 %v6347
      %9398 = vmatpush1.bf16.msra.mxu0 %v6346
      %9399 = vmatprep.subr.bf16.mxu0 %v6355
      %9400 = vmatpush1.bf16.msra.mxu0 %v6354
      %9401 = vmatprep.subr.bf16.mxu0 %v6363
      %9402 = vmatpush1.bf16.msra.mxu0 %v6362
      %9403 = vmatprep.subr.bf16.mxu0 %v6371
      %9404 = vmatpush1.bf16.msra.mxu0 %v6370
      %9405 = vmatprep.subr.bf16.mxu0 %v6379
      %9406 = vmatpush1.bf16.msra.mxu0 %v6378
      %9407 = vmatprep.subr.bf16.mxu0 %v6387
      %9408 = vmatpush1.bf16.msra.mxu0 %v6386
      %9409 = vmatprep.subr.bf16.mxu0 %v6395
      %9410 = vmatpush1.bf16.msra.mxu0 %v6394
      %9411 = vmatprep.subr.bf16.mxu0 %v6403
      %9412 = vmatpush1.bf16.msra.mxu0 %v6402
      %9413 = vmatprep.subr.bf16.mxu0 %v6411
      %9414 = vmatpush1.bf16.msra.mxu0 %v6410
      %9415 = vmatprep.subr.bf16.mxu0 %v6419
      %9416 = vmatpush1.bf16.msra.mxu0 %v6418
      %9417 = vmatprep.subr.bf16.mxu0 %v6427
      %9418 = vmatpush1.bf16.msra.mxu0 %v6426
      %9419 = vmatprep.subr.bf16.mxu0 %v6435
      %9420 = vmatpush1.bf16.msra.mxu0 %v6434
      %9421 = vmatprep.subr.bf16.mxu0 %v6443
      %9422 = vmatpush1.bf16.msra.mxu0 %v6442
      %9423 = vmatprep.subr.bf16.mxu0 %v6451
      %9424 = vmatpush1.bf16.msra.mxu0 %v6450
      %9425 = vmatprep.subr.bf16.mxu0 %v6459
      %9426 = vmatpush1.bf16.msra.mxu0 %v6458
      %9427 = vmatprep.mubr.bf16.mxu0 %v2319
      %9428 = vmatmul.mubr.bf16.gmra.mrb[0].mxu0 %v2311
      %v9429 = vpop.f32.mrb[0].mxu0
      %v9430 = vadd.f32 %v9389, %v9429
      %v9431 = vpop.f32.mrb[0].mxu0
      %v9432 = vadd.f32 %v9391, %v9431
      %v9433 = vpop.f32.mrb[0].mxu0
      %v9434 = vpop.f32.mrb[0].mxu0
      %9435 = vdwg.mxu0
      %9436 = vmatprep.subr.bf16.mxu0 %v6467
      %9437 = vmatpush1.bf16.msra.mxu0 %v6466
      %9438 = vmatprep.subr.bf16.mxu0 %v6475
      %9439 = vmatpush1.bf16.msra.mxu0 %v6474
      %9440 = vmatprep.subr.bf16.mxu0 %v6483
      %9441 = vmatpush1.bf16.msra.mxu0 %v6482
      %9442 = vmatprep.subr.bf16.mxu0 %v6491
      %9443 = vmatpush1.bf16.msra.mxu0 %v6490
      %9444 = vmatprep.subr.bf16.mxu0 %v6499
      %9445 = vmatpush1.bf16.msra.mxu0 %v6498
      %9446 = vmatprep.subr.bf16.mxu0 %v6507
      %9447 = vmatpush1.bf16.msra.mxu0 %v6506
      %9448 = vmatprep.subr.bf16.mxu0 %v6515
      %9449 = vmatpush1.bf16.msra.mxu0 %v6514
      %9450 = vmatprep.subr.bf16.mxu0 %v6523
      %9451 = vmatpush1.bf16.msra.mxu0 %v6522
      %9452 = vmatprep.subr.bf16.mxu0 %v6531
      %9453 = vmatpush1.bf16.msra.mxu0 %v6530
      %9454 = vmatprep.subr.bf16.mxu0 %v6539
      %9455 = vmatpush1.bf16.msra.mxu0 %v6538
      %9456 = vmatprep.subr.bf16.mxu0 %v6547
      %9457 = vmatpush1.bf16.msra.mxu0 %v6546
      %9458 = vmatprep.subr.bf16.mxu0 %v6555
      %9459 = vmatpush1.bf16.msra.mxu0 %v6554
      %9460 = vmatprep.subr.bf16.mxu0 %v6563
      %9461 = vmatpush1.bf16.msra.mxu0 %v6562
      %9462 = vmatprep.subr.bf16.mxu0 %v6571
      %9463 = vmatpush1.bf16.msra.mxu0 %v6570
      %9464 = vmatprep.subr.bf16.mxu0 %v6579
      %9465 = vmatpush1.bf16.msra.mxu0 %v6578
      %9466 = vmatprep.subr.bf16.mxu0 %v6587
      %9467 = vmatpush1.bf16.msra.mxu0 %v6586
      %9468 = vmatprep.mubr.bf16.mxu0 %v2320
      %9469 = vmatmul.mubr.bf16.gmra.mrb[0].mxu0 %v2318
      %v9470 = vpop.f32.mrb[0].mxu0
      %v9471 = vadd.f32 %v9430, %v9470
      %v9472 = vpop.f32.mrb[0].mxu0
      %v9473 = vadd.f32 %v9432, %v9472
      %v9474 = vpop.f32.mrb[0].mxu0
      %v9475 = vpop.f32.mrb[0].mxu0
      %9476 = vdwg.mxu0
      %9477 = vmatprep.subr.bf16.mxu0 %v6595
      %9478 = vmatpush1.bf16.msra.mxu0 %v6594
      %9479 = vmatprep.subr.bf16.mxu0 %v6603
      %9480 = vmatpush1.bf16.msra.mxu0 %v6602
      %9481 = vmatprep.subr.bf16.mxu0 %v6611
      %9482 = vmatpush1.bf16.msra.mxu0 %v6610
      %9483 = vmatprep.subr.bf16.mxu0 %v6619
      %9484 = vmatpush1.bf16.msra.mxu0 %v6618
      %9485 = vmatprep.subr.bf16.mxu0 %v6627
      %9486 = vmatpush1.bf16.msra.mxu0 %v6626
      %9487 = vmatprep.subr.bf16.mxu0 %v6635
      %9488 = vmatpush1.bf16.msra.mxu0 %v6634
      %9489 = vmatprep.subr.bf16.mxu0 %v6643
      %9490 = vmatpush1.bf16.msra.mxu0 %v6642
      %9491 = vmatprep.subr.bf16.mxu0 %v6651
      %9492 = vmatpush1.bf16.msra.mxu0 %v6650
      %9493 = vmatprep.subr.bf16.mxu0 %v6659
      %9494 = vmatpush1.bf16.msra.mxu0 %v6658
      %9495 = vmatprep.subr.bf16.mxu0 %v6667
      %9496 = vmatpush1.bf16.msra.mxu0 %v6666
      %9497 = vmatprep.subr.bf16.mxu0 %v6675
      %9498 = vmatpush1.bf16.msra.mxu0 %v6674
      %9499 = vmatprep.subr.bf16.mxu0 %v6683
      %9500 = vmatpush1.bf16.msra.mxu0 %v6682
      %9501 = vmatprep.subr.bf16.mxu0 %v6691
      %9502 = vmatpush1.bf16.msra.mxu0 %v6690
      %9503 = vmatprep.subr.bf16.mxu0 %v6699
      %9504 = vmatpush1.bf16.msra.mxu0 %v6698
      %9505 = vmatprep.subr.bf16.mxu0 %v6707
      %9506 = vmatpush1.bf16.msra.mxu0 %v6706
      %9507 = vmatprep.subr.bf16.mxu0 %v6715
      %9508 = vmatpush1.bf16.msra.mxu0 %v6714
      %9509 = vmatprep.mubr.bf16.mxu0 %v2336
      %9510 = vmatmul.mubr.bf16.gmra.mrb[0].mxu0 %v2328
      %v9511 = vpop.f32.mrb[0].mxu0
      %v9512 = vadd.f32 %v9471, %v9511
      %v9513 = vpop.f32.mrb[0].mxu0
      %v9514 = vadd.f32 %v9473, %v9513
      %v9515 = vpop.f32.mrb[0].mxu0
      %v9516 = vpop.f32.mrb[0].mxu0
      %9517 = vdwg.mxu0
      %9518 = vmatprep.subr.bf16.mxu0 %v6723
      %9519 = vmatpush1.bf16.msra.mxu0 %v6722
      %9520 = vmatprep.subr.bf16.mxu0 %v6731
      %9521 = vmatpush1.bf16.msra.mxu0 %v6730
      %9522 = vmatprep.subr.bf16.mxu0 %v6739
      %9523 = vmatpush1.bf16.msra.mxu0 %v6738
      %9524 = vmatprep.subr.bf16.mxu0 %v6747
      %9525 = vmatpush1.bf16.msra.mxu0 %v6746
      %9526 = vmatprep.subr.bf16.mxu0 %v6755
      %9527 = vmatpush1.bf16.msra.mxu0 %v6754
      %9528 = vmatprep.subr.bf16.mxu0 %v6763
      %9529 = vmatpush1.bf16.msra.mxu0 %v6762
      %9530 = vmatprep.subr.bf16.mxu0 %v6771
      %9531 = vmatpush1.bf16.msra.mxu0 %v6770
      %9532 = vmatprep.subr.bf16.mxu0 %v6779
      %9533 = vmatpush1.bf16.msra.mxu0 %v6778
      %9534 = vmatprep.subr.bf16.mxu0 %v6787
      %9535 = vmatpush1.bf16.msra.mxu0 %v6786
      %9536 = vmatprep.subr.bf16.mxu0 %v6795
      %9537 = vmatpush1.bf16.msra.mxu0 %v6794
      %9538 = vmatprep.subr.bf16.mxu0 %v6803
      %9539 = vmatpush1.bf16.msra.mxu0 %v6802
      %9540 = vmatprep.subr.bf16.mxu0 %v6811
      %9541 = vmatpush1.bf16.msra.mxu0 %v6810
      %9542 = vmatprep.subr.bf16.mxu0 %v6819
      %9543 = vmatpush1.bf16.msra.mxu0 %v6818
      %9544 = vmatprep.subr.bf16.mxu0 %v6827
      %9545 = vmatpush1.bf16.msra.mxu0 %v6826
      %9546 = vmatprep.subr.bf16.mxu0 %v6835
      %9547 = vmatpush1.bf16.msra.mxu0 %v6834
      %9548 = vmatprep.subr.bf16.mxu0 %v6843
      %9549 = vmatpush1.bf16.msra.mxu0 %v6842
      %9550 = vmatprep.mubr.bf16.mxu0 %v2337
      %9551 = vmatmul.mubr.bf16.gmra.mrb[0].mxu0 %v2335
      %v9552 = vpop.f32.mrb[0].mxu0
      %v9553 = vadd.f32 %v9512, %v9552
      %v9554 = vpop.f32.mrb[0].mxu0
      %v9555 = vadd.f32 %v9514, %v9554
      %v9556 = vpop.f32.mrb[0].mxu0
      %v9557 = vpop.f32.mrb[0].mxu0
      %9558 = vdwg.mxu0
      %9559 = vmatprep.subr.bf16.mxu0 %v6851
      %9560 = vmatpush1.bf16.msra.mxu0 %v6850
      %9561 = vmatprep.subr.bf16.mxu0 %v6859
      %9562 = vmatpush1.bf16.msra.mxu0 %v6858
      %9563 = vmatprep.subr.bf16.mxu0 %v6867
      %9564 = vmatpush1.bf16.msra.mxu0 %v6866
      %9565 = vmatprep.subr.bf16.mxu0 %v6875
      %9566 = vmatpush1.bf16.msra.mxu0 %v6874
      %9567 = vmatprep.subr.bf16.mxu0 %v6883
      %9568 = vmatpush1.bf16.msra.mxu0 %v6882
      %9569 = vmatprep.subr.bf16.mxu0 %v6891
      %9570 = vmatpush1.bf16.msra.mxu0 %v6890
      %9571 = vmatprep.subr.bf16.mxu0 %v6899
      %9572 = vmatpush1.bf16.msra.mxu0 %v6898
      %9573 = vmatprep.subr.bf16.mxu0 %v6907
      %9574 = vmatpush1.bf16.msra.mxu0 %v6906
      %9575 = vmatprep.subr.bf16.mxu0 %v6915
      %9576 = vmatpush1.bf16.msra.mxu0 %v6914
      %9577 = vmatprep.subr.bf16.mxu0 %v6923
      %9578 = vmatpush1.bf16.msra.mxu0 %v6922
      %9579 = vmatprep.subr.bf16.mxu0 %v6931
      %9580 = vmatpush1.bf16.msra.mxu0 %v6930
      %9581 = vmatprep.subr.bf16.mxu0 %v6939
      %9582 = vmatpush1.bf16.msra.mxu0 %v6938
      %9583 = vmatprep.subr.bf16.mxu0 %v6947
      %9584 = vmatpush1.bf16.msra.mxu0 %v6946
      %9585 = vmatprep.subr.bf16.mxu0 %v6955
      %9586 = vmatpush1.bf16.msra.mxu0 %v6954
      %9587 = vmatprep.subr.bf16.mxu0 %v6963
      %9588 = vmatpush1.bf16.msra.mxu0 %v6962
      %9589 = vmatprep.subr.bf16.mxu0 %v6971
      %9590 = vmatpush1.bf16.msra.mxu0 %v6970
      %9591 = vmatprep.mubr.bf16.mxu0 %v2345
      %9592 = vmatmul.mubr.bf16.gmra.mrb[0].mxu0 %v2344
      %v9593 = vpop.f32.mrb[0].mxu0
      %v9594 = vadd.f32 %v9553, %v9593
      %v9595 = vpop.f32.mrb[0].mxu0
      %v9596 = vadd.f32 %v9555, %v9595
      %v9597 = vpop.f32.mrb[0].mxu0
      %v9598 = vpop.f32.mrb[0].mxu0
      %9599 = vdwg.mxu0
      %v9600 = vmax.f32 %v8487, %v9225
      %v9601 = vmax.f32 %v8489, %v9227
      %v9602 = vmax.f32 %v8856, %v9594
      %v9603 = vmax.f32 %v8858, %v9596
      %v9604 = vmax.f32 %v9600, %v9602
      %v9605 = vmax.f32 %v9601, %v9603
      %v9606 = vld [vmem:[%s4] sm:$0x3]
      %v9608 = vlaneseq
      %v9609 = vshrl.u32 %v9608, 7
      %v9610 = vsub.s32 0, %v9609
      %v9611 = vrot.slane %v9606, %v9610
      %v9612 = vlaneseq
      %v9613 = vshrl.u32 %v9612, 7
      %v9614 = vsub.s32 1, %v9613
      %v9615 = vrot.slane %v9606, %v9614
      %v9618 = vadd.f32 %v9604, %v9611
      %v9619 = vadd.f32 %v9605, %v9615
      %v9620 = vmax.f32 %v9618, 0.0
      %v9621 = vmax.f32 %v9619, 0.0
      %v9622 = vpack.c.bf16 %v9620, %v9620
      %v9623 = vpack.c.bf16 %v9621, %v9621
      %v9624 = vld [vmem:[%s5] sm:$0xff]
      %v9625 = vld [vmem:[%s5 + $0x8] sm:$0xff]
      %v9626 = vld [vmem:[%s5 + $0x10] sm:$0xff]
      %v9627 = vld [vmem:[%s5 + $0x18] sm:$0xff]
      %v9628 = vld [vmem:[%s5 + $0x20] sm:$0xff]
      %v9629 = vld [vmem:[%s5 + $0x28] sm:$0xff]
      %v9630 = vld [vmem:[%s5 + $0x30] sm:$0xff]
      %v9631 = vld [vmem:[%s5 + $0x38] sm:$0xff]
      %v9632 = vld [vmem:[%s5 + $0x40] sm:$0xff]
      %v9633 = vld [vmem:[%s5 + $0x48] sm:$0xff]
      %v9634 = vld [vmem:[%s5 + $0x50] sm:$0xff]
      %v9635 = vld [vmem:[%s5 + $0x58] sm:$0xff]
      %v9636 = vld [vmem:[%s5 + $0x60] sm:$0xff]
      %v9637 = vld [vmem:[%s5 + $0x68] sm:$0xff]
      %v9638 = vld [vmem:[%s5 + $0x70] sm:$0xff]
      %v9639 = vld [vmem:[%s5 + $0x78] sm:$0xff]
      %v9640 = vld [vmem:[%s5 + $0x80] sm:$0xff]
      %v9641 = vld [vmem:[%s5 + $0x88] sm:$0xff]
      %v9642 = vld [vmem:[%s5 + $0x90] sm:$0xff]
      %v9643 = vld [vmem:[%s5 + $0x98] sm:$0xff]
      %v9644 = vld [vmem:[%s5 + $0xa0] sm:$0xff]
      %v9645 = vld [vmem:[%s5 + $0xa8] sm:$0xff]
      %v9646 = vld [vmem:[%s5 + $0xb0] sm:$0xff]
      %v9647 = vld [vmem:[%s5 + $0xb8] sm:$0xff]
      %v9648 = vld [vmem:[%s5 + $0xc0] sm:$0xff]
      %v9649 = vld [vmem:[%s5 + $0xc8] sm:$0xff]
      %v9650 = vld [vmem:[%s5 + $0xd0] sm:$0xff]
      %v9651 = vld [vmem:[%s5 + $0xd8] sm:$0xff]
      %v9652 = vld [vmem:[%s5 + $0xe0] sm:$0xff]
      %v9653 = vld [vmem:[%s5 + $0xe8] sm:$0xff]
      %v9654 = vld [vmem:[%s5 + $0xf0] sm:$0xff]
      %v9655 = vld [vmem:[%s5 + $0xf8] sm:$0xff]
      %v9656 = vld [vmem:[%s5 + $0x100] sm:$0xff]
      %v9657 = vld [vmem:[%s5 + $0x108] sm:$0xff]
      %v9658 = vld [vmem:[%s5 + $0x110] sm:$0xff]
      %v9659 = vld [vmem:[%s5 + $0x118] sm:$0xff]
      %v9660 = vld [vmem:[%s5 + $0x120] sm:$0xff]
      %v9661 = vld [vmem:[%s5 + $0x128] sm:$0xff]
      %v9662 = vld [vmem:[%s5 + $0x130] sm:$0xff]
      %v9663 = vld [vmem:[%s5 + $0x138] sm:$0xff]
      %v9664 = vld [vmem:[%s5 + $0x140] sm:$0xff]
      %v9665 = vld [vmem:[%s5 + $0x148] sm:$0xff]
      %v9666 = vld [vmem:[%s5 + $0x150] sm:$0xff]
      %v9667 = vld [vmem:[%s5 + $0x158] sm:$0xff]
      %v9668 = vld [vmem:[%s5 + $0x160] sm:$0xff]
      %v9669 = vld [vmem:[%s5 + $0x168] sm:$0xff]
      %v9670 = vld [vmem:[%s5 + $0x170] sm:$0xff]
      %v9671 = vld [vmem:[%s5 + $0x178] sm:$0xff]
      %v9672 = vld [vmem:[%s5 + $0x180] sm:$0xff]
      %v9673 = vld [vmem:[%s5 + $0x188] sm:$0xff]
      %v9674 = vld [vmem:[%s5 + $0x190] sm:$0xff]
      %v9675 = vld [vmem:[%s5 + $0x198] sm:$0xff]
      %v9676 = vld [vmem:[%s5 + $0x1a0] sm:$0xff]
      %v9677 = vld [vmem:[%s5 + $0x1a8] sm:$0xff]
      %v9678 = vld [vmem:[%s5 + $0x1b0] sm:$0xff]
      %v9679 = vld [vmem:[%s5 + $0x1b8] sm:$0xff]
      %v9680 = vld [vmem:[%s5 + $0x1c0] sm:$0xff]
      %v9681 = vld [vmem:[%s5 + $0x1c8] sm:$0xff]
      %v9682 = vld [vmem:[%s5 + $0x1d0] sm:$0xff]
      %v9683 = vld [vmem:[%s5 + $0x1d8] sm:$0xff]
      %v9684 = vld [vmem:[%s5 + $0x1e0] sm:$0xff]
      %v9685 = vld [vmem:[%s5 + $0x1e8] sm:$0xff]
      %v9686 = vld [vmem:[%s5 + $0x1f0] sm:$0xff]
      %v9687 = vld [vmem:[%s5 + $0x1f8] sm:$0xff]
      %v9688 = vld [vmem:[%s5 + $0x200] sm:$0xff]
      %v9689 = vld [vmem:[%s5 + $0x208] sm:$0xff]
      %v9690 = vld [vmem:[%s5 + $0x210] sm:$0xff]
      %v9691 = vld [vmem:[%s5 + $0x218] sm:$0xff]
      %v9692 = vld [vmem:[%s5 + $0x220] sm:$0xff]
      %v9693 = vld [vmem:[%s5 + $0x228] sm:$0xff]
      %v9694 = vld [vmem:[%s5 + $0x230] sm:$0xff]
      %v9695 = vld [vmem:[%s5 + $0x238] sm:$0xff]
      %v9696 = vld [vmem:[%s5 + $0x240] sm:$0xff]
      %v9697 = vld [vmem:[%s5 + $0x248] sm:$0xff]
      %v9698 = vld [vmem:[%s5 + $0x250] sm:$0xff]
      %v9699 = vld [vmem:[%s5 + $0x258] sm:$0xff]
      %v9700 = vld [vmem:[%s5 + $0x260] sm:$0xff]
      %v9701 = vld [vmem:[%s5 + $0x268] sm:$0xff]
      %v9702 = vld [vmem:[%s5 + $0x270] sm:$0xff]
      %v9703 = vld [vmem:[%s5 + $0x278] sm:$0xff]
      %v9704 = vld [vmem:[%s5 + $0x280] sm:$0xff]
      %v9705 = vld [vmem:[%s5 + $0x288] sm:$0xff]
      %v9706 = vld [vmem:[%s5 + $0x290] sm:$0xff]
      %v9707 = vld [vmem:[%s5 + $0x298] sm:$0xff]
      %v9708 = vld [vmem:[%s5 + $0x2a0] sm:$0xff]
      %v9709 = vld [vmem:[%s5 + $0x2a8] sm:$0xff]
      %v9710 = vld [vmem:[%s5 + $0x2b0] sm:$0xff]
      %v9711 = vld [vmem:[%s5 + $0x2b8] sm:$0xff]
      %v9712 = vld [vmem:[%s5 + $0x2c0] sm:$0xff]
      %v9713 = vld [vmem:[%s5 + $0x2c8] sm:$0xff]
      %v9714 = vld [vmem:[%s5 + $0x2d0] sm:$0xff]
      %v9715 = vld [vmem:[%s5 + $0x2d8] sm:$0xff]
      %v9716 = vld [vmem:[%s5 + $0x2e0] sm:$0xff]
      %v9717 = vld [vmem:[%s5 + $0x2e8] sm:$0xff]
      %v9718 = vld [vmem:[%s5 + $0x2f0] sm:$0xff]
      %v9719 = vld [vmem:[%s5 + $0x2f8] sm:$0xff]
      %v9720 = vld [vmem:[%s5 + $0x300] sm:$0xff]
      %v9721 = vld [vmem:[%s5 + $0x308] sm:$0xff]
      %v9722 = vld [vmem:[%s5 + $0x310] sm:$0xff]
      %v9723 = vld [vmem:[%s5 + $0x318] sm:$0xff]
      %v9724 = vld [vmem:[%s5 + $0x320] sm:$0xff]
      %v9725 = vld [vmem:[%s5 + $0x328] sm:$0xff]
      %v9726 = vld [vmem:[%s5 + $0x330] sm:$0xff]
      %v9727 = vld [vmem:[%s5 + $0x338] sm:$0xff]
      %v9728 = vld [vmem:[%s5 + $0x340] sm:$0xff]
      %v9729 = vld [vmem:[%s5 + $0x348] sm:$0xff]
      %v9730 = vld [vmem:[%s5 + $0x350] sm:$0xff]
      %v9731 = vld [vmem:[%s5 + $0x358] sm:$0xff]
      %v9732 = vld [vmem:[%s5 + $0x360] sm:$0xff]
      %v9733 = vld [vmem:[%s5 + $0x368] sm:$0xff]
      %v9734 = vld [vmem:[%s5 + $0x370] sm:$0xff]
      %v9735 = vld [vmem:[%s5 + $0x378] sm:$0xff]
      %v9736 = vld [vmem:[%s5 + $0x380] sm:$0xff]
      %v9737 = vld [vmem:[%s5 + $0x388] sm:$0xff]
      %v9738 = vld [vmem:[%s5 + $0x390] sm:$0xff]
      %v9739 = vld [vmem:[%s5 + $0x398] sm:$0xff]
      %v9740 = vld [vmem:[%s5 + $0x3a0] sm:$0xff]
      %v9741 = vld [vmem:[%s5 + $0x3a8] sm:$0xff]
      %v9742 = vld [vmem:[%s5 + $0x3b0] sm:$0xff]
      %v9743 = vld [vmem:[%s5 + $0x3b8] sm:$0xff]
      %v9744 = vld [vmem:[%s5 + $0x3c0] sm:$0xff]
      %v9745 = vld [vmem:[%s5 + $0x3c8] sm:$0xff]
      %v9746 = vld [vmem:[%s5 + $0x3d0] sm:$0xff]
      %v9747 = vld [vmem:[%s5 + $0x3d8] sm:$0xff]
      %v9748 = vld [vmem:[%s5 + $0x3e0] sm:$0xff]
      %v9749 = vld [vmem:[%s5 + $0x3e8] sm:$0xff]
      %v9750 = vld [vmem:[%s5 + $0x3f0] sm:$0xff]
      %v9751 = vld [vmem:[%s5 + $0x3f8] sm:$0xff]
      %v9753 = vshrl.u32 %v9622, 16
      %v9756 = vshrl.u32 %v9623, 16
      %v9824 = vunpack.c.l.b16 %v9688
      %v9825 = vunpack.c.h.b16 %v9688
      %v9826 = vunpack.c.l.b16 %v9689
      %v9827 = vunpack.c.h.b16 %v9689
      %v9828 = vunpack.c.l.b16 %v9690
      %v9829 = vunpack.c.h.b16 %v9690
      %v9830 = vunpack.c.l.b16 %v9691
      %v9831 = vunpack.c.h.b16 %v9691
      %v9832 = vunpack.c.l.b16 %v9692
      %v9833 = vunpack.c.h.b16 %v9692
      %v9834 = vunpack.c.l.b16 %v9693
      %v9835 = vunpack.c.h.b16 %v9693
      %v9836 = vunpack.c.l.b16 %v9694
      %v9837 = vunpack.c.h.b16 %v9694
      %v9838 = vunpack.c.l.b16 %v9695
      %v9839 = vunpack.c.h.b16 %v9695
      %v9840 = vunpack.c.l.b16 %v9696
      %v9841 = vunpack.c.h.b16 %v9696
      %v9842 = vunpack.c.l.b16 %v9697
      %v9843 = vunpack.c.h.b16 %v9697
      %v9844 = vunpack.c.l.b16 %v9698
      %v9845 = vunpack.c.h.b16 %v9698
      %v9846 = vunpack.c.l.b16 %v9699
      %v9847 = vunpack.c.h.b16 %v9699
      %v9848 = vunpack.c.l.b16 %v9700
      %v9849 = vunpack.c.h.b16 %v9700
      %v9850 = vunpack.c.l.b16 %v9701
      %v9851 = vunpack.c.h.b16 %v9701
      %v9852 = vunpack.c.l.b16 %v9702
      %v9853 = vunpack.c.h.b16 %v9702
      %v9854 = vunpack.c.l.b16 %v9703
      %v9855 = vunpack.c.h.b16 %v9703
      %v9856 = vunpack.c.l.b16 %v9704
      %v9857 = vunpack.c.h.b16 %v9704
      %v9858 = vunpack.c.l.b16 %v9705
      %v9859 = vunpack.c.h.b16 %v9705
      %v9860 = vunpack.c.l.b16 %v9706
      %v9861 = vunpack.c.h.b16 %v9706
      %v9862 = vunpack.c.l.b16 %v9707
      %v9863 = vunpack.c.h.b16 %v9707
      %v9864 = vunpack.c.l.b16 %v9708
      %v9865 = vunpack.c.h.b16 %v9708
      %v9866 = vunpack.c.l.b16 %v9709
      %v9867 = vunpack.c.h.b16 %v9709
      %v9868 = vunpack.c.l.b16 %v9710
      %v9869 = vunpack.c.h.b16 %v9710
      %v9870 = vunpack.c.l.b16 %v9711
      %v9871 = vunpack.c.h.b16 %v9711
      %v9872 = vunpack.c.l.b16 %v9712
      %v9873 = vunpack.c.h.b16 %v9712
      %v9874 = vunpack.c.l.b16 %v9713
      %v9875 = vunpack.c.h.b16 %v9713
      %v9876 = vunpack.c.l.b16 %v9714
      %v9877 = vunpack.c.h.b16 %v9714
      %v9878 = vunpack.c.l.b16 %v9715
      %v9879 = vunpack.c.h.b16 %v9715
      %v9880 = vunpack.c.l.b16 %v9716
      %v9881 = vunpack.c.h.b16 %v9716
      %v9882 = vunpack.c.l.b16 %v9717
      %v9883 = vunpack.c.h.b16 %v9717
      %v9884 = vunpack.c.l.b16 %v9718
      %v9885 = vunpack.c.h.b16 %v9718
      %v9886 = vunpack.c.l.b16 %v9719
      %v9887 = vunpack.c.h.b16 %v9719
      %v9888 = vunpack.c.l.b16 %v9720
      %v9889 = vunpack.c.h.b16 %v9720
      %v9890 = vunpack.c.l.b16 %v9721
      %v9891 = vunpack.c.h.b16 %v9721
      %v9892 = vunpack.c.l.b16 %v9722
      %v9893 = vunpack.c.h.b16 %v9722
      %v9894 = vunpack.c.l.b16 %v9723
      %v9895 = vunpack.c.h.b16 %v9723
      %v9896 = vunpack.c.l.b16 %v9724
      %v9897 = vunpack.c.h.b16 %v9724
      %v9898 = vunpack.c.l.b16 %v9725
      %v9899 = vunpack.c.h.b16 %v9725
      %v9900 = vunpack.c.l.b16 %v9726
      %v9901 = vunpack.c.h.b16 %v9726
      %v9902 = vunpack.c.l.b16 %v9727
      %v9903 = vunpack.c.h.b16 %v9727
      %v9904 = vunpack.c.l.b16 %v9728
      %v9905 = vunpack.c.h.b16 %v9728
      %v9906 = vunpack.c.l.b16 %v9729
      %v9907 = vunpack.c.h.b16 %v9729
      %v9908 = vunpack.c.l.b16 %v9730
      %v9909 = vunpack.c.h.b16 %v9730
      %v9910 = vunpack.c.l.b16 %v9731
      %v9911 = vunpack.c.h.b16 %v9731
      %v9912 = vunpack.c.l.b16 %v9732
      %v9913 = vunpack.c.h.b16 %v9732
      %v9914 = vunpack.c.l.b16 %v9733
      %v9915 = vunpack.c.h.b16 %v9733
      %v9916 = vunpack.c.l.b16 %v9734
      %v9917 = vunpack.c.h.b16 %v9734
      %v9918 = vunpack.c.l.b16 %v9735
      %v9919 = vunpack.c.h.b16 %v9735
      %v9920 = vunpack.c.l.b16 %v9736
      %v9921 = vunpack.c.h.b16 %v9736
      %v9922 = vunpack.c.l.b16 %v9737
      %v9923 = vunpack.c.h.b16 %v9737
      %v9924 = vunpack.c.l.b16 %v9738
      %v9925 = vunpack.c.h.b16 %v9738
      %v9926 = vunpack.c.l.b16 %v9739
      %v9927 = vunpack.c.h.b16 %v9739
      %v9928 = vunpack.c.l.b16 %v9740
      %v9929 = vunpack.c.h.b16 %v9740
      %v9930 = vunpack.c.l.b16 %v9741
      %v9931 = vunpack.c.h.b16 %v9741
      %v9932 = vunpack.c.l.b16 %v9742
      %v9933 = vunpack.c.h.b16 %v9742
      %v9934 = vunpack.c.l.b16 %v9743
      %v9935 = vunpack.c.h.b16 %v9743
      %v9936 = vunpack.c.l.b16 %v9744
      %v9937 = vunpack.c.h.b16 %v9744
      %v9938 = vunpack.c.l.b16 %v9745
      %v9939 = vunpack.c.h.b16 %v9745
      %v9940 = vunpack.c.l.b16 %v9746
      %v9941 = vunpack.c.h.b16 %v9746
      %v9942 = vunpack.c.l.b16 %v9747
      %v9943 = vunpack.c.h.b16 %v9747
      %v9944 = vunpack.c.l.b16 %v9748
      %v9945 = vunpack.c.h.b16 %v9748
      %v9946 = vunpack.c.l.b16 %v9749
      %v9947 = vunpack.c.h.b16 %v9749
      %v9948 = vunpack.c.l.b16 %v9750
      %v9949 = vunpack.c.h.b16 %v9750
      %v9950 = vunpack.c.l.b16 %v9751
      %v9951 = vunpack.c.h.b16 %v9751
      %v9952 = vpack.c.b16 %v9828, %v9824
      %v9953 = vpack.c.b16 %v9829, %v9825
      %v9954 = vpack.c.b16 %v9830, %v9826
      %v9955 = vpack.c.b16 %v9831, %v9827
      %v9956 = vpack.c.b16 %v9836, %v9832
      %v9957 = vpack.c.b16 %v9837, %v9833
      %v9958 = vpack.c.b16 %v9838, %v9834
      %v9959 = vpack.c.b16 %v9839, %v9835
      %v9960 = vpack.c.b16 %v9844, %v9840
      %v9961 = vpack.c.b16 %v9845, %v9841
      %v9962 = vpack.c.b16 %v9846, %v9842
      %v9963 = vpack.c.b16 %v9847, %v9843
      %v9964 = vpack.c.b16 %v9852, %v9848
      %v9965 = vpack.c.b16 %v9853, %v9849
      %v9966 = vpack.c.b16 %v9854, %v9850
      %v9967 = vpack.c.b16 %v9855, %v9851
      %v9968 = vpack.c.b16 %v9860, %v9856
      %v9969 = vpack.c.b16 %v9861, %v9857
      %v9970 = vpack.c.b16 %v9862, %v9858
      %v9971 = vpack.c.b16 %v9863, %v9859
      %v9972 = vpack.c.b16 %v9868, %v9864
      %v9973 = vpack.c.b16 %v9869, %v9865
      %v9974 = vpack.c.b16 %v9870, %v9866
      %v9975 = vpack.c.b16 %v9871, %v9867
      %v9976 = vpack.c.b16 %v9876, %v9872
      %v9977 = vpack.c.b16 %v9877, %v9873
      %v9978 = vpack.c.b16 %v9878, %v9874
      %v9979 = vpack.c.b16 %v9879, %v9875
      %v9980 = vpack.c.b16 %v9884, %v9880
      %v9981 = vpack.c.b16 %v9885, %v9881
      %v9982 = vpack.c.b16 %v9886, %v9882
      %v9983 = vpack.c.b16 %v9887, %v9883
      %v9984 = vpack.c.b16 %v9892, %v9888
      %v9985 = vpack.c.b16 %v9893, %v9889
      %v9986 = vpack.c.b16 %v9894, %v9890
      %v9987 = vpack.c.b16 %v9895, %v9891
      %v9988 = vpack.c.b16 %v9900, %v9896
      %v9989 = vpack.c.b16 %v9901, %v9897
      %v9990 = vpack.c.b16 %v9902, %v9898
      %v9991 = vpack.c.b16 %v9903, %v9899
      %v9992 = vpack.c.b16 %v9908, %v9904
      %v9993 = vpack.c.b16 %v9909, %v9905
      %v9994 = vpack.c.b16 %v9910, %v9906
      %v9995 = vpack.c.b16 %v9911, %v9907
      %v9996 = vpack.c.b16 %v9916, %v9912
      %v9997 = vpack.c.b16 %v9917, %v9913
      %v9998 = vpack.c.b16 %v9918, %v9914
      %v9999 = vpack.c.b16 %v9919, %v9915
      %v10000 = vpack.c.b16 %v9924, %v9920
      %v10001 = vpack.c.b16 %v9925, %v9921
      %v10002 = vpack.c.b16 %v9926, %v9922
      %v10003 = vpack.c.b16 %v9927, %v9923
      %v10004 = vpack.c.b16 %v9932, %v9928
      %v10005 = vpack.c.b16 %v9933, %v9929
      %v10006 = vpack.c.b16 %v9934, %v9930
      %v10007 = vpack.c.b16 %v9935, %v9931
      %v10008 = vpack.c.b16 %v9940, %v9936
      %v10009 = vpack.c.b16 %v9941, %v9937
      %v10010 = vpack.c.b16 %v9942, %v9938
      %v10011 = vpack.c.b16 %v9943, %v9939
      %v10012 = vpack.c.b16 %v9948, %v9944
      %v10013 = vpack.c.b16 %v9949, %v9945
      %v10014 = vpack.c.b16 %v9950, %v9946
      %v10015 = vpack.c.b16 %v9951, %v9947
      %10080 = vmatprep.subr.bf16.mxu0 %v9953
      %10081 = vmatpush1.bf16.msra.mxu0 %v9952
      %10082 = vmatprep.subr.bf16.mxu0 %v9957
      %10083 = vmatpush1.bf16.msra.mxu0 %v9956
      %10084 = vmatprep.subr.bf16.mxu0 %v9961
      %10085 = vmatpush1.bf16.msra.mxu0 %v9960
      %10086 = vmatprep.subr.bf16.mxu0 %v9965
      %10087 = vmatpush1.bf16.msra.mxu0 %v9964
      %10088 = vmatprep.subr.bf16.mxu0 %v9969
      %10089 = vmatpush1.bf16.msra.mxu0 %v9968
      %10090 = vmatprep.subr.bf16.mxu0 %v9973
      %10091 = vmatpush1.bf16.msra.mxu0 %v9972
      %10092 = vmatprep.subr.bf16.mxu0 %v9977
      %10093 = vmatpush1.bf16.msra.mxu0 %v9976
      %10094 = vmatprep.subr.bf16.mxu0 %v9981
      %10095 = vmatpush1.bf16.msra.mxu0 %v9980
      %10096 = vmatprep.subr.bf16.mxu0 %v9985
      %10097 = vmatpush1.bf16.msra.mxu0 %v9984
      %10098 = vmatprep.subr.bf16.mxu0 %v9989
      %10099 = vmatpush1.bf16.msra.mxu0 %v9988
      %10100 = vmatprep.subr.bf16.mxu0 %v9993
      %10101 = vmatpush1.bf16.msra.mxu0 %v9992
      %10102 = vmatprep.subr.bf16.mxu0 %v9997
      %10103 = vmatpush1.bf16.msra.mxu0 %v9996
      %10104 = vmatprep.subr.bf16.mxu0 %v10001
      %10105 = vmatpush1.bf16.msra.mxu0 %v10000
      %10106 = vmatprep.subr.bf16.mxu0 %v10005
      %10107 = vmatpush1.bf16.msra.mxu0 %v10004
      %10108 = vmatprep.subr.bf16.mxu0 %v10009
      %10109 = vmatpush1.bf16.msra.mxu0 %v10008
      %10110 = vmatprep.subr.bf16.mxu0 %v10013
      %10111 = vmatpush1.bf16.msra.mxu0 %v10012
      %10112 = vmatprep.mubr.bf16.mxu0 %v9756
      %10113 = vmatmul.mubr.bf16.gmra.mrb[0].mxu0 %v9753
      %v10114 = vpop.f32.mrb[0].mxu0
      %v10115 = vadd.f32 0.0, %v10114
      %v10116 = vpop.f32.mrb[0].mxu0
      %v10117 = vadd.f32 0.0, %v10116
      %v10118 = vpop.f32.mrb[0].mxu0
      %v10119 = vpop.f32.mrb[0].mxu0
      %10120 = vdwg.mxu0
      %10121 = vmatprep.subr.bf16.mxu0 %v9955
      %10122 = vmatpush1.bf16.msra.mxu0 %v9954
      %10123 = vmatprep.subr.bf16.mxu0 %v9959
      %10124 = vmatpush1.bf16.msra.mxu0 %v9958
      %10125 = vmatprep.subr.bf16.mxu0 %v9963
      %10126 = vmatpush1.bf16.msra.mxu0 %v9962
      %10127 = vmatprep.subr.bf16.mxu0 %v9967
      %10128 = vmatpush1.bf16.msra.mxu0 %v9966
      %10129 = vmatprep.subr.bf16.mxu0 %v9971
      %10130 = vmatpush1.bf16.msra.mxu0 %v9970
      %10131 = vmatprep.subr.bf16.mxu0 %v9975
      %10132 = vmatpush1.bf16.msra.mxu0 %v9974
      %10133 = vmatprep.subr.bf16.mxu0 %v9979
      %10134 = vmatpush1.bf16.msra.mxu0 %v9978
      %10135 = vmatprep.subr.bf16.mxu0 %v9983
      %10136 = vmatpush1.bf16.msra.mxu0 %v9982
      %10137 = vmatprep.subr.bf16.mxu0 %v9987
      %10138 = vmatpush1.bf16.msra.mxu0 %v9986
      %10139 = vmatprep.subr.bf16.mxu0 %v9991
      %10140 = vmatpush1.bf16.msra.mxu0 %v9990
      %10141 = vmatprep.subr.bf16.mxu0 %v9995
      %10142 = vmatpush1.bf16.msra.mxu0 %v9994
      %10143 = vmatprep.subr.bf16.mxu0 %v9999
      %10144 = vmatpush1.bf16.msra.mxu0 %v9998
      %10145 = vmatprep.subr.bf16.mxu0 %v10003
      %10146 = vmatpush1.bf16.msra.mxu0 %v10002
      %10147 = vmatprep.subr.bf16.mxu0 %v10007
      %10148 = vmatpush1.bf16.msra.mxu0 %v10006
      %10149 = vmatprep.subr.bf16.mxu0 %v10011
      %10150 = vmatpush1.bf16.msra.mxu0 %v10010
      %10151 = vmatprep.subr.bf16.mxu0 %v10015
      %10152 = vmatpush1.bf16.msra.mxu0 %v10014
      %10153 = vmatprep.mubr.bf16.mxu0 %v9756
      %10154 = vmatmul.mubr.bf16.gmra.mrb[0].mxu0 %v9753
      %v10155 = vpop.f32.mrb[0].mxu0
      %v10156 = vadd.f32 0.0, %v10155
      %v10157 = vpop.f32.mrb[0].mxu0
      %v10158 = vadd.f32 0.0, %v10157
      %v10159 = vpop.f32.mrb[0].mxu0
      %v10160 = vpop.f32.mrb[0].mxu0
      %10161 = vdwg.mxu0
      %v10226 = vunpack.c.l.b16 %v9624
      %v10227 = vunpack.c.h.b16 %v9624
      %v10228 = vunpack.c.l.b16 %v9625
      %v10229 = vunpack.c.h.b16 %v9625
      %v10230 = vunpack.c.l.b16 %v9626
      %v10231 = vunpack.c.h.b16 %v9626
      %v10232 = vunpack.c.l.b16 %v9627
      %v10233 = vunpack.c.h.b16 %v9627
      %v10234 = vunpack.c.l.b16 %v9628
      %v10235 = vunpack.c.h.b16 %v9628
      %v10236 = vunpack.c.l.b16 %v9629
      %v10237 = vunpack.c.h.b16 %v9629
      %v10238 = vunpack.c.l.b16 %v9630
      %v10239 = vunpack.c.h.b16 %v9630
      %v10240 = vunpack.c.l.b16 %v9631
      %v10241 = vunpack.c.h.b16 %v9631
      %v10242 = vunpack.c.l.b16 %v9632
      %v10243 = vunpack.c.h.b16 %v9632
      %v10244 = vunpack.c.l.b16 %v9633
      %v10245 = vunpack.c.h.b16 %v9633
      %v10246 = vunpack.c.l.b16 %v9634
      %v10247 = vunpack.c.h.b16 %v9634
      %v10248 = vunpack.c.l.b16 %v9635
      %v10249 = vunpack.c.h.b16 %v9635
      %v10250 = vunpack.c.l.b16 %v9636
      %v10251 = vunpack.c.h.b16 %v9636
      %v10252 = vunpack.c.l.b16 %v9637
      %v10253 = vunpack.c.h.b16 %v9637
      %v10254 = vunpack.c.l.b16 %v9638
      %v10255 = vunpack.c.h.b16 %v9638
      %v10256 = vunpack.c.l.b16 %v9639
      %v10257 = vunpack.c.h.b16 %v9639
      %v10258 = vunpack.c.l.b16 %v9640
      %v10259 = vunpack.c.h.b16 %v9640
      %v10260 = vunpack.c.l.b16 %v9641
      %v10261 = vunpack.c.h.b16 %v9641
      %v10262 = vunpack.c.l.b16 %v9642
      %v10263 = vunpack.c.h.b16 %v9642
      %v10264 = vunpack.c.l.b16 %v9643
      %v10265 = vunpack.c.h.b16 %v9643
      %v10266 = vunpack.c.l.b16 %v9644
      %v10267 = vunpack.c.h.b16 %v9644
      %v10268 = vunpack.c.l.b16 %v9645
      %v10269 = vunpack.c.h.b16 %v9645
      %v10270 = vunpack.c.l.b16 %v9646
      %v10271 = vunpack.c.h.b16 %v9646
      %v10272 = vunpack.c.l.b16 %v9647
      %v10273 = vunpack.c.h.b16 %v9647
      %v10274 = vunpack.c.l.b16 %v9648
      %v10275 = vunpack.c.h.b16 %v9648
      %v10276 = vunpack.c.l.b16 %v9649
      %v10277 = vunpack.c.h.b16 %v9649
      %v10278 = vunpack.c.l.b16 %v9650
      %v10279 = vunpack.c.h.b16 %v9650
      %v10280 = vunpack.c.l.b16 %v9651
      %v10281 = vunpack.c.h.b16 %v9651
      %v10282 = vunpack.c.l.b16 %v9652
      %v10283 = vunpack.c.h.b16 %v9652
      %v10284 = vunpack.c.l.b16 %v9653
      %v10285 = vunpack.c.h.b16 %v9653
      %v10286 = vunpack.c.l.b16 %v9654
      %v10287 = vunpack.c.h.b16 %v9654
      %v10288 = vunpack.c.l.b16 %v9655
      %v10289 = vunpack.c.h.b16 %v9655
      %v10290 = vunpack.c.l.b16 %v9656
      %v10291 = vunpack.c.h.b16 %v9656
      %v10292 = vunpack.c.l.b16 %v9657
      %v10293 = vunpack.c.h.b16 %v9657
      %v10294 = vunpack.c.l.b16 %v9658
      %v10295 = vunpack.c.h.b16 %v9658
      %v10296 = vunpack.c.l.b16 %v9659
      %v10297 = vunpack.c.h.b16 %v9659
      %v10298 = vunpack.c.l.b16 %v9660
      %v10299 = vunpack.c.h.b16 %v9660
      %v10300 = vunpack.c.l.b16 %v9661
      %v10301 = vunpack.c.h.b16 %v9661
      %v10302 = vunpack.c.l.b16 %v9662
      %v10303 = vunpack.c.h.b16 %v9662
      %v10304 = vunpack.c.l.b16 %v9663
      %v10305 = vunpack.c.h.b16 %v9663
      %v10306 = vunpack.c.l.b16 %v9664
      %v10307 = vunpack.c.h.b16 %v9664
      %v10308 = vunpack.c.l.b16 %v9665
      %v10309 = vunpack.c.h.b16 %v9665
      %v10310 = vunpack.c.l.b16 %v9666
      %v10311 = vunpack.c.h.b16 %v9666
      %v10312 = vunpack.c.l.b16 %v9667
      %v10313 = vunpack.c.h.b16 %v9667
      %v10314 = vunpack.c.l.b16 %v9668
      %v10315 = vunpack.c.h.b16 %v9668
      %v10316 = vunpack.c.l.b16 %v9669
      %v10317 = vunpack.c.h.b16 %v9669
      %v10318 = vunpack.c.l.b16 %v9670
      %v10319 = vunpack.c.h.b16 %v9670
      %v10320 = vunpack.c.l.b16 %v9671
      %v10321 = vunpack.c.h.b16 %v9671
      %v10322 = vunpack.c.l.b16 %v9672
      %v10323 = vunpack.c.h.b16 %v9672
      %v10324 = vunpack.c.l.b16 %v9673
      %v10325 = vunpack.c.h.b16 %v9673
      %v10326 = vunpack.c.l.b16 %v9674
      %v10327 = vunpack.c.h.b16 %v9674
      %v10328 = vunpack.c.l.b16 %v9675
      %v10329 = vunpack.c.h.b16 %v9675
      %v10330 = vunpack.c.l.b16 %v9676
      %v10331 = vunpack.c.h.b16 %v9676
      %v10332 = vunpack.c.l.b16 %v9677
      %v10333 = vunpack.c.h.b16 %v9677
      %v10334 = vunpack.c.l.b16 %v9678
      %v10335 = vunpack.c.h.b16 %v9678
      %v10336 = vunpack.c.l.b16 %v9679
      %v10337 = vunpack.c.h.b16 %v9679
      %v10338 = vunpack.c.l.b16 %v9680
      %v10339 = vunpack.c.h.b16 %v9680
      %v10340 = vunpack.c.l.b16 %v9681
      %v10341 = vunpack.c.h.b16 %v9681
      %v10342 = vunpack.c.l.b16 %v9682
      %v10343 = vunpack.c.h.b16 %v9682
      %v10344 = vunpack.c.l.b16 %v9683
      %v10345 = vunpack.c.h.b16 %v9683
      %v10346 = vunpack.c.l.b16 %v9684
      %v10347 = vunpack.c.h.b16 %v9684
      %v10348 = vunpack.c.l.b16 %v9685
      %v10349 = vunpack.c.h.b16 %v9685
      %v10350 = vunpack.c.l.b16 %v9686
      %v10351 = vunpack.c.h.b16 %v9686
      %v10352 = vunpack.c.l.b16 %v9687
      %v10353 = vunpack.c.h.b16 %v9687
      %v10354 = vpack.c.b16 %v10230, %v10226
      %v10355 = vpack.c.b16 %v10231, %v10227
      %v10356 = vpack.c.b16 %v10232, %v10228
      %v10357 = vpack.c.b16 %v10233, %v10229
      %v10358 = vpack.c.b16 %v10238, %v10234
      %v10359 = vpack.c.b16 %v10239, %v10235
      %v10360 = vpack.c.b16 %v10240, %v10236
      %v10361 = vpack.c.b16 %v10241, %v10237
      %v10362 = vpack.c.b16 %v10246, %v10242
      %v10363 = vpack.c.b16 %v10247, %v10243
      %v10364 = vpack.c.b16 %v10248, %v10244
      %v10365 = vpack.c.b16 %v10249, %v10245
      %v10366 = vpack.c.b16 %v10254, %v10250
      %v10367 = vpack.c.b16 %v10255, %v10251
      %v10368 = vpack.c.b16 %v10256, %v10252
      %v10369 = vpack.c.b16 %v10257, %v10253
      %v10370 = vpack.c.b16 %v10262, %v10258
      %v10371 = vpack.c.b16 %v10263, %v10259
      %v10372 = vpack.c.b16 %v10264, %v10260
      %v10373 = vpack.c.b16 %v10265, %v10261
      %v10374 = vpack.c.b16 %v10270, %v10266
      %v10375 = vpack.c.b16 %v10271, %v10267
      %v10376 = vpack.c.b16 %v10272, %v10268
      %v10377 = vpack.c.b16 %v10273, %v10269
      %v10378 = vpack.c.b16 %v10278, %v10274
      %v10379 = vpack.c.b16 %v10279, %v10275
      %v10380 = vpack.c.b16 %v10280, %v10276
      %v10381 = vpack.c.b16 %v10281, %v10277
      %v10382 = vpack.c.b16 %v10286, %v10282
      %v10383 = vpack.c.b16 %v10287, %v10283
      %v10384 = vpack.c.b16 %v10288, %v10284
      %v10385 = vpack.c.b16 %v10289, %v10285
      %v10386 = vpack.c.b16 %v10294, %v10290
      %v10387 = vpack.c.b16 %v10295, %v10291
      %v10388 = vpack.c.b16 %v10296, %v10292
      %v10389 = vpack.c.b16 %v10297, %v10293
      %v10390 = vpack.c.b16 %v10302, %v10298
      %v10391 = vpack.c.b16 %v10303, %v10299
      %v10392 = vpack.c.b16 %v10304, %v10300
      %v10393 = vpack.c.b16 %v10305, %v10301
      %v10394 = vpack.c.b16 %v10310, %v10306
      %v10395 = vpack.c.b16 %v10311, %v10307
      %v10396 = vpack.c.b16 %v10312, %v10308
      %v10397 = vpack.c.b16 %v10313, %v10309
      %v10398 = vpack.c.b16 %v10318, %v10314
      %v10399 = vpack.c.b16 %v10319, %v10315
      %v10400 = vpack.c.b16 %v10320, %v10316
      %v10401 = vpack.c.b16 %v10321, %v10317
      %v10402 = vpack.c.b16 %v10326, %v10322
      %v10403 = vpack.c.b16 %v10327, %v10323
      %v10404 = vpack.c.b16 %v10328, %v10324
      %v10405 = vpack.c.b16 %v10329, %v10325
      %v10406 = vpack.c.b16 %v10334, %v10330
      %v10407 = vpack.c.b16 %v10335, %v10331
      %v10408 = vpack.c.b16 %v10336, %v10332
      %v10409 = vpack.c.b16 %v10337, %v10333
      %v10410 = vpack.c.b16 %v10342, %v10338
      %v10411 = vpack.c.b16 %v10343, %v10339
      %v10412 = vpack.c.b16 %v10344, %v10340
      %v10413 = vpack.c.b16 %v10345, %v10341
      %v10414 = vpack.c.b16 %v10350, %v10346
      %v10415 = vpack.c.b16 %v10351, %v10347
      %v10416 = vpack.c.b16 %v10352, %v10348
      %v10417 = vpack.c.b16 %v10353, %v10349
      %10482 = vmatprep.subr.bf16.mxu0 %v10355
      %10483 = vmatpush1.bf16.msra.mxu0 %v10354
      %10484 = vmatprep.subr.bf16.mxu0 %v10359
      %10485 = vmatpush1.bf16.msra.mxu0 %v10358
      %10486 = vmatprep.subr.bf16.mxu0 %v10363
      %10487 = vmatpush1.bf16.msra.mxu0 %v10362
      %10488 = vmatprep.subr.bf16.mxu0 %v10367
      %10489 = vmatpush1.bf16.msra.mxu0 %v10366
      %10490 = vmatprep.subr.bf16.mxu0 %v10371
      %10491 = vmatpush1.bf16.msra.mxu0 %v10370
      %10492 = vmatprep.subr.bf16.mxu0 %v10375
      %10493 = vmatpush1.bf16.msra.mxu0 %v10374
      %10494 = vmatprep.subr.bf16.mxu0 %v10379
      %10495 = vmatpush1.bf16.msra.mxu0 %v10378
      %10496 = vmatprep.subr.bf16.mxu0 %v10383
      %10497 = vmatpush1.bf16.msra.mxu0 %v10382
      %10498 = vmatprep.subr.bf16.mxu0 %v10387
      %10499 = vmatpush1.bf16.msra.mxu0 %v10386
      %10500 = vmatprep.subr.bf16.mxu0 %v10391
      %10501 = vmatpush1.bf16.msra.mxu0 %v10390
      %10502 = vmatprep.subr.bf16.mxu0 %v10395
      %10503 = vmatpush1.bf16.msra.mxu0 %v10394
      %10504 = vmatprep.subr.bf16.mxu0 %v10399
      %10505 = vmatpush1.bf16.msra.mxu0 %v10398
      %10506 = vmatprep.subr.bf16.mxu0 %v10403
      %10507 = vmatpush1.bf16.msra.mxu0 %v10402
      %10508 = vmatprep.subr.bf16.mxu0 %v10407
      %10509 = vmatpush1.bf16.msra.mxu0 %v10406
      %10510 = vmatprep.subr.bf16.mxu0 %v10411
      %10511 = vmatpush1.bf16.msra.mxu0 %v10410
      %10512 = vmatprep.subr.bf16.mxu0 %v10415
      %10513 = vmatpush1.bf16.msra.mxu0 %v10414
      %10514 = vmatprep.mubr.bf16.mxu0 %v9623
      %10515 = vmatmul.mubr.bf16.gmra.mrb[0].mxu0 %v9622
      %v10516 = vpop.f32.mrb[0].mxu0
      %v10517 = vadd.f32 %v10115, %v10516
      %v10518 = vpop.f32.mrb[0].mxu0
      %v10519 = vadd.f32 %v10117, %v10518
      %v10520 = vpop.f32.mrb[0].mxu0
      %v10521 = vpop.f32.mrb[0].mxu0
      %10522 = vdwg.mxu0
      %10523 = vmatprep.subr.bf16.mxu0 %v10357
      %10524 = vmatpush1.bf16.msra.mxu0 %v10356
      %10525 = vmatprep.subr.bf16.mxu0 %v10361
      %10526 = vmatpush1.bf16.msra.mxu0 %v10360
      %10527 = vmatprep.subr.bf16.mxu0 %v10365
      %10528 = vmatpush1.bf16.msra.mxu0 %v10364
      %10529 = vmatprep.subr.bf16.mxu0 %v10369
      %10530 = vmatpush1.bf16.msra.mxu0 %v10368
      %10531 = vmatprep.subr.bf16.mxu0 %v10373
      %10532 = vmatpush1.bf16.msra.mxu0 %v10372
      %10533 = vmatprep.subr.bf16.mxu0 %v10377
      %10534 = vmatpush1.bf16.msra.mxu0 %v10376
      %10535 = vmatprep.subr.bf16.mxu0 %v10381
      %10536 = vmatpush1.bf16.msra.mxu0 %v10380
      %10537 = vmatprep.subr.bf16.mxu0 %v10385
      %10538 = vmatpush1.bf16.msra.mxu0 %v10384
      %10539 = vmatprep.subr.bf16.mxu0 %v10389
      %10540 = vmatpush1.bf16.msra.mxu0 %v10388
      %10541 = vmatprep.subr.bf16.mxu0 %v10393
      %10542 = vmatpush1.bf16.msra.mxu0 %v10392
      %10543 = vmatprep.subr.bf16.mxu0 %v10397
      %10544 = vmatpush1.bf16.msra.mxu0 %v10396
      %10545 = vmatprep.subr.bf16.mxu0 %v10401
      %10546 = vmatpush1.bf16.msra.mxu0 %v10400
      %10547 = vmatprep.subr.bf16.mxu0 %v10405
      %10548 = vmatpush1.bf16.msra.mxu0 %v10404
      %10549 = vmatprep.subr.bf16.mxu0 %v10409
      %10550 = vmatpush1.bf16.msra.mxu0 %v10408
      %10551 = vmatprep.subr.bf16.mxu0 %v10413
      %10552 = vmatpush1.bf16.msra.mxu0 %v10412
      %10553 = vmatprep.subr.bf16.mxu0 %v10417
      %10554 = vmatpush1.bf16.msra.mxu0 %v10416
      %10555 = vmatprep.mubr.bf16.mxu0 %v9623
      %10556 = vmatmul.mubr.bf16.gmra.mrb[0].mxu0 %v9622
      %v10557 = vpop.f32.mrb[0].mxu0
      %v10558 = vadd.f32 %v10156, %v10557
      %v10559 = vpop.f32.mrb[0].mxu0
      %v10560 = vadd.f32 %v10158, %v10559
      %v10561 = vpop.f32.mrb[0].mxu0
      %v10562 = vpop.f32.mrb[0].mxu0
      %10563 = vdwg.mxu0
      %v10564 = vld [vmem:[%s5 + $0x400] sm:$0xff]
      %v10565 = vld [vmem:[%s5 + $0x408] sm:$0xff]
      %v10566 = vld [vmem:[%s5 + $0x410] sm:$0xff]
      %v10567 = vld [vmem:[%s5 + $0x418] sm:$0xff]
      %v10568 = vld [vmem:[%s5 + $0x420] sm:$0xff]
      %v10569 = vld [vmem:[%s5 + $0x428] sm:$0xff]
      %v10570 = vld [vmem:[%s5 + $0x430] sm:$0xff]
      %v10571 = vld [vmem:[%s5 + $0x438] sm:$0xff]
      %v10572 = vld [vmem:[%s5 + $0x440] sm:$0xff]
      %v10573 = vld [vmem:[%s5 + $0x448] sm:$0xff]
      %v10574 = vld [vmem:[%s5 + $0x450] sm:$0xff]
      %v10575 = vld [vmem:[%s5 + $0x458] sm:$0xff]
      %v10576 = vld [vmem:[%s5 + $0x460] sm:$0xff]
      %v10577 = vld [vmem:[%s5 + $0x468] sm:$0xff]
      %v10578 = vld [vmem:[%s5 + $0x470] sm:$0xff]
      %v10579 = vld [vmem:[%s5 + $0x478] sm:$0xff]
      %v10580 = vld [vmem:[%s5 + $0x480] sm:$0xff]
      %v10581 = vld [vmem:[%s5 + $0x488] sm:$0xff]
      %v10582 = vld [vmem:[%s5 + $0x490] sm:$0xff]
      %v10583 = vld [vmem:[%s5 + $0x498] sm:$0xff]
      %v10584 = vld [vmem:[%s5 + $0x4a0] sm:$0xff]
      %v10585 = vld [vmem:[%s5 + $0x4a8] sm:$0xff]
      %v10586 = vld [vmem:[%s5 + $0x4b0] sm:$0xff]
      %v10587 = vld [vmem:[%s5 + $0x4b8] sm:$0xff]
      %v10588 = vld [vmem:[%s5 + $0x4c0] sm:$0xff]
      %v10589 = vld [vmem:[%s5 + $0x4c8] sm:$0xff]
      %v10590 = vld [vmem:[%s5 + $0x4d0] sm:$0xff]
      %v10591 = vld [vmem:[%s5 + $0x4d8] sm:$0xff]
      %v10592 = vld [vmem:[%s5 + $0x4e0] sm:$0xff]
      %v10593 = vld [vmem:[%s5 + $0x4e8] sm:$0xff]
      %v10594 = vld [vmem:[%s5 + $0x4f0] sm:$0xff]
      %v10595 = vld [vmem:[%s5 + $0x4f8] sm:$0xff]
      %v10596 = vld [vmem:[%s5 + $0x500] sm:$0xff]
      %v10597 = vld [vmem:[%s5 + $0x508] sm:$0xff]
      %v10598 = vld [vmem:[%s5 + $0x510] sm:$0xff]
      %v10599 = vld [vmem:[%s5 + $0x518] sm:$0xff]
      %v10600 = vld [vmem:[%s5 + $0x520] sm:$0xff]
      %v10601 = vld [vmem:[%s5 + $0x528] sm:$0xff]
      %v10602 = vld [vmem:[%s5 + $0x530] sm:$0xff]
      %v10603 = vld [vmem:[%s5 + $0x538] sm:$0xff]
      %v10604 = vld [vmem:[%s5 + $0x540] sm:$0xff]
      %v10605 = vld [vmem:[%s5 + $0x548] sm:$0xff]
      %v10606 = vld [vmem:[%s5 + $0x550] sm:$0xff]
      %v10607 = vld [vmem:[%s5 + $0x558] sm:$0xff]
      %v10608 = vld [vmem:[%s5 + $0x560] sm:$0xff]
      %v10609 = vld [vmem:[%s5 + $0x568] sm:$0xff]
      %v10610 = vld [vmem:[%s5 + $0x570] sm:$0xff]
      %v10611 = vld [vmem:[%s5 + $0x578] sm:$0xff]
      %v10612 = vld [vmem:[%s5 + $0x580] sm:$0xff]
      %v10613 = vld [vmem:[%s5 + $0x588] sm:$0xff]
      %v10614 = vld [vmem:[%s5 + $0x590] sm:$0xff]
      %v10615 = vld [vmem:[%s5 + $0x598] sm:$0xff]
      %v10616 = vld [vmem:[%s5 + $0x5a0] sm:$0xff]
      %v10617 = vld [vmem:[%s5 + $0x5a8] sm:$0xff]
      %v10618 = vld [vmem:[%s5 + $0x5b0] sm:$0xff]
      %v10619 = vld [vmem:[%s5 + $0x5b8] sm:$0xff]
      %v10620 = vld [vmem:[%s5 + $0x5c0] sm:$0xff]
      %v10621 = vld [vmem:[%s5 + $0x5c8] sm:$0xff]
      %v10622 = vld [vmem:[%s5 + $0x5d0] sm:$0xff]
      %v10623 = vld [vmem:[%s5 + $0x5d8] sm:$0xff]
      %v10624 = vld [vmem:[%s5 + $0x5e0] sm:$0xff]
      %v10625 = vld [vmem:[%s5 + $0x5e8] sm:$0xff]
      %v10626 = vld [vmem:[%s5 + $0x5f0] sm:$0xff]
      %v10627 = vld [vmem:[%s5 + $0x5f8] sm:$0xff]
      %v10630 = vrot.slane %v9622, 1
      %v10631 = vrot.slane %v9623, 1
      %v10698 = vunpack.c.l.b16 %v10564
      %v10699 = vunpack.c.h.b16 %v10564
      %v10700 = vunpack.c.l.b16 %v10565
      %v10701 = vunpack.c.h.b16 %v10565
      %v10702 = vunpack.c.l.b16 %v10566
      %v10703 = vunpack.c.h.b16 %v10566
      %v10704 = vunpack.c.l.b16 %v10567
      %v10705 = vunpack.c.h.b16 %v10567
      %v10706 = vunpack.c.l.b16 %v10568
      %v10707 = vunpack.c.h.b16 %v10568
      %v10708 = vunpack.c.l.b16 %v10569
      %v10709 = vunpack.c.h.b16 %v10569
      %v10710 = vunpack.c.l.b16 %v10570
      %v10711 = vunpack.c.h.b16 %v10570
      %v10712 = vunpack.c.l.b16 %v10571
      %v10713 = vunpack.c.h.b16 %v10571
      %v10714 = vunpack.c.l.b16 %v10572
      %v10715 = vunpack.c.h.b16 %v10572
      %v10716 = vunpack.c.l.b16 %v10573
      %v10717 = vunpack.c.h.b16 %v10573
      %v10718 = vunpack.c.l.b16 %v10574
      %v10719 = vunpack.c.h.b16 %v10574
      %v10720 = vunpack.c.l.b16 %v10575
      %v10721 = vunpack.c.h.b16 %v10575
      %v10722 = vunpack.c.l.b16 %v10576
      %v10723 = vunpack.c.h.b16 %v10576
      %v10724 = vunpack.c.l.b16 %v10577
      %v10725 = vunpack.c.h.b16 %v10577
      %v10726 = vunpack.c.l.b16 %v10578
      %v10727 = vunpack.c.h.b16 %v10578
      %v10728 = vunpack.c.l.b16 %v10579
      %v10729 = vunpack.c.h.b16 %v10579
      %v10730 = vunpack.c.l.b16 %v10580
      %v10731 = vunpack.c.h.b16 %v10580
      %v10732 = vunpack.c.l.b16 %v10581
      %v10733 = vunpack.c.h.b16 %v10581
      %v10734 = vunpack.c.l.b16 %v10582
      %v10735 = vunpack.c.h.b16 %v10582
      %v10736 = vunpack.c.l.b16 %v10583
      %v10737 = vunpack.c.h.b16 %v10583
      %v10738 = vunpack.c.l.b16 %v10584
      %v10739 = vunpack.c.h.b16 %v10584
      %v10740 = vunpack.c.l.b16 %v10585
      %v10741 = vunpack.c.h.b16 %v10585
      %v10742 = vunpack.c.l.b16 %v10586
      %v10743 = vunpack.c.h.b16 %v10586
      %v10744 = vunpack.c.l.b16 %v10587
      %v10745 = vunpack.c.h.b16 %v10587
      %v10746 = vunpack.c.l.b16 %v10588
      %v10747 = vunpack.c.h.b16 %v10588
      %v10748 = vunpack.c.l.b16 %v10589
      %v10749 = vunpack.c.h.b16 %v10589
      %v10750 = vunpack.c.l.b16 %v10590
      %v10751 = vunpack.c.h.b16 %v10590
      %v10752 = vunpack.c.l.b16 %v10591
      %v10753 = vunpack.c.h.b16 %v10591
      %v10754 = vunpack.c.l.b16 %v10592
      %v10755 = vunpack.c.h.b16 %v10592
      %v10756 = vunpack.c.l.b16 %v10593
      %v10757 = vunpack.c.h.b16 %v10593
      %v10758 = vunpack.c.l.b16 %v10594
      %v10759 = vunpack.c.h.b16 %v10594
      %v10760 = vunpack.c.l.b16 %v10595
      %v10761 = vunpack.c.h.b16 %v10595
      %v10762 = vunpack.c.l.b16 %v10596
      %v10763 = vunpack.c.h.b16 %v10596
      %v10764 = vunpack.c.l.b16 %v10597
      %v10765 = vunpack.c.h.b16 %v10597
      %v10766 = vunpack.c.l.b16 %v10598
      %v10767 = vunpack.c.h.b16 %v10598
      %v10768 = vunpack.c.l.b16 %v10599
      %v10769 = vunpack.c.h.b16 %v10599
      %v10770 = vunpack.c.l.b16 %v10600
      %v10771 = vunpack.c.h.b16 %v10600
      %v10772 = vunpack.c.l.b16 %v10601
      %v10773 = vunpack.c.h.b16 %v10601
      %v10774 = vunpack.c.l.b16 %v10602
      %v10775 = vunpack.c.h.b16 %v10602
      %v10776 = vunpack.c.l.b16 %v10603
      %v10777 = vunpack.c.h.b16 %v10603
      %v10778 = vunpack.c.l.b16 %v10604
      %v10779 = vunpack.c.h.b16 %v10604
      %v10780 = vunpack.c.l.b16 %v10605
      %v10781 = vunpack.c.h.b16 %v10605
      %v10782 = vunpack.c.l.b16 %v10606
      %v10783 = vunpack.c.h.b16 %v10606
      %v10784 = vunpack.c.l.b16 %v10607
      %v10785 = vunpack.c.h.b16 %v10607
      %v10786 = vunpack.c.l.b16 %v10608
      %v10787 = vunpack.c.h.b16 %v10608
      %v10788 = vunpack.c.l.b16 %v10609
      %v10789 = vunpack.c.h.b16 %v10609
      %v10790 = vunpack.c.l.b16 %v10610
      %v10791 = vunpack.c.h.b16 %v10610
      %v10792 = vunpack.c.l.b16 %v10611
      %v10793 = vunpack.c.h.b16 %v10611
      %v10794 = vunpack.c.l.b16 %v10612
      %v10795 = vunpack.c.h.b16 %v10612
      %v10796 = vunpack.c.l.b16 %v10613
      %v10797 = vunpack.c.h.b16 %v10613
      %v10798 = vunpack.c.l.b16 %v10614
      %v10799 = vunpack.c.h.b16 %v10614
      %v10800 = vunpack.c.l.b16 %v10615
      %v10801 = vunpack.c.h.b16 %v10615
      %v10802 = vunpack.c.l.b16 %v10616
      %v10803 = vunpack.c.h.b16 %v10616
      %v10804 = vunpack.c.l.b16 %v10617
      %v10805 = vunpack.c.h.b16 %v10617
      %v10806 = vunpack.c.l.b16 %v10618
      %v10807 = vunpack.c.h.b16 %v10618
      %v10808 = vunpack.c.l.b16 %v10619
      %v10809 = vunpack.c.h.b16 %v10619
      %v10810 = vunpack.c.l.b16 %v10620
      %v10811 = vunpack.c.h.b16 %v10620
      %v10812 = vunpack.c.l.b16 %v10621
      %v10813 = vunpack.c.h.b16 %v10621
      %v10814 = vunpack.c.l.b16 %v10622
      %v10815 = vunpack.c.h.b16 %v10622
      %v10816 = vunpack.c.l.b16 %v10623
      %v10817 = vunpack.c.h.b16 %v10623
      %v10818 = vunpack.c.l.b16 %v10624
      %v10819 = vunpack.c.h.b16 %v10624
      %v10820 = vunpack.c.l.b16 %v10625
      %v10821 = vunpack.c.h.b16 %v10625
      %v10822 = vunpack.c.l.b16 %v10626
      %v10823 = vunpack.c.h.b16 %v10626
      %v10824 = vunpack.c.l.b16 %v10627
      %v10825 = vunpack.c.h.b16 %v10627
      %v10826 = vpack.c.b16 %v10702, %v10698
      %v10827 = vpack.c.b16 %v10703, %v10699
      %v10828 = vpack.c.b16 %v10704, %v10700
      %v10829 = vpack.c.b16 %v10705, %v10701
      %v10830 = vpack.c.b16 %v10710, %v10706
      %v10831 = vpack.c.b16 %v10711, %v10707
      %v10832 = vpack.c.b16 %v10712, %v10708
      %v10833 = vpack.c.b16 %v10713, %v10709
      %v10834 = vpack.c.b16 %v10718, %v10714
      %v10835 = vpack.c.b16 %v10719, %v10715
      %v10836 = vpack.c.b16 %v10720, %v10716
      %v10837 = vpack.c.b16 %v10721, %v10717
      %v10838 = vpack.c.b16 %v10726, %v10722
      %v10839 = vpack.c.b16 %v10727, %v10723
      %v10840 = vpack.c.b16 %v10728, %v10724
      %v10841 = vpack.c.b16 %v10729, %v10725
      %v10842 = vpack.c.b16 %v10734, %v10730
      %v10843 = vpack.c.b16 %v10735, %v10731
      %v10844 = vpack.c.b16 %v10736, %v10732
      %v10845 = vpack.c.b16 %v10737, %v10733
      %v10846 = vpack.c.b16 %v10742, %v10738
      %v10847 = vpack.c.b16 %v10743, %v10739
      %v10848 = vpack.c.b16 %v10744, %v10740
      %v10849 = vpack.c.b16 %v10745, %v10741
      %v10850 = vpack.c.b16 %v10750, %v10746
      %v10851 = vpack.c.b16 %v10751, %v10747
      %v10852 = vpack.c.b16 %v10752, %v10748
      %v10853 = vpack.c.b16 %v10753, %v10749
      %v10854 = vpack.c.b16 %v10758, %v10754
      %v10855 = vpack.c.b16 %v10759, %v10755
      %v10856 = vpack.c.b16 %v10760, %v10756
      %v10857 = vpack.c.b16 %v10761, %v10757
      %v10858 = vpack.c.b16 %v10766, %v10762
      %v10859 = vpack.c.b16 %v10767, %v10763
      %v10860 = vpack.c.b16 %v10768, %v10764
      %v10861 = vpack.c.b16 %v10769, %v10765
      %v10862 = vpack.c.b16 %v10774, %v10770
      %v10863 = vpack.c.b16 %v10775, %v10771
      %v10864 = vpack.c.b16 %v10776, %v10772
      %v10865 = vpack.c.b16 %v10777, %v10773
      %v10866 = vpack.c.b16 %v10782, %v10778
      %v10867 = vpack.c.b16 %v10783, %v10779
      %v10868 = vpack.c.b16 %v10784, %v10780
      %v10869 = vpack.c.b16 %v10785, %v10781
      %v10870 = vpack.c.b16 %v10790, %v10786
      %v10871 = vpack.c.b16 %v10791, %v10787
      %v10872 = vpack.c.b16 %v10792, %v10788
      %v10873 = vpack.c.b16 %v10793, %v10789
      %v10874 = vpack.c.b16 %v10798, %v10794
      %v10875 = vpack.c.b16 %v10799, %v10795
      %v10876 = vpack.c.b16 %v10800, %v10796
      %v10877 = vpack.c.b16 %v10801, %v10797
      %v10878 = vpack.c.b16 %v10806, %v10802
      %v10879 = vpack.c.b16 %v10807, %v10803
      %v10880 = vpack.c.b16 %v10808, %v10804
      %v10881 = vpack.c.b16 %v10809, %v10805
      %v10882 = vpack.c.b16 %v10814, %v10810
      %v10883 = vpack.c.b16 %v10815, %v10811
      %v10884 = vpack.c.b16 %v10816, %v10812
      %v10885 = vpack.c.b16 %v10817, %v10813
      %v10886 = vpack.c.b16 %v10822, %v10818
      %v10887 = vpack.c.b16 %v10823, %v10819
      %v10888 = vpack.c.b16 %v10824, %v10820
      %v10889 = vpack.c.b16 %v10825, %v10821
      %10954 = vmatprep.subr.bf16.mxu0 %v10827
      %10955 = vmatpush1.bf16.msra.mxu0 %v10826
      %10956 = vmatprep.subr.bf16.mxu0 %v10831
      %10957 = vmatpush1.bf16.msra.mxu0 %v10830
      %10958 = vmatprep.subr.bf16.mxu0 %v10835
      %10959 = vmatpush1.bf16.msra.mxu0 %v10834
      %10960 = vmatprep.subr.bf16.mxu0 %v10839
      %10961 = vmatpush1.bf16.msra.mxu0 %v10838
      %10962 = vmatprep.subr.bf16.mxu0 %v10843
      %10963 = vmatpush1.bf16.msra.mxu0 %v10842
      %10964 = vmatprep.subr.bf16.mxu0 %v10847
      %10965 = vmatpush1.bf16.msra.mxu0 %v10846
      %10966 = vmatprep.subr.bf16.mxu0 %v10851
      %10967 = vmatpush1.bf16.msra.mxu0 %v10850
      %10968 = vmatprep.subr.bf16.mxu0 %v10855
      %10969 = vmatpush1.bf16.msra.mxu0 %v10854
      %10970 = vmatprep.subr.bf16.mxu0 %v10859
      %10971 = vmatpush1.bf16.msra.mxu0 %v10858
      %10972 = vmatprep.subr.bf16.mxu0 %v10863
      %10973 = vmatpush1.bf16.msra.mxu0 %v10862
      %10974 = vmatprep.subr.bf16.mxu0 %v10867
      %10975 = vmatpush1.bf16.msra.mxu0 %v10866
      %10976 = vmatprep.subr.bf16.mxu0 %v10871
      %10977 = vmatpush1.bf16.msra.mxu0 %v10870
      %10978 = vmatprep.subr.bf16.mxu0 %v10875
      %10979 = vmatpush1.bf16.msra.mxu0 %v10874
      %10980 = vmatprep.subr.bf16.mxu0 %v10879
      %10981 = vmatpush1.bf16.msra.mxu0 %v10878
      %10982 = vmatprep.subr.bf16.mxu0 %v10883
      %10983 = vmatpush1.bf16.msra.mxu0 %v10882
      %10984 = vmatprep.subr.bf16.mxu0 %v10887
      %10985 = vmatpush1.bf16.msra.mxu0 %v10886
      %10986 = vmatprep.mubr.bf16.mxu0 %v10631
      %10987 = vmatmul.mubr.bf16.gmra.mrb[0].mxu0 %v10630
      %v10988 = vpop.f32.mrb[0].mxu0
      %v10989 = vadd.f32 0.0, %v10988
      %v10990 = vpop.f32.mrb[0].mxu0
      %v10991 = vadd.f32 0.0, %v10990
      %v10992 = vpop.f32.mrb[0].mxu0
      %v10993 = vpop.f32.mrb[0].mxu0
      %10994 = vdwg.mxu0
      %10995 = vmatprep.subr.bf16.mxu0 %v10829
      %10996 = vmatpush1.bf16.msra.mxu0 %v10828
      %10997 = vmatprep.subr.bf16.mxu0 %v10833
      %10998 = vmatpush1.bf16.msra.mxu0 %v10832
      %10999 = vmatprep.subr.bf16.mxu0 %v10837
      %11000 = vmatpush1.bf16.msra.mxu0 %v10836
      %11001 = vmatprep.subr.bf16.mxu0 %v10841
      %11002 = vmatpush1.bf16.msra.mxu0 %v10840
      %11003 = vmatprep.subr.bf16.mxu0 %v10845
      %11004 = vmatpush1.bf16.msra.mxu0 %v10844
      %11005 = vmatprep.subr.bf16.mxu0 %v10849
      %11006 = vmatpush1.bf16.msra.mxu0 %v10848
      %11007 = vmatprep.subr.bf16.mxu0 %v10853
      %11008 = vmatpush1.bf16.msra.mxu0 %v10852
      %11009 = vmatprep.subr.bf16.mxu0 %v10857
      %11010 = vmatpush1.bf16.msra.mxu0 %v10856
      %11011 = vmatprep.subr.bf16.mxu0 %v10861
      %11012 = vmatpush1.bf16.msra.mxu0 %v10860
      %11013 = vmatprep.subr.bf16.mxu0 %v10865
      %11014 = vmatpush1.bf16.msra.mxu0 %v10864
      %11015 = vmatprep.subr.bf16.mxu0 %v10869
      %11016 = vmatpush1.bf16.msra.mxu0 %v10868
      %11017 = vmatprep.subr.bf16.mxu0 %v10873
      %11018 = vmatpush1.bf16.msra.mxu0 %v10872
      %11019 = vmatprep.subr.bf16.mxu0 %v10877
      %11020 = vmatpush1.bf16.msra.mxu0 %v10876
      %11021 = vmatprep.subr.bf16.mxu0 %v10881
      %11022 = vmatpush1.bf16.msra.mxu0 %v10880
      %11023 = vmatprep.subr.bf16.mxu0 %v10885
      %11024 = vmatpush1.bf16.msra.mxu0 %v10884
      %11025 = vmatprep.subr.bf16.mxu0 %v10889
      %11026 = vmatpush1.bf16.msra.mxu0 %v10888
      %11027 = vmatprep.mubr.bf16.mxu0 %v10631
      %11028 = vmatmul.mubr.bf16.gmra.mrb[0].mxu0 %v10630
      %v11029 = vpop.f32.mrb[0].mxu0
      %v11030 = vadd.f32 0.0, %v11029
      %v11031 = vpop.f32.mrb[0].mxu0
      %v11032 = vadd.f32 0.0, %v11031
      %v11033 = vpop.f32.mrb[0].mxu0
      %v11034 = vpop.f32.mrb[0].mxu0
      %11035 = vdwg.mxu0
      %v11036 = vadd.f32 %v10517, %v10989
      %v11037 = vadd.f32 %v10519, %v10991
      %v11038 = vadd.f32 %v10558, %v11030
      %v11039 = vadd.f32 %v10560, %v11032
      %v11040 = vld [vmem:[%s5 + $0x600] sm:$0xff]
      %v11041 = vld [vmem:[%s5 + $0x608] sm:$0xff]
      %v11042 = vld [vmem:[%s5 + $0x610] sm:$0xff]
      %v11043 = vld [vmem:[%s5 + $0x618] sm:$0xff]
      %v11044 = vld [vmem:[%s5 + $0x620] sm:$0xff]
      %v11045 = vld [vmem:[%s5 + $0x628] sm:$0xff]
      %v11046 = vld [vmem:[%s5 + $0x630] sm:$0xff]
      %v11047 = vld [vmem:[%s5 + $0x638] sm:$0xff]
      %v11048 = vld [vmem:[%s5 + $0x640] sm:$0xff]
      %v11049 = vld [vmem:[%s5 + $0x648] sm:$0xff]
      %v11050 = vld [vmem:[%s5 + $0x650] sm:$0xff]
      %v11051 = vld [vmem:[%s5 + $0x658] sm:$0xff]
      %v11052 = vld [vmem:[%s5 + $0x660] sm:$0xff]
      %v11053 = vld [vmem:[%s5 + $0x668] sm:$0xff]
      %v11054 = vld [vmem:[%s5 + $0x670] sm:$0xff]
      %v11055 = vld [vmem:[%s5 + $0x678] sm:$0xff]
      %v11056 = vld [vmem:[%s5 + $0x680] sm:$0xff]
      %v11057 = vld [vmem:[%s5 + $0x688] sm:$0xff]
      %v11058 = vld [vmem:[%s5 + $0x690] sm:$0xff]
      %v11059 = vld [vmem:[%s5 + $0x698] sm:$0xff]
      %v11060 = vld [vmem:[%s5 + $0x6a0] sm:$0xff]
      %v11061 = vld [vmem:[%s5 + $0x6a8] sm:$0xff]
      %v11062 = vld [vmem:[%s5 + $0x6b0] sm:$0xff]
      %v11063 = vld [vmem:[%s5 + $0x6b8] sm:$0xff]
      %v11064 = vld [vmem:[%s5 + $0x6c0] sm:$0xff]
      %v11065 = vld [vmem:[%s5 + $0x6c8] sm:$0xff]
      %v11066 = vld [vmem:[%s5 + $0x6d0] sm:$0xff]
      %v11067 = vld [vmem:[%s5 + $0x6d8] sm:$0xff]
      %v11068 = vld [vmem:[%s5 + $0x6e0] sm:$0xff]
      %v11069 = vld [vmem:[%s5 + $0x6e8] sm:$0xff]
      %v11070 = vld [vmem:[%s5 + $0x6f0] sm:$0xff]
      %v11071 = vld [vmem:[%s5 + $0x6f8] sm:$0xff]
      %v11072 = vld [vmem:[%s5 + $0x700] sm:$0xff]
      %v11073 = vld [vmem:[%s5 + $0x708] sm:$0xff]
      %v11074 = vld [vmem:[%s5 + $0x710] sm:$0xff]
      %v11075 = vld [vmem:[%s5 + $0x718] sm:$0xff]
      %v11076 = vld [vmem:[%s5 + $0x720] sm:$0xff]
      %v11077 = vld [vmem:[%s5 + $0x728] sm:$0xff]
      %v11078 = vld [vmem:[%s5 + $0x730] sm:$0xff]
      %v11079 = vld [vmem:[%s5 + $0x738] sm:$0xff]
      %v11080 = vld [vmem:[%s5 + $0x740] sm:$0xff]
      %v11081 = vld [vmem:[%s5 + $0x748] sm:$0xff]
      %v11082 = vld [vmem:[%s5 + $0x750] sm:$0xff]
      %v11083 = vld [vmem:[%s5 + $0x758] sm:$0xff]
      %v11084 = vld [vmem:[%s5 + $0x760] sm:$0xff]
      %v11085 = vld [vmem:[%s5 + $0x768] sm:$0xff]
      %v11086 = vld [vmem:[%s5 + $0x770] sm:$0xff]
      %v11087 = vld [vmem:[%s5 + $0x778] sm:$0xff]
      %v11088 = vld [vmem:[%s5 + $0x780] sm:$0xff]
      %v11089 = vld [vmem:[%s5 + $0x788] sm:$0xff]
      %v11090 = vld [vmem:[%s5 + $0x790] sm:$0xff]
      %v11091 = vld [vmem:[%s5 + $0x798] sm:$0xff]
      %v11092 = vld [vmem:[%s5 + $0x7a0] sm:$0xff]
      %v11093 = vld [vmem:[%s5 + $0x7a8] sm:$0xff]
      %v11094 = vld [vmem:[%s5 + $0x7b0] sm:$0xff]
      %v11095 = vld [vmem:[%s5 + $0x7b8] sm:$0xff]
      %v11096 = vld [vmem:[%s5 + $0x7c0] sm:$0xff]
      %v11097 = vld [vmem:[%s5 + $0x7c8] sm:$0xff]
      %v11098 = vld [vmem:[%s5 + $0x7d0] sm:$0xff]
      %v11099 = vld [vmem:[%s5 + $0x7d8] sm:$0xff]
      %v11100 = vld [vmem:[%s5 + $0x7e0] sm:$0xff]
      %v11101 = vld [vmem:[%s5 + $0x7e8] sm:$0xff]
      %v11102 = vld [vmem:[%s5 + $0x7f0] sm:$0xff]
      %v11103 = vld [vmem:[%s5 + $0x7f8] sm:$0xff]
      %v11104 = vrot.slane %v9753, 1
      %v11105 = vrot.slane %v9756, 1
      %v11172 = vunpack.c.l.b16 %v11040
      %v11173 = vunpack.c.h.b16 %v11040
      %v11174 = vunpack.c.l.b16 %v11041
      %v11175 = vunpack.c.h.b16 %v11041
      %v11176 = vunpack.c.l.b16 %v11042
      %v11177 = vunpack.c.h.b16 %v11042
      %v11178 = vunpack.c.l.b16 %v11043
      %v11179 = vunpack.c.h.b16 %v11043
      %v11180 = vunpack.c.l.b16 %v11044
      %v11181 = vunpack.c.h.b16 %v11044
      %v11182 = vunpack.c.l.b16 %v11045
      %v11183 = vunpack.c.h.b16 %v11045
      %v11184 = vunpack.c.l.b16 %v11046
      %v11185 = vunpack.c.h.b16 %v11046
      %v11186 = vunpack.c.l.b16 %v11047
      %v11187 = vunpack.c.h.b16 %v11047
      %v11188 = vunpack.c.l.b16 %v11048
      %v11189 = vunpack.c.h.b16 %v11048
      %v11190 = vunpack.c.l.b16 %v11049
      %v11191 = vunpack.c.h.b16 %v11049
      %v11192 = vunpack.c.l.b16 %v11050
      %v11193 = vunpack.c.h.b16 %v11050
      %v11194 = vunpack.c.l.b16 %v11051
      %v11195 = vunpack.c.h.b16 %v11051
      %v11196 = vunpack.c.l.b16 %v11052
      %v11197 = vunpack.c.h.b16 %v11052
      %v11198 = vunpack.c.l.b16 %v11053
      %v11199 = vunpack.c.h.b16 %v11053
      %v11200 = vunpack.c.l.b16 %v11054
      %v11201 = vunpack.c.h.b16 %v11054
      %v11202 = vunpack.c.l.b16 %v11055
      %v11203 = vunpack.c.h.b16 %v11055
      %v11204 = vunpack.c.l.b16 %v11056
      %v11205 = vunpack.c.h.b16 %v11056
      %v11206 = vunpack.c.l.b16 %v11057
      %v11207 = vunpack.c.h.b16 %v11057
      %v11208 = vunpack.c.l.b16 %v11058
      %v11209 = vunpack.c.h.b16 %v11058
      %v11210 = vunpack.c.l.b16 %v11059
      %v11211 = vunpack.c.h.b16 %v11059
      %v11212 = vunpack.c.l.b16 %v11060
      %v11213 = vunpack.c.h.b16 %v11060
      %v11214 = vunpack.c.l.b16 %v11061
      %v11215 = vunpack.c.h.b16 %v11061
      %v11216 = vunpack.c.l.b16 %v11062
      %v11217 = vunpack.c.h.b16 %v11062
      %v11218 = vunpack.c.l.b16 %v11063
      %v11219 = vunpack.c.h.b16 %v11063
      %v11220 = vunpack.c.l.b16 %v11064
      %v11221 = vunpack.c.h.b16 %v11064
      %v11222 = vunpack.c.l.b16 %v11065
      %v11223 = vunpack.c.h.b16 %v11065
      %v11224 = vunpack.c.l.b16 %v11066
      %v11225 = vunpack.c.h.b16 %v11066
      %v11226 = vunpack.c.l.b16 %v11067
      %v11227 = vunpack.c.h.b16 %v11067
      %v11228 = vunpack.c.l.b16 %v11068
      %v11229 = vunpack.c.h.b16 %v11068
      %v11230 = vunpack.c.l.b16 %v11069
      %v11231 = vunpack.c.h.b16 %v11069
      %v11232 = vunpack.c.l.b16 %v11070
      %v11233 = vunpack.c.h.b16 %v11070
      %v11234 = vunpack.c.l.b16 %v11071
      %v11235 = vunpack.c.h.b16 %v11071
      %v11236 = vunpack.c.l.b16 %v11072
      %v11237 = vunpack.c.h.b16 %v11072
      %v11238 = vunpack.c.l.b16 %v11073
      %v11239 = vunpack.c.h.b16 %v11073
      %v11240 = vunpack.c.l.b16 %v11074
      %v11241 = vunpack.c.h.b16 %v11074
      %v11242 = vunpack.c.l.b16 %v11075
      %v11243 = vunpack.c.h.b16 %v11075
      %v11244 = vunpack.c.l.b16 %v11076
      %v11245 = vunpack.c.h.b16 %v11076
      %v11246 = vunpack.c.l.b16 %v11077
      %v11247 = vunpack.c.h.b16 %v11077
      %v11248 = vunpack.c.l.b16 %v11078
      %v11249 = vunpack.c.h.b16 %v11078
      %v11250 = vunpack.c.l.b16 %v11079
      %v11251 = vunpack.c.h.b16 %v11079
      %v11252 = vunpack.c.l.b16 %v11080
      %v11253 = vunpack.c.h.b16 %v11080
      %v11254 = vunpack.c.l.b16 %v11081
      %v11255 = vunpack.c.h.b16 %v11081
      %v11256 = vunpack.c.l.b16 %v11082
      %v11257 = vunpack.c.h.b16 %v11082
      %v11258 = vunpack.c.l.b16 %v11083
      %v11259 = vunpack.c.h.b16 %v11083
      %v11260 = vunpack.c.l.b16 %v11084
      %v11261 = vunpack.c.h.b16 %v11084
      %v11262 = vunpack.c.l.b16 %v11085
      %v11263 = vunpack.c.h.b16 %v11085
      %v11264 = vunpack.c.l.b16 %v11086
      %v11265 = vunpack.c.h.b16 %v11086
      %v11266 = vunpack.c.l.b16 %v11087
      %v11267 = vunpack.c.h.b16 %v11087
      %v11268 = vunpack.c.l.b16 %v11088
      %v11269 = vunpack.c.h.b16 %v11088
      %v11270 = vunpack.c.l.b16 %v11089
      %v11271 = vunpack.c.h.b16 %v11089
      %v11272 = vunpack.c.l.b16 %v11090
      %v11273 = vunpack.c.h.b16 %v11090
      %v11274 = vunpack.c.l.b16 %v11091
      %v11275 = vunpack.c.h.b16 %v11091
      %v11276 = vunpack.c.l.b16 %v11092
      %v11277 = vunpack.c.h.b16 %v11092
      %v11278 = vunpack.c.l.b16 %v11093
      %v11279 = vunpack.c.h.b16 %v11093
      %v11280 = vunpack.c.l.b16 %v11094
      %v11281 = vunpack.c.h.b16 %v11094
      %v11282 = vunpack.c.l.b16 %v11095
      %v11283 = vunpack.c.h.b16 %v11095
      %v11284 = vunpack.c.l.b16 %v11096
      %v11285 = vunpack.c.h.b16 %v11096
      %v11286 = vunpack.c.l.b16 %v11097
      %v11287 = vunpack.c.h.b16 %v11097
      %v11288 = vunpack.c.l.b16 %v11098
      %v11289 = vunpack.c.h.b16 %v11098
      %v11290 = vunpack.c.l.b16 %v11099
      %v11291 = vunpack.c.h.b16 %v11099
      %v11292 = vunpack.c.l.b16 %v11100
      %v11293 = vunpack.c.h.b16 %v11100
      %v11294 = vunpack.c.l.b16 %v11101
      %v11295 = vunpack.c.h.b16 %v11101
      %v11296 = vunpack.c.l.b16 %v11102
      %v11297 = vunpack.c.h.b16 %v11102
      %v11298 = vunpack.c.l.b16 %v11103
      %v11299 = vunpack.c.h.b16 %v11103
      %v11300 = vpack.c.b16 %v11176, %v11172
      %v11301 = vpack.c.b16 %v11177, %v11173
      %v11302 = vpack.c.b16 %v11178, %v11174
      %v11303 = vpack.c.b16 %v11179, %v11175
      %v11304 = vpack.c.b16 %v11184, %v11180
      %v11305 = vpack.c.b16 %v11185, %v11181
      %v11306 = vpack.c.b16 %v11186, %v11182
      %v11307 = vpack.c.b16 %v11187, %v11183
      %v11308 = vpack.c.b16 %v11192, %v11188
      %v11309 = vpack.c.b16 %v11193, %v11189
      %v11310 = vpack.c.b16 %v11194, %v11190
      %v11311 = vpack.c.b16 %v11195, %v11191
      %v11312 = vpack.c.b16 %v11200, %v11196
      %v11313 = vpack.c.b16 %v11201, %v11197
      %v11314 = vpack.c.b16 %v11202, %v11198
      %v11315 = vpack.c.b16 %v11203, %v11199
      %v11316 = vpack.c.b16 %v11208, %v11204
      %v11317 = vpack.c.b16 %v11209, %v11205
      %v11318 = vpack.c.b16 %v11210, %v11206
      %v11319 = vpack.c.b16 %v11211, %v11207
      %v11320 = vpack.c.b16 %v11216, %v11212
      %v11321 = vpack.c.b16 %v11217, %v11213
      %v11322 = vpack.c.b16 %v11218, %v11214
      %v11323 = vpack.c.b16 %v11219, %v11215
      %v11324 = vpack.c.b16 %v11224, %v11220
      %v11325 = vpack.c.b16 %v11225, %v11221
      %v11326 = vpack.c.b16 %v11226, %v11222
      %v11327 = vpack.c.b16 %v11227, %v11223
      %v11328 = vpack.c.b16 %v11232, %v11228
      %v11329 = vpack.c.b16 %v11233, %v11229
      %v11330 = vpack.c.b16 %v11234, %v11230
      %v11331 = vpack.c.b16 %v11235, %v11231
      %v11332 = vpack.c.b16 %v11240, %v11236
      %v11333 = vpack.c.b16 %v11241, %v11237
      %v11334 = vpack.c.b16 %v11242, %v11238
      %v11335 = vpack.c.b16 %v11243, %v11239
      %v11336 = vpack.c.b16 %v11248, %v11244
      %v11337 = vpack.c.b16 %v11249, %v11245
      %v11338 = vpack.c.b16 %v11250, %v11246
      %v11339 = vpack.c.b16 %v11251, %v11247
      %v11340 = vpack.c.b16 %v11256, %v11252
      %v11341 = vpack.c.b16 %v11257, %v11253
      %v11342 = vpack.c.b16 %v11258, %v11254
      %v11343 = vpack.c.b16 %v11259, %v11255
      %v11344 = vpack.c.b16 %v11264, %v11260
      %v11345 = vpack.c.b16 %v11265, %v11261
      %v11346 = vpack.c.b16 %v11266, %v11262
      %v11347 = vpack.c.b16 %v11267, %v11263
      %v11348 = vpack.c.b16 %v11272, %v11268
      %v11349 = vpack.c.b16 %v11273, %v11269
      %v11350 = vpack.c.b16 %v11274, %v11270
      %v11351 = vpack.c.b16 %v11275, %v11271
      %v11352 = vpack.c.b16 %v11280, %v11276
      %v11353 = vpack.c.b16 %v11281, %v11277
      %v11354 = vpack.c.b16 %v11282, %v11278
      %v11355 = vpack.c.b16 %v11283, %v11279
      %v11356 = vpack.c.b16 %v11288, %v11284
      %v11357 = vpack.c.b16 %v11289, %v11285
      %v11358 = vpack.c.b16 %v11290, %v11286
      %v11359 = vpack.c.b16 %v11291, %v11287
      %v11360 = vpack.c.b16 %v11296, %v11292
      %v11361 = vpack.c.b16 %v11297, %v11293
      %v11362 = vpack.c.b16 %v11298, %v11294
      %v11363 = vpack.c.b16 %v11299, %v11295
      %11428 = vmatprep.subr.bf16.mxu0 %v11301
      %11429 = vmatpush1.bf16.msra.mxu0 %v11300
      %11430 = vmatprep.subr.bf16.mxu0 %v11305
      %11431 = vmatpush1.bf16.msra.mxu0 %v11304
      %11432 = vmatprep.subr.bf16.mxu0 %v11309
      %11433 = vmatpush1.bf16.msra.mxu0 %v11308
      %11434 = vmatprep.subr.bf16.mxu0 %v11313
      %11435 = vmatpush1.bf16.msra.mxu0 %v11312
      %11436 = vmatprep.subr.bf16.mxu0 %v11317
      %11437 = vmatpush1.bf16.msra.mxu0 %v11316
      %11438 = vmatprep.subr.bf16.mxu0 %v11321
      %11439 = vmatpush1.bf16.msra.mxu0 %v11320
      %11440 = vmatprep.subr.bf16.mxu0 %v11325
      %11441 = vmatpush1.bf16.msra.mxu0 %v11324
      %11442 = vmatprep.subr.bf16.mxu0 %v11329
      %11443 = vmatpush1.bf16.msra.mxu0 %v11328
      %11444 = vmatprep.subr.bf16.mxu0 %v11333
      %11445 = vmatpush1.bf16.msra.mxu0 %v11332
      %11446 = vmatprep.subr.bf16.mxu0 %v11337
      %11447 = vmatpush1.bf16.msra.mxu0 %v11336
      %11448 = vmatprep.subr.bf16.mxu0 %v11341
      %11449 = vmatpush1.bf16.msra.mxu0 %v11340
      %11450 = vmatprep.subr.bf16.mxu0 %v11345
      %11451 = vmatpush1.bf16.msra.mxu0 %v11344
      %11452 = vmatprep.subr.bf16.mxu0 %v11349
      %11453 = vmatpush1.bf16.msra.mxu0 %v11348
      %11454 = vmatprep.subr.bf16.mxu0 %v11353
      %11455 = vmatpush1.bf16.msra.mxu0 %v11352
      %11456 = vmatprep.subr.bf16.mxu0 %v11357
      %11457 = vmatpush1.bf16.msra.mxu0 %v11356
      %11458 = vmatprep.subr.bf16.mxu0 %v11361
      %11459 = vmatpush1.bf16.msra.mxu0 %v11360
      %11460 = vmatprep.mubr.bf16.mxu0 %v11105
      %11461 = vmatmul.mubr.bf16.gmra.mrb[0].mxu0 %v11104
      %v11462 = vpop.f32.mrb[0].mxu0
      %v11463 = vadd.f32 0.0, %v11462
      %v11464 = vpop.f32.mrb[0].mxu0
      %v11465 = vadd.f32 0.0, %v11464
      %v11466 = vpop.f32.mrb[0].mxu0
      %v11467 = vpop.f32.mrb[0].mxu0
      %11468 = vdwg.mxu0
      %11469 = vmatprep.subr.bf16.mxu0 %v11303
      %11470 = vmatpush1.bf16.msra.mxu0 %v11302
      %11471 = vmatprep.subr.bf16.mxu0 %v11307
      %11472 = vmatpush1.bf16.msra.mxu0 %v11306
      %11473 = vmatprep.subr.bf16.mxu0 %v11311
      %11474 = vmatpush1.bf16.msra.mxu0 %v11310
      %11475 = vmatprep.subr.bf16.mxu0 %v11315
      %11476 = vmatpush1.bf16.msra.mxu0 %v11314
      %11477 = vmatprep.subr.bf16.mxu0 %v11319
      %11478 = vmatpush1.bf16.msra.mxu0 %v11318
      %11479 = vmatprep.subr.bf16.mxu0 %v11323
      %11480 = vmatpush1.bf16.msra.mxu0 %v11322
      %11481 = vmatprep.subr.bf16.mxu0 %v11327
      %11482 = vmatpush1.bf16.msra.mxu0 %v11326
      %11483 = vmatprep.subr.bf16.mxu0 %v11331
      %11484 = vmatpush1.bf16.msra.mxu0 %v11330
      %11485 = vmatprep.subr.bf16.mxu0 %v11335
      %11486 = vmatpush1.bf16.msra.mxu0 %v11334
      %11487 = vmatprep.subr.bf16.mxu0 %v11339
      %11488 = vmatpush1.bf16.msra.mxu0 %v11338
      %11489 = vmatprep.subr.bf16.mxu0 %v11343
      %11490 = vmatpush1.bf16.msra.mxu0 %v11342
      %11491 = vmatprep.subr.bf16.mxu0 %v11347
      %11492 = vmatpush1.bf16.msra.mxu0 %v11346
      %11493 = vmatprep.subr.bf16.mxu0 %v11351
      %11494 = vmatpush1.bf16.msra.mxu0 %v11350
      %11495 = vmatprep.subr.bf16.mxu0 %v11355
      %11496 = vmatpush1.bf16.msra.mxu0 %v11354
      %11497 = vmatprep.subr.bf16.mxu0 %v11359
      %11498 = vmatpush1.bf16.msra.mxu0 %v11358
      %11499 = vmatprep.subr.bf16.mxu0 %v11363
      %11500 = vmatpush1.bf16.msra.mxu0 %v11362
      %11501 = vmatprep.mubr.bf16.mxu0 %v11105
      %11502 = vmatmul.mubr.bf16.gmra.mrb[0].mxu0 %v11104
      %v11503 = vpop.f32.mrb[0].mxu0
      %v11504 = vadd.f32 0.0, %v11503
      %v11505 = vpop.f32.mrb[0].mxu0
      %v11506 = vadd.f32 0.0, %v11505
      %v11507 = vpop.f32.mrb[0].mxu0
      %v11508 = vpop.f32.mrb[0].mxu0
      %11509 = vdwg.mxu0
      %v11510 = vadd.f32 %v11036, %v11463
      %v11511 = vadd.f32 %v11037, %v11465
      %v11512 = vadd.f32 %v11038, %v11504
      %v11513 = vadd.f32 %v11039, %v11506
      %v11514 = vld [vmem:[%s6] sm:$0xf]
      %v11516 = vlaneseq
      %v11517 = vshrl.u32 %v11516, 7
      %v11518 = vsub.s32 0, %v11517
      %v11519 = vrot.slane %v11514, %v11518
      %v11520 = vlaneseq
      %v11521 = vshrl.u32 %v11520, 7
      %v11522 = vsub.s32 1, %v11521
      %v11523 = vrot.slane %v11514, %v11522
      %v11524 = vlaneseq
      %v11525 = vshrl.u32 %v11524, 7
      %v11526 = vsub.s32 2, %v11525
      %v11527 = vrot.slane %v11514, %v11526
      %v11528 = vlaneseq
      %v11529 = vshrl.u32 %v11528, 7
      %v11530 = vsub.s32 3, %v11529
      %v11531 = vrot.slane %v11514, %v11530
      %v11536 = vadd.f32 %v11510, %v11519
      %v11537 = vadd.f32 %v11511, %v11523
      %v11538 = vadd.f32 %v11512, %v11527
      %v11539 = vadd.f32 %v11513, %v11531
      %v11544 = vcombine.low %v11536, %v11537
      %v11545 = vcombine.low %v11538, %v11539
      %v11547 = vunpack.c.l.s4 1966171168
      %v11548 = vunpack.c.0.s8 %v11547
      %v11549 = vlaneseq
      %v11550 = vshrl.u32 %v11549, 7
      %v11551 = vsub.s32 %v11548, %v11550
      %v11552 = vrot.slane %v11544, %v11551
      %v11554 = vunpack.c.l.s4 1966171168
      %v11555 = vunpack.c.0.s8 %v11554
      %v11556 = vlaneseq
      %v11557 = vshrl.u32 %v11556, 7
      %v11558 = vsub.s32 %v11555, %v11557
      %v11559 = vrot.slane %v11545, %v11558
      %v11560 = vcombine.low %v11552, %v11559
      %v11562 = vunpack.c.l.s4 1966171168
      %v11563 = vunpack.c.0.s8 %v11562
      %v11564 = vlaneseq
      %v11565 = vshrl.u32 %v11564, 7
      %v11566 = vsub.s32 %v11563, %v11565
      %v11567 = vrot.slane %v11560, %v11566
      %v11569 = vlaneseq
      %vm11570 = vcmp.ge.s32.totalorder %v11569, 0
      %vm11571 = vcmp.lt.s32.totalorder %v11569, 512
      %vm11572 = vmand %vm11570, %vm11571
      %11573 = vst.msk [vmem:[%s276] sm:$0xf] %vm11572, %v11567
      %p11574 = scmp.lt.s32.totalorder %s18, 1
      %s11575 = scalar_select %p11574, %s18, 1
      %s11576 = smul.addr %s11575, 4
      %s11577 = scalar_lea.vmem %s7, %s11576
      // Predicated region
      $region49: #{lenet_encoder_forward.1} parent=47 // pred_check
        %p11578 = pneg %p188
      $region50: #{lenet_encoder_forward.1} parent=47 // pred_check_branch
        %11580 = sbr.rel (%p11578) target = $region52
      $region51: #{lenet_encoder_forward.1} parent=47 // pred_region
        _
      $region52: #{lenet_encoder_forward.1} parent=47 // pred_fallthru
        _
    $region48: #{lenet_encoder_forward.1} parent=5 // pred_fallthru
      _
    %p11581 = scmp.le.s32.totalorder 2, %s13
    // Predicated region
    $region53: #{lenet_encoder_forward.1} parent=5 // pred_check
      %p11582 = pneg %p11581
    $region54: #{lenet_encoder_forward.1} parent=5 // pred_check_branch
      %11584 = sbr.rel (%p11582) target = $region56
    $region55: #{lenet_encoder_forward.1} parent=5 // pred_region
      %s11585 = ssub.s32 %s13, 2
      // Predicated region
      $region57: #{lenet_encoder_forward.1} parent=55 // pred_check
        %p11586 = pneg %p194
      $region58: #{lenet_encoder_forward.1} parent=55 // pred_check_branch
        %11588 = sbr.rel (%p11586) target = $region60
      $region59: #{lenet_encoder_forward.1} parent=55 // pred_region
        %p11589 = scmp.lt.s32.totalorder %s19, 1
        %s11590 = scalar_select %p11589, %s19, 1
        %s11591 = smul.addr %s11590, 4
        %s11592 = scalar_lea.vmem %s7, %s11591
      $region60: #{lenet_encoder_forward.1} parent=55 // pred_fallthru
        _
    $region56: #{lenet_encoder_forward.1} parent=5 // pred_fallthru
      _
  $region6: #{lenet_encoder_forward.1} parent=0 // loop_footer
    %s17 = sadd.s32 1, %s13
  $region7: #{lenet_encoder_forward.1} parent=0 // loop_footer_branch
    %12 = sbr.rel target = $region3
  $region8: #{lenet_encoder_forward.1} parent=0 // loop_exit
    _

</llo_original>
